<compile_context>
chip_gen: v5e
topology: v5e:2x2
jax: 0.10.0
libtpu: 0.0.40
codegen_flags: <defaults>
</compile_context>

<pallas_src>
import functools

import numpy as np
import jax
import jax.numpy as jnp
from jax.experimental import pallas as pl
from jax.experimental.pallas import tpu as pltpu

# Module defaults (match the PyTorch module's defaults)
USE_NOISE = True
USE_PIXEL_NORM = False
USE_INSTANCE_NORM = True
USE_STYLES = True
LRELU_SLOPE = 0.2

ACT_DTYPE = jnp.bfloat16      # inter-layer activations / MXU operands (f32 accumulation)
RGB_LANES = 128               # lane-dense padded output width for the 1x1 to_rgb convs


def _default_vmem_limit():
    cap = 64 * 1024 * 1024
    try:
        cap = int(pltpu.get_tpu_info().vmem_capacity_bytes)
    except Exception:
        pass
    # ~3/4 of physical VMEM, capped at 100 MiB (v5e/v6e: 96-100 MiB; v7x: ~48 MiB).
    return int(min(100 * 1024 * 1024, cap * 3 // 4))


_VMEM_LIMIT = _default_vmem_limit()


def _cparams(n_grid):
    return pltpu.CompilerParams(
        dimension_semantics=("parallel",) * n_grid,
        vmem_limit_bytes=_VMEM_LIMIT)


# ----------------------------------------------------------------------------- pallas kernels

def _epilogue_f32(h, nw, nz, style, valid, inv_n):
    """Fused LayerEpilogue tail (all math in f32; v5e-safe).

    h:     (R, C)  f32 pre-activation rows (R = H*(W+2); garbage cols masked by `valid`)
    nw:    (1, C)  per-channel noise weights
    nz:    (R, 1)  per-pixel noise (shared across channels)
    style: (1, 2C) precomputed StyleMod linear output for this sample
    valid: (R, 1)  1.0 for real pixels, 0.0 for the padded garbage columns
    inv_n: 1 / (H*W)
    """
    C = h.shape[-1]
    if USE_NOISE:
        h = h + nw * nz
    # LeakyReLU(0.2)
    h = jnp.where(h >= 0.0, h, LRELU_SLOPE * h)
    if USE_PIXEL_NORM:
        h = h * jax.lax.rsqrt(jnp.mean(h * h, axis=-1, keepdims=True) + 1e-8)
    if USE_INSTANCE_NORM:
        # Masked per-channel mean/var over the H*W valid pixels (biased, eps=1e-5 like PyTorch).
        mean = jnp.sum(h * valid, axis=0, keepdims=True) * inv_n
        hc = h - mean
        var = jnp.sum(hc * hc * valid, axis=0, keepdims=True) * inv_n
        h = hc * jax.lax.rsqrt(var + 1e-5)
    if USE_STYLES:
        ys = style[:, :C]
        yb = style[:, C:]
        h = h * (ys + 1.0) + yb
    # Re-zero the garbage columns: they are the next conv's horizontal zero padding.
    return h * valid


def _conv_epi_kernel(x_ref, w_ref, b_ref, nw_ref, style_ref, nz_ref, valid_ref, o_ref, xp_ref,
                     *, H, W):
    """Fused {3x3 same-conv + bias + LayerEpilogue} for one batch element.

    x_ref:     (H*Wp, Cin)   row-padded flat activation (Wp = W+2, trailing cols are zero), bf16
    w_ref:     (9, Cin, Cout) conv weight, one (Cin, Cout) slab per tap, bf16
    b_ref:     (1, Cout)     conv bias (f32)
    nw_ref:    (1, Cout)     noise weights (f32)
    style_ref: (1, 2*Cout)   hoisted StyleMod linear output (f32)
    nz_ref:    (H*Wp, 1)     per-pixel noise (f32)
    valid_ref: (H*Wp, 1)     valid-pixel mask (f32)
    o_ref:     (H*Wp, Cout)  bf16 output (garbage cols zeroed)
    xp_ref:    VMEM scratch, ((H+3)*Wp, Cin) bf16  -> zero-padded activation
    """
    Wp = W + 2
    HWp = H * Wp

    # Build the zero-padded activation in VMEM with one zero-fill + ONE contiguous store:
    # placing the row-padded flat input at offset Wp+1 reproduces exactly the (H+2, W+2)
    # zero-padded image in flattened row-major order (the 2 trailing zero cols of row r
    # become right-pad of row r and left-pad of row r+1).
    xp_ref[...] = jnp.zeros_like(xp_ref)
    xp_ref[pl.ds(Wp + 1, HWp), :] = x_ref[...]

    # 9 tap-accumulated MXU matmuls; each tap is a single contiguous 2D slice (no im2col).
    acc = None
    for kh in range(3):
        for kw in range(3):
            tap = xp_ref[pl.ds(kh * Wp + kw, HWp), :]                       # (HWp, Cin) bf16
            part = jnp.dot(tap, w_ref[kh * 3 + kw],
                           preferred_element_type=jnp.float32)              # f32 accumulation
            acc = part if acc is None else acc + part

    h = acc + b_ref[...]
    h = _epilogue_f32(h, nw_ref[...], nz_ref[...], style_ref[...],
                      valid_ref[...], 1.0 / float(H * W))
    o_ref[...] = h.astype(o_ref.dtype)


def _epi_kernel(x_ref, nw_ref, style_ref, nz_ref, valid_ref, o_ref, *, inv_n):
    """LayerEpilogue only (InputBlock's first epilogue on the learned const)."""
    h = x_ref[...].astype(jnp.float32)
    h = _epilogue_f32(h, nw_ref[...], nz_ref[...], style_ref[...], valid_ref[...], inv_n)
    o_ref[...] = h.astype(o_ref.dtype)


def _rgb_kernel(x_ref, w_ref, b_ref, o_ref):
    """Equalized 1x1 conv (to_rgb): lane-dense (rows, 128) output slab."""
    o_ref[...] = (jnp.dot(x_ref[...], w_ref[...], preferred_element_type=jnp.float32)
                  + b_ref[...])


def _rgb_blend_kernel(alpha_ref, xs_ref, ws_ref, bs_ref, xr_ref, wr_ref, br_ref, o_ref):
    """Fused fade-in: alpha * to_rgb(straight) + (1 - alpha) * to_rgb(residual).

    alpha lives in SMEM so distinct alpha values never force a recompile.
    """
    a = alpha_ref[0]
    straight = jnp.dot(xs_ref[...], ws_ref[...], preferred_element_type=jnp.float32) + bs_ref[...]
    residual = jnp.dot(xr_ref[...], wr_ref[...], preferred_element_type=jnp.float32) + br_ref[...]
    o_ref[...] = a * straight + (1.0 - a) * residual


# ----------------------------------------------------------------------------- layout helpers

def _rowpad_flat_from_nhwc(x):
    """(B, H, W, C) -> (B, H*(W+2), C) with 2 zero columns appended to every row."""
    B, H, W, C = x.shape
    xp = jnp.pad(x, ((0, 0), (0, 0), (0, 2), (0, 0)))
    return xp.reshape(B, H * (W + 2), C)


def _nhwc_from_rowpad_flat(x_flat, H, W):
    B = x_flat.shape[0]
    C = x_flat.shape[-1]
    return x_flat.reshape(B, H, W + 2, C)[:, :, :W, :]


def _valid_mask(H, W):
    """(H*(W+2), 1) f32: 1 for real pixels, 0 for the padded garbage columns."""
    Wp = W + 2
    m = np.zeros((H, Wp, 1), np.float32)
    m[:, :W, :] = 1.0
    return jnp.asarray(m.reshape(H * Wp, 1))


def upsample2x_rowpad(x_flat, H, W):
    """Nearest-neighbor 2x upsample, staying in row-padded flat layout (bf16, one XLA fusion)."""
    # TODO(synk): fuse into conv0's read path (phase-weight decomposition) to remove this
    #             HBM round trip entirely.
    x = _nhwc_from_rowpad_flat(x_flat, H, W)
    x = jnp.repeat(jnp.repeat(x, 2, axis=1), 2, axis=2)
    return _rowpad_flat_from_nhwc(x)


# ----------------------------------------------------------------------------- op wrappers

def conv_epilogue(x_flat, conv_p, epi_p, style, noise, H, W):
    """One fused pallas_call per batch grid step: 3x3 conv + bias + full LayerEpilogue."""
    B, HWp, Cin = x_flat.shape
    Wp = W + 2
    assert HWp == H * Wp
    Cout = conv_p['w'].shape[-1]
    w_taps = conv_p['w'].reshape(9, Cin, Cout).astype(ACT_DTYPE)

    kern = functools.partial(_conv_epi_kernel, H=H, W=W)
    out = pl.pallas_call(
        kern,
        out_shape=jax.ShapeDtypeStruct((B, HWp, Cout), ACT_DTYPE),
        grid=(B,),
        in_specs=[
            pl.BlockSpec((None, HWp, Cin), lambda b: (b, 0, 0)),       # per-sample activation
            pl.BlockSpec((9, Cin, Cout), lambda b: (0, 0, 0)),         # conv weight (per tap)
            pl.BlockSpec((1, Cout), lambda b: (0, 0)),                 # conv bias
            pl.BlockSpec((1, Cout), lambda b: (0, 0)),                 # noise weight
            pl.BlockSpec((None, 1, 2 * Cout), lambda b: (b, 0, 0)),    # hoisted style vector
            pl.BlockSpec((None, HWp, 1), lambda b: (b, 0, 0)),         # per-pixel noise
            pl.BlockSpec((HWp, 1), lambda b: (0, 0)),                  # valid-pixel mask
        ],
        out_specs=pl.BlockSpec((None, HWp, Cout), lambda b: (b, 0, 0)),
        scratch_shapes=[pltpu.VMEM(((H + 3) * Wp, Cin), ACT_DTYPE)],   # zero-padded activation
        compiler_params=_cparams(1),
    )(x_flat.astype(ACT_DTYPE),
      w_taps,
      conv_p['b'].reshape(1, Cout),
      epi_p['noise_w'].reshape(1, Cout),
      style.reshape(B, 1, 2 * Cout),
      noise,
      _valid_mask(H, W))
    return out


def epilogue_only(x_const_flat, epi_p, style, noise, H, W, B):
    """LayerEpilogue on the learned const (shared across batch; broadcast via index_map)."""
    _, HWp, C = x_const_flat.shape
    kern = functools.partial(_epi_kernel, inv_n=1.0 / float(H * W))
    out = pl.pallas_call(
        kern,
        out_shape=jax.ShapeDtypeStruct((B, HWp, C), ACT_DTYPE),
        grid=(B,),
        in_specs=[
            pl.BlockSpec((None, HWp, C), lambda b: (0, 0, 0)),         # const (broadcast read)
            pl.BlockSpec((1, C), lambda b: (0, 0)),
            pl.BlockSpec((None, 1, 2 * C), lambda b: (b, 0, 0)),
            pl.BlockSpec((None, HWp, 1), lambda b: (b, 0, 0)),
            pl.BlockSpec((HWp, 1), lambda b: (0, 0)),
        ],
        out_specs=pl.BlockSpec((None, HWp, C), lambda b: (b, 0, 0)),
        compiler_params=_cparams(1),
    )(x_const_flat.astype(ACT_DTYPE),
      epi_p['noise_w'].reshape(1, C),
      style.reshape(B, 1, 2 * C),
      noise,
      _valid_mask(H, W))
    return out


def _row_block(n, cap=2048):
    if n <= cap:
        return n
    for cand in (2048, 1024, 512, 256, 128, 64, 32, 16, 8):
        if n % cand == 0:
            return cand
    return n


def _pad_rgb_params(rgb_p, Cin):
    """Zero-pad the 1x1 to_rgb weight/bias to a lane-dense 128-wide output."""
    Cout = rgb_p['w'].shape[-1]
    w = rgb_p['w'].reshape(Cin, Cout)
    w = jnp.pad(w, ((0, 0), (0, RGB_LANES - Cout))).astype(ACT_DTYPE)
    b = jnp.pad(rgb_p['b'], (0, RGB_LANES - Cout)).reshape(1, RGB_LANES)
    return w, b, Cout


def to_rgb(x_flat, rgb_p, H, W):
    """Equalized 1x1 conv (gain=1), row-tiled grid, lane-dense (rb, 128) output."""
    B, HWp, C = x_flat.shape
    N = B * HWp
    w, b, Cout = _pad_rgb_params(rgb_p, C)
    rb = _row_block(N)
    out = pl.pallas_call(
        _rgb_kernel,
        out_shape=jax.ShapeDtypeStruct((N, RGB_LANES), jnp.float32),
        grid=(N // rb,),
        in_specs=[
            pl.BlockSpec((rb, C), lambda i: (i, 0)),
            pl.BlockSpec((C, RGB_LANES), lambda i: (0, 0)),
            pl.BlockSpec((1, RGB_LANES), lambda i: (0, 0)),
        ],
        out_specs=pl.BlockSpec((rb, RGB_LANES), lambda i: (i, 0)),
        compiler_params=_cparams(1),
    )(x_flat.reshape(N, C).astype(ACT_DTYPE), w, b)
    return out[:, :Cout].reshape(B, H, W + 2, Cout)[:, :, :W, :]


def to_rgb_blend(xs_flat, rgb_s, xr_flat, rgb_r, alpha, H, W):
    """Fused fade-in: alpha * to_rgb_s(straight) + (1 - alpha) * to_rgb_r(residual)."""
    B, HWp, Cs = xs_flat.shape
    Cr = xr_flat.shape[-1]
    N = B * HWp
    ws, bs, Cout = _pad_rgb_params(rgb_s, Cs)
    wr, br, _ = _pad_rgb_params(rgb_r, Cr)
    rb = _row_block(N)
    alpha_arr = jnp.asarray(alpha, jnp.float32).reshape(1)
    out = pl.pallas_call(
        _rgb_blend_kernel,
        out_shape=jax.ShapeDtypeStruct((N, RGB_LANES), jnp.float32),
        grid=(N // rb,),
        in_specs=[
            pl.BlockSpec(memory_space=pltpu.MemorySpace.SMEM),          # alpha scalar
            pl.BlockSpec((rb, Cs), lambda i: (i, 0)),
            pl.BlockSpec((Cs, RGB_LANES), lambda i: (0, 0)),
            pl.BlockSpec((1, RGB_LANES), lambda i: (0, 0)),
            pl.BlockSpec((rb, Cr), lambda i: (i, 0)),
            pl.BlockSpec((Cr, RGB_LANES), lambda i: (0, 0)),
            pl.BlockSpec((1, RGB_LANES), lambda i: (0, 0)),
        ],
        out_specs=pl.BlockSpec((rb, RGB_LANES), lambda i: (i, 0)),
        compiler_params=_cparams(1),
    )(alpha_arr,
      xs_flat.reshape(N, Cs).astype(ACT_DTYPE), ws, bs,
      xr_flat.reshape(N, Cr).astype(ACT_DTYPE), wr, br)
    return out[:, :Cout].reshape(B, H, W + 2, Cout)[:, :, :W, :]


def _noise_for(key, layer_idx, B, H, W):
    # NoiseLayer draws fresh (B, 1, H, W) noise each forward; stored here as (B, H*(W+2), 1).
    # TODO(synk): generate in-kernel with pltpu.prng_seed / pltpu.prng_random_bits.
    return jax.random.normal(jax.random.fold_in(key, layer_idx),
                             (B, H * (W + 2), 1), jnp.float32)


def _layer_style(dlatent, epi_p):
    """Hoisted StyleMod equalized linear: (B, D) @ (D, 2C) + (2C), done once per layer in XLA."""
    return dlatent @ epi_p['style_w'] + epi_p['style_b']


# ----------------------------------------------------------------------------- parameters

def init_gsynthesis_params(key, dlatent_size, num_channels, resolution,
                           fmap_base, fmap_decay, fmap_max, gain=float(np.sqrt(2.0))):
    def nf(stage):
        return min(int(fmap_base / 2.0 ** (stage * fmap_decay)), fmap_max)

    resolution_log2 = int(np.log2(resolution))
    assert resolution == 2 ** resolution_log2 and resolution >= 4
    keys = iter(jax.random.split(key, 128))
    nxt = lambda: next(keys)

    def conv_p(cin, cout, k, g):
        kw_, kb_ = jax.random.split(nxt())
        # equalized-lr: randn weight with he_std (wscale) folded into the stored weight
        w = jax.random.normal(kw_, (k, k, cin, cout), jnp.float32) * (g / np.sqrt(cin * k * k))
        b = 0.1 * jax.random.normal(kb_, (cout,), jnp.float32)
        return {'w': w, 'b': b}

    def epi_p(channels):
        k1, k2, k3 = jax.random.split(nxt(), 3)
        return {
            'noise_w': 0.1 * jax.random.normal(k1, (channels,), jnp.float32),
            'style_w': jax.random.normal(k2, (dlatent_size, 2 * channels), jnp.float32)
                       * (1.0 / np.sqrt(dlatent_size)),     # StyleMod linear, gain=1.0, wscale
            'style_b': 0.1 * jax.random.normal(k3, (2 * channels,), jnp.float32),
        }

    params = {
        'init': {
            'const': jax.random.normal(nxt(), (1, 4, 4, nf(1)), jnp.float32),
            'const_bias': 0.1 * jax.random.normal(nxt(), (nf(1),), jnp.float32),
            'epi1': epi_p(nf(1)),
            'conv': conv_p(nf(1), nf(1), 3, gain),
            'epi2': epi_p(nf(1)),
        },
        'blocks': [],
        'to_rgb': [conv_p(nf(1), num_channels, 1, 1.0)],
    }
    for res in range(3, resolution_log2 + 1):
        last_c, ch = nf(res - 2), nf(res - 1)
        params['blocks'].append({
            'conv0': conv_p(last_c, ch, 3, gain),
            'epi1': epi_p(ch),
            'conv1': conv_p(ch, ch, 3, gain),
            'epi2': epi_p(ch),
        })
        params['to_rgb'].append(conv_p(ch, num_channels, 1, 1.0))
    meta = {'depth': resolution_log2 - 1, 'num_layers': resolution_log2 * 2 - 2}
    return params, meta


# ----------------------------------------------------------------------------- forward

def synthesis_block(bp, x_flat, dl2, noise_key, layer_base, H_in, W_in):
    """GSynthesisBlock: 2x upsample -> conv3x3+epilogue -> conv3x3+epilogue (each fused)."""
    x_up = upsample2x_rowpad(x_flat, H_in, W_in)
    H, W = 2 * H_in, 2 * W_in
    B = x_flat.shape[0]
    x = conv_epilogue(x_up, bp['conv0'], bp['epi1'],
                      _layer_style(dl2[:, 0], bp['epi1']),
                      _noise_for(noise_key, layer_base, B, H, W), H, W)
    x = conv_epilogue(x, bp['conv1'], bp['epi2'],
                      _layer_style(dl2[:, 1], bp['epi2']),
                      _noise_for(noise_key, layer_base + 1, B, H, W), H, W)
    return x, H, W


@functools.partial(jax.jit, static_argnames=('depth', 'structure'))
def gsynthesis_forward(params, dlatents_in, alpha=0.0, noise_key=None, depth=0,
                       structure='linear'):
    """dlatents_in: (B, num_layers, dlatent_size). Returns NCHW images like the PyTorch module."""
    if noise_key is None:
        noise_key = jax.random.PRNGKey(0)
    n_blocks = len(params['blocks'])
    assert depth < n_blocks + 1, 'Requested output depth cannot be produced'
    B = dlatents_in.shape[0]
    ip = params['init']
    C0 = ip['const'].shape[-1]

    # InputBlock: learned const (+bias) -> epilogue -> 3x3 conv -> epilogue
    const = ip['const'] + ip['const_bias'].reshape(1, 1, 1, C0)
    const_flat = _rowpad_flat_from_nhwc(const)                        # (1, 4*6, C0)
    x = epilogue_only(const_flat, ip['epi1'],
                      _layer_style(dlatents_in[:, 0], ip['epi1']),
                      _noise_for(noise_key, 0, B, 4, 4), 4, 4, B)
    x = conv_epilogue(x, ip['conv'], ip['epi2'],
                      _layer_style(dlatents_in[:, 1], ip['epi2']),
                      _noise_for(noise_key, 1, B, 4, 4), 4, 4)
    H = W = 4

    if structure == 'fixed':
        for i, bp in enumerate(params['blocks']):
            x, H, W = synthesis_block(bp, x, dlatents_in[:, 2 * (i + 1):2 * (i + 2)],
                                      noise_key, 2 * (i + 1), H, W)
        images = to_rgb(x, params['to_rgb'][-1], H, W)
    elif structure == 'linear':
        if depth > 0:
            for i, bp in enumerate(params['blocks'][:depth - 1]):
                x, H, W = synthesis_block(bp, x, dlatents_in[:, 2 * (i + 1):2 * (i + 2)],
                                          noise_key, 2 * (i + 1), H, W)
            residual_in = upsample2x_rowpad(x, H, W)
            straight_in, Hs, Ws = synthesis_block(params['blocks'][depth - 1], x,
                                                  dlatents_in[:, 2 * depth:2 * (depth + 1)],
                                                  noise_key, 2 * depth, H, W)
            images = to_rgb_blend(straight_in, params['to_rgb'][depth],
                                  residual_in, params['to_rgb'][depth - 1], alpha, Hs, Ws)
        else:
            images = to_rgb(x, params['to_rgb'][0], H, W)
    else:
        raise KeyError('Unknown structure: ', structure)

    return jnp.transpose(images, (0, 3, 1, 2))   # NHWC -> NCHW


# ----------------------------------------------------------------------------- main

if __name__ == "__main__":
    # Small configuration consistent with the module:
    #   resolution=16 -> resolution_log2=4 -> depth=3, num_layers=6
    DLATENT = 32
    NUM_CHANNELS = 3
    RESOLUTION = 16
    B = 2

    params, meta = init_gsynthesis_params(
        jax.random.PRNGKey(1234), DLATENT, NUM_CHANNELS, RESOLUTION,
        fmap_base=256, fmap_decay=1.0, fmap_max=32)

    key = jax.random.PRNGKey(0)
    k_dl, k_noise = jax.random.split(key)
    dlatents_in = jax.random.normal(k_dl, (B, meta['num_layers'], DLATENT), jnp.float32)

    out = gsynthesis_forward(params, dlatents_in, alpha=0.7, noise_key=k_noise, depth=2)
    out = jax.block_until_ready(out)

    assert out.shape == (B, NUM_CHANNELS, RESOLUTION, RESOLUTION), out.shape
    assert bool(jnp.all(jnp.isfinite(out)))
    print("KERNEL_OK")
</pallas_src>

<mosaic_0001>
module attributes {stable_mosaic.version = 11 : i64} {
  func.func @_epi_kernel(%arg0: i32, %arg1: memref<1x24x32xbf16, #tpu.memory_space<vmem>>, %arg2: memref<1x32xf32, #tpu.memory_space<vmem>>, %arg3: memref<1x1x64xf32, #tpu.memory_space<vmem>>, %arg4: memref<1x24x1xf32, #tpu.memory_space<vmem>>, %arg5: memref<24x1xf32, #tpu.memory_space<vmem>>, %arg6: memref<1x24x32xbf16, #tpu.memory_space<vmem>>) attributes {dimension_semantics = [#tpu.dimension_semantics<parallel>], iteration_bounds = array<i64: 2>, scalar_prefetch = 0 : i64, scratch_operands = 0 : i64, tpu.core_type = #tpu.core_type<tc>, window_params = [{pipeline_mode = #tpu.pipeline_mode<synchronous>, transform_indices = @transform_0, window_bounds = array<i64: 1, 24, 32>}, {pipeline_mode = #tpu.pipeline_mode<synchronous>, transform_indices = @transform_1, window_bounds = array<i64: 1, 32>}, {transform_indices = @transform_2, window_bounds = array<i64: 1, 1, 64>}, {transform_indices = @transform_3, window_bounds = array<i64: 1, 24, 1>}, {pipeline_mode = #tpu.pipeline_mode<synchronous>, transform_indices = @transform_4, window_bounds = array<i64: 24, 1>}, {transform_indices = @transform_5, window_bounds = array<i64: 1, 24, 32>}]} {
    %c0 = arith.constant 0 : index
    %c0_0 = arith.constant 0 : index
    %c0_1 = arith.constant 0 : index
    %0 = vector.load %arg1[%c0, %c0_0, %c0_1] : memref<1x24x32xbf16, #tpu.memory_space<vmem>>, vector<1x24x32xbf16>
    %1 = vector.shape_cast %0 : vector<1x24x32xbf16> to vector<24x32xbf16>
    %2 = arith.extf %1 : vector<24x32xbf16> to vector<24x32xf32>
    %c0_2 = arith.constant 0 : index
    %c0_3 = arith.constant 0 : index
    %3 = vector.load %arg2[%c0_2, %c0_3] : memref<1x32xf32, #tpu.memory_space<vmem>>, vector<1x32xf32>
    %c0_4 = arith.constant 0 : index
    %c0_5 = arith.constant 0 : index
    %c0_6 = arith.constant 0 : index
    %4 = vector.load %arg4[%c0_4, %c0_5, %c0_6] : memref<1x24x1xf32, #tpu.memory_space<vmem>>, vector<1x24x1xf32>
    %5 = vector.shape_cast %4 : vector<1x24x1xf32> to vector<24x1xf32>
    %c0_7 = arith.constant 0 : index
    %c0_8 = arith.constant 0 : index
    %c0_9 = arith.constant 0 : index
    %6 = vector.load %arg3[%c0_7, %c0_8, %c0_9] : memref<1x1x64xf32, #tpu.memory_space<vmem>>, vector<1x1x64xf32>
    %7 = vector.shape_cast %6 : vector<1x1x64xf32> to vector<1x64xf32>
    %c0_10 = arith.constant 0 : index
    %c0_11 = arith.constant 0 : index
    %8 = vector.load %arg5[%c0_10, %c0_11] : memref<24x1xf32, #tpu.memory_space<vmem>>, vector<24x1xf32>
    %9 = vector.broadcast %3 : vector<1x32xf32> to vector<24x32xf32>
    %10 = vector.broadcast %5 : vector<24x1xf32> to vector<24x32xf32>
    %11 = arith.mulf %9, %10 : vector<24x32xf32>
    %12 = arith.addf %2, %11 : vector<24x32xf32>
    %cst = arith.constant 0.000000e+00 : f32
    %13 = vector.broadcast %cst : f32 to vector<24x32xf32>
    %14 = arith.cmpf oge, %12, %13 : vector<24x32xf32>
    %cst_12 = arith.constant 2.000000e-01 : f32
    %15 = vector.broadcast %cst_12 : f32 to vector<24x32xf32>
    %16 = arith.mulf %15, %12 : vector<24x32xf32>
    %17 = arith.select %14, %12, %16 : vector<24x32xi1>, vector<24x32xf32>
    %18 = vector.broadcast %8 : vector<24x1xf32> to vector<24x32xf32>
    %19 = arith.mulf %17, %18 : vector<24x32xf32>
    %cst_13 = arith.constant dense<0.000000e+00> : vector<32xf32>
    %20 = vector.multi_reduction <add>, %19, %cst_13 [0] : vector<24x32xf32> to vector<32xf32>
    %21 = vector.shape_cast %20 : vector<32xf32> to vector<1x32xf32>
    %cst_14 = arith.constant 6.250000e-02 : f32
    %22 = vector.broadcast %cst_14 : f32 to vector<1x32xf32>
    %23 = arith.mulf %21, %22 : vector<1x32xf32>
    %24 = vector.broadcast %23 : vector<1x32xf32> to vector<24x32xf32>
    %25 = arith.subf %17, %24 : vector<24x32xf32>
    %26 = arith.mulf %25, %25 : vector<24x32xf32>
    %27 = vector.broadcast %8 : vector<24x1xf32> to vector<24x32xf32>
    %28 = arith.mulf %26, %27 : vector<24x32xf32>
    %cst_15 = arith.constant dense<0.000000e+00> : vector<32xf32>
    %29 = vector.multi_reduction <add>, %28, %cst_15 [0] : vector<24x32xf32> to vector<32xf32>
    %30 = vector.shape_cast %29 : vector<32xf32> to vector<1x32xf32>
    %cst_16 = arith.constant 6.250000e-02 : f32
    %31 = vector.broadcast %cst_16 : f32 to vector<1x32xf32>
    %32 = arith.mulf %30, %31 : vector<1x32xf32>
    %cst_17 = arith.constant 9.99999974E-6 : f32
    %33 = vector.broadcast %cst_17 : f32 to vector<1x32xf32>
    %34 = arith.addf %32, %33 : vector<1x32xf32>
    %35 = math.rsqrt %34 : vector<1x32xf32>
    %36 = vector.broadcast %35 : vector<1x32xf32> to vector<24x32xf32>
    %37 = arith.mulf %25, %36 : vector<24x32xf32>
    %38 = vector.extract_strided_slice %7 {offsets = [0, 0], sizes = [1, 32], strides = [1, 1]} : vector<1x64xf32> to vector<1x32xf32>
    %39 = vector.extract_strided_slice %7 {offsets = [0, 32], sizes = [1, 32], strides = [1, 1]} : vector<1x64xf32> to vector<1x32xf32>
    %cst_18 = arith.constant 1.000000e+00 : f32
    %40 = vector.broadcast %cst_18 : f32 to vector<1x32xf32>
    %41 = arith.addf %38, %40 : vector<1x32xf32>
    %42 = vector.broadcast %41 : vector<1x32xf32> to vector<24x32xf32>
    %43 = arith.mulf %37, %42 : vector<24x32xf32>
    %44 = vector.broadcast %39 : vector<1x32xf32> to vector<24x32xf32>
    %45 = arith.addf %43, %44 : vector<24x32xf32>
    %46 = vector.broadcast %8 : vector<24x1xf32> to vector<24x32xf32>
    %47 = arith.mulf %45, %46 : vector<24x32xf32>
    %48 = arith.truncf %47 : vector<24x32xf32> to vector<24x32xbf16>
    %c0_19 = arith.constant 0 : index
    %c0_20 = arith.constant 0 : index
    %c0_21 = arith.constant 0 : index
    %49 = vector.load %arg6[%c0_19, %c0_20, %c0_21] : memref<1x24x32xbf16, #tpu.memory_space<vmem>>, vector<1x24x32xbf16>
    %50 = vector.shape_cast %49 : vector<1x24x32xbf16> to vector<24x32xbf16>
    %51 = vector.shape_cast %48 : vector<24x32xbf16> to vector<1x24x32xbf16>
    tpu.vector_store %arg6[%c0_19, %c0_20, %c0_21], %51 {strides = array<i32>} : memref<1x24x32xbf16, #tpu.memory_space<vmem>>, vector<1x24x32xbf16>,
    return
  }
  func.func @transform_0(%arg0: i32) -> (i32, i32, i32) {
    %c0_i32 = arith.constant 0 : i32
    %c0_i32_0 = arith.constant 0 : i32
    %c0_i32_1 = arith.constant 0 : i32
    %c0_i32_2 = arith.constant 0 : i32
    return %c0_i32, %c0_i32_0, %c0_i32_1 : i32, i32, i32
  }
  func.func @transform_1(%arg0: i32) -> (i32, i32) {
    %c0_i32 = arith.constant 0 : i32
    %c0_i32_0 = arith.constant 0 : i32
    %c0_i32_1 = arith.constant 0 : i32
    return %c0_i32, %c0_i32_0 : i32, i32
  }
  func.func @transform_2(%arg0: i32) -> (i32, i32, i32) {
    %c0_i32 = arith.constant 0 : i32
    %c0_i32_0 = arith.constant 0 : i32
    %c0_i32_1 = arith.constant 0 : i32
    return %arg0, %c0_i32, %c0_i32_0 : i32, i32, i32
  }
  func.func @transform_3(%arg0: i32) -> (i32, i32, i32) {
    %c0_i32 = arith.constant 0 : i32
    %c0_i32_0 = arith.constant 0 : i32
    %c0_i32_1 = arith.constant 0 : i32
    return %arg0, %c0_i32, %c0_i32_0 : i32, i32, i32
  }
  func.func @transform_4(%arg0: i32) -> (i32, i32) {
    %c0_i32 = arith.constant 0 : i32
    %c0_i32_0 = arith.constant 0 : i32
    %c0_i32_1 = arith.constant 0 : i32
    return %c0_i32, %c0_i32_0 : i32, i32
  }
  func.func @transform_5(%arg0: i32) -> (i32, i32, i32) {
    %c0_i32 = arith.constant 0 : i32
    %c0_i32_0 = arith.constant 0 : i32
    %c0_i32_1 = arith.constant 0 : i32
    return %arg0, %c0_i32, %c0_i32_0 : i32, i32, i32
  }
}

module attributes {stable_mosaic.version = 11 : i64} {
  func.func @_conv_epi_kernel(%arg0: i32, %arg1: memref<1x24x32xbf16, #tpu.memory_space<vmem>>, %arg2: memref<9x32x32xbf16, #tpu.memory_space<vmem>>, %arg3: memref<1x32xf32, #tpu.memory_space<vmem>>, %arg4: memref<1x32xf32, #tpu.memory_space<vmem>>, %arg5: memref<1x1x64xf32, #tpu.memory_space<vmem>>, %arg6: memref<1x24x1xf32, #tpu.memory_space<vmem>>, %arg7: memref<24x1xf32, #tpu.memory_space<vmem>>, %arg8: memref<1x24x32xbf16, #tpu.memory_space<vmem>>, %arg9: memref<42x32xbf16, #tpu.memory_space<vmem>>) attributes {dimension_semantics = [#tpu.dimension_semantics<parallel>], iteration_bounds = array<i64: 2>, scalar_prefetch = 0 : i64, scratch_operands = 1 : i64, tpu.core_type = #tpu.core_type<tc>, window_params = [{transform_indices = @transform_0, window_bounds = array<i64: 1, 24, 32>}, {pipeline_mode = #tpu.pipeline_mode<synchronous>, transform_indices = @transform_1, window_bounds = array<i64: 9, 32, 32>}, {pipeline_mode = #tpu.pipeline_mode<synchronous>, transform_indices = @transform_2, window_bounds = array<i64: 1, 32>}, {pipeline_mode = #tpu.pipeline_mode<synchronous>, transform_indices = @transform_3, window_bounds = array<i64: 1, 32>}, {transform_indices = @transform_4, window_bounds = array<i64: 1, 1, 64>}, {transform_indices = @transform_5, window_bounds = array<i64: 1, 24, 1>}, {pipeline_mode = #tpu.pipeline_mode<synchronous>, transform_indices = @transform_6, window_bounds = array<i64: 24, 1>}, {transform_indices = @transform_7, window_bounds = array<i64: 1, 24, 32>}]} {
    %cst = arith.constant 0.000000e+00 : bf16
    %0 = vector.broadcast %cst : bf16 to vector<42x32xbf16>
    %c0 = arith.constant 0 : index
    %c0_0 = arith.constant 0 : index
    %1 = vector.load %arg9[%c0, %c0_0] : memref<42x32xbf16, #tpu.memory_space<vmem>>, vector<42x32xbf16>
    tpu.vector_store %arg9[%c0, %c0_0], %0 {strides = array<i32>} : memref<42x32xbf16, #tpu.memory_space<vmem>>, vector<42x32xbf16>,
    %c0_1 = arith.constant 0 : index
    %c0_2 = arith.constant 0 : index
    %c0_3 = arith.constant 0 : index
    %2 = vector.load %arg1[%c0_1, %c0_2, %c0_3] : memref<1x24x32xbf16, #tpu.memory_space<vmem>>, vector<1x24x32xbf16>
    %3 = vector.shape_cast %2 : vector<1x24x32xbf16> to vector<24x32xbf16>
    %c7 = arith.constant 7 : index
    %c0_4 = arith.constant 0 : index
    %4 = vector.load %arg9[%c7, %c0_4] : memref<42x32xbf16, #tpu.memory_space<vmem>>, vector<24x32xbf16>
    tpu.vector_store %arg9[%c7, %c0_4], %3 {strides = array<i32>} : memref<42x32xbf16, #tpu.memory_space<vmem>>, vector<24x32xbf16>,
    %c0_5 = arith.constant 0 : index
    %c0_6 = arith.constant 0 : index
    %5 = vector.load %arg9[%c0_5, %c0_6] : memref<42x32xbf16, #tpu.memory_space<vmem>>, vector<24x32xbf16>
    %c0_7 = arith.constant 0 : index
    %c0_8 = arith.constant 0 : index
    %c0_9 = arith.constant 0 : index
    %6 = vector.load %arg2[%c0_7, %c0_8, %c0_9] : memref<9x32x32xbf16, #tpu.memory_space<vmem>>, vector<1x32x32xbf16>
    %7 = vector.shape_cast %6 : vector<1x32x32xbf16> to vector<32x32xbf16>
    %cst_10 = arith.constant dense<0.000000e+00> : vector<24x32xf32>
    %8 = tpu.matmul %5, %7, %cst_10 {dimension_numbers = #tpu.dot_dimension_numbers<[1], [0], [0], [1], [0, 0, 1, 1], [], []>} : vector<24x32xbf16>, vector<32x32xbf16>, vector<24x32xf32> -> vector<24x32xf32>
    %c1 = arith.constant 1 : index
    %c0_11 = arith.constant 0 : index
    %9 = vector.load %arg9[%c1, %c0_11] : memref<42x32xbf16, #tpu.memory_space<vmem>>, vector<24x32xbf16>
    %c1_12 = arith.constant 1 : index
    %c0_13 = arith.constant 0 : index
    %c0_14 = arith.constant 0 : index
    %10 = vector.load %arg2[%c1_12, %c0_13, %c0_14] : memref<9x32x32xbf16, #tpu.memory_space<vmem>>, vector<1x32x32xbf16>
    %11 = vector.shape_cast %10 : vector<1x32x32xbf16> to vector<32x32xbf16>
    %cst_15 = arith.constant dense<0.000000e+00> : vector<24x32xf32>
    %12 = tpu.matmul %9, %11, %cst_15 {dimension_numbers = #tpu.dot_dimension_numbers<[1], [0], [0], [1], [0, 0, 1, 1], [], []>} : vector<24x32xbf16>, vector<32x32xbf16>, vector<24x32xf32> -> vector<24x32xf32>
    %13 = arith.addf %8, %12 : vector<24x32xf32>
    %c2 = arith.constant 2 : index
    %c0_16 = arith.constant 0 : index
    %14 = vector.load %arg9[%c2, %c0_16] : memref<42x32xbf16, #tpu.memory_space<vmem>>, vector<24x32xbf16>
    %c2_17 = arith.constant 2 : index
    %c0_18 = arith.constant 0 : index
    %c0_19 = arith.constant 0 : index
    %15 = vector.load %arg2[%c2_17, %c0_18, %c0_19] : memref<9x32x32xbf16, #tpu.memory_space<vmem>>, vector<1x32x32xbf16>
    %16 = vector.shape_cast %15 : vector<1x32x32xbf16> to vector<32x32xbf16>
    %cst_20 = arith.constant dense<0.000000e+00> : vector<24x32xf32>
    %17 = tpu.matmul %14, %16, %cst_20 {dimension_numbers = #tpu.dot_dimension_numbers<[1], [0], [0], [1], [0, 0, 1, 1], [], []>} : vector<24x32xbf16>, vector<32x32xbf16>, vector<24x32xf32> -> vector<24x32xf32>
    %18 = arith.addf %13, %17 : vector<24x32xf32>
    %c6 = arith.constant 6 : index
    %c0_21 = arith.constant 0 : index
    %19 = vector.load %arg9[%c6, %c0_21] : memref<42x32xbf16, #tpu.memory_space<vmem>>, vector<24x32xbf16>
    %c3 = arith.constant 3 : index
    %c0_22 = arith.constant 0 : index
    %c0_23 = arith.constant 0 : index
    %20 = vector.load %arg2[%c3, %c0_22, %c0_23] : memref<9x32x32xbf16, #tpu.memory_space<vmem>>, vector<1x32x32xbf16>
    %21 = vector.shape_cast %20 : vector<1x32x32xbf16> to vector<32x32xbf16>
    %cst_24 = arith.constant dense<0.000000e+00> : vector<24x32xf32>
    %22 = tpu.matmul %19, %21, %cst_24 {dimension_numbers = #tpu.dot_dimension_numbers<[1], [0], [0], [1], [0, 0, 1, 1], [], []>} : vector<24x32xbf16>, vector<32x32xbf16>, vector<24x32xf32> -> vector<24x32xf32>
    %23 = arith.addf %18, %22 : vector<24x32xf32>
    %c7_25 = arith.constant 7 : index
    %c0_26 = arith.constant 0 : index
    %24 = vector.load %arg9[%c7_25, %c0_26] : memref<42x32xbf16, #tpu.memory_space<vmem>>, vector<24x32xbf16>
    %c4 = arith.constant 4 : index
    %c0_27 = arith.constant 0 : index
    %c0_28 = arith.constant 0 : index
    %25 = vector.load %arg2[%c4, %c0_27, %c0_28] : memref<9x32x32xbf16, #tpu.memory_space<vmem>>, vector<1x32x32xbf16>
    %26 = vector.shape_cast %25 : vector<1x32x32xbf16> to vector<32x32xbf16>
    %cst_29 = arith.constant dense<0.000000e+00> : vector<24x32xf32>
    %27 = tpu.matmul %24, %26, %cst_29 {dimension_numbers = #tpu.dot_dimension_numbers<[1], [0], [0], [1], [0, 0, 1, 1], [], []>} : vector<24x32xbf16>, vector<32x32xbf16>, vector<24x32xf32> -> vector<24x32xf32>
    %28 = arith.addf %23, %27 : vector<24x32xf32>
    %c8 = arith.constant 8 : index
    %c0_30 = arith.constant 0 : index
    %29 = vector.load %arg9[%c8, %c0_30] : memref<42x32xbf16, #tpu.memory_space<vmem>>, vector<24x32xbf16>
    %c5 = arith.constant 5 : index
    %c0_31 = arith.constant 0 : index
    %c0_32 = arith.constant 0 : index
    %30 = vector.load %arg2[%c5, %c0_31, %c0_32] : memref<9x32x32xbf16, #tpu.memory_space<vmem>>, vector<1x32x32xbf16>
    %31 = vector.shape_cast %30 : vector<1x32x32xbf16> to vector<32x32xbf16>
    %cst_33 = arith.constant dense<0.000000e+00> : vector<24x32xf32>
    %32 = tpu.matmul %29, %31, %cst_33 {dimension_numbers = #tpu.dot_dimension_numbers<[1], [0], [0], [1], [0, 0, 1, 1], [], []>} : vector<24x32xbf16>, vector<32x32xbf16>, vector<24x32xf32> -> vector<24x32xf32>
    %33 = arith.addf %28, %32 : vector<24x32xf32>
    %c12 = arith.constant 12 : index
    %c0_34 = arith.constant 0 : index
    %34 = vector.load %arg9[%c12, %c0_34] : memref<42x32xbf16, #tpu.memory_space<vmem>>, vector<24x32xbf16>
    %c6_35 = arith.constant 6 : index
    %c0_36 = arith.constant 0 : index
    %c0_37 = arith.constant 0 : index
    %35 = vector.load %arg2[%c6_35, %c0_36, %c0_37] : memref<9x32x32xbf16, #tpu.memory_space<vmem>>, vector<1x32x32xbf16>
    %36 = vector.shape_cast %35 : vector<1x32x32xbf16> to vector<32x32xbf16>
    %cst_38 = arith.constant dense<0.000000e+00> : vector<24x32xf32>
    %37 = tpu.matmul %34, %36, %cst_38 {dimension_numbers = #tpu.dot_dimension_numbers<[1], [0], [0], [1], [0, 0, 1, 1], [], []>} : vector<24x32xbf16>, vector<32x32xbf16>, vector<24x32xf32> -> vector<24x32xf32>
    %38 = arith.addf %33, %37 : vector<24x32xf32>
    %c13 = arith.constant 13 : index
    %c0_39 = arith.constant 0 : index
    %39 = vector.load %arg9[%c13, %c0_39] : memref<42x32xbf16, #tpu.memory_space<vmem>>, vector<24x32xbf16>
    %c7_40 = arith.constant 7 : index
    %c0_41 = arith.constant 0 : index
    %c0_42 = arith.constant 0 : index
    %40 = vector.load %arg2[%c7_40, %c0_41, %c0_42] : memref<9x32x32xbf16, #tpu.memory_space<vmem>>, vector<1x32x32xbf16>
    %41 = vector.shape_cast %40 : vector<1x32x32xbf16> to vector<32x32xbf16>
    %cst_43 = arith.constant dense<0.000000e+00> : vector<24x32xf32>
    %42 = tpu.matmul %39, %41, %cst_43 {dimension_numbers = #tpu.dot_dimension_numbers<[1], [0], [0], [1], [0, 0, 1, 1], [], []>} : vector<24x32xbf16>, vector<32x32xbf16>, vector<24x32xf32> -> vector<24x32xf32>
    %43 = arith.addf %38, %42 : vector<24x32xf32>
    %c14 = arith.constant 14 : index
    %c0_44 = arith.constant 0 : index
    %44 = vector.load %arg9[%c14, %c0_44] : memref<42x32xbf16, #tpu.memory_space<vmem>>, vector<24x32xbf16>
    %c8_45 = arith.constant 8 : index
    %c0_46 = arith.constant 0 : index
    %c0_47 = arith.constant 0 : index
    %45 = vector.load %arg2[%c8_45, %c0_46, %c0_47] : memref<9x32x32xbf16, #tpu.memory_space<vmem>>, vector<1x32x32xbf16>
    %46 = vector.shape_cast %45 : vector<1x32x32xbf16> to vector<32x32xbf16>
    %cst_48 = arith.constant dense<0.000000e+00> : vector<24x32xf32>
    %47 = tpu.matmul %44, %46, %cst_48 {dimension_numbers = #tpu.dot_dimension_numbers<[1], [0], [0], [1], [0, 0, 1, 1], [], []>} : vector<24x32xbf16>, vector<32x32xbf16>, vector<24x32xf32> -> vector<24x32xf32>
    %48 = arith.addf %43, %47 : vector<24x32xf32>
    %c0_49 = arith.constant 0 : index
    %c0_50 = arith.constant 0 : index
    %49 = vector.load %arg3[%c0_49, %c0_50] : memref<1x32xf32, #tpu.memory_space<vmem>>, vector<1x32xf32>
    %50 = vector.broadcast %49 : vector<1x32xf32> to vector<24x32xf32>
    %51 = arith.addf %48, %50 : vector<24x32xf32>
    %c0_51 = arith.constant 0 : index
    %c0_52 = arith.constant 0 : index
    %52 = vector.load %arg4[%c0_51, %c0_52] : memref<1x32xf32, #tpu.memory_space<vmem>>, vector<1x32xf32>
    %c0_53 = arith.constant 0 : index
    %c0_54 = arith.constant 0 : index
    %c0_55 = arith.constant 0 : index
    %53 = vector.load %arg6[%c0_53, %c0_54, %c0_55] : memref<1x24x1xf32, #tpu.memory_space<vmem>>, vector<1x24x1xf32>
    %54 = vector.shape_cast %53 : vector<1x24x1xf32> to vector<24x1xf32>
    %c0_56 = arith.constant 0 : index
    %c0_57 = arith.constant 0 : index
    %c0_58 = arith.constant 0 : index
    %55 = vector.load %arg5[%c0_56, %c0_57, %c0_58] : memref<1x1x64xf32, #tpu.memory_space<vmem>>, vector<1x1x64xf32>
    %56 = vector.shape_cast %55 : vector<1x1x64xf32> to vector<1x64xf32>
    %c0_59 = arith.constant 0 : index
    %c0_60 = arith.constant 0 : index
    %57 = vector.load %arg7[%c0_59, %c0_60] : memref<24x1xf32, #tpu.memory_space<vmem>>, vector<24x1xf32>
    %58 = vector.broadcast %52 : vector<1x32xf32> to vector<24x32xf32>
    %59 = vector.broadcast %54 : vector<24x1xf32> to vector<24x32xf32>
    %60 = arith.mulf %58, %59 : vector<24x32xf32>
    %61 = arith.addf %51, %60 : vector<24x32xf32>
    %cst_61 = arith.constant 0.000000e+00 : f32
    %62 = vector.broadcast %cst_61 : f32 to vector<24x32xf32>
    %63 = arith.cmpf oge, %61, %62 : vector<24x32xf32>
    %cst_62 = arith.constant 2.000000e-01 : f32
    %64 = vector.broadcast %cst_62 : f32 to vector<24x32xf32>
    %65 = arith.mulf %64, %61 : vector<24x32xf32>
    %66 = arith.select %63, %61, %65 : vector<24x32xi1>, vector<24x32xf32>
    %67 = vector.broadcast %57 : vector<24x1xf32> to vector<24x32xf32>
    %68 = arith.mulf %66, %67 : vector<24x32xf32>
    %cst_63 = arith.constant dense<0.000000e+00> : vector<32xf32>
    %69 = vector.multi_reduction <add>, %68, %cst_63 [0] : vector<24x32xf32> to vector<32xf32>
    %70 = vector.shape_cast %69 : vector<32xf32> to vector<1x32xf32>
    %cst_64 = arith.constant 6.250000e-02 : f32
    %71 = vector.broadcast %cst_64 : f32 to vector<1x32xf32>
    %72 = arith.mulf %70, %71 : vector<1x32xf32>
    %73 = vector.broadcast %72 : vector<1x32xf32> to vector<24x32xf32>
    %74 = arith.subf %66, %73 : vector<24x32xf32>
    %75 = arith.mulf %74, %74 : vector<24x32xf32>
    %76 = vector.broadcast %57 : vector<24x1xf32> to vector<24x32xf32>
    %77 = arith.mulf %75, %76 : vector<24x32xf32>
    %cst_65 = arith.constant dense<0.000000e+00> : vector<32xf32>
    %78 = vector.multi_reduction <add>, %77, %cst_65 [0] : vector<24x32xf32> to vector<32xf32>
    %79 = vector.shape_cast %78 : vector<32xf32> to vector<1x32xf32>
    %cst_66 = arith.constant 6.250000e-02 : f32
    %80 = vector.broadcast %cst_66 : f32 to vector<1x32xf32>
    %81 = arith.mulf %79, %80 : vector<1x32xf32>
    %cst_67 = arith.constant 9.99999974E-6 : f32
    %82 = vector.broadcast %cst_67 : f32 to vector<1x32xf32>
    %83 = arith.addf %81, %82 : vector<1x32xf32>
    %84 = math.rsqrt %83 : vector<1x32xf32>
    %85 = vector.broadcast %84 : vector<1x32xf32> to vector<24x32xf32>
    %86 = arith.mulf %74, %85 : vector<24x32xf32>
    %87 = vector.extract_strided_slice %56 {offsets = [0, 0], sizes = [1, 32], strides = [1, 1]} : vector<1x64xf32> to vector<1x32xf32>
    %88 = vector.extract_strided_slice %56 {offsets = [0, 32], sizes = [1, 32], strides = [1, 1]} : vector<1x64xf32> to vector<1x32xf32>
    %cst_68 = arith.constant 1.000000e+00 : f32
    %89 = vector.broadcast %cst_68 : f32 to vector<1x32xf32>
    %90 = arith.addf %87, %89 : vector<1x32xf32>
    %91 = vector.broadcast %90 : vector<1x32xf32> to vector<24x32xf32>
    %92 = arith.mulf %86, %91 : vector<24x32xf32>
    %93 = vector.broadcast %88 : vector<1x32xf32> to vector<24x32xf32>
    %94 = arith.addf %92, %93 : vector<24x32xf32>
    %95 = vector.broadcast %57 : vector<24x1xf32> to vector<24x32xf32>
    %96 = arith.mulf %94, %95 : vector<24x32xf32>
    %97 = arith.truncf %96 : vector<24x32xf32> to vector<24x32xbf16>
    %c0_69 = arith.constant 0 : index
    %c0_70 = arith.constant 0 : index
    %c0_71 = arith.constant 0 : index
    %98 = vector.load %arg8[%c0_69, %c0_70, %c0_71] : memref<1x24x32xbf16, #tpu.memory_space<vmem>>, vector<1x24x32xbf16>
    %99 = vector.shape_cast %98 : vector<1x24x32xbf16> to vector<24x32xbf16>
    %100 = vector.shape_cast %97 : vector<24x32xbf16> to vector<1x24x32xbf16>
    tpu.vector_store %arg8[%c0_69, %c0_70, %c0_71], %100 {strides = array<i32>} : memref<1x24x32xbf16, #tpu.memory_space<vmem>>, vector<1x24x32xbf16>,
    return
  }
  func.func @transform_0(%arg0: i32) -> (i32, i32, i32) {
    %c0_i32 = arith.constant 0 : i32
    %c0_i32_0 = arith.constant 0 : i32
    %c0_i32_1 = arith.constant 0 : i32
    return %arg0, %c0_i32, %c0_i32_0 : i32, i32, i32
  }
  func.func @transform_1(%arg0: i32) -> (i32, i32, i32) {
    %c0_i32 = arith.constant 0 : i32
    %c0_i32_0 = arith.constant 0 : i32
    %c0_i32_1 = arith.constant 0 : i32
    %c0_i32_2 = arith.constant 0 : i32
    return %c0_i32, %c0_i32_0, %c0_i32_1 : i32, i32, i32
  }
  func.func @transform_2(%arg0: i32) -> (i32, i32) {
    %c0_i32 = arith.constant 0 : i32
    %c0_i32_0 = arith.constant 0 : i32
    %c0_i32_1 = arith.constant 0 : i32
    return %c0_i32, %c0_i32_0 : i32, i32
  }
  func.func @transform_3(%arg0: i32) -> (i32, i32) {
    %c0_i32 = arith.constant 0 : i32
    %c0_i32_0 = arith.constant 0 : i32
    %c0_i32_1 = arith.constant 0 : i32
    return %c0_i32, %c0_i32_0 : i32, i32
  }
  func.func @transform_4(%arg0: i32) -> (i32, i32, i32) {
    %c0_i32 = arith.constant 0 : i32
    %c0_i32_0 = arith.constant 0 : i32
    %c0_i32_1 = arith.constant 0 : i32
    return %arg0, %c0_i32, %c0_i32_0 : i32, i32, i32
  }
  func.func @transform_5(%arg0: i32) -> (i32, i32, i32) {
    %c0_i32 = arith.constant 0 : i32
    %c0_i32_0 = arith.constant 0 : i32
    %c0_i32_1 = arith.constant 0 : i32
    return %arg0, %c0_i32, %c0_i32_0 : i32, i32, i32
  }
  func.func @transform_6(%arg0: i32) -> (i32, i32) {
    %c0_i32 = arith.constant 0 : i32
    %c0_i32_0 = arith.constant 0 : i32
    %c0_i32_1 = arith.constant 0 : i32
    return %c0_i32, %c0_i32_0 : i32, i32
  }
  func.func @transform_7(%arg0: i32) -> (i32, i32, i32) {
    %c0_i32 = arith.constant 0 : i32
    %c0_i32_0 = arith.constant 0 : i32
    %c0_i32_1 = arith.constant 0 : i32
    return %arg0, %c0_i32, %c0_i32_0 : i32, i32, i32
  }
}

module attributes {stable_mosaic.version = 11 : i64} {
  func.func @_conv_epi_kernel(%arg0: i32, %arg1: memref<1x80x32xbf16, #tpu.memory_space<vmem>>, %arg2: memref<9x32x32xbf16, #tpu.memory_space<vmem>>, %arg3: memref<1x32xf32, #tpu.memory_space<vmem>>, %arg4: memref<1x32xf32, #tpu.memory_space<vmem>>, %arg5: memref<1x1x64xf32, #tpu.memory_space<vmem>>, %arg6: memref<1x80x1xf32, #tpu.memory_space<vmem>>, %arg7: memref<80x1xf32, #tpu.memory_space<vmem>>, %arg8: memref<1x80x32xbf16, #tpu.memory_space<vmem>>, %arg9: memref<110x32xbf16, #tpu.memory_space<vmem>>) attributes {dimension_semantics = [#tpu.dimension_semantics<parallel>], iteration_bounds = array<i64: 2>, scalar_prefetch = 0 : i64, scratch_operands = 1 : i64, tpu.core_type = #tpu.core_type<tc>, window_params = [{transform_indices = @transform_0, window_bounds = array<i64: 1, 80, 32>}, {pipeline_mode = #tpu.pipeline_mode<synchronous>, transform_indices = @transform_1, window_bounds = array<i64: 9, 32, 32>}, {pipeline_mode = #tpu.pipeline_mode<synchronous>, transform_indices = @transform_2, window_bounds = array<i64: 1, 32>}, {pipeline_mode = #tpu.pipeline_mode<synchronous>, transform_indices = @transform_3, window_bounds = array<i64: 1, 32>}, {transform_indices = @transform_4, window_bounds = array<i64: 1, 1, 64>}, {transform_indices = @transform_5, window_bounds = array<i64: 1, 80, 1>}, {pipeline_mode = #tpu.pipeline_mode<synchronous>, transform_indices = @transform_6, window_bounds = array<i64: 80, 1>}, {transform_indices = @transform_7, window_bounds = array<i64: 1, 80, 32>}]} {
    %cst = arith.constant 0.000000e+00 : bf16
    %0 = vector.broadcast %cst : bf16 to vector<110x32xbf16>
    %c0 = arith.constant 0 : index
    %c0_0 = arith.constant 0 : index
    %1 = vector.load %arg9[%c0, %c0_0] : memref<110x32xbf16, #tpu.memory_space<vmem>>, vector<110x32xbf16>
    tpu.vector_store %arg9[%c0, %c0_0], %0 {strides = array<i32>} : memref<110x32xbf16, #tpu.memory_space<vmem>>, vector<110x32xbf16>,
    %c0_1 = arith.constant 0 : index
    %c0_2 = arith.constant 0 : index
    %c0_3 = arith.constant 0 : index
    %2 = vector.load %arg1[%c0_1, %c0_2, %c0_3] : memref<1x80x32xbf16, #tpu.memory_space<vmem>>, vector<1x80x32xbf16>
    %3 = vector.shape_cast %2 : vector<1x80x32xbf16> to vector<80x32xbf16>
    %c11 = arith.constant 11 : index
    %c0_4 = arith.constant 0 : index
    %4 = vector.load %arg9[%c11, %c0_4] : memref<110x32xbf16, #tpu.memory_space<vmem>>, vector<80x32xbf16>
    tpu.vector_store %arg9[%c11, %c0_4], %3 {strides = array<i32>} : memref<110x32xbf16, #tpu.memory_space<vmem>>, vector<80x32xbf16>,
    %c0_5 = arith.constant 0 : index
    %c0_6 = arith.constant 0 : index
    %5 = vector.load %arg9[%c0_5, %c0_6] : memref<110x32xbf16, #tpu.memory_space<vmem>>, vector<80x32xbf16>
    %c0_7 = arith.constant 0 : index
    %c0_8 = arith.constant 0 : index
    %c0_9 = arith.constant 0 : index
    %6 = vector.load %arg2[%c0_7, %c0_8, %c0_9] : memref<9x32x32xbf16, #tpu.memory_space<vmem>>, vector<1x32x32xbf16>
    %7 = vector.shape_cast %6 : vector<1x32x32xbf16> to vector<32x32xbf16>
    %cst_10 = arith.constant dense<0.000000e+00> : vector<80x32xf32>
    %8 = tpu.matmul %5, %7, %cst_10 {dimension_numbers = #tpu.dot_dimension_numbers<[1], [0], [0], [1], [0, 0, 1, 1], [], []>} : vector<80x32xbf16>, vector<32x32xbf16>, vector<80x32xf32> -> vector<80x32xf32>
    %c1 = arith.constant 1 : index
    %c0_11 = arith.constant 0 : index
    %9 = vector.load %arg9[%c1, %c0_11] : memref<110x32xbf16, #tpu.memory_space<vmem>>, vector<80x32xbf16>
    %c1_12 = arith.constant 1 : index
    %c0_13 = arith.constant 0 : index
    %c0_14 = arith.constant 0 : index
    %10 = vector.load %arg2[%c1_12, %c0_13, %c0_14] : memref<9x32x32xbf16, #tpu.memory_space<vmem>>, vector<1x32x32xbf16>
    %11 = vector.shape_cast %10 : vector<1x32x32xbf16> to vector<32x32xbf16>
    %cst_15 = arith.constant dense<0.000000e+00> : vector<80x32xf32>
    %12 = tpu.matmul %9, %11, %cst_15 {dimension_numbers = #tpu.dot_dimension_numbers<[1], [0], [0], [1], [0, 0, 1, 1], [], []>} : vector<80x32xbf16>, vector<32x32xbf16>, vector<80x32xf32> -> vector<80x32xf32>
    %13 = arith.addf %8, %12 : vector<80x32xf32>
    %c2 = arith.constant 2 : index
    %c0_16 = arith.constant 0 : index
    %14 = vector.load %arg9[%c2, %c0_16] : memref<110x32xbf16, #tpu.memory_space<vmem>>, vector<80x32xbf16>
    %c2_17 = arith.constant 2 : index
    %c0_18 = arith.constant 0 : index
    %c0_19 = arith.constant 0 : index
    %15 = vector.load %arg2[%c2_17, %c0_18, %c0_19] : memref<9x32x32xbf16, #tpu.memory_space<vmem>>, vector<1x32x32xbf16>
    %16 = vector.shape_cast %15 : vector<1x32x32xbf16> to vector<32x32xbf16>
    %cst_20 = arith.constant dense<0.000000e+00> : vector<80x32xf32>
    %17 = tpu.matmul %14, %16, %cst_20 {dimension_numbers = #tpu.dot_dimension_numbers<[1], [0], [0], [1], [0, 0, 1, 1], [], []>} : vector<80x32xbf16>, vector<32x32xbf16>, vector<80x32xf32> -> vector<80x32xf32>
    %18 = arith.addf %13, %17 : vector<80x32xf32>
    %c10 = arith.constant 10 : index
    %c0_21 = arith.constant 0 : index
    %19 = vector.load %arg9[%c10, %c0_21] : memref<110x32xbf16, #tpu.memory_space<vmem>>, vector<80x32xbf16>
    %c3 = arith.constant 3 : index
    %c0_22 = arith.constant 0 : index
    %c0_23 = arith.constant 0 : index
    %20 = vector.load %arg2[%c3, %c0_22, %c0_23] : memref<9x32x32xbf16, #tpu.memory_space<vmem>>, vector<1x32x32xbf16>
    %21 = vector.shape_cast %20 : vector<1x32x32xbf16> to vector<32x32xbf16>
    %cst_24 = arith.constant dense<0.000000e+00> : vector<80x32xf32>
    %22 = tpu.matmul %19, %21, %cst_24 {dimension_numbers = #tpu.dot_dimension_numbers<[1], [0], [0], [1], [0, 0, 1, 1], [], []>} : vector<80x32xbf16>, vector<32x32xbf16>, vector<80x32xf32> -> vector<80x32xf32>
    %23 = arith.addf %18, %22 : vector<80x32xf32>
    %c11_25 = arith.constant 11 : index
    %c0_26 = arith.constant 0 : index
    %24 = vector.load %arg9[%c11_25, %c0_26] : memref<110x32xbf16, #tpu.memory_space<vmem>>, vector<80x32xbf16>
    %c4 = arith.constant 4 : index
    %c0_27 = arith.constant 0 : index
    %c0_28 = arith.constant 0 : index
    %25 = vector.load %arg2[%c4, %c0_27, %c0_28] : memref<9x32x32xbf16, #tpu.memory_space<vmem>>, vector<1x32x32xbf16>
    %26 = vector.shape_cast %25 : vector<1x32x32xbf16> to vector<32x32xbf16>
    %cst_29 = arith.constant dense<0.000000e+00> : vector<80x32xf32>
    %27 = tpu.matmul %24, %26, %cst_29 {dimension_numbers = #tpu.dot_dimension_numbers<[1], [0], [0], [1], [0, 0, 1, 1], [], []>} : vector<80x32xbf16>, vector<32x32xbf16>, vector<80x32xf32> -> vector<80x32xf32>
    %28 = arith.addf %23, %27 : vector<80x32xf32>
    %c12 = arith.constant 12 : index
    %c0_30 = arith.constant 0 : index
    %29 = vector.load %arg9[%c12, %c0_30] : memref<110x32xbf16, #tpu.memory_space<vmem>>, vector<80x32xbf16>
    %c5 = arith.constant 5 : index
    %c0_31 = arith.constant 0 : index
    %c0_32 = arith.constant 0 : index
    %30 = vector.load %arg2[%c5, %c0_31, %c0_32] : memref<9x32x32xbf16, #tpu.memory_space<vmem>>, vector<1x32x32xbf16>
    %31 = vector.shape_cast %30 : vector<1x32x32xbf16> to vector<32x32xbf16>
    %cst_33 = arith.constant dense<0.000000e+00> : vector<80x32xf32>
    %32 = tpu.matmul %29, %31, %cst_33 {dimension_numbers = #tpu.dot_dimension_numbers<[1], [0], [0], [1], [0, 0, 1, 1], [], []>} : vector<80x32xbf16>, vector<32x32xbf16>, vector<80x32xf32> -> vector<80x32xf32>
    %33 = arith.addf %28, %32 : vector<80x32xf32>
    %c20 = arith.constant 20 : index
    %c0_34 = arith.constant 0 : index
    %34 = vector.load %arg9[%c20, %c0_34] : memref<110x32xbf16, #tpu.memory_space<vmem>>, vector<80x32xbf16>
    %c6 = arith.constant 6 : index
    %c0_35 = arith.constant 0 : index
    %c0_36 = arith.constant 0 : index
    %35 = vector.load %arg2[%c6, %c0_35, %c0_36] : memref<9x32x32xbf16, #tpu.memory_space<vmem>>, vector<1x32x32xbf16>
    %36 = vector.shape_cast %35 : vector<1x32x32xbf16> to vector<32x32xbf16>
    %cst_37 = arith.constant dense<0.000000e+00> : vector<80x32xf32>
    %37 = tpu.matmul %34, %36, %cst_37 {dimension_numbers = #tpu.dot_dimension_numbers<[1], [0], [0], [1], [0, 0, 1, 1], [], []>} : vector<80x32xbf16>, vector<32x32xbf16>, vector<80x32xf32> -> vector<80x32xf32>
    %38 = arith.addf %33, %37 : vector<80x32xf32>
    %c21 = arith.constant 21 : index
    %c0_38 = arith.constant 0 : index
    %39 = vector.load %arg9[%c21, %c0_38] : memref<110x32xbf16, #tpu.memory_space<vmem>>, vector<80x32xbf16>
    %c7 = arith.constant 7 : index
    %c0_39 = arith.constant 0 : index
    %c0_40 = arith.constant 0 : index
    %40 = vector.load %arg2[%c7, %c0_39, %c0_40] : memref<9x32x32xbf16, #tpu.memory_space<vmem>>, vector<1x32x32xbf16>
    %41 = vector.shape_cast %40 : vector<1x32x32xbf16> to vector<32x32xbf16>
    %cst_41 = arith.constant dense<0.000000e+00> : vector<80x32xf32>
    %42 = tpu.matmul %39, %41, %cst_41 {dimension_numbers = #tpu.dot_dimension_numbers<[1], [0], [0], [1], [0, 0, 1, 1], [], []>} : vector<80x32xbf16>, vector<32x32xbf16>, vector<80x32xf32> -> vector<80x32xf32>
    %43 = arith.addf %38, %42 : vector<80x32xf32>
    %c22 = arith.constant 22 : index
    %c0_42 = arith.constant 0 : index
    %44 = vector.load %arg9[%c22, %c0_42] : memref<110x32xbf16, #tpu.memory_space<vmem>>, vector<80x32xbf16>
    %c8 = arith.constant 8 : index
    %c0_43 = arith.constant 0 : index
    %c0_44 = arith.constant 0 : index
    %45 = vector.load %arg2[%c8, %c0_43, %c0_44] : memref<9x32x32xbf16, #tpu.memory_space<vmem>>, vector<1x32x32xbf16>
    %46 = vector.shape_cast %45 : vector<1x32x32xbf16> to vector<32x32xbf16>
    %cst_45 = arith.constant dense<0.000000e+00> : vector<80x32xf32>
    %47 = tpu.matmul %44, %46, %cst_45 {dimension_numbers = #tpu.dot_dimension_numbers<[1], [0], [0], [1], [0, 0, 1, 1], [], []>} : vector<80x32xbf16>, vector<32x32xbf16>, vector<80x32xf32> -> vector<80x32xf32>
    %48 = arith.addf %43, %47 : vector<80x32xf32>
    %c0_46 = arith.constant 0 : index
    %c0_47 = arith.constant 0 : index
    %49 = vector.load %arg3[%c0_46, %c0_47] : memref<1x32xf32, #tpu.memory_space<vmem>>, vector<1x32xf32>
    %50 = vector.broadcast %49 : vector<1x32xf32> to vector<80x32xf32>
    %51 = arith.addf %48, %50 : vector<80x32xf32>
    %c0_48 = arith.constant 0 : index
    %c0_49 = arith.constant 0 : index
    %52 = vector.load %arg4[%c0_48, %c0_49] : memref<1x32xf32, #tpu.memory_space<vmem>>, vector<1x32xf32>
    %c0_50 = arith.constant 0 : index
    %c0_51 = arith.constant 0 : index
    %c0_52 = arith.constant 0 : index
    %53 = vector.load %arg6[%c0_50, %c0_51, %c0_52] : memref<1x80x1xf32, #tpu.memory_space<vmem>>, vector<1x80x1xf32>
    %54 = vector.shape_cast %53 : vector<1x80x1xf32> to vector<80x1xf32>
    %c0_53 = arith.constant 0 : index
    %c0_54 = arith.constant 0 : index
    %c0_55 = arith.constant 0 : index
    %55 = vector.load %arg5[%c0_53, %c0_54, %c0_55] : memref<1x1x64xf32, #tpu.memory_space<vmem>>, vector<1x1x64xf32>
    %56 = vector.shape_cast %55 : vector<1x1x64xf32> to vector<1x64xf32>
    %c0_56 = arith.constant 0 : index
    %c0_57 = arith.constant 0 : index
    %57 = vector.load %arg7[%c0_56, %c0_57] : memref<80x1xf32, #tpu.memory_space<vmem>>, vector<80x1xf32>
    %58 = vector.broadcast %52 : vector<1x32xf32> to vector<80x32xf32>
    %59 = vector.broadcast %54 : vector<80x1xf32> to vector<80x32xf32>
    %60 = arith.mulf %58, %59 : vector<80x32xf32>
    %61 = arith.addf %51, %60 : vector<80x32xf32>
    %cst_58 = arith.constant 0.000000e+00 : f32
    %62 = vector.broadcast %cst_58 : f32 to vector<80x32xf32>
    %63 = arith.cmpf oge, %61, %62 : vector<80x32xf32>
    %cst_59 = arith.constant 2.000000e-01 : f32
    %64 = vector.broadcast %cst_59 : f32 to vector<80x32xf32>
    %65 = arith.mulf %64, %61 : vector<80x32xf32>
    %66 = arith.select %63, %61, %65 : vector<80x32xi1>, vector<80x32xf32>
    %67 = vector.broadcast %57 : vector<80x1xf32> to vector<80x32xf32>
    %68 = arith.mulf %66, %67 : vector<80x32xf32>
    %cst_60 = arith.constant dense<0.000000e+00> : vector<32xf32>
    %69 = vector.multi_reduction <add>, %68, %cst_60 [0] : vector<80x32xf32> to vector<32xf32>
    %70 = vector.shape_cast %69 : vector<32xf32> to vector<1x32xf32>
    %cst_61 = arith.constant 1.562500e-02 : f32
    %71 = vector.broadcast %cst_61 : f32 to vector<1x32xf32>
    %72 = arith.mulf %70, %71 : vector<1x32xf32>
    %73 = vector.broadcast %72 : vector<1x32xf32> to vector<80x32xf32>
    %74 = arith.subf %66, %73 : vector<80x32xf32>
    %75 = arith.mulf %74, %74 : vector<80x32xf32>
    %76 = vector.broadcast %57 : vector<80x1xf32> to vector<80x32xf32>
    %77 = arith.mulf %75, %76 : vector<80x32xf32>
    %cst_62 = arith.constant dense<0.000000e+00> : vector<32xf32>
    %78 = vector.multi_reduction <add>, %77, %cst_62 [0] : vector<80x32xf32> to vector<32xf32>
    %79 = vector.shape_cast %78 : vector<32xf32> to vector<1x32xf32>
    %cst_63 = arith.constant 1.562500e-02 : f32
    %80 = vector.broadcast %cst_63 : f32 to vector<1x32xf32>
    %81 = arith.mulf %79, %80 : vector<1x32xf32>
    %cst_64 = arith.constant 9.99999974E-6 : f32
    %82 = vector.broadcast %cst_64 : f32 to vector<1x32xf32>
    %83 = arith.addf %81, %82 : vector<1x32xf32>
    %84 = math.rsqrt %83 : vector<1x32xf32>
    %85 = vector.broadcast %84 : vector<1x32xf32> to vector<80x32xf32>
    %86 = arith.mulf %74, %85 : vector<80x32xf32>
    %87 = vector.extract_strided_slice %56 {offsets = [0, 0], sizes = [1, 32], strides = [1, 1]} : vector<1x64xf32> to vector<1x32xf32>
    %88 = vector.extract_strided_slice %56 {offsets = [0, 32], sizes = [1, 32], strides = [1, 1]} : vector<1x64xf32> to vector<1x32xf32>
    %cst_65 = arith.constant 1.000000e+00 : f32
    %89 = vector.broadcast %cst_65 : f32 to vector<1x32xf32>
    %90 = arith.addf %87, %89 : vector<1x32xf32>
    %91 = vector.broadcast %90 : vector<1x32xf32> to vector<80x32xf32>
    %92 = arith.mulf %86, %91 : vector<80x32xf32>
    %93 = vector.broadcast %88 : vector<1x32xf32> to vector<80x32xf32>
    %94 = arith.addf %92, %93 : vector<80x32xf32>
    %95 = vector.broadcast %57 : vector<80x1xf32> to vector<80x32xf32>
    %96 = arith.mulf %94, %95 : vector<80x32xf32>
    %97 = arith.truncf %96 : vector<80x32xf32> to vector<80x32xbf16>
    %c0_66 = arith.constant 0 : index
    %c0_67 = arith.constant 0 : index
    %c0_68 = arith.constant 0 : index
    %98 = vector.load %arg8[%c0_66, %c0_67, %c0_68] : memref<1x80x32xbf16, #tpu.memory_space<vmem>>, vector<1x80x32xbf16>
    %99 = vector.shape_cast %98 : vector<1x80x32xbf16> to vector<80x32xbf16>
    %100 = vector.shape_cast %97 : vector<80x32xbf16> to vector<1x80x32xbf16>
    tpu.vector_store %arg8[%c0_66, %c0_67, %c0_68], %100 {strides = array<i32>} : memref<1x80x32xbf16, #tpu.memory_space<vmem>>, vector<1x80x32xbf16>,
    return
  }
  func.func @transform_0(%arg0: i32) -> (i32, i32, i32) {
    %c0_i32 = arith.constant 0 : i32
    %c0_i32_0 = arith.constant 0 : i32
    %c0_i32_1 = arith.constant 0 : i32
    return %arg0, %c0_i32, %c0_i32_0 : i32, i32, i32
  }
  func.func @transform_1(%arg0: i32) -> (i32, i32, i32) {
    %c0_i32 = arith.constant 0 : i32
    %c0_i32_0 = arith.constant 0 : i32
    %c0_i32_1 = arith.constant 0 : i32
    %c0_i32_2 = arith.constant 0 : i32
    return %c0_i32, %c0_i32_0, %c0_i32_1 : i32, i32, i32
  }
  func.func @transform_2(%arg0: i32) -> (i32, i32) {
    %c0_i32 = arith.constant 0 : i32
    %c0_i32_0 = arith.constant 0 : i32
    %c0_i32_1 = arith.constant 0 : i32
    return %c0_i32, %c0_i32_0 : i32, i32
  }
  func.func @transform_3(%arg0: i32) -> (i32, i32) {
    %c0_i32 = arith.constant 0 : i32
    %c0_i32_0 = arith.constant 0 : i32
    %c0_i32_1 = arith.constant 0 : i32
    return %c0_i32, %c0_i32_0 : i32, i32
  }
  func.func @transform_4(%arg0: i32) -> (i32, i32, i32) {
    %c0_i32 = arith.constant 0 : i32
    %c0_i32_0 = arith.constant 0 : i32
    %c0_i32_1 = arith.constant 0 : i32
    return %arg0, %c0_i32, %c0_i32_0 : i32, i32, i32
  }
  func.func @transform_5(%arg0: i32) -> (i32, i32, i32) {
    %c0_i32 = arith.constant 0 : i32
    %c0_i32_0 = arith.constant 0 : i32
    %c0_i32_1 = arith.constant 0 : i32
    return %arg0, %c0_i32, %c0_i32_0 : i32, i32, i32
  }
  func.func @transform_6(%arg0: i32) -> (i32, i32) {
    %c0_i32 = arith.constant 0 : i32
    %c0_i32_0 = arith.constant 0 : i32
    %c0_i32_1 = arith.constant 0 : i32
    return %c0_i32, %c0_i32_0 : i32, i32
  }
  func.func @transform_7(%arg0: i32) -> (i32, i32, i32) {
    %c0_i32 = arith.constant 0 : i32
    %c0_i32_0 = arith.constant 0 : i32
    %c0_i32_1 = arith.constant 0 : i32
    return %arg0, %c0_i32, %c0_i32_0 : i32, i32, i32
  }
}

module attributes {stable_mosaic.version = 11 : i64} {
  func.func @_conv_epi_kernel(%arg0: i32, %arg1: memref<1x288x32xbf16, #tpu.memory_space<vmem>>, %arg2: memref<9x32x32xbf16, #tpu.memory_space<vmem>>, %arg3: memref<1x32xf32, #tpu.memory_space<vmem>>, %arg4: memref<1x32xf32, #tpu.memory_space<vmem>>, %arg5: memref<1x1x64xf32, #tpu.memory_space<vmem>>, %arg6: memref<1x288x1xf32, #tpu.memory_space<vmem>>, %arg7: memref<288x1xf32, #tpu.memory_space<vmem>>, %arg8: memref<1x288x32xbf16, #tpu.memory_space<vmem>>, %arg9: memref<342x32xbf16, #tpu.memory_space<vmem>>) attributes {dimension_semantics = [#tpu.dimension_semantics<parallel>], iteration_bounds = array<i64: 2>, scalar_prefetch = 0 : i64, scratch_operands = 1 : i64, tpu.core_type = #tpu.core_type<tc>, window_params = [{transform_indices = @transform_0, window_bounds = array<i64: 1, 288, 32>}, {pipeline_mode = #tpu.pipeline_mode<synchronous>, transform_indices = @transform_1, window_bounds = array<i64: 9, 32, 32>}, {pipeline_mode = #tpu.pipeline_mode<synchronous>, transform_indices = @transform_2, window_bounds = array<i64: 1, 32>}, {pipeline_mode = #tpu.pipeline_mode<synchronous>, transform_indices = @transform_3, window_bounds = array<i64: 1, 32>}, {transform_indices = @transform_4, window_bounds = array<i64: 1, 1, 64>}, {transform_indices = @transform_5, window_bounds = array<i64: 1, 288, 1>}, {pipeline_mode = #tpu.pipeline_mode<synchronous>, transform_indices = @transform_6, window_bounds = array<i64: 288, 1>}, {transform_indices = @transform_7, window_bounds = array<i64: 1, 288, 32>}]} {
    %cst = arith.constant 0.000000e+00 : bf16
    %0 = vector.broadcast %cst : bf16 to vector<342x32xbf16>
    %c0 = arith.constant 0 : index
    %c0_0 = arith.constant 0 : index
    %1 = vector.load %arg9[%c0, %c0_0] : memref<342x32xbf16, #tpu.memory_space<vmem>>, vector<342x32xbf16>
    tpu.vector_store %arg9[%c0, %c0_0], %0 {strides = array<i32>} : memref<342x32xbf16, #tpu.memory_space<vmem>>, vector<342x32xbf16>,
    %c0_1 = arith.constant 0 : index
    %c0_2 = arith.constant 0 : index
    %c0_3 = arith.constant 0 : index
    %2 = vector.load %arg1[%c0_1, %c0_2, %c0_3] : memref<1x288x32xbf16, #tpu.memory_space<vmem>>, vector<1x288x32xbf16>
    %3 = vector.shape_cast %2 : vector<1x288x32xbf16> to vector<288x32xbf16>
    %c19 = arith.constant 19 : index
    %c0_4 = arith.constant 0 : index
    %4 = vector.load %arg9[%c19, %c0_4] : memref<342x32xbf16, #tpu.memory_space<vmem>>, vector<288x32xbf16>
    tpu.vector_store %arg9[%c19, %c0_4], %3 {strides = array<i32>} : memref<342x32xbf16, #tpu.memory_space<vmem>>, vector<288x32xbf16>,
    %c0_5 = arith.constant 0 : index
    %c0_6 = arith.constant 0 : index
    %5 = vector.load %arg9[%c0_5, %c0_6] : memref<342x32xbf16, #tpu.memory_space<vmem>>, vector<288x32xbf16>
    %c0_7 = arith.constant 0 : index
    %c0_8 = arith.constant 0 : index
    %c0_9 = arith.constant 0 : index
    %6 = vector.load %arg2[%c0_7, %c0_8, %c0_9] : memref<9x32x32xbf16, #tpu.memory_space<vmem>>, vector<1x32x32xbf16>
    %7 = vector.shape_cast %6 : vector<1x32x32xbf16> to vector<32x32xbf16>
    %cst_10 = arith.constant dense<0.000000e+00> : vector<288x32xf32>
    %8 = tpu.matmul %5, %7, %cst_10 {dimension_numbers = #tpu.dot_dimension_numbers<[1], [0], [0], [1], [0, 0, 1, 1], [], []>} : vector<288x32xbf16>, vector<32x32xbf16>, vector<288x32xf32> -> vector<288x32xf32>
    %c1 = arith.constant 1 : index
    %c0_11 = arith.constant 0 : index
    %9 = vector.load %arg9[%c1, %c0_11] : memref<342x32xbf16, #tpu.memory_space<vmem>>, vector<288x32xbf16>
    %c1_12 = arith.constant 1 : index
    %c0_13 = arith.constant 0 : index
    %c0_14 = arith.constant 0 : index
    %10 = vector.load %arg2[%c1_12, %c0_13, %c0_14] : memref<9x32x32xbf16, #tpu.memory_space<vmem>>, vector<1x32x32xbf16>
    %11 = vector.shape_cast %10 : vector<1x32x32xbf16> to vector<32x32xbf16>
    %cst_15 = arith.constant dense<0.000000e+00> : vector<288x32xf32>
    %12 = tpu.matmul %9, %11, %cst_15 {dimension_numbers = #tpu.dot_dimension_numbers<[1], [0], [0], [1], [0, 0, 1, 1], [], []>} : vector<288x32xbf16>, vector<32x32xbf16>, vector<288x32xf32> -> vector<288x32xf32>
    %13 = arith.addf %8, %12 : vector<288x32xf32>
    %c2 = arith.constant 2 : index
    %c0_16 = arith.constant 0 : index
    %14 = vector.load %arg9[%c2, %c0_16] : memref<342x32xbf16, #tpu.memory_space<vmem>>, vector<288x32xbf16>
    %c2_17 = arith.constant 2 : index
    %c0_18 = arith.constant 0 : index
    %c0_19 = arith.constant 0 : index
    %15 = vector.load %arg2[%c2_17, %c0_18, %c0_19] : memref<9x32x32xbf16, #tpu.memory_space<vmem>>, vector<1x32x32xbf16>
    %16 = vector.shape_cast %15 : vector<1x32x32xbf16> to vector<32x32xbf16>
    %cst_20 = arith.constant dense<0.000000e+00> : vector<288x32xf32>
    %17 = tpu.matmul %14, %16, %cst_20 {dimension_numbers = #tpu.dot_dimension_numbers<[1], [0], [0], [1], [0, 0, 1, 1], [], []>} : vector<288x32xbf16>, vector<32x32xbf16>, vector<288x32xf32> -> vector<288x32xf32>
    %18 = arith.addf %13, %17 : vector<288x32xf32>
    %c18 = arith.constant 18 : index
    %c0_21 = arith.constant 0 : index
    %19 = vector.load %arg9[%c18, %c0_21] : memref<342x32xbf16, #tpu.memory_space<vmem>>, vector<288x32xbf16>
    %c3 = arith.constant 3 : index
    %c0_22 = arith.constant 0 : index
    %c0_23 = arith.constant 0 : index
    %20 = vector.load %arg2[%c3, %c0_22, %c0_23] : memref<9x32x32xbf16, #tpu.memory_space<vmem>>, vector<1x32x32xbf16>
    %21 = vector.shape_cast %20 : vector<1x32x32xbf16> to vector<32x32xbf16>
    %cst_24 = arith.constant dense<0.000000e+00> : vector<288x32xf32>
    %22 = tpu.matmul %19, %21, %cst_24 {dimension_numbers = #tpu.dot_dimension_numbers<[1], [0], [0], [1], [0, 0, 1, 1], [], []>} : vector<288x32xbf16>, vector<32x32xbf16>, vector<288x32xf32> -> vector<288x32xf32>
    %23 = arith.addf %18, %22 : vector<288x32xf32>
    %c19_25 = arith.constant 19 : index
    %c0_26 = arith.constant 0 : index
    %24 = vector.load %arg9[%c19_25, %c0_26] : memref<342x32xbf16, #tpu.memory_space<vmem>>, vector<288x32xbf16>
    %c4 = arith.constant 4 : index
    %c0_27 = arith.constant 0 : index
    %c0_28 = arith.constant 0 : index
    %25 = vector.load %arg2[%c4, %c0_27, %c0_28] : memref<9x32x32xbf16, #tpu.memory_space<vmem>>, vector<1x32x32xbf16>
    %26 = vector.shape_cast %25 : vector<1x32x32xbf16> to vector<32x32xbf16>
    %cst_29 = arith.constant dense<0.000000e+00> : vector<288x32xf32>
    %27 = tpu.matmul %24, %26, %cst_29 {dimension_numbers = #tpu.dot_dimension_numbers<[1], [0], [0], [1], [0, 0, 1, 1], [], []>} : vector<288x32xbf16>, vector<32x32xbf16>, vector<288x32xf32> -> vector<288x32xf32>
    %28 = arith.addf %23, %27 : vector<288x32xf32>
    %c20 = arith.constant 20 : index
    %c0_30 = arith.constant 0 : index
    %29 = vector.load %arg9[%c20, %c0_30] : memref<342x32xbf16, #tpu.memory_space<vmem>>, vector<288x32xbf16>
    %c5 = arith.constant 5 : index
    %c0_31 = arith.constant 0 : index
    %c0_32 = arith.constant 0 : index
    %30 = vector.load %arg2[%c5, %c0_31, %c0_32] : memref<9x32x32xbf16, #tpu.memory_space<vmem>>, vector<1x32x32xbf16>
    %31 = vector.shape_cast %30 : vector<1x32x32xbf16> to vector<32x32xbf16>
    %cst_33 = arith.constant dense<0.000000e+00> : vector<288x32xf32>
    %32 = tpu.matmul %29, %31, %cst_33 {dimension_numbers = #tpu.dot_dimension_numbers<[1], [0], [0], [1], [0, 0, 1, 1], [], []>} : vector<288x32xbf16>, vector<32x32xbf16>, vector<288x32xf32> -> vector<288x32xf32>
    %33 = arith.addf %28, %32 : vector<288x32xf32>
    %c36 = arith.constant 36 : index
    %c0_34 = arith.constant 0 : index
    %34 = vector.load %arg9[%c36, %c0_34] : memref<342x32xbf16, #tpu.memory_space<vmem>>, vector<288x32xbf16>
    %c6 = arith.constant 6 : index
    %c0_35 = arith.constant 0 : index
    %c0_36 = arith.constant 0 : index
    %35 = vector.load %arg2[%c6, %c0_35, %c0_36] : memref<9x32x32xbf16, #tpu.memory_space<vmem>>, vector<1x32x32xbf16>
    %36 = vector.shape_cast %35 : vector<1x32x32xbf16> to vector<32x32xbf16>
    %cst_37 = arith.constant dense<0.000000e+00> : vector<288x32xf32>
    %37 = tpu.matmul %34, %36, %cst_37 {dimension_numbers = #tpu.dot_dimension_numbers<[1], [0], [0], [1], [0, 0, 1, 1], [], []>} : vector<288x32xbf16>, vector<32x32xbf16>, vector<288x32xf32> -> vector<288x32xf32>
    %38 = arith.addf %33, %37 : vector<288x32xf32>
    %c37 = arith.constant 37 : index
    %c0_38 = arith.constant 0 : index
    %39 = vector.load %arg9[%c37, %c0_38] : memref<342x32xbf16, #tpu.memory_space<vmem>>, vector<288x32xbf16>
    %c7 = arith.constant 7 : index
    %c0_39 = arith.constant 0 : index
    %c0_40 = arith.constant 0 : index
    %40 = vector.load %arg2[%c7, %c0_39, %c0_40] : memref<9x32x32xbf16, #tpu.memory_space<vmem>>, vector<1x32x32xbf16>
    %41 = vector.shape_cast %40 : vector<1x32x32xbf16> to vector<32x32xbf16>
    %cst_41 = arith.constant dense<0.000000e+00> : vector<288x32xf32>
    %42 = tpu.matmul %39, %41, %cst_41 {dimension_numbers = #tpu.dot_dimension_numbers<[1], [0], [0], [1], [0, 0, 1, 1], [], []>} : vector<288x32xbf16>, vector<32x32xbf16>, vector<288x32xf32> -> vector<288x32xf32>
    %43 = arith.addf %38, %42 : vector<288x32xf32>
    %c38 = arith.constant 38 : index
    %c0_42 = arith.constant 0 : index
    %44 = vector.load %arg9[%c38, %c0_42] : memref<342x32xbf16, #tpu.memory_space<vmem>>, vector<288x32xbf16>
    %c8 = arith.constant 8 : index
    %c0_43 = arith.constant 0 : index
    %c0_44 = arith.constant 0 : index
    %45 = vector.load %arg2[%c8, %c0_43, %c0_44] : memref<9x32x32xbf16, #tpu.memory_space<vmem>>, vector<1x32x32xbf16>
    %46 = vector.shape_cast %45 : vector<1x32x32xbf16> to vector<32x32xbf16>
    %cst_45 = arith.constant dense<0.000000e+00> : vector<288x32xf32>
    %47 = tpu.matmul %44, %46, %cst_45 {dimension_numbers = #tpu.dot_dimension_numbers<[1], [0], [0], [1], [0, 0, 1, 1], [], []>} : vector<288x32xbf16>, vector<32x32xbf16>, vector<288x32xf32> -> vector<288x32xf32>
    %48 = arith.addf %43, %47 : vector<288x32xf32>
    %c0_46 = arith.constant 0 : index
    %c0_47 = arith.constant 0 : index
    %49 = vector.load %arg3[%c0_46, %c0_47] : memref<1x32xf32, #tpu.memory_space<vmem>>, vector<1x32xf32>
    %50 = vector.broadcast %49 : vector<1x32xf32> to vector<288x32xf32>
    %51 = arith.addf %48, %50 : vector<288x32xf32>
    %c0_48 = arith.constant 0 : index
    %c0_49 = arith.constant 0 : index
    %52 = vector.load %arg4[%c0_48, %c0_49] : memref<1x32xf32, #tpu.memory_space<vmem>>, vector<1x32xf32>
    %c0_50 = arith.constant 0 : index
    %c0_51 = arith.constant 0 : index
    %c0_52 = arith.constant 0 : index
    %53 = vector.load %arg6[%c0_50, %c0_51, %c0_52] : memref<1x288x1xf32, #tpu.memory_space<vmem>>, vector<1x288x1xf32>
    %54 = vector.shape_cast %53 : vector<1x288x1xf32> to vector<288x1xf32>
    %c0_53 = arith.constant 0 : index
    %c0_54 = arith.constant 0 : index
    %c0_55 = arith.constant 0 : index
    %55 = vector.load %arg5[%c0_53, %c0_54, %c0_55] : memref<1x1x64xf32, #tpu.memory_space<vmem>>, vector<1x1x64xf32>
    %56 = vector.shape_cast %55 : vector<1x1x64xf32> to vector<1x64xf32>
    %c0_56 = arith.constant 0 : index
    %c0_57 = arith.constant 0 : index
    %57 = vector.load %arg7[%c0_56, %c0_57] : memref<288x1xf32, #tpu.memory_space<vmem>>, vector<288x1xf32>
    %58 = vector.broadcast %52 : vector<1x32xf32> to vector<288x32xf32>
    %59 = vector.broadcast %54 : vector<288x1xf32> to vector<288x32xf32>
    %60 = arith.mulf %58, %59 : vector<288x32xf32>
    %61 = arith.addf %51, %60 : vector<288x32xf32>
    %cst_58 = arith.constant 0.000000e+00 : f32
    %62 = vector.broadcast %cst_58 : f32 to vector<288x32xf32>
    %63 = arith.cmpf oge, %61, %62 : vector<288x32xf32>
    %cst_59 = arith.constant 2.000000e-01 : f32
    %64 = vector.broadcast %cst_59 : f32 to vector<288x32xf32>
    %65 = arith.mulf %64, %61 : vector<288x32xf32>
    %66 = arith.select %63, %61, %65 : vector<288x32xi1>, vector<288x32xf32>
    %67 = vector.broadcast %57 : vector<288x1xf32> to vector<288x32xf32>
    %68 = arith.mulf %66, %67 : vector<288x32xf32>
    %cst_60 = arith.constant dense<0.000000e+00> : vector<32xf32>
    %69 = vector.multi_reduction <add>, %68, %cst_60 [0] : vector<288x32xf32> to vector<32xf32>
    %70 = vector.shape_cast %69 : vector<32xf32> to vector<1x32xf32>
    %cst_61 = arith.constant 3.906250e-03 : f32
    %71 = vector.broadcast %cst_61 : f32 to vector<1x32xf32>
    %72 = arith.mulf %70, %71 : vector<1x32xf32>
    %73 = vector.broadcast %72 : vector<1x32xf32> to vector<288x32xf32>
    %74 = arith.subf %66, %73 : vector<288x32xf32>
    %75 = arith.mulf %74, %74 : vector<288x32xf32>
    %76 = vector.broadcast %57 : vector<288x1xf32> to vector<288x32xf32>
    %77 = arith.mulf %75, %76 : vector<288x32xf32>
    %cst_62 = arith.constant dense<0.000000e+00> : vector<32xf32>
    %78 = vector.multi_reduction <add>, %77, %cst_62 [0] : vector<288x32xf32> to vector<32xf32>
    %79 = vector.shape_cast %78 : vector<32xf32> to vector<1x32xf32>
    %cst_63 = arith.constant 3.906250e-03 : f32
    %80 = vector.broadcast %cst_63 : f32 to vector<1x32xf32>
    %81 = arith.mulf %79, %80 : vector<1x32xf32>
    %cst_64 = arith.constant 9.99999974E-6 : f32
    %82 = vector.broadcast %cst_64 : f32 to vector<1x32xf32>
    %83 = arith.addf %81, %82 : vector<1x32xf32>
    %84 = math.rsqrt %83 : vector<1x32xf32>
    %85 = vector.broadcast %84 : vector<1x32xf32> to vector<288x32xf32>
    %86 = arith.mulf %74, %85 : vector<288x32xf32>
    %87 = vector.extract_strided_slice %56 {offsets = [0, 0], sizes = [1, 32], strides = [1, 1]} : vector<1x64xf32> to vector<1x32xf32>
    %88 = vector.extract_strided_slice %56 {offsets = [0, 32], sizes = [1, 32], strides = [1, 1]} : vector<1x64xf32> to vector<1x32xf32>
    %cst_65 = arith.constant 1.000000e+00 : f32
    %89 = vector.broadcast %cst_65 : f32 to vector<1x32xf32>
    %90 = arith.addf %87, %89 : vector<1x32xf32>
    %91 = vector.broadcast %90 : vector<1x32xf32> to vector<288x32xf32>
    %92 = arith.mulf %86, %91 : vector<288x32xf32>
    %93 = vector.broadcast %88 : vector<1x32xf32> to vector<288x32xf32>
    %94 = arith.addf %92, %93 : vector<288x32xf32>
    %95 = vector.broadcast %57 : vector<288x1xf32> to vector<288x32xf32>
    %96 = arith.mulf %94, %95 : vector<288x32xf32>
    %97 = arith.truncf %96 : vector<288x32xf32> to vector<288x32xbf16>
    %c0_66 = arith.constant 0 : index
    %c0_67 = arith.constant 0 : index
    %c0_68 = arith.constant 0 : index
    %98 = vector.load %arg8[%c0_66, %c0_67, %c0_68] : memref<1x288x32xbf16, #tpu.memory_space<vmem>>, vector<1x288x32xbf16>
    %99 = vector.shape_cast %98 : vector<1x288x32xbf16> to vector<288x32xbf16>
    %100 = vector.shape_cast %97 : vector<288x32xbf16> to vector<1x288x32xbf16>
    tpu.vector_store %arg8[%c0_66, %c0_67, %c0_68], %100 {strides = array<i32>} : memref<1x288x32xbf16, #tpu.memory_space<vmem>>, vector<1x288x32xbf16>,
    return
  }
  func.func @transform_0(%arg0: i32) -> (i32, i32, i32) {
    %c0_i32 = arith.constant 0 : i32
    %c0_i32_0 = arith.constant 0 : i32
    %c0_i32_1 = arith.constant 0 : i32
    return %arg0, %c0_i32, %c0_i32_0 : i32, i32, i32
  }
  func.func @transform_1(%arg0: i32) -> (i32, i32, i32) {
    %c0_i32 = arith.constant 0 : i32
    %c0_i32_0 = arith.constant 0 : i32
    %c0_i32_1 = arith.constant 0 : i32
    %c0_i32_2 = arith.constant 0 : i32
    return %c0_i32, %c0_i32_0, %c0_i32_1 : i32, i32, i32
  }
  func.func @transform_2(%arg0: i32) -> (i32, i32) {
    %c0_i32 = arith.constant 0 : i32
    %c0_i32_0 = arith.constant 0 : i32
    %c0_i32_1 = arith.constant 0 : i32
    return %c0_i32, %c0_i32_0 : i32, i32
  }
  func.func @transform_3(%arg0: i32) -> (i32, i32) {
    %c0_i32 = arith.constant 0 : i32
    %c0_i32_0 = arith.constant 0 : i32
    %c0_i32_1 = arith.constant 0 : i32
    return %c0_i32, %c0_i32_0 : i32, i32
  }
  func.func @transform_4(%arg0: i32) -> (i32, i32, i32) {
    %c0_i32 = arith.constant 0 : i32
    %c0_i32_0 = arith.constant 0 : i32
    %c0_i32_1 = arith.constant 0 : i32
    return %arg0, %c0_i32, %c0_i32_0 : i32, i32, i32
  }
  func.func @transform_5(%arg0: i32) -> (i32, i32, i32) {
    %c0_i32 = arith.constant 0 : i32
    %c0_i32_0 = arith.constant 0 : i32
    %c0_i32_1 = arith.constant 0 : i32
    return %arg0, %c0_i32, %c0_i32_0 : i32, i32, i32
  }
  func.func @transform_6(%arg0: i32) -> (i32, i32) {
    %c0_i32 = arith.constant 0 : i32
    %c0_i32_0 = arith.constant 0 : i32
    %c0_i32_1 = arith.constant 0 : i32
    return %c0_i32, %c0_i32_0 : i32, i32
  }
  func.func @transform_7(%arg0: i32) -> (i32, i32, i32) {
    %c0_i32 = arith.constant 0 : i32
    %c0_i32_0 = arith.constant 0 : i32
    %c0_i32_1 = arith.constant 0 : i32
    return %arg0, %c0_i32, %c0_i32_0 : i32, i32, i32
  }
}

module attributes {stable_mosaic.version = 11 : i64} {
  func.func @_rgb_blend_kernel(%arg0: i32, %arg1: memref<1xf32, #tpu.memory_space<smem>>, %arg2: memref<576x32xbf16, #tpu.memory_space<vmem>>, %arg3: memref<32x128xbf16, #tpu.memory_space<vmem>>, %arg4: memref<1x128xf32, #tpu.memory_space<vmem>>, %arg5: memref<576x32xbf16, #tpu.memory_space<vmem>>, %arg6: memref<32x128xbf16, #tpu.memory_space<vmem>>, %arg7: memref<1x128xf32, #tpu.memory_space<vmem>>, %arg8: memref<576x128xf32, #tpu.memory_space<vmem>>) attributes {dimension_semantics = [#tpu.dimension_semantics<parallel>], iteration_bounds = array<i64: 1>, scalar_prefetch = 0 : i64, scratch_operands = 0 : i64, tpu.core_type = #tpu.core_type<tc>, window_params = [{transform_indices = @transform_0, window_bounds = array<i64: 1>}, {transform_indices = @transform_1, window_bounds = array<i64: 576, 32>}, {pipeline_mode = #tpu.pipeline_mode<synchronous>, transform_indices = @transform_2, window_bounds = array<i64: 32, 128>}, {pipeline_mode = #tpu.pipeline_mode<synchronous>, transform_indices = @transform_3, window_bounds = array<i64: 1, 128>}, {transform_indices = @transform_4, window_bounds = array<i64: 576, 32>}, {pipeline_mode = #tpu.pipeline_mode<synchronous>, transform_indices = @transform_5, window_bounds = array<i64: 32, 128>}, {pipeline_mode = #tpu.pipeline_mode<synchronous>, transform_indices = @transform_6, window_bounds = array<i64: 1, 128>}, {transform_indices = @transform_7, window_bounds = array<i64: 576, 128>}]} {
    %c0 = arith.constant 0 : index
    %0 = memref.load %arg1[%c0] : memref<1xf32, #tpu.memory_space<smem>>
    %c0_0 = arith.constant 0 : index
    %c0_1 = arith.constant 0 : index
    %1 = vector.load %arg2[%c0_0, %c0_1] : memref<576x32xbf16, #tpu.memory_space<vmem>>, vector<576x32xbf16>
    %c0_2 = arith.constant 0 : index
    %c0_3 = arith.constant 0 : index
    %2 = vector.load %arg3[%c0_2, %c0_3] : memref<32x128xbf16, #tpu.memory_space<vmem>>, vector<32x128xbf16>
    %cst = arith.constant dense<0.000000e+00> : vector<576x128xf32>
    %3 = tpu.matmul %1, %2, %cst {dimension_numbers = #tpu.dot_dimension_numbers<[1], [0], [0], [1], [0, 0, 1, 1], [], []>} : vector<576x32xbf16>, vector<32x128xbf16>, vector<576x128xf32> -> vector<576x128xf32>
    %c0_4 = arith.constant 0 : index
    %c0_5 = arith.constant 0 : index
    %4 = vector.load %arg4[%c0_4, %c0_5] : memref<1x128xf32, #tpu.memory_space<vmem>>, vector<1x128xf32>
    %5 = vector.broadcast %4 : vector<1x128xf32> to vector<576x128xf32>
    %6 = arith.addf %3, %5 : vector<576x128xf32>
    %c0_6 = arith.constant 0 : index
    %c0_7 = arith.constant 0 : index
    %7 = vector.load %arg5[%c0_6, %c0_7] : memref<576x32xbf16, #tpu.memory_space<vmem>>, vector<576x32xbf16>
    %c0_8 = arith.constant 0 : index
    %c0_9 = arith.constant 0 : index
    %8 = vector.load %arg6[%c0_8, %c0_9] : memref<32x128xbf16, #tpu.memory_space<vmem>>, vector<32x128xbf16>
    %cst_10 = arith.constant dense<0.000000e+00> : vector<576x128xf32>
    %9 = tpu.matmul %7, %8, %cst_10 {dimension_numbers = #tpu.dot_dimension_numbers<[1], [0], [0], [1], [0, 0, 1, 1], [], []>} : vector<576x32xbf16>, vector<32x128xbf16>, vector<576x128xf32> -> vector<576x128xf32>
    %c0_11 = arith.constant 0 : index
    %c0_12 = arith.constant 0 : index
    %10 = vector.load %arg7[%c0_11, %c0_12] : memref<1x128xf32, #tpu.memory_space<vmem>>, vector<1x128xf32>
    %11 = vector.broadcast %10 : vector<1x128xf32> to vector<576x128xf32>
    %12 = arith.addf %9, %11 : vector<576x128xf32>
    %13 = vector.broadcast %0 : f32 to vector<576x128xf32>
    %14 = arith.mulf %13, %6 : vector<576x128xf32>
    %cst_13 = arith.constant 1.000000e+00 : f32
    %15 = arith.subf %cst_13, %0 : f32
    %16 = vector.broadcast %15 : f32 to vector<576x128xf32>
    %17 = arith.mulf %16, %12 : vector<576x128xf32>
    %18 = arith.addf %14, %17 : vector<576x128xf32>
    %c0_14 = arith.constant 0 : index
    %c0_15 = arith.constant 0 : index
    %19 = vector.load %arg8[%c0_14, %c0_15] : memref<576x128xf32, #tpu.memory_space<vmem>>, vector<576x128xf32>
    tpu.vector_store %arg8[%c0_14, %c0_15], %18 {strides = array<i32>} : memref<576x128xf32, #tpu.memory_space<vmem>>, vector<576x128xf32>,
    return
  }
  func.func @transform_0(%arg0: i32) -> i32 {
    %c0_i32 = arith.constant 0 : i32
    %c0_i32_0 = arith.constant 0 : i32
    return %c0_i32 : i32
  }
  func.func @transform_1(%arg0: i32) -> (i32, i32) {
    %c0_i32 = arith.constant 0 : i32
    %c0_i32_0 = arith.constant 0 : i32
    return %arg0, %c0_i32 : i32, i32
  }
  func.func @transform_2(%arg0: i32) -> (i32, i32) {
    %c0_i32 = arith.constant 0 : i32
    %c0_i32_0 = arith.constant 0 : i32
    %c0_i32_1 = arith.constant 0 : i32
    return %c0_i32, %c0_i32_0 : i32, i32
  }
  func.func @transform_3(%arg0: i32) -> (i32, i32) {
    %c0_i32 = arith.constant 0 : i32
    %c0_i32_0 = arith.constant 0 : i32
    %c0_i32_1 = arith.constant 0 : i32
    return %c0_i32, %c0_i32_0 : i32, i32
  }
  func.func @transform_4(%arg0: i32) -> (i32, i32) {
    %c0_i32 = arith.constant 0 : i32
    %c0_i32_0 = arith.constant 0 : i32
    return %arg0, %c0_i32 : i32, i32
  }
  func.func @transform_5(%arg0: i32) -> (i32, i32) {
    %c0_i32 = arith.constant 0 : i32
    %c0_i32_0 = arith.constant 0 : i32
    %c0_i32_1 = arith.constant 0 : i32
    return %c0_i32, %c0_i32_0 : i32, i32
  }
  func.func @transform_6(%arg0: i32) -> (i32, i32) {
    %c0_i32 = arith.constant 0 : i32
    %c0_i32_0 = arith.constant 0 : i32
    %c0_i32_1 = arith.constant 0 : i32
    return %c0_i32, %c0_i32_0 : i32, i32
  }
  func.func @transform_7(%arg0: i32) -> (i32, i32) {
    %c0_i32 = arith.constant 0 : i32
    %c0_i32_0 = arith.constant 0 : i32
    return %arg0, %c0_i32 : i32, i32
  }
}

</mosaic_0001>

<llo_original>
// kernel: gsynthesis_forward.7
$region0: #{gsynthesis_forward.7}
  #allocation0 [shape = 'u32[]', space=smem, size = 0x4, offset = 0x4, fixed_abs, tag = 'smem constant byte address 0x4 - core index']
  #allocation1 [shape = 'u32[72,128]{1,0:T(1,128)}', space=vmem, size = 0x9000, scoped, tag = 'internal scratch']
  %s0 = inlined_call_operand.vmem [shape: bf16[1,24,32], index: 0, kind: input, shape index: {}]
  %s1 = inlined_call_operand.vmem [shape: f32[1,32], index: 1, kind: input, shape index: {}]
  %s2 = inlined_call_operand.vmem [shape: f32[2,1,64], index: 2, kind: input, shape index: {}]
  %s3 = inlined_call_operand.vmem [shape: f32[2,24,1], index: 3, kind: input, shape index: {}]
  %s4 = inlined_call_operand.vmem [shape: f32[24,1], index: 4, kind: input, shape index: {}]
  %s5 = inlined_call_operand.vmem [shape: bf16[2,24,32], index: 5, kind: output, shape index: {}]
  %s6 = sld [smem:[#allocation0]]
  $region53: #{gsynthesis_forward.7} parent=0
    _
  %s8 = ssub.s32 1, %s6
  %s9 = scalar_select 0, %s8, %s6
  loop: start=0, step=1, limit=4
  $region2: #{gsynthesis_forward.7} parent=0 // loop_pre_header
    _
  $region3: #{gsynthesis_forward.7} parent=0 // loop_header
    %s11 = sphi 0, %s15
    %p12 = scmp.ge.s32.totalorder %s11, 4
    %s19 = sphi 0, %s19
    %s21 = sphi 0, %s19
    %s22 = sphi 0, %s21
    %s36 = sphi 0, %s22
    %s40 = sphi 0, %s40
    %s42 = sphi 0, %s40
    %s43 = sphi 0, %s42
    %s57 = sphi 0, %s43
    %s63 = sphi 0, %s65
    %s66 = sphi 0, %s63
    %s67 = sphi 0, %s66
    %s83 = sphi 0, %s67
    %s89 = sphi 0, %s91
    %s92 = sphi 0, %s89
    %s93 = sphi 0, %s92
    %s109 = sphi 0, %s93
    %s113 = sphi 0, %s113
    %s115 = sphi 0, %s113
    %s116 = sphi 0, %s115
    %s130 = sphi 0, %s116
    %s136 = sphi 0, %s138
    %s139 = sphi 0, %s136
    %s140 = sphi 0, %s139
    %s156 = sphi 0, %s140
  $region4: #{gsynthesis_forward.7} parent=0 // loop_header_branch
    %14 = sbr.rel (%p12) target = $region8
  $region5: #{gsynthesis_forward.7} parent=0 // loop_body
    %s16 = ssub.s32 %s11, 1
    %s17 = ssub.s32 %s11, 2
    %s18 = sadd.s32 %s11, 1
    %s20 = sadd.s32 %s19, 1
    %p23 = scmp.eq.s32.totalorder %s11, 1
    %p24 = scmp.ne.s32.totalorder %s19, %s21
    %p25 = scmp.eq.s32.totalorder %s11, 0
    %p26 = por %p24, %p25
    %p27 = scmp.ne.s32.totalorder %s19, %s21
    %p28 = scmp.eq.s32.totalorder %s16, 1
    %p29 = por %p27, %p28
    %p30 = scmp.ne.s32.totalorder %s21, %s22
    %p31 = scmp.eq.s32.totalorder %s16, 0
    %p32 = por %p30, %p31
    %p33 = scmp.ne.s32.totalorder %s21, %s22
    %p34 = scmp.eq.s32.totalorder %s17, 1
    %p35 = por %p33, %p34
    %p37 = scmp.ne.s32.totalorder %s22, %s36
    %p38 = scmp.eq.s32.totalorder %s17, 0
    %p39 = por %p37, %p38
    %s41 = sadd.s32 %s40, 1
    %p44 = scmp.eq.s32.totalorder %s11, 1
    %p45 = scmp.ne.s32.totalorder %s40, %s42
    %p46 = scmp.eq.s32.totalorder %s11, 0
    %p47 = por %p45, %p46
    %p48 = scmp.ne.s32.totalorder %s40, %s42
    %p49 = scmp.eq.s32.totalorder %s16, 1
    %p50 = por %p48, %p49
    %p51 = scmp.ne.s32.totalorder %s42, %s43
    %p52 = scmp.eq.s32.totalorder %s16, 0
    %p53 = por %p51, %p52
    %p54 = scmp.ne.s32.totalorder %s42, %s43
    %p55 = scmp.eq.s32.totalorder %s17, 1
    %p56 = por %p54, %p55
    %p58 = scmp.ne.s32.totalorder %s43, %s57
    %p59 = scmp.eq.s32.totalorder %s17, 0
    %p60 = por %p58, %p59
    %s61 = ssub.s32 %s11, %s18
    %p62 = scmp.eq.s32.totalorder %s61, 0
    %s64 = sadd.s32 %s63, 1
    %s65 = scalar_select %p62, %s63, %s64
    %p68 = pneg %p62
    %p69 = scmp.eq.s32.totalorder %s11, 1
    %p70 = por %p68, %p69
    %p71 = scmp.ne.s32.totalorder %s63, %s66
    %p72 = scmp.eq.s32.totalorder %s11, 0
    %p73 = por %p71, %p72
    %p74 = scmp.ne.s32.totalorder %s63, %s66
    %p75 = scmp.eq.s32.totalorder %s16, 1
    %p76 = por %p74, %p75
    %p77 = scmp.ne.s32.totalorder %s66, %s67
    %p78 = scmp.eq.s32.totalorder %s16, 0
    %p79 = por %p77, %p78
    %p80 = scmp.ne.s32.totalorder %s66, %s67
    %p81 = scmp.eq.s32.totalorder %s17, 1
    %p82 = por %p80, %p81
    %p84 = scmp.ne.s32.totalorder %s67, %s83
    %p85 = scmp.eq.s32.totalorder %s17, 0
    %p86 = por %p84, %p85
    %s87 = ssub.s32 %s11, %s18
    %p88 = scmp.eq.s32.totalorder %s87, 0
    %s90 = sadd.s32 %s89, 1
    %s91 = scalar_select %p88, %s89, %s90
    %p94 = pneg %p88
    %p95 = scmp.eq.s32.totalorder %s11, 1
    %p96 = por %p94, %p95
    %p97 = scmp.ne.s32.totalorder %s89, %s92
    %p98 = scmp.eq.s32.totalorder %s11, 0
    %p99 = por %p97, %p98
    %p100 = scmp.ne.s32.totalorder %s89, %s92
    %p101 = scmp.eq.s32.totalorder %s16, 1
    %p102 = por %p100, %p101
    %p103 = scmp.ne.s32.totalorder %s92, %s93
    %p104 = scmp.eq.s32.totalorder %s16, 0
    %p105 = por %p103, %p104
    %p106 = scmp.ne.s32.totalorder %s92, %s93
    %p107 = scmp.eq.s32.totalorder %s17, 1
    %p108 = por %p106, %p107
    %p110 = scmp.ne.s32.totalorder %s93, %s109
    %p111 = scmp.eq.s32.totalorder %s17, 0
    %p112 = por %p110, %p111
    %s114 = sadd.s32 %s113, 1
    %p117 = scmp.eq.s32.totalorder %s11, 1
    %p118 = scmp.ne.s32.totalorder %s113, %s115
    %p119 = scmp.eq.s32.totalorder %s11, 0
    %p120 = por %p118, %p119
    %p121 = scmp.ne.s32.totalorder %s113, %s115
    %p122 = scmp.eq.s32.totalorder %s16, 1
    %p123 = por %p121, %p122
    %p124 = scmp.ne.s32.totalorder %s115, %s116
    %p125 = scmp.eq.s32.totalorder %s16, 0
    %p126 = por %p124, %p125
    %p127 = scmp.ne.s32.totalorder %s115, %s116
    %p128 = scmp.eq.s32.totalorder %s17, 1
    %p129 = por %p127, %p128
    %p131 = scmp.ne.s32.totalorder %s116, %s130
    %p132 = scmp.eq.s32.totalorder %s17, 0
    %p133 = por %p131, %p132
    %s134 = ssub.s32 %s11, %s18
    %p135 = scmp.eq.s32.totalorder %s134, 0
    %s137 = sadd.s32 %s136, 1
    %s138 = scalar_select %p135, %s136, %s137
    %p141 = pneg %p135
    %p142 = scmp.eq.s32.totalorder %s11, 1
    %p143 = por %p141, %p142
    %p144 = scmp.ne.s32.totalorder %s136, %s139
    %p145 = scmp.eq.s32.totalorder %s11, 0
    %p146 = por %p144, %p145
    %p147 = scmp.ne.s32.totalorder %s136, %s139
    %p148 = scmp.eq.s32.totalorder %s16, 1
    %p149 = por %p147, %p148
    %p150 = scmp.ne.s32.totalorder %s139, %s140
    %p151 = scmp.eq.s32.totalorder %s16, 0
    %p152 = por %p150, %p151
    %p153 = scmp.ne.s32.totalorder %s139, %s140
    %p154 = scmp.eq.s32.totalorder %s17, 1
    %p155 = por %p153, %p154
    %p157 = scmp.ne.s32.totalorder %s140, %s156
    %p158 = scmp.eq.s32.totalorder %s17, 0
    %p159 = por %p157, %p158
    %p160 = scmp.le.s32.totalorder 1, %s11
    %p161 = scmp.lt.s32.totalorder %s11, 3
    %p162 = pnand %p160, %p161
    %p163 = pneg %p162
    // Predicated region
    $region9: #{gsynthesis_forward.7} parent=5 // pred_check
      _
    $region10: #{gsynthesis_forward.7} parent=5 // pred_check_branch
      %165 = sbr.rel (%p162) target = $region12
    $region11: #{gsynthesis_forward.7} parent=5 // pred_region
      %s166 = ssub.s32 %s11, 1
      // Predicated region
      $region13: #{gsynthesis_forward.7} parent=11 // pred_check
        %p167 = pneg %p32
      $region14: #{gsynthesis_forward.7} parent=11 // pred_check_branch
        %169 = sbr.rel (%p167) target = $region16
      $region15: #{gsynthesis_forward.7} parent=11 // pred_region
        _
      $region16: #{gsynthesis_forward.7} parent=11 // pred_fallthru
        _
      // Predicated region
      $region17: #{gsynthesis_forward.7} parent=11 // pred_check
        %p170 = pneg %p53
      $region18: #{gsynthesis_forward.7} parent=11 // pred_check_branch
        %172 = sbr.rel (%p170) target = $region20
      $region19: #{gsynthesis_forward.7} parent=11 // pred_region
        _
      $region20: #{gsynthesis_forward.7} parent=11 // pred_fallthru
        _
      // Predicated region
      $region21: #{gsynthesis_forward.7} parent=11 // pred_check
        %p173 = pneg %p126
      $region22: #{gsynthesis_forward.7} parent=11 // pred_check_branch
        %175 = sbr.rel (%p173) target = $region24
      $region23: #{gsynthesis_forward.7} parent=11 // pred_region
        _
      $region24: #{gsynthesis_forward.7} parent=11 // pred_fallthru
        _
    $region12: #{gsynthesis_forward.7} parent=5 // pred_fallthru
      _
    %p176 = scmp.lt.s32.totalorder %s11, 2
    // Predicated region
    $region25: #{gsynthesis_forward.7} parent=5 // pred_check
      %p177 = pneg %p176
    $region26: #{gsynthesis_forward.7} parent=5 // pred_check_branch
      %179 = sbr.rel (%p177) target = $region28
    $region27: #{gsynthesis_forward.7} parent=5 // pred_region
      // Predicated region
      $region29: #{gsynthesis_forward.7} parent=27 // pred_check
        %p180 = pneg %p73
      $region30: #{gsynthesis_forward.7} parent=27 // pred_check_branch
        %182 = sbr.rel (%p180) target = $region32
      $region31: #{gsynthesis_forward.7} parent=27 // pred_region
        %p183 = scmp.lt.s32.totalorder %s11, 1
        %s184 = scalar_select %p183, %s11, 1
        %s185 = scalar_lea.vmem %s2, %s184
      $region32: #{gsynthesis_forward.7} parent=27 // pred_fallthru
        _
      // Predicated region
      $region33: #{gsynthesis_forward.7} parent=27 // pred_check
        %p186 = pneg %p99
      $region34: #{gsynthesis_forward.7} parent=27 // pred_check_branch
        %188 = sbr.rel (%p186) target = $region36
      $region35: #{gsynthesis_forward.7} parent=27 // pred_region
        %p189 = scmp.lt.s32.totalorder %s11, 1
        %s190 = scalar_select %p189, %s11, 1
        %s191 = smul.addr %s190, 3
        %s192 = smul.addr %s191, 8
        %s193 = scalar_lea.vmem %s3, %s192
      $region36: #{gsynthesis_forward.7} parent=27 // pred_fallthru
        _
    $region28: #{gsynthesis_forward.7} parent=5 // pred_fallthru
      _
    %p194 = scmp.le.s32.totalorder 1, %s11
    %p195 = scmp.lt.s32.totalorder %s11, 3
    %p196 = pnand %p194, %p195
    %p197 = pneg %p196
    // Predicated region
    $region37: #{gsynthesis_forward.7} parent=5 // pred_check
      _
    $region38: #{gsynthesis_forward.7} parent=5 // pred_check_branch
      %199 = sbr.rel (%p196) target = $region40
    $region39: #{gsynthesis_forward.7} parent=5 // pred_region
      %s200 = ssub.s32 %s11, 1
      %p201 = pneg %p32
      %p202 = pneg %p29
      %p203 = pneg %p53
      %p204 = pneg %p50
      %p205 = scmp.lt.s32.totalorder %s16, 1
      %s206 = scalar_select %p205, %s16, 1
      %s207 = scalar_lea.vmem %s2, %s206
      %p208 = pneg %p79
      %p209 = pneg %p76
      %p210 = scmp.lt.s32.totalorder %s16, 1
      %s211 = scalar_select %p210, %s16, 1
      %s212 = smul.addr %s211, 3
      %s213 = smul.addr %s212, 8
      %s214 = scalar_lea.vmem %s3, %s213
      %p215 = pneg %p105
      %p216 = pneg %p102
      %p217 = pneg %p126
      %p218 = pneg %p123
      %p219 = pneg %p152
      %p220 = pneg %p149
      %p221 = scmp.lt.s32.totalorder %s16, 1
      %s222 = scalar_select %p221, %s16, 1
      %s223 = smul.addr %s222, 3
      %s224 = smul.addr %s223, 4
      %s225 = scalar_lea.vmem %s5, %s224
      %p226 = scmp.lt.s32.totalorder %s16, 1
      %s227 = scalar_select %p226, %s16, 1
      %s228 = scalar_lea.vmem %s2, %s227
      %p229 = scmp.lt.s32.totalorder %s16, 1
      %s230 = scalar_select %p229, %s16, 1
      %s231 = smul.addr %s230, 3
      %s232 = smul.addr %s231, 8
      %s233 = scalar_lea.vmem %s3, %s232
      %p234 = scmp.lt.s32.totalorder %s16, 1
      %s235 = scalar_select %p234, %s16, 1
      %s236 = smul.addr %s235, 3
      %s237 = smul.addr %s236, 4
      %s238 = scalar_lea.vmem %s5, %s237
      %v239 = vld [vmem:[%s0] sm:$0xf]
      %v240 = vld [vmem:[%s0 + $0x4] sm:$0xf]
      %v241 = vld [vmem:[%s0 + $0x8] sm:$0xf]
      %v242 = vunpack.c.l.bf16 %v239
      %v243 = vunpack.c.l.bf16 %v240
      %v244 = vunpack.c.l.bf16 %v241
      %v245 = vld [vmem:[%s1] sm:$0x1]
      %v246 = vld [vmem:[%s233] sm:$0xff]
      %v247 = vld [vmem:[%s233 + $0x8] sm:$0xff]
      %v248 = vld [vmem:[%s233 + $0x10] sm:$0xff]
      %v249 = vld [vmem:[%s228] sm:$0x1]
      %v250 = vld [vmem:[%s4] sm:$0xff]
      %v251 = vld [vmem:[%s4 + $0x8] sm:$0xff]
      %v252 = vld [vmem:[%s4 + $0x10] sm:$0xff]
      %v254 = vperm.slane %v245, 0
      %257 = vset.pattern.permute.xlu0 0
      %258 = vperm.xlu0 %257, %v246
      %v259 = vpop.permute.xlu0 %258
      %262 = vset.pattern.permute.xlu0 0
      %263 = vperm.xlu0 %262, %v247
      %v264 = vpop.permute.xlu0 %263
      %267 = vset.pattern.permute.xlu0 0
      %268 = vperm.xlu0 %267, %v248
      %v269 = vpop.permute.xlu0 %268
      %v271 = vmul.f32 %v254, %v259
      %v272 = vmul.f32 %v254, %v264
      %v273 = vmul.f32 %v254, %v269
      %v274 = vadd.f32 %v242, %v271
      %v275 = vadd.f32 %v243, %v272
      %v276 = vadd.f32 %v244, %v273
      %vm277 = vcmp.ge.f32.partialorder %v274, 0.0
      %vm278 = vcmp.ge.f32.partialorder %v275, 0.0
      %vm279 = vcmp.ge.f32.partialorder %v276, 0.0
      %v280 = vmul.f32 %v274, 0.2
      %v281 = vmul.f32 %v275, 0.2
      %v282 = vmul.f32 %v276, 0.2
      %v283 = vsel %vm277, %v274, %v280
      %v284 = vsel %vm278, %v275, %v281
      %v285 = vsel %vm279, %v276, %v282
      %287 = vset.pattern.permute.xlu0 0
      %288 = vperm.xlu0 %287, %v250
      %v289 = vpop.permute.xlu0 %288
      %292 = vset.pattern.permute.xlu0 0
      %293 = vperm.xlu0 %292, %v251
      %v294 = vpop.permute.xlu0 %293
      %297 = vset.pattern.permute.xlu0 0
      %298 = vperm.xlu0 %297, %v252
      %v299 = vpop.permute.xlu0 %298
      %v301 = vmul.f32 %v283, %v289
      %v302 = vmul.f32 %v284, %v294
      %v303 = vmul.f32 %v285, %v299
      %vm304 = vcmask 261120
      %v305 = vsel %vm304, %v301, 0.0
      %v306 = vsel %vm304, %v302, 0.0
      %v307 = vadd.f32 %v305, %v306
      %v308 = vsel %vm304, %v303, 0.0
      %v309 = vadd.f32 %v307, %v308
      %v310 = vrot.slane %v309, 4
      %v311 = vadd.f32 %v309, %v310
      %v312 = vrot.slane %v311, 2
      %v313 = vadd.f32 %v311, %v312
      %v314 = vrot.slane %v313, 1
      %v315 = vadd.f32 %v313, %v314
      %v316 = vmul.f32 %v315, 0.0625
      %v317 = vsub.f32 %v283, %v316
      %v318 = vsub.f32 %v284, %v316
      %v319 = vsub.f32 %v285, %v316
      %v320 = vmul.f32 %v317, %v317
      %v321 = vmul.f32 %v318, %v318
      %v322 = vmul.f32 %v319, %v319
      %v323 = vmul.f32 %v320, %v289
      %v324 = vmul.f32 %v321, %v294
      %v325 = vmul.f32 %v322, %v299
      %v326 = vsel %vm304, %v323, 0.0
      %v327 = vsel %vm304, %v324, 0.0
      %v328 = vadd.f32 %v326, %v327
      %v329 = vsel %vm304, %v325, 0.0
      %v330 = vadd.f32 %v328, %v329
      %v331 = vrot.slane %v330, 4
      %v332 = vadd.f32 %v330, %v331
      %v333 = vrot.slane %v332, 2
      %v334 = vadd.f32 %v332, %v333
      %v335 = vrot.slane %v334, 1
      %v336 = vadd.f32 %v334, %v335
      %v337 = vmul.f32 %v336, 0.0625
      %v338 = vadd.f32 %v337, 1e-05
      %v339 = vrsqrt.pop %v338
      %v340 = vmul.f32 %v339, %v338
      %v341 = vmul.f32 %v340, %v339
      %v342 = vmul.f32 0.5, %v341
      %v343 = vsub.f32 1.5, %v342
      %v344 = vmul.f32 %v339, %v343
      %vm345 = vweird.f32 %v338
      %vm346 = vweird.f32 %v339
      %vm347 = vmor %vm345, %vm346
      %v348 = vsel %vm347, %v339, %v344
      %v349 = vmul.f32 %v317, %v348
      %v350 = vmul.f32 %v318, %v348
      %v351 = vmul.f32 %v319, %v348
      %v352 = vadd.f32 %v249, 1.0
      %v354 = vperm.slane %v352, 0
      %v356 = vmul.f32 %v349, %v354
      %v357 = vmul.f32 %v350, %v354
      %v358 = vmul.f32 %v351, %v354
      %v360 = vperm.slane %v249, 0
      %361 = vrot.lane.b32.xlu0 %v360, 96
      %v362 = vpop.permute.xlu0 %361
      %v364 = vadd.f32 %v356, %v362
      %v365 = vadd.f32 %v357, %v362
      %v366 = vadd.f32 %v358, %v362
      %v367 = vmul.f32 %v364, %v289
      %v368 = vmul.f32 %v365, %v294
      %v369 = vmul.f32 %v366, %v299
      %v370 = vpack.c.bf16 %v367, %v367
      %v371 = vpack.c.bf16 %v368, %v368
      %v372 = vpack.c.bf16 %v369, %v369
      %vm373 = vcmask 257024
      %374 = vst.msk [vmem:[%s238] sm:$0xf] %vm373, %v370
      %375 = vst.msk [vmem:[%s238 + $0x4] sm:$0xf] %vm373, %v371
      %376 = vst.msk [vmem:[%s238 + $0x8] sm:$0xf] %vm373, %v372
      %p377 = scmp.lt.s32.totalorder %s16, 1
      %s378 = scalar_select %p377, %s16, 1
      %s379 = smul.addr %s378, 3
      %s380 = smul.addr %s379, 4
      %s381 = scalar_lea.vmem %s5, %s380
      // Predicated region
      $region41: #{gsynthesis_forward.7} parent=39 // pred_check
        %p382 = pneg %p149
      $region42: #{gsynthesis_forward.7} parent=39 // pred_check_branch
        %384 = sbr.rel (%p382) target = $region44
      $region43: #{gsynthesis_forward.7} parent=39 // pred_region
        _
      $region44: #{gsynthesis_forward.7} parent=39 // pred_fallthru
        _
    $region40: #{gsynthesis_forward.7} parent=5 // pred_fallthru
      _
    %p385 = scmp.le.s32.totalorder 2, %s11
    // Predicated region
    $region45: #{gsynthesis_forward.7} parent=5 // pred_check
      %p386 = pneg %p385
    $region46: #{gsynthesis_forward.7} parent=5 // pred_check_branch
      %388 = sbr.rel (%p386) target = $region48
    $region47: #{gsynthesis_forward.7} parent=5 // pred_region
      %s389 = ssub.s32 %s11, 2
      // Predicated region
      $region49: #{gsynthesis_forward.7} parent=47 // pred_check
        %p390 = pneg %p155
      $region50: #{gsynthesis_forward.7} parent=47 // pred_check_branch
        %392 = sbr.rel (%p390) target = $region52
      $region51: #{gsynthesis_forward.7} parent=47 // pred_region
        %p393 = scmp.lt.s32.totalorder %s17, 1
        %s394 = scalar_select %p393, %s17, 1
        %s395 = smul.addr %s394, 3
        %s396 = smul.addr %s395, 4
        %s397 = scalar_lea.vmem %s5, %s396
      $region52: #{gsynthesis_forward.7} parent=47 // pred_fallthru
        _
    $region48: #{gsynthesis_forward.7} parent=5 // pred_fallthru
      _
  $region6: #{gsynthesis_forward.7} parent=0 // loop_footer
    %s15 = sadd.s32 1, %s11
  $region7: #{gsynthesis_forward.7} parent=0 // loop_footer_branch
    %10 = sbr.rel target = $region3
  $region8: #{gsynthesis_forward.7} parent=0 // loop_exit
    _

// kernel: gsynthesis_forward.8
$region0: #{gsynthesis_forward.8}
  #allocation0 [shape = 'u32[]', space=smem, size = 0x4, offset = 0x4, fixed_abs, tag = 'smem constant byte address 0x4 - core index']
  #allocation1 [shape = 'u32[72,128]{1,0:T(1,128)}', space=vmem, size = 0x9000, scoped, tag = 'internal scratch']
  #allocation2 [shape = 'bf16[42,32]{1,0:T(8,128)(2,1)}', space=vmem, size = 0x3000, scoped, tag = 'scratch operand']
  %s0 = inlined_call_operand.vmem [shape: bf16[2,24,32], index: 0, kind: input, shape index: {}]
  %s1 = inlined_call_operand.vmem [shape: bf16[9,32,32], index: 1, kind: input, shape index: {}]
  %s2 = inlined_call_operand.vmem [shape: f32[1,32], index: 2, kind: input, shape index: {}]
  %s3 = inlined_call_operand.vmem [shape: f32[1,32], index: 3, kind: input, shape index: {}]
  %s4 = inlined_call_operand.vmem [shape: f32[2,1,64], index: 4, kind: input, shape index: {}]
  %s5 = inlined_call_operand.vmem [shape: f32[2,24,1], index: 5, kind: input, shape index: {}]
  %s6 = inlined_call_operand.vmem [shape: f32[24,1], index: 6, kind: input, shape index: {}]
  %s7 = inlined_call_operand.vmem [shape: bf16[2,24,32], index: 7, kind: output, shape index: {}]
  %s8 = sld [smem:[#allocation0]]
  $region61: #{gsynthesis_forward.8} parent=0
    _
  %s10 = ssub.s32 1, %s8
  %s11 = scalar_select 0, %s10, %s8
  loop: start=0, step=1, limit=4
  $region2: #{gsynthesis_forward.8} parent=0 // loop_pre_header
    _
  $region3: #{gsynthesis_forward.8} parent=0 // loop_header
    %s13 = sphi 0, %s17
    %p14 = scmp.ge.s32.totalorder %s13, 4
    %s23 = sphi 0, %s25
    %s26 = sphi 0, %s23
    %s27 = sphi 0, %s26
    %s43 = sphi 0, %s27
    %s47 = sphi 0, %s47
    %s49 = sphi 0, %s47
    %s50 = sphi 0, %s49
    %s64 = sphi 0, %s50
    %s68 = sphi 0, %s68
    %s70 = sphi 0, %s68
    %s71 = sphi 0, %s70
    %s85 = sphi 0, %s71
    %s89 = sphi 0, %s89
    %s91 = sphi 0, %s89
    %s92 = sphi 0, %s91
    %s106 = sphi 0, %s92
    %s112 = sphi 0, %s114
    %s115 = sphi 0, %s112
    %s116 = sphi 0, %s115
    %s132 = sphi 0, %s116
    %s138 = sphi 0, %s140
    %s141 = sphi 0, %s138
    %s142 = sphi 0, %s141
    %s158 = sphi 0, %s142
    %s162 = sphi 0, %s162
    %s164 = sphi 0, %s162
    %s165 = sphi 0, %s164
    %s179 = sphi 0, %s165
    %s185 = sphi 0, %s187
    %s188 = sphi 0, %s185
    %s189 = sphi 0, %s188
    %s205 = sphi 0, %s189
  $region4: #{gsynthesis_forward.8} parent=0 // loop_header_branch
    %16 = sbr.rel (%p14) target = $region8
  $region5: #{gsynthesis_forward.8} parent=0 // loop_body
    %s18 = ssub.s32 %s13, 1
    %s19 = ssub.s32 %s13, 2
    %s20 = sadd.s32 %s13, 1
    %s21 = ssub.s32 %s13, %s20
    %p22 = scmp.eq.s32.totalorder %s21, 0
    %s24 = sadd.s32 %s23, 1
    %s25 = scalar_select %p22, %s23, %s24
    %p28 = pneg %p22
    %p29 = scmp.eq.s32.totalorder %s13, 1
    %p30 = por %p28, %p29
    %p31 = scmp.ne.s32.totalorder %s23, %s26
    %p32 = scmp.eq.s32.totalorder %s13, 0
    %p33 = por %p31, %p32
    %p34 = scmp.ne.s32.totalorder %s23, %s26
    %p35 = scmp.eq.s32.totalorder %s18, 1
    %p36 = por %p34, %p35
    %p37 = scmp.ne.s32.totalorder %s26, %s27
    %p38 = scmp.eq.s32.totalorder %s18, 0
    %p39 = por %p37, %p38
    %p40 = scmp.ne.s32.totalorder %s26, %s27
    %p41 = scmp.eq.s32.totalorder %s19, 1
    %p42 = por %p40, %p41
    %p44 = scmp.ne.s32.totalorder %s27, %s43
    %p45 = scmp.eq.s32.totalorder %s19, 0
    %p46 = por %p44, %p45
    %s48 = sadd.s32 %s47, 1
    %p51 = scmp.eq.s32.totalorder %s13, 1
    %p52 = scmp.ne.s32.totalorder %s47, %s49
    %p53 = scmp.eq.s32.totalorder %s13, 0
    %p54 = por %p52, %p53
    %p55 = scmp.ne.s32.totalorder %s47, %s49
    %p56 = scmp.eq.s32.totalorder %s18, 1
    %p57 = por %p55, %p56
    %p58 = scmp.ne.s32.totalorder %s49, %s50
    %p59 = scmp.eq.s32.totalorder %s18, 0
    %p60 = por %p58, %p59
    %p61 = scmp.ne.s32.totalorder %s49, %s50
    %p62 = scmp.eq.s32.totalorder %s19, 1
    %p63 = por %p61, %p62
    %p65 = scmp.ne.s32.totalorder %s50, %s64
    %p66 = scmp.eq.s32.totalorder %s19, 0
    %p67 = por %p65, %p66
    %s69 = sadd.s32 %s68, 1
    %p72 = scmp.eq.s32.totalorder %s13, 1
    %p73 = scmp.ne.s32.totalorder %s68, %s70
    %p74 = scmp.eq.s32.totalorder %s13, 0
    %p75 = por %p73, %p74
    %p76 = scmp.ne.s32.totalorder %s68, %s70
    %p77 = scmp.eq.s32.totalorder %s18, 1
    %p78 = por %p76, %p77
    %p79 = scmp.ne.s32.totalorder %s70, %s71
    %p80 = scmp.eq.s32.totalorder %s18, 0
    %p81 = por %p79, %p80
    %p82 = scmp.ne.s32.totalorder %s70, %s71
    %p83 = scmp.eq.s32.totalorder %s19, 1
    %p84 = por %p82, %p83
    %p86 = scmp.ne.s32.totalorder %s71, %s85
    %p87 = scmp.eq.s32.totalorder %s19, 0
    %p88 = por %p86, %p87
    %s90 = sadd.s32 %s89, 1
    %p93 = scmp.eq.s32.totalorder %s13, 1
    %p94 = scmp.ne.s32.totalorder %s89, %s91
    %p95 = scmp.eq.s32.totalorder %s13, 0
    %p96 = por %p94, %p95
    %p97 = scmp.ne.s32.totalorder %s89, %s91
    %p98 = scmp.eq.s32.totalorder %s18, 1
    %p99 = por %p97, %p98
    %p100 = scmp.ne.s32.totalorder %s91, %s92
    %p101 = scmp.eq.s32.totalorder %s18, 0
    %p102 = por %p100, %p101
    %p103 = scmp.ne.s32.totalorder %s91, %s92
    %p104 = scmp.eq.s32.totalorder %s19, 1
    %p105 = por %p103, %p104
    %p107 = scmp.ne.s32.totalorder %s92, %s106
    %p108 = scmp.eq.s32.totalorder %s19, 0
    %p109 = por %p107, %p108
    %s110 = ssub.s32 %s13, %s20
    %p111 = scmp.eq.s32.totalorder %s110, 0
    %s113 = sadd.s32 %s112, 1
    %s114 = scalar_select %p111, %s112, %s113
    %p117 = pneg %p111
    %p118 = scmp.eq.s32.totalorder %s13, 1
    %p119 = por %p117, %p118
    %p120 = scmp.ne.s32.totalorder %s112, %s115
    %p121 = scmp.eq.s32.totalorder %s13, 0
    %p122 = por %p120, %p121
    %p123 = scmp.ne.s32.totalorder %s112, %s115
    %p124 = scmp.eq.s32.totalorder %s18, 1
    %p125 = por %p123, %p124
    %p126 = scmp.ne.s32.totalorder %s115, %s116
    %p127 = scmp.eq.s32.totalorder %s18, 0
    %p128 = por %p126, %p127
    %p129 = scmp.ne.s32.totalorder %s115, %s116
    %p130 = scmp.eq.s32.totalorder %s19, 1
    %p131 = por %p129, %p130
    %p133 = scmp.ne.s32.totalorder %s116, %s132
    %p134 = scmp.eq.s32.totalorder %s19, 0
    %p135 = por %p133, %p134
    %s136 = ssub.s32 %s13, %s20
    %p137 = scmp.eq.s32.totalorder %s136, 0
    %s139 = sadd.s32 %s138, 1
    %s140 = scalar_select %p137, %s138, %s139
    %p143 = pneg %p137
    %p144 = scmp.eq.s32.totalorder %s13, 1
    %p145 = por %p143, %p144
    %p146 = scmp.ne.s32.totalorder %s138, %s141
    %p147 = scmp.eq.s32.totalorder %s13, 0
    %p148 = por %p146, %p147
    %p149 = scmp.ne.s32.totalorder %s138, %s141
    %p150 = scmp.eq.s32.totalorder %s18, 1
    %p151 = por %p149, %p150
    %p152 = scmp.ne.s32.totalorder %s141, %s142
    %p153 = scmp.eq.s32.totalorder %s18, 0
    %p154 = por %p152, %p153
    %p155 = scmp.ne.s32.totalorder %s141, %s142
    %p156 = scmp.eq.s32.totalorder %s19, 1
    %p157 = por %p155, %p156
    %p159 = scmp.ne.s32.totalorder %s142, %s158
    %p160 = scmp.eq.s32.totalorder %s19, 0
    %p161 = por %p159, %p160
    %s163 = sadd.s32 %s162, 1
    %p166 = scmp.eq.s32.totalorder %s13, 1
    %p167 = scmp.ne.s32.totalorder %s162, %s164
    %p168 = scmp.eq.s32.totalorder %s13, 0
    %p169 = por %p167, %p168
    %p170 = scmp.ne.s32.totalorder %s162, %s164
    %p171 = scmp.eq.s32.totalorder %s18, 1
    %p172 = por %p170, %p171
    %p173 = scmp.ne.s32.totalorder %s164, %s165
    %p174 = scmp.eq.s32.totalorder %s18, 0
    %p175 = por %p173, %p174
    %p176 = scmp.ne.s32.totalorder %s164, %s165
    %p177 = scmp.eq.s32.totalorder %s19, 1
    %p178 = por %p176, %p177
    %p180 = scmp.ne.s32.totalorder %s165, %s179
    %p181 = scmp.eq.s32.totalorder %s19, 0
    %p182 = por %p180, %p181
    %s183 = ssub.s32 %s13, %s20
    %p184 = scmp.eq.s32.totalorder %s183, 0
    %s186 = sadd.s32 %s185, 1
    %s187 = scalar_select %p184, %s185, %s186
    %p190 = pneg %p184
    %p191 = scmp.eq.s32.totalorder %s13, 1
    %p192 = por %p190, %p191
    %p193 = scmp.ne.s32.totalorder %s185, %s188
    %p194 = scmp.eq.s32.totalorder %s13, 0
    %p195 = por %p193, %p194
    %p196 = scmp.ne.s32.totalorder %s185, %s188
    %p197 = scmp.eq.s32.totalorder %s18, 1
    %p198 = por %p196, %p197
    %p199 = scmp.ne.s32.totalorder %s188, %s189
    %p200 = scmp.eq.s32.totalorder %s18, 0
    %p201 = por %p199, %p200
    %p202 = scmp.ne.s32.totalorder %s188, %s189
    %p203 = scmp.eq.s32.totalorder %s19, 1
    %p204 = por %p202, %p203
    %p206 = scmp.ne.s32.totalorder %s189, %s205
    %p207 = scmp.eq.s32.totalorder %s19, 0
    %p208 = por %p206, %p207
    %p209 = scmp.le.s32.totalorder 1, %s13
    %p210 = scmp.lt.s32.totalorder %s13, 3
    %p211 = pnand %p209, %p210
    %p212 = pneg %p211
    // Predicated region
    $region9: #{gsynthesis_forward.8} parent=5 // pred_check
      _
    $region10: #{gsynthesis_forward.8} parent=5 // pred_check_branch
      %214 = sbr.rel (%p211) target = $region12
    $region11: #{gsynthesis_forward.8} parent=5 // pred_region
      %s215 = ssub.s32 %s13, 1
      // Predicated region
      $region13: #{gsynthesis_forward.8} parent=11 // pred_check
        %p216 = pneg %p60
      $region14: #{gsynthesis_forward.8} parent=11 // pred_check_branch
        %218 = sbr.rel (%p216) target = $region16
      $region15: #{gsynthesis_forward.8} parent=11 // pred_region
        _
      $region16: #{gsynthesis_forward.8} parent=11 // pred_fallthru
        _
      // Predicated region
      $region17: #{gsynthesis_forward.8} parent=11 // pred_check
        %p219 = pneg %p81
      $region18: #{gsynthesis_forward.8} parent=11 // pred_check_branch
        %221 = sbr.rel (%p219) target = $region20
      $region19: #{gsynthesis_forward.8} parent=11 // pred_region
        _
      $region20: #{gsynthesis_forward.8} parent=11 // pred_fallthru
        _
      // Predicated region
      $region21: #{gsynthesis_forward.8} parent=11 // pred_check
        %p222 = pneg %p102
      $region22: #{gsynthesis_forward.8} parent=11 // pred_check_branch
        %224 = sbr.rel (%p222) target = $region24
      $region23: #{gsynthesis_forward.8} parent=11 // pred_region
        _
      $region24: #{gsynthesis_forward.8} parent=11 // pred_fallthru
        _
      // Predicated region
      $region25: #{gsynthesis_forward.8} parent=11 // pred_check
        %p225 = pneg %p175
      $region26: #{gsynthesis_forward.8} parent=11 // pred_check_branch
        %227 = sbr.rel (%p225) target = $region28
      $region27: #{gsynthesis_forward.8} parent=11 // pred_region
        _
      $region28: #{gsynthesis_forward.8} parent=11 // pred_fallthru
        _
    $region12: #{gsynthesis_forward.8} parent=5 // pred_fallthru
      _
    %p228 = scmp.lt.s32.totalorder %s13, 2
    // Predicated region
    $region29: #{gsynthesis_forward.8} parent=5 // pred_check
      %p229 = pneg %p228
    $region30: #{gsynthesis_forward.8} parent=5 // pred_check_branch
      %231 = sbr.rel (%p229) target = $region32
    $region31: #{gsynthesis_forward.8} parent=5 // pred_region
      // Predicated region
      $region33: #{gsynthesis_forward.8} parent=31 // pred_check
        %p232 = pneg %p33
      $region34: #{gsynthesis_forward.8} parent=31 // pred_check_branch
        %234 = sbr.rel (%p232) target = $region36
      $region35: #{gsynthesis_forward.8} parent=31 // pred_region
        %p235 = scmp.lt.s32.totalorder %s13, 1
        %s236 = scalar_select %p235, %s13, 1
        %s237 = smul.addr %s236, 3
        %s238 = smul.addr %s237, 4
        %s239 = scalar_lea.vmem %s0, %s238
      $region36: #{gsynthesis_forward.8} parent=31 // pred_fallthru
        _
      // Predicated region
      $region37: #{gsynthesis_forward.8} parent=31 // pred_check
        %p240 = pneg %p122
      $region38: #{gsynthesis_forward.8} parent=31 // pred_check_branch
        %242 = sbr.rel (%p240) target = $region40
      $region39: #{gsynthesis_forward.8} parent=31 // pred_region
        %p243 = scmp.lt.s32.totalorder %s13, 1
        %s244 = scalar_select %p243, %s13, 1
        %s245 = scalar_lea.vmem %s4, %s244
      $region40: #{gsynthesis_forward.8} parent=31 // pred_fallthru
        _
      // Predicated region
      $region41: #{gsynthesis_forward.8} parent=31 // pred_check
        %p246 = pneg %p148
      $region42: #{gsynthesis_forward.8} parent=31 // pred_check_branch
        %248 = sbr.rel (%p246) target = $region44
      $region43: #{gsynthesis_forward.8} parent=31 // pred_region
        %p249 = scmp.lt.s32.totalorder %s13, 1
        %s250 = scalar_select %p249, %s13, 1
        %s251 = smul.addr %s250, 3
        %s252 = smul.addr %s251, 8
        %s253 = scalar_lea.vmem %s5, %s252
      $region44: #{gsynthesis_forward.8} parent=31 // pred_fallthru
        _
    $region32: #{gsynthesis_forward.8} parent=5 // pred_fallthru
      _
    %p254 = scmp.le.s32.totalorder 1, %s13
    %p255 = scmp.lt.s32.totalorder %s13, 3
    %p256 = pnand %p254, %p255
    %p257 = pneg %p256
    // Predicated region
    $region45: #{gsynthesis_forward.8} parent=5 // pred_check
      _
    $region46: #{gsynthesis_forward.8} parent=5 // pred_check_branch
      %259 = sbr.rel (%p256) target = $region48
    $region47: #{gsynthesis_forward.8} parent=5 // pred_region
      %s260 = ssub.s32 %s13, 1
      %p261 = scmp.lt.s32.totalorder %s18, 1
      %s262 = scalar_select %p261, %s18, 1
      %s263 = smul.addr %s262, 3
      %s264 = smul.addr %s263, 4
      %s265 = scalar_lea.vmem %s0, %s264
      %p266 = pneg %p39
      %p267 = pneg %p36
      %p268 = pneg %p60
      %p269 = pneg %p57
      %p270 = pneg %p81
      %p271 = pneg %p78
      %p272 = pneg %p102
      %p273 = pneg %p99
      %p274 = scmp.lt.s32.totalorder %s18, 1
      %s275 = scalar_select %p274, %s18, 1
      %s276 = scalar_lea.vmem %s4, %s275
      %p277 = pneg %p128
      %p278 = pneg %p125
      %p279 = scmp.lt.s32.totalorder %s18, 1
      %s280 = scalar_select %p279, %s18, 1
      %s281 = smul.addr %s280, 3
      %s282 = smul.addr %s281, 8
      %s283 = scalar_lea.vmem %s5, %s282
      %p284 = pneg %p154
      %p285 = pneg %p151
      %p286 = pneg %p175
      %p287 = pneg %p172
      %p288 = pneg %p201
      %p289 = pneg %p198
      %p290 = scmp.lt.s32.totalorder %s18, 1
      %s291 = scalar_select %p290, %s18, 1
      %s292 = smul.addr %s291, 3
      %s293 = smul.addr %s292, 4
      %s294 = scalar_lea.vmem %s7, %s293
      %p295 = scmp.lt.s32.totalorder %s18, 1
      %s296 = scalar_select %p295, %s18, 1
      %s297 = smul.addr %s296, 3
      %s298 = smul.addr %s297, 4
      %s299 = scalar_lea.vmem %s0, %s298
      %p300 = scmp.lt.s32.totalorder %s18, 1
      %s301 = scalar_select %p300, %s18, 1
      %s302 = scalar_lea.vmem %s4, %s301
      %p303 = scmp.lt.s32.totalorder %s18, 1
      %s304 = scalar_select %p303, %s18, 1
      %s305 = smul.addr %s304, 3
      %s306 = smul.addr %s305, 8
      %s307 = scalar_lea.vmem %s5, %s306
      %p308 = scmp.lt.s32.totalorder %s18, 1
      %s309 = scalar_select %p308, %s18, 1
      %s310 = smul.addr %s309, 3
      %s311 = smul.addr %s310, 4
      %s312 = scalar_lea.vmem %s7, %s311
      %vm314 = vcmask 257024
      %315 = vst.msk [vmem:[#allocation2] sm:$0xf] %vm314, 0
      %316 = vst.msk [vmem:[#allocation2 + $0x4] sm:$0xf] %vm314, 0
      %317 = vst.msk [vmem:[#allocation2 + $0x8] sm:$0xf] %vm314, 0
      %318 = vst.msk [vmem:[#allocation2 + $0xc] sm:$0xf] %vm314, 0
      %319 = vst.msk [vmem:[#allocation2 + $0x10] sm:$0xf] %vm314, 0
      %vm320 = vcmask 253952
      %321 = vst.msk [vmem:[#allocation2 + $0x14] sm:$0x1] %vm320, 0
      %v322 = vld [vmem:[%s299] sm:$0xf]
      %v323 = vld [vmem:[%s299 + $0x4] sm:$0xf]
      %v324 = vld [vmem:[%s299 + $0x8] sm:$0xf]
      %vm325 = vsmask.f32 3328
      %vm326 = vsmask.f32 7440
      %vm327 = vmor %vm325, %vm326
      %v329 = vshll.u32 %v322, 16
      %v331 = vrot.slane %v329, 5
      %v332 = vshrl.u32 %v322, 16
      %v334 = vrot.slane %v332, 4
      %v335 = vor.u32 %v334, %v331
      %v336 = vrot.slane %v335, 4
      %v338 = vshll.u32 %v323, 16
      %v340 = vrot.slane %v338, 5
      %v341 = vsel %vm327, %v336, %v340
      %v342 = vshrl.u32 %v323, 16
      %v344 = vrot.slane %v342, 4
      %v345 = vor.u32 %v344, %v340
      %v346 = vrot.slane %v345, 4
      %v348 = vshll.u32 %v324, 16
      %v350 = vrot.slane %v348, 5
      %v351 = vsel %vm327, %v346, %v350
      %v352 = vshrl.u32 %v324, 16
      %v354 = vrot.slane %v352, 4
      %v355 = vor.u32 %v354, %v350
      %v356 = vrot.slane %v355, 4
      %vm361 = vcmask 257027
      %vm362 = vsmask.f32 7950
      %vm363 = vmand %vm361, %vm362
      %v364 = vld [vmem:[#allocation2] sm:$0x8]
      %v365 = vsel %vm363, %v331, %v364
      %366 = vst [vmem:[#allocation2] sm:$0x8] %v365
      %367 = vst.msk [vmem:[#allocation2 + $0x4] sm:$0xf] %vm314, %v341
      %368 = vst.msk [vmem:[#allocation2 + $0x8] sm:$0xf] %vm314, %v351
      %vm369 = vcmask 257024
      %vm370 = vmand %vm369, %vm325
      %v371 = vld [vmem:[#allocation2 + $0xc] sm:$0xf]
      %v372 = vsel %vm370, %v356, %v371
      %373 = vst [vmem:[#allocation2 + $0xc] sm:$0xf] %v372
      %v374 = vld [vmem:[#allocation2] sm:$0xf]
      %v375 = vld [vmem:[#allocation2 + $0x4] sm:$0xf]
      %v376 = vld [vmem:[#allocation2 + $0x8] sm:$0xf]
      %v377 = vld [vmem:[%s1] sm:$0xf]
      %v378 = vld [vmem:[%s1 + $0x4] sm:$0xf]
      %v379 = vld [vmem:[%s1 + $0x8] sm:$0xf]
      %v380 = vld [vmem:[%s1 + $0xc] sm:$0xf]
      %v381 = vld [vmem:[#allocation2 + $0xc] sm:$0x1]
      %s382 = scalar_lea.vmem %s1, 16
      %v383 = vld [vmem:[%s382] sm:$0xf]
      %v384 = vld [vmem:[%s382 + $0x4] sm:$0xf]
      %v385 = vld [vmem:[%s382 + $0x8] sm:$0xf]
      %v386 = vld [vmem:[%s382 + $0xc] sm:$0xf]
      %v391 = vunpack.c.l.b16 %v374
      %v392 = vunpack.c.l.b16 %v375
      %v393 = vunpack.c.l.b16 %v376
      %v394 = vunpack.c.l.b16 %v381
      %v395 = vpack.c.b16 %v392, %v391
      %v396 = vpack.c.b16 %v394, %v393
      %vm397 = vsmask.f32 7424
      %v399 = vshrl.u32 %v395, 16
      %v401 = vshll.u32 %v395, 16
      %v403 = vrot.slane %v401, 1
      %v404 = vor.u32 %v399, %v403
      %v406 = vshll.u32 %v396, 16
      %v408 = vrot.slane %v406, 1
      %v409 = vsel %vm397, %v404, %v408
      %v410 = vshrl.u32 %v396, 16
      %v412 = vor.u32 %v410, %v408
      %v417 = vunpack.c.l.b16 %v383
      %v418 = vunpack.c.l.b16 %v384
      %v419 = vunpack.c.l.b16 %v385
      %v420 = vunpack.c.l.b16 %v386
      %v421 = vpack.c.b16 %v418, %v417
      %v422 = vpack.c.b16 %v420, %v419
      %vm425 = vcmask 261120
      %v427 = vsel %vm425, %v409, 0
      %v430 = vsel %vm425, %v412, 0
      %432 = vmatpush.bf16.msra.mxu0 0
      %433 = vmatpush.bf16.msra.mxu0 0
      %434 = vmatpush.bf16.msra.mxu0 0
      %435 = vmatpush.bf16.msra.mxu0 0
      %436 = vmatpush.bf16.msra.mxu0 0
      %437 = vmatpush.bf16.msra.mxu0 0
      %438 = vmatpush.bf16.msra.mxu0 %v422
      %439 = vmatpush.bf16.msra.mxu0 %v421
      %440 = vmatmul.bf16.gmra.mxu0 %v427
      %v441 = vpop.f32.mrf.mxu0
      %v442 = vadd.f32 0.0, %v441
      %v443 = vpop.f32.mrf.mxu0
      %v444 = vadd.f32 0.0, %v443
      %445 = vmatmul.bf16.gmra.mxu0 %v430
      %v446 = vpop.f32.mrf.mxu0
      %v447 = vadd.f32 0.0, %v446
      %v448 = vpop.f32.mrf.mxu0
      %449 = vdwg.mxu0
      %v450 = vpack.c.b16 %v393, %v393
      %v455 = vunpack.c.l.b16 %v377
      %v456 = vunpack.c.l.b16 %v378
      %v457 = vunpack.c.l.b16 %v379
      %v458 = vunpack.c.l.b16 %v380
      %v459 = vpack.c.b16 %v456, %v455
      %v460 = vpack.c.b16 %v458, %v457
      %v463 = vsel %vm425, %v395, 0
      %v466 = vsel %vm425, %v450, 0
      %468 = vmatpush.bf16.msra.mxu0 0
      %469 = vmatpush.bf16.msra.mxu0 0
      %470 = vmatpush.bf16.msra.mxu0 0
      %471 = vmatpush.bf16.msra.mxu0 0
      %472 = vmatpush.bf16.msra.mxu0 0
      %473 = vmatpush.bf16.msra.mxu0 0
      %474 = vmatpush.bf16.msra.mxu0 %v460
      %475 = vmatpush.bf16.msra.mxu0 %v459
      %476 = vmatmul.bf16.gmra.mxu0 %v463
      %v477 = vpop.f32.mrf.mxu0
      %v478 = vadd.f32 %v442, %v477
      %v479 = vpop.f32.mrf.mxu0
      %v480 = vadd.f32 %v444, %v479
      %481 = vmatmul.bf16.gmra.mxu0 %v466
      %v482 = vpop.f32.mrf.mxu0
      %v483 = vadd.f32 %v447, %v482
      %v484 = vpop.f32.mrf.mxu0
      %485 = vdwg.mxu0
      %v486 = vld [vmem:[#allocation2] sm:$0xe]
      %s487 = scalar_lea.vmem %s1, 32
      %v488 = vld [vmem:[%s487] sm:$0xf]
      %v489 = vld [vmem:[%s487 + $0x4] sm:$0xf]
      %v490 = vld [vmem:[%s487 + $0x8] sm:$0xf]
      %v491 = vld [vmem:[%s487 + $0xc] sm:$0xf]
      %v493 = vunpack.c.l.b16 %v486
      %v494 = vpack.c.b16 %v392, %v493
      %vm495 = vcmask 1046528
      %v496 = vrot.slane %v494, 1
      %v497 = vrot.slane %v396, 1
      %v498 = vsel %vm495, %v496, %v497
      %v503 = vunpack.c.l.b16 %v488
      %v504 = vunpack.c.l.b16 %v489
      %v505 = vunpack.c.l.b16 %v490
      %v506 = vunpack.c.l.b16 %v491
      %v507 = vpack.c.b16 %v504, %v503
      %v508 = vpack.c.b16 %v506, %v505
      %v512 = vsel %vm425, %v498, 0
      %v515 = vsel %vm425, %v497, 0
      %517 = vmatpush.bf16.msra.mxu0 0
      %518 = vmatpush.bf16.msra.mxu0 0
      %519 = vmatpush.bf16.msra.mxu0 0
      %520 = vmatpush.bf16.msra.mxu0 0
      %521 = vmatpush.bf16.msra.mxu0 0
      %522 = vmatpush.bf16.msra.mxu0 0
      %523 = vmatpush.bf16.msra.mxu0 %v508
      %524 = vmatpush.bf16.msra.mxu0 %v507
      %525 = vmatmul.bf16.gmra.mxu0 %v512
      %v526 = vpop.f32.mrf.mxu0
      %v527 = vadd.f32 0.0, %v526
      %v528 = vpop.f32.mrf.mxu0
      %v529 = vadd.f32 0.0, %v528
      %530 = vmatmul.bf16.gmra.mxu0 %v515
      %v531 = vpop.f32.mrf.mxu0
      %v532 = vadd.f32 0.0, %v531
      %v533 = vpop.f32.mrf.mxu0
      %534 = vdwg.mxu0
      %v535 = vadd.f32 %v478, %v527
      %v536 = vadd.f32 %v480, %v529
      %v537 = vadd.f32 %v483, %v532
      %v538 = vld [vmem:[#allocation2] sm:$0x8]
      %v539 = vld [vmem:[#allocation2 + $0xc] sm:$0x7]
      %s540 = scalar_lea.vmem %s1, 48
      %v541 = vld [vmem:[%s540] sm:$0xf]
      %v542 = vld [vmem:[%s540 + $0x4] sm:$0xf]
      %v543 = vld [vmem:[%s540 + $0x8] sm:$0xf]
      %v544 = vld [vmem:[%s540 + $0xc] sm:$0xf]
      %v547 = vunpack.c.l.b16 %v538
      %v548 = vunpack.c.l.b16 %v539
      %v549 = vpack.c.b16 %v392, %v547
      %v550 = vpack.c.b16 %v548, %v393
      %vm551 = vcmask 1044480
      %v552 = vrot.slane %v549, 3
      %v553 = vrot.slane %v550, 3
      %v554 = vsel %vm551, %v552, %v553
      %v559 = vunpack.c.l.b16 %v541
      %v560 = vunpack.c.l.b16 %v542
      %v561 = vunpack.c.l.b16 %v543
      %v562 = vunpack.c.l.b16 %v544
      %v563 = vpack.c.b16 %v560, %v559
      %v564 = vpack.c.b16 %v562, %v561
      %v568 = vsel %vm425, %v554, 0
      %v571 = vsel %vm425, %v553, 0
      %573 = vmatpush.bf16.msra.mxu0 0
      %574 = vmatpush.bf16.msra.mxu0 0
      %575 = vmatpush.bf16.msra.mxu0 0
      %576 = vmatpush.bf16.msra.mxu0 0
      %577 = vmatpush.bf16.msra.mxu0 0
      %578 = vmatpush.bf16.msra.mxu0 0
      %579 = vmatpush.bf16.msra.mxu0 %v564
      %580 = vmatpush.bf16.msra.mxu0 %v563
      %581 = vmatmul.bf16.gmra.mxu0 %v568
      %v582 = vpop.f32.mrf.mxu0
      %v583 = vadd.f32 0.0, %v582
      %v584 = vpop.f32.mrf.mxu0
      %v585 = vadd.f32 0.0, %v584
      %586 = vmatmul.bf16.gmra.mxu0 %v571
      %v587 = vpop.f32.mrf.mxu0
      %v588 = vadd.f32 0.0, %v587
      %v589 = vpop.f32.mrf.mxu0
      %590 = vdwg.mxu0
      %v591 = vadd.f32 %v535, %v583
      %v592 = vadd.f32 %v536, %v585
      %v593 = vadd.f32 %v537, %v588
      %v594 = vld [vmem:[#allocation2 + $0xc] sm:$0xf]
      %s595 = scalar_lea.vmem %s1, 64
      %v596 = vld [vmem:[%s595] sm:$0xf]
      %v597 = vld [vmem:[%s595 + $0x4] sm:$0xf]
      %v598 = vld [vmem:[%s595 + $0x8] sm:$0xf]
      %v599 = vld [vmem:[%s595 + $0xc] sm:$0xf]
      %v601 = vunpack.c.l.b16 %v594
      %v602 = vpack.c.b16 %v601, %v393
      %vm603 = vsmask.f32 4352
      %v605 = vshrl.u32 %v549, 16
      %v607 = vrot.slane %v605, 3
      %v608 = vshll.u32 %v549, 16
      %v610 = vrot.slane %v608, 4
      %v611 = vor.u32 %v607, %v610
      %v613 = vshrl.u32 %v602, 16
      %v615 = vrot.slane %v613, 3
      %v616 = vshll.u32 %v602, 16
      %v618 = vrot.slane %v616, 4
      %v619 = vor.u32 %v615, %v618
      %v620 = vsel %vm603, %v611, %v619
      %v625 = vunpack.c.l.b16 %v596
      %v626 = vunpack.c.l.b16 %v597
      %v627 = vunpack.c.l.b16 %v598
      %v628 = vunpack.c.l.b16 %v599
      %v629 = vpack.c.b16 %v626, %v625
      %v630 = vpack.c.b16 %v628, %v627
      %v634 = vsel %vm425, %v620, 0
      %v637 = vsel %vm425, %v619, 0
      %639 = vmatpush.bf16.msra.mxu0 0
      %640 = vmatpush.bf16.msra.mxu0 0
      %641 = vmatpush.bf16.msra.mxu0 0
      %642 = vmatpush.bf16.msra.mxu0 0
      %643 = vmatpush.bf16.msra.mxu0 0
      %644 = vmatpush.bf16.msra.mxu0 0
      %645 = vmatpush.bf16.msra.mxu0 %v630
      %646 = vmatpush.bf16.msra.mxu0 %v629
      %647 = vmatmul.bf16.gmra.mxu0 %v634
      %v648 = vpop.f32.mrf.mxu0
      %v649 = vadd.f32 0.0, %v648
      %v650 = vpop.f32.mrf.mxu0
      %v651 = vadd.f32 0.0, %v650
      %652 = vmatmul.bf16.gmra.mxu0 %v637
      %v653 = vpop.f32.mrf.mxu0
      %v654 = vadd.f32 0.0, %v653
      %v655 = vpop.f32.mrf.mxu0
      %656 = vdwg.mxu0
      %v657 = vadd.f32 %v591, %v649
      %v658 = vadd.f32 %v592, %v651
      %v659 = vadd.f32 %v593, %v654
      %s660 = scalar_lea.vmem %s1, 80
      %v661 = vld [vmem:[%s660] sm:$0xf]
      %v662 = vld [vmem:[%s660 + $0x4] sm:$0xf]
      %v663 = vld [vmem:[%s660 + $0x8] sm:$0xf]
      %v664 = vld [vmem:[%s660 + $0xc] sm:$0xf]
      %v665 = vpack.c.b16 %v393, %v392
      %v666 = vpack.c.b16 %v601, %v601
      %v671 = vunpack.c.l.b16 %v661
      %v672 = vunpack.c.l.b16 %v662
      %v673 = vunpack.c.l.b16 %v663
      %v674 = vunpack.c.l.b16 %v664
      %v675 = vpack.c.b16 %v672, %v671
      %v676 = vpack.c.b16 %v674, %v673
      %v680 = vsel %vm425, %v665, 0
      %v683 = vsel %vm425, %v666, 0
      %685 = vmatpush.bf16.msra.mxu0 0
      %686 = vmatpush.bf16.msra.mxu0 0
      %687 = vmatpush.bf16.msra.mxu0 0
      %688 = vmatpush.bf16.msra.mxu0 0
      %689 = vmatpush.bf16.msra.mxu0 0
      %690 = vmatpush.bf16.msra.mxu0 0
      %691 = vmatpush.bf16.msra.mxu0 %v676
      %692 = vmatpush.bf16.msra.mxu0 %v675
      %693 = vmatmul.bf16.gmra.mxu0 %v680
      %v694 = vpop.f32.mrf.mxu0
      %v695 = vadd.f32 0.0, %v694
      %v696 = vpop.f32.mrf.mxu0
      %v697 = vadd.f32 0.0, %v696
      %698 = vmatmul.bf16.gmra.mxu0 %v683
      %v699 = vpop.f32.mrf.mxu0
      %v700 = vadd.f32 0.0, %v699
      %v701 = vpop.f32.mrf.mxu0
      %702 = vdwg.mxu0
      %v703 = vadd.f32 %v657, %v695
      %v704 = vadd.f32 %v658, %v697
      %v705 = vadd.f32 %v659, %v700
      %v706 = vld [vmem:[#allocation2 + $0x4] sm:$0xc]
      %v707 = vld [vmem:[#allocation2 + $0x8] sm:$0xf]
      %v708 = vld [vmem:[#allocation2 + $0xc] sm:$0xf]
      %v709 = vld [vmem:[#allocation2 + $0x10] sm:$0x3]
      %s710 = scalar_lea.vmem %s1, 96
      %v711 = vld [vmem:[%s710] sm:$0xf]
      %v712 = vld [vmem:[%s710 + $0x4] sm:$0xf]
      %v713 = vld [vmem:[%s710 + $0x8] sm:$0xf]
      %v714 = vld [vmem:[%s710 + $0xc] sm:$0xf]
      %v719 = vunpack.c.l.b16 %v706
      %v720 = vunpack.c.l.b16 %v707
      %v721 = vunpack.c.l.b16 %v708
      %v722 = vunpack.c.l.b16 %v709
      %v723 = vpack.c.b16 %v720, %v719
      %v724 = vpack.c.b16 %v722, %v721
      %vm725 = vcmask 1045504
      %v726 = vrot.slane %v723, 2
      %v727 = vrot.slane %v724, 2
      %v728 = vsel %vm725, %v726, %v727
      %v733 = vunpack.c.l.b16 %v711
      %v734 = vunpack.c.l.b16 %v712
      %v735 = vunpack.c.l.b16 %v713
      %v736 = vunpack.c.l.b16 %v714
      %v737 = vpack.c.b16 %v734, %v733
      %v738 = vpack.c.b16 %v736, %v735
      %v742 = vsel %vm425, %v728, 0
      %v745 = vsel %vm425, %v727, 0
      %747 = vmatpush.bf16.msra.mxu0 0
      %748 = vmatpush.bf16.msra.mxu0 0
      %749 = vmatpush.bf16.msra.mxu0 0
      %750 = vmatpush.bf16.msra.mxu0 0
      %751 = vmatpush.bf16.msra.mxu0 0
      %752 = vmatpush.bf16.msra.mxu0 0
      %753 = vmatpush.bf16.msra.mxu0 %v738
      %754 = vmatpush.bf16.msra.mxu0 %v737
      %755 = vmatmul.bf16.gmra.mxu0 %v742
      %v756 = vpop.f32.mrf.mxu0
      %v757 = vadd.f32 0.0, %v756
      %v758 = vpop.f32.mrf.mxu0
      %v759 = vadd.f32 0.0, %v758
      %760 = vmatmul.bf16.gmra.mxu0 %v745
      %v761 = vpop.f32.mrf.mxu0
      %v762 = vadd.f32 0.0, %v761
      %v763 = vpop.f32.mrf.mxu0
      %764 = vdwg.mxu0
      %v765 = vadd.f32 %v703, %v757
      %v766 = vadd.f32 %v704, %v759
      %v767 = vadd.f32 %v705, %v762
      %v768 = vld [vmem:[#allocation2 + $0x10] sm:$0x7]
      %s769 = scalar_lea.vmem %s1, 112
      %v770 = vld [vmem:[%s769] sm:$0xf]
      %v771 = vld [vmem:[%s769 + $0x4] sm:$0xf]
      %v772 = vld [vmem:[%s769 + $0x8] sm:$0xf]
      %v773 = vld [vmem:[%s769 + $0xc] sm:$0xf]
      %v775 = vunpack.c.l.b16 %v768
      %v776 = vpack.c.b16 %v775, %v721
      %vm777 = vsmask.f32 5376
      %v779 = vshrl.u32 %v723, 16
      %v781 = vrot.slane %v779, 2
      %v782 = vshll.u32 %v723, 16
      %v784 = vrot.slane %v782, 3
      %v785 = vor.u32 %v781, %v784
      %v787 = vshrl.u32 %v776, 16
      %v789 = vrot.slane %v787, 2
      %v790 = vshll.u32 %v776, 16
      %v792 = vrot.slane %v790, 3
      %v793 = vor.u32 %v789, %v792
      %v794 = vsel %vm777, %v785, %v793
      %v799 = vunpack.c.l.b16 %v770
      %v800 = vunpack.c.l.b16 %v771
      %v801 = vunpack.c.l.b16 %v772
      %v802 = vunpack.c.l.b16 %v773
      %v803 = vpack.c.b16 %v800, %v799
      %v804 = vpack.c.b16 %v802, %v801
      %v808 = vsel %vm425, %v794, 0
      %v811 = vsel %vm425, %v793, 0
      %813 = vmatpush.bf16.msra.mxu0 0
      %814 = vmatpush.bf16.msra.mxu0 0
      %815 = vmatpush.bf16.msra.mxu0 0
      %816 = vmatpush.bf16.msra.mxu0 0
      %817 = vmatpush.bf16.msra.mxu0 0
      %818 = vmatpush.bf16.msra.mxu0 0
      %819 = vmatpush.bf16.msra.mxu0 %v804
      %820 = vmatpush.bf16.msra.mxu0 %v803
      %821 = vmatmul.bf16.gmra.mxu0 %v808
      %v822 = vpop.f32.mrf.mxu0
      %v823 = vadd.f32 0.0, %v822
      %v824 = vpop.f32.mrf.mxu0
      %v825 = vadd.f32 0.0, %v824
      %826 = vmatmul.bf16.gmra.mxu0 %v811
      %v827 = vpop.f32.mrf.mxu0
      %v828 = vadd.f32 0.0, %v827
      %v829 = vpop.f32.mrf.mxu0
      %830 = vdwg.mxu0
      %v831 = vadd.f32 %v765, %v823
      %v832 = vadd.f32 %v766, %v825
      %v833 = vadd.f32 %v767, %v828
      %v834 = vld [vmem:[#allocation2 + $0x4] sm:$0x8]
      %s835 = scalar_lea.vmem %s1, 128
      %v836 = vld [vmem:[%s835] sm:$0xf]
      %v837 = vld [vmem:[%s835 + $0x4] sm:$0xf]
      %v838 = vld [vmem:[%s835 + $0x8] sm:$0xf]
      %v839 = vld [vmem:[%s835 + $0xc] sm:$0xf]
      %v841 = vunpack.c.l.b16 %v834
      %v842 = vpack.c.b16 %v720, %v841
      %v843 = vrot.slane %v842, 3
      %v844 = vrot.slane %v776, 3
      %v845 = vsel %vm551, %v843, %v844
      %v850 = vunpack.c.l.b16 %v836
      %v851 = vunpack.c.l.b16 %v837
      %v852 = vunpack.c.l.b16 %v838
      %v853 = vunpack.c.l.b16 %v839
      %v854 = vpack.c.b16 %v851, %v850
      %v855 = vpack.c.b16 %v853, %v852
      %v859 = vsel %vm425, %v845, 0
      %v862 = vsel %vm425, %v844, 0
      %864 = vmatpush.bf16.msra.mxu0 0
      %865 = vmatpush.bf16.msra.mxu0 0
      %866 = vmatpush.bf16.msra.mxu0 0
      %867 = vmatpush.bf16.msra.mxu0 0
      %868 = vmatpush.bf16.msra.mxu0 0
      %869 = vmatpush.bf16.msra.mxu0 0
      %870 = vmatpush.bf16.msra.mxu0 %v855
      %871 = vmatpush.bf16.msra.mxu0 %v854
      %872 = vmatmul.bf16.gmra.mxu0 %v859
      %v873 = vpop.f32.mrf.mxu0
      %v874 = vadd.f32 0.0, %v873
      %v875 = vpop.f32.mrf.mxu0
      %v876 = vadd.f32 0.0, %v875
      %877 = vmatmul.bf16.gmra.mxu0 %v862
      %v878 = vpop.f32.mrf.mxu0
      %v879 = vadd.f32 0.0, %v878
      %v880 = vpop.f32.mrf.mxu0
      %881 = vdwg.mxu0
      %v882 = vadd.f32 %v831, %v874
      %v883 = vadd.f32 %v832, %v876
      %v884 = vadd.f32 %v833, %v879
      %v885 = vld [vmem:[%s2] sm:$0x1]
      %v887 = vperm.slane %v885, 0
      %v889 = vadd.f32 %v882, %v887
      %v890 = vadd.f32 %v883, %v887
      %v891 = vadd.f32 %v884, %v887
      %v892 = vld [vmem:[%s3] sm:$0x1]
      %v893 = vld [vmem:[%s307] sm:$0xff]
      %v894 = vld [vmem:[%s307 + $0x8] sm:$0xff]
      %v895 = vld [vmem:[%s307 + $0x10] sm:$0xff]
      %v896 = vld [vmem:[%s302] sm:$0x1]
      %v897 = vld [vmem:[%s6] sm:$0xff]
      %v898 = vld [vmem:[%s6 + $0x8] sm:$0xff]
      %v899 = vld [vmem:[%s6 + $0x10] sm:$0xff]
      %v901 = vperm.slane %v892, 0
      %904 = vset.pattern.permute.xlu0 0
      %905 = vperm.xlu0 %904, %v893
      %v906 = vpop.permute.xlu0 %905
      %909 = vset.pattern.permute.xlu0 0
      %910 = vperm.xlu0 %909, %v894
      %v911 = vpop.permute.xlu0 %910
      %914 = vset.pattern.permute.xlu0 0
      %915 = vperm.xlu0 %914, %v895
      %v916 = vpop.permute.xlu0 %915
      %v918 = vmul.f32 %v901, %v906
      %v919 = vmul.f32 %v901, %v911
      %v920 = vmul.f32 %v901, %v916
      %v921 = vadd.f32 %v889, %v918
      %v922 = vadd.f32 %v890, %v919
      %v923 = vadd.f32 %v891, %v920
      %vm924 = vcmp.ge.f32.partialorder %v921, 0.0
      %vm925 = vcmp.ge.f32.partialorder %v922, 0.0
      %vm926 = vcmp.ge.f32.partialorder %v923, 0.0
      %v927 = vmul.f32 %v921, 0.2
      %v928 = vmul.f32 %v922, 0.2
      %v929 = vmul.f32 %v923, 0.2
      %v930 = vsel %vm924, %v921, %v927
      %v931 = vsel %vm925, %v922, %v928
      %v932 = vsel %vm926, %v923, %v929
      %934 = vset.pattern.permute.xlu0 0
      %935 = vperm.xlu0 %934, %v897
      %v936 = vpop.permute.xlu0 %935
      %939 = vset.pattern.permute.xlu0 0
      %940 = vperm.xlu0 %939, %v898
      %v941 = vpop.permute.xlu0 %940
      %944 = vset.pattern.permute.xlu0 0
      %945 = vperm.xlu0 %944, %v899
      %v946 = vpop.permute.xlu0 %945
      %v948 = vmul.f32 %v930, %v936
      %v949 = vmul.f32 %v931, %v941
      %v950 = vmul.f32 %v932, %v946
      %v951 = vsel %vm425, %v948, 0.0
      %v952 = vsel %vm425, %v949, 0.0
      %v953 = vadd.f32 %v951, %v952
      %v954 = vsel %vm425, %v950, 0.0
      %v955 = vadd.f32 %v953, %v954
      %v956 = vrot.slane %v955, 4
      %v957 = vadd.f32 %v955, %v956
      %v958 = vrot.slane %v957, 2
      %v959 = vadd.f32 %v957, %v958
      %v960 = vrot.slane %v959, 1
      %v961 = vadd.f32 %v959, %v960
      %v962 = vmul.f32 %v961, 0.0625
      %v963 = vsub.f32 %v930, %v962
      %v964 = vsub.f32 %v931, %v962
      %v965 = vsub.f32 %v932, %v962
      %v966 = vmul.f32 %v963, %v963
      %v967 = vmul.f32 %v964, %v964
      %v968 = vmul.f32 %v965, %v965
      %v969 = vmul.f32 %v966, %v936
      %v970 = vmul.f32 %v967, %v941
      %v971 = vmul.f32 %v968, %v946
      %v972 = vsel %vm425, %v969, 0.0
      %v973 = vsel %vm425, %v970, 0.0
      %v974 = vadd.f32 %v972, %v973
      %v975 = vsel %vm425, %v971, 0.0
      %v976 = vadd.f32 %v974, %v975
      %v977 = vrot.slane %v976, 4
      %v978 = vadd.f32 %v976, %v977
      %v979 = vrot.slane %v978, 2
      %v980 = vadd.f32 %v978, %v979
      %v981 = vrot.slane %v980, 1
      %v982 = vadd.f32 %v980, %v981
      %v983 = vmul.f32 %v982, 0.0625
      %v984 = vadd.f32 %v983, 1e-05
      %v985 = vrsqrt.pop %v984
      %v986 = vmul.f32 %v985, %v984
      %v987 = vmul.f32 %v986, %v985
      %v988 = vmul.f32 0.5, %v987
      %v989 = vsub.f32 1.5, %v988
      %v990 = vmul.f32 %v985, %v989
      %vm991 = vweird.f32 %v984
      %vm992 = vweird.f32 %v985
      %vm993 = vmor %vm991, %vm992
      %v994 = vsel %vm993, %v985, %v990
      %v995 = vmul.f32 %v963, %v994
      %v996 = vmul.f32 %v964, %v994
      %v997 = vmul.f32 %v965, %v994
      %v998 = vadd.f32 %v896, 1.0
      %v1000 = vperm.slane %v998, 0
      %v1002 = vmul.f32 %v995, %v1000
      %v1003 = vmul.f32 %v996, %v1000
      %v1004 = vmul.f32 %v997, %v1000
      %v1006 = vperm.slane %v896, 0
      %1007 = vrot.lane.b32.xlu0 %v1006, 96
      %v1008 = vpop.permute.xlu0 %1007
      %v1010 = vadd.f32 %v1002, %v1008
      %v1011 = vadd.f32 %v1003, %v1008
      %v1012 = vadd.f32 %v1004, %v1008
      %v1013 = vmul.f32 %v1010, %v936
      %v1014 = vmul.f32 %v1011, %v941
      %v1015 = vmul.f32 %v1012, %v946
      %v1016 = vpack.c.bf16 %v1013, %v1013
      %v1017 = vpack.c.bf16 %v1014, %v1014
      %v1018 = vpack.c.bf16 %v1015, %v1015
      %1019 = vst.msk [vmem:[%s312] sm:$0xf] %vm314, %v1016
      %1020 = vst.msk [vmem:[%s312 + $0x4] sm:$0xf] %vm314, %v1017
      %1021 = vst.msk [vmem:[%s312 + $0x8] sm:$0xf] %vm314, %v1018
      %p1022 = scmp.lt.s32.totalorder %s18, 1
      %s1023 = scalar_select %p1022, %s18, 1
      %s1024 = smul.addr %s1023, 3
      %s1025 = smul.addr %s1024, 4
      %s1026 = scalar_lea.vmem %s7, %s1025
      // Predicated region
      $region49: #{gsynthesis_forward.8} parent=47 // pred_check
        %p1027 = pneg %p198
      $region50: #{gsynthesis_forward.8} parent=47 // pred_check_branch
        %1029 = sbr.rel (%p1027) target = $region52
      $region51: #{gsynthesis_forward.8} parent=47 // pred_region
        _
      $region52: #{gsynthesis_forward.8} parent=47 // pred_fallthru
        _
    $region48: #{gsynthesis_forward.8} parent=5 // pred_fallthru
      _
    %p1030 = scmp.le.s32.totalorder 2, %s13
    // Predicated region
    $region53: #{gsynthesis_forward.8} parent=5 // pred_check
      %p1031 = pneg %p1030
    $region54: #{gsynthesis_forward.8} parent=5 // pred_check_branch
      %1033 = sbr.rel (%p1031) target = $region56
    $region55: #{gsynthesis_forward.8} parent=5 // pred_region
      %s1034 = ssub.s32 %s13, 2
      // Predicated region
      $region57: #{gsynthesis_forward.8} parent=55 // pred_check
        %p1035 = pneg %p204
      $region58: #{gsynthesis_forward.8} parent=55 // pred_check_branch
        %1037 = sbr.rel (%p1035) target = $region60
      $region59: #{gsynthesis_forward.8} parent=55 // pred_region
        %p1038 = scmp.lt.s32.totalorder %s19, 1
        %s1039 = scalar_select %p1038, %s19, 1
        %s1040 = smul.addr %s1039, 3
        %s1041 = smul.addr %s1040, 4
        %s1042 = scalar_lea.vmem %s7, %s1041
      $region60: #{gsynthesis_forward.8} parent=55 // pred_fallthru
        _
    $region56: #{gsynthesis_forward.8} parent=5 // pred_fallthru
      _
  $region6: #{gsynthesis_forward.8} parent=0 // loop_footer
    %s17 = sadd.s32 1, %s13
  $region7: #{gsynthesis_forward.8} parent=0 // loop_footer_branch
    %12 = sbr.rel target = $region3
  $region8: #{gsynthesis_forward.8} parent=0 // loop_exit
    _

// kernel: gsynthesis_forward.9
$region0: #{gsynthesis_forward.9}
  #allocation0 [shape = 'u32[]', space=smem, size = 0x4, offset = 0x4, fixed_abs, tag = 'smem constant byte address 0x4 - core index']
  #allocation1 [shape = 'u32[72,128]{1,0:T(1,128)}', space=vmem, size = 0x9000, scoped, tag = 'internal scratch']
  #allocation2 [shape = 'bf16[110,32]{1,0:T(8,128)(2,1)}', space=vmem, size = 0x7000, scoped, tag = 'scratch operand']
  %s0 = inlined_call_operand.vmem [shape: bf16[2,80,32], index: 0, kind: input, shape index: {}]
  %s1 = inlined_call_operand.vmem [shape: bf16[9,32,32], index: 1, kind: input, shape index: {}]
  %s2 = inlined_call_operand.vmem [shape: f32[1,32], index: 2, kind: input, shape index: {}]
  %s3 = inlined_call_operand.vmem [shape: f32[1,32], index: 3, kind: input, shape index: {}]
  %s4 = inlined_call_operand.vmem [shape: f32[2,1,64], index: 4, kind: input, shape index: {}]
  %s5 = inlined_call_operand.vmem [shape: f32[2,80,1], index: 5, kind: input, shape index: {}]
  %s6 = inlined_call_operand.vmem [shape: f32[80,1], index: 6, kind: input, shape index: {}]
  %s7 = inlined_call_operand.vmem [shape: bf16[2,80,32], index: 7, kind: output, shape index: {}]
  %s8 = sld [smem:[#allocation0]]
  $region61: #{gsynthesis_forward.9} parent=0
    _
  %s10 = ssub.s32 1, %s8
  %s11 = scalar_select 0, %s10, %s8
  loop: start=0, step=1, limit=4
  $region2: #{gsynthesis_forward.9} parent=0 // loop_pre_header
    _
  $region3: #{gsynthesis_forward.9} parent=0 // loop_header
    %s13 = sphi 0, %s17
    %p14 = scmp.ge.s32.totalorder %s13, 4
    %s23 = sphi 0, %s25
    %s26 = sphi 0, %s23
    %s27 = sphi 0, %s26
    %s43 = sphi 0, %s27
    %s47 = sphi 0, %s47
    %s49 = sphi 0, %s47
    %s50 = sphi 0, %s49
    %s64 = sphi 0, %s50
    %s68 = sphi 0, %s68
    %s70 = sphi 0, %s68
    %s71 = sphi 0, %s70
    %s85 = sphi 0, %s71
    %s89 = sphi 0, %s89
    %s91 = sphi 0, %s89
    %s92 = sphi 0, %s91
    %s106 = sphi 0, %s92
    %s112 = sphi 0, %s114
    %s115 = sphi 0, %s112
    %s116 = sphi 0, %s115
    %s132 = sphi 0, %s116
    %s138 = sphi 0, %s140
    %s141 = sphi 0, %s138
    %s142 = sphi 0, %s141
    %s158 = sphi 0, %s142
    %s162 = sphi 0, %s162
    %s164 = sphi 0, %s162
    %s165 = sphi 0, %s164
    %s179 = sphi 0, %s165
    %s185 = sphi 0, %s187
    %s188 = sphi 0, %s185
    %s189 = sphi 0, %s188
    %s205 = sphi 0, %s189
  $region4: #{gsynthesis_forward.9} parent=0 // loop_header_branch
    %16 = sbr.rel (%p14) target = $region8
  $region5: #{gsynthesis_forward.9} parent=0 // loop_body
    %s18 = ssub.s32 %s13, 1
    %s19 = ssub.s32 %s13, 2
    %s20 = sadd.s32 %s13, 1
    %s21 = ssub.s32 %s13, %s20
    %p22 = scmp.eq.s32.totalorder %s21, 0
    %s24 = sadd.s32 %s23, 1
    %s25 = scalar_select %p22, %s23, %s24
    %p28 = pneg %p22
    %p29 = scmp.eq.s32.totalorder %s13, 1
    %p30 = por %p28, %p29
    %p31 = scmp.ne.s32.totalorder %s23, %s26
    %p32 = scmp.eq.s32.totalorder %s13, 0
    %p33 = por %p31, %p32
    %p34 = scmp.ne.s32.totalorder %s23, %s26
    %p35 = scmp.eq.s32.totalorder %s18, 1
    %p36 = por %p34, %p35
    %p37 = scmp.ne.s32.totalorder %s26, %s27
    %p38 = scmp.eq.s32.totalorder %s18, 0
    %p39 = por %p37, %p38
    %p40 = scmp.ne.s32.totalorder %s26, %s27
    %p41 = scmp.eq.s32.totalorder %s19, 1
    %p42 = por %p40, %p41
    %p44 = scmp.ne.s32.totalorder %s27, %s43
    %p45 = scmp.eq.s32.totalorder %s19, 0
    %p46 = por %p44, %p45
    %s48 = sadd.s32 %s47, 1
    %p51 = scmp.eq.s32.totalorder %s13, 1
    %p52 = scmp.ne.s32.totalorder %s47, %s49
    %p53 = scmp.eq.s32.totalorder %s13, 0
    %p54 = por %p52, %p53
    %p55 = scmp.ne.s32.totalorder %s47, %s49
    %p56 = scmp.eq.s32.totalorder %s18, 1
    %p57 = por %p55, %p56
    %p58 = scmp.ne.s32.totalorder %s49, %s50
    %p59 = scmp.eq.s32.totalorder %s18, 0
    %p60 = por %p58, %p59
    %p61 = scmp.ne.s32.totalorder %s49, %s50
    %p62 = scmp.eq.s32.totalorder %s19, 1
    %p63 = por %p61, %p62
    %p65 = scmp.ne.s32.totalorder %s50, %s64
    %p66 = scmp.eq.s32.totalorder %s19, 0
    %p67 = por %p65, %p66
    %s69 = sadd.s32 %s68, 1
    %p72 = scmp.eq.s32.totalorder %s13, 1
    %p73 = scmp.ne.s32.totalorder %s68, %s70
    %p74 = scmp.eq.s32.totalorder %s13, 0
    %p75 = por %p73, %p74
    %p76 = scmp.ne.s32.totalorder %s68, %s70
    %p77 = scmp.eq.s32.totalorder %s18, 1
    %p78 = por %p76, %p77
    %p79 = scmp.ne.s32.totalorder %s70, %s71
    %p80 = scmp.eq.s32.totalorder %s18, 0
    %p81 = por %p79, %p80
    %p82 = scmp.ne.s32.totalorder %s70, %s71
    %p83 = scmp.eq.s32.totalorder %s19, 1
    %p84 = por %p82, %p83
    %p86 = scmp.ne.s32.totalorder %s71, %s85
    %p87 = scmp.eq.s32.totalorder %s19, 0
    %p88 = por %p86, %p87
    %s90 = sadd.s32 %s89, 1
    %p93 = scmp.eq.s32.totalorder %s13, 1
    %p94 = scmp.ne.s32.totalorder %s89, %s91
    %p95 = scmp.eq.s32.totalorder %s13, 0
    %p96 = por %p94, %p95
    %p97 = scmp.ne.s32.totalorder %s89, %s91
    %p98 = scmp.eq.s32.totalorder %s18, 1
    %p99 = por %p97, %p98
    %p100 = scmp.ne.s32.totalorder %s91, %s92
    %p101 = scmp.eq.s32.totalorder %s18, 0
    %p102 = por %p100, %p101
    %p103 = scmp.ne.s32.totalorder %s91, %s92
    %p104 = scmp.eq.s32.totalorder %s19, 1
    %p105 = por %p103, %p104
    %p107 = scmp.ne.s32.totalorder %s92, %s106
    %p108 = scmp.eq.s32.totalorder %s19, 0
    %p109 = por %p107, %p108
    %s110 = ssub.s32 %s13, %s20
    %p111 = scmp.eq.s32.totalorder %s110, 0
    %s113 = sadd.s32 %s112, 1
    %s114 = scalar_select %p111, %s112, %s113
    %p117 = pneg %p111
    %p118 = scmp.eq.s32.totalorder %s13, 1
    %p119 = por %p117, %p118
    %p120 = scmp.ne.s32.totalorder %s112, %s115
    %p121 = scmp.eq.s32.totalorder %s13, 0
    %p122 = por %p120, %p121
    %p123 = scmp.ne.s32.totalorder %s112, %s115
    %p124 = scmp.eq.s32.totalorder %s18, 1
    %p125 = por %p123, %p124
    %p126 = scmp.ne.s32.totalorder %s115, %s116
    %p127 = scmp.eq.s32.totalorder %s18, 0
    %p128 = por %p126, %p127
    %p129 = scmp.ne.s32.totalorder %s115, %s116
    %p130 = scmp.eq.s32.totalorder %s19, 1
    %p131 = por %p129, %p130
    %p133 = scmp.ne.s32.totalorder %s116, %s132
    %p134 = scmp.eq.s32.totalorder %s19, 0
    %p135 = por %p133, %p134
    %s136 = ssub.s32 %s13, %s20
    %p137 = scmp.eq.s32.totalorder %s136, 0
    %s139 = sadd.s32 %s138, 1
    %s140 = scalar_select %p137, %s138, %s139
    %p143 = pneg %p137
    %p144 = scmp.eq.s32.totalorder %s13, 1
    %p145 = por %p143, %p144
    %p146 = scmp.ne.s32.totalorder %s138, %s141
    %p147 = scmp.eq.s32.totalorder %s13, 0
    %p148 = por %p146, %p147
    %p149 = scmp.ne.s32.totalorder %s138, %s141
    %p150 = scmp.eq.s32.totalorder %s18, 1
    %p151 = por %p149, %p150
    %p152 = scmp.ne.s32.totalorder %s141, %s142
    %p153 = scmp.eq.s32.totalorder %s18, 0
    %p154 = por %p152, %p153
    %p155 = scmp.ne.s32.totalorder %s141, %s142
    %p156 = scmp.eq.s32.totalorder %s19, 1
    %p157 = por %p155, %p156
    %p159 = scmp.ne.s32.totalorder %s142, %s158
    %p160 = scmp.eq.s32.totalorder %s19, 0
    %p161 = por %p159, %p160
    %s163 = sadd.s32 %s162, 1
    %p166 = scmp.eq.s32.totalorder %s13, 1
    %p167 = scmp.ne.s32.totalorder %s162, %s164
    %p168 = scmp.eq.s32.totalorder %s13, 0
    %p169 = por %p167, %p168
    %p170 = scmp.ne.s32.totalorder %s162, %s164
    %p171 = scmp.eq.s32.totalorder %s18, 1
    %p172 = por %p170, %p171
    %p173 = scmp.ne.s32.totalorder %s164, %s165
    %p174 = scmp.eq.s32.totalorder %s18, 0
    %p175 = por %p173, %p174
    %p176 = scmp.ne.s32.totalorder %s164, %s165
    %p177 = scmp.eq.s32.totalorder %s19, 1
    %p178 = por %p176, %p177
    %p180 = scmp.ne.s32.totalorder %s165, %s179
    %p181 = scmp.eq.s32.totalorder %s19, 0
    %p182 = por %p180, %p181
    %s183 = ssub.s32 %s13, %s20
    %p184 = scmp.eq.s32.totalorder %s183, 0
    %s186 = sadd.s32 %s185, 1
    %s187 = scalar_select %p184, %s185, %s186
    %p190 = pneg %p184
    %p191 = scmp.eq.s32.totalorder %s13, 1
    %p192 = por %p190, %p191
    %p193 = scmp.ne.s32.totalorder %s185, %s188
    %p194 = scmp.eq.s32.totalorder %s13, 0
    %p195 = por %p193, %p194
    %p196 = scmp.ne.s32.totalorder %s185, %s188
    %p197 = scmp.eq.s32.totalorder %s18, 1
    %p198 = por %p196, %p197
    %p199 = scmp.ne.s32.totalorder %s188, %s189
    %p200 = scmp.eq.s32.totalorder %s18, 0
    %p201 = por %p199, %p200
    %p202 = scmp.ne.s32.totalorder %s188, %s189
    %p203 = scmp.eq.s32.totalorder %s19, 1
    %p204 = por %p202, %p203
    %p206 = scmp.ne.s32.totalorder %s189, %s205
    %p207 = scmp.eq.s32.totalorder %s19, 0
    %p208 = por %p206, %p207
    %p209 = scmp.le.s32.totalorder 1, %s13
    %p210 = scmp.lt.s32.totalorder %s13, 3
    %p211 = pnand %p209, %p210
    %p212 = pneg %p211
    // Predicated region
    $region9: #{gsynthesis_forward.9} parent=5 // pred_check
      _
    $region10: #{gsynthesis_forward.9} parent=5 // pred_check_branch
      %214 = sbr.rel (%p211) target = $region12
    $region11: #{gsynthesis_forward.9} parent=5 // pred_region
      %s215 = ssub.s32 %s13, 1
      // Predicated region
      $region13: #{gsynthesis_forward.9} parent=11 // pred_check
        %p216 = pneg %p60
      $region14: #{gsynthesis_forward.9} parent=11 // pred_check_branch
        %218 = sbr.rel (%p216) target = $region16
      $region15: #{gsynthesis_forward.9} parent=11 // pred_region
        _
      $region16: #{gsynthesis_forward.9} parent=11 // pred_fallthru
        _
      // Predicated region
      $region17: #{gsynthesis_forward.9} parent=11 // pred_check
        %p219 = pneg %p81
      $region18: #{gsynthesis_forward.9} parent=11 // pred_check_branch
        %221 = sbr.rel (%p219) target = $region20
      $region19: #{gsynthesis_forward.9} parent=11 // pred_region
        _
      $region20: #{gsynthesis_forward.9} parent=11 // pred_fallthru
        _
      // Predicated region
      $region21: #{gsynthesis_forward.9} parent=11 // pred_check
        %p222 = pneg %p102
      $region22: #{gsynthesis_forward.9} parent=11 // pred_check_branch
        %224 = sbr.rel (%p222) target = $region24
      $region23: #{gsynthesis_forward.9} parent=11 // pred_region
        _
      $region24: #{gsynthesis_forward.9} parent=11 // pred_fallthru
        _
      // Predicated region
      $region25: #{gsynthesis_forward.9} parent=11 // pred_check
        %p225 = pneg %p175
      $region26: #{gsynthesis_forward.9} parent=11 // pred_check_branch
        %227 = sbr.rel (%p225) target = $region28
      $region27: #{gsynthesis_forward.9} parent=11 // pred_region
        _
      $region28: #{gsynthesis_forward.9} parent=11 // pred_fallthru
        _
    $region12: #{gsynthesis_forward.9} parent=5 // pred_fallthru
      _
    %p228 = scmp.lt.s32.totalorder %s13, 2
    // Predicated region
    $region29: #{gsynthesis_forward.9} parent=5 // pred_check
      %p229 = pneg %p228
    $region30: #{gsynthesis_forward.9} parent=5 // pred_check_branch
      %231 = sbr.rel (%p229) target = $region32
    $region31: #{gsynthesis_forward.9} parent=5 // pred_region
      // Predicated region
      $region33: #{gsynthesis_forward.9} parent=31 // pred_check
        %p232 = pneg %p33
      $region34: #{gsynthesis_forward.9} parent=31 // pred_check_branch
        %234 = sbr.rel (%p232) target = $region36
      $region35: #{gsynthesis_forward.9} parent=31 // pred_region
        %p235 = scmp.lt.s32.totalorder %s13, 1
        %s236 = scalar_select %p235, %s13, 1
        %s237 = smul.addr %s236, 10
        %s238 = smul.addr %s237, 4
        %s239 = scalar_lea.vmem %s0, %s238
      $region36: #{gsynthesis_forward.9} parent=31 // pred_fallthru
        _
      // Predicated region
      $region37: #{gsynthesis_forward.9} parent=31 // pred_check
        %p240 = pneg %p122
      $region38: #{gsynthesis_forward.9} parent=31 // pred_check_branch
        %242 = sbr.rel (%p240) target = $region40
      $region39: #{gsynthesis_forward.9} parent=31 // pred_region
        %p243 = scmp.lt.s32.totalorder %s13, 1
        %s244 = scalar_select %p243, %s13, 1
        %s245 = scalar_lea.vmem %s4, %s244
      $region40: #{gsynthesis_forward.9} parent=31 // pred_fallthru
        _
      // Predicated region
      $region41: #{gsynthesis_forward.9} parent=31 // pred_check
        %p246 = pneg %p148
      $region42: #{gsynthesis_forward.9} parent=31 // pred_check_branch
        %248 = sbr.rel (%p246) target = $region44
      $region43: #{gsynthesis_forward.9} parent=31 // pred_region
        %p249 = scmp.lt.s32.totalorder %s13, 1
        %s250 = scalar_select %p249, %s13, 1
        %s251 = smul.addr %s250, 10
        %s252 = smul.addr %s251, 8
        %s253 = scalar_lea.vmem %s5, %s252
      $region44: #{gsynthesis_forward.9} parent=31 // pred_fallthru
        _
    $region32: #{gsynthesis_forward.9} parent=5 // pred_fallthru
      _
    %p254 = scmp.le.s32.totalorder 1, %s13
    %p255 = scmp.lt.s32.totalorder %s13, 3
    %p256 = pnand %p254, %p255
    %p257 = pneg %p256
    // Predicated region
    $region45: #{gsynthesis_forward.9} parent=5 // pred_check
      _
    $region46: #{gsynthesis_forward.9} parent=5 // pred_check_branch
      %259 = sbr.rel (%p256) target = $region48
    $region47: #{gsynthesis_forward.9} parent=5 // pred_region
      %s260 = ssub.s32 %s13, 1
      %p261 = scmp.lt.s32.totalorder %s18, 1
      %s262 = scalar_select %p261, %s18, 1
      %s263 = smul.addr %s262, 10
      %s264 = smul.addr %s263, 4
      %s265 = scalar_lea.vmem %s0, %s264
      %p266 = pneg %p39
      %p267 = pneg %p36
      %p268 = pneg %p60
      %p269 = pneg %p57
      %p270 = pneg %p81
      %p271 = pneg %p78
      %p272 = pneg %p102
      %p273 = pneg %p99
      %p274 = scmp.lt.s32.totalorder %s18, 1
      %s275 = scalar_select %p274, %s18, 1
      %s276 = scalar_lea.vmem %s4, %s275
      %p277 = pneg %p128
      %p278 = pneg %p125
      %p279 = scmp.lt.s32.totalorder %s18, 1
      %s280 = scalar_select %p279, %s18, 1
      %s281 = smul.addr %s280, 10
      %s282 = smul.addr %s281, 8
      %s283 = scalar_lea.vmem %s5, %s282
      %p284 = pneg %p154
      %p285 = pneg %p151
      %p286 = pneg %p175
      %p287 = pneg %p172
      %p288 = pneg %p201
      %p289 = pneg %p198
      %p290 = scmp.lt.s32.totalorder %s18, 1
      %s291 = scalar_select %p290, %s18, 1
      %s292 = smul.addr %s291, 10
      %s293 = smul.addr %s292, 4
      %s294 = scalar_lea.vmem %s7, %s293
      %p295 = scmp.lt.s32.totalorder %s18, 1
      %s296 = scalar_select %p295, %s18, 1
      %s297 = smul.addr %s296, 10
      %s298 = smul.addr %s297, 4
      %s299 = scalar_lea.vmem %s0, %s298
      %p300 = scmp.lt.s32.totalorder %s18, 1
      %s301 = scalar_select %p300, %s18, 1
      %s302 = scalar_lea.vmem %s4, %s301
      %p303 = scmp.lt.s32.totalorder %s18, 1
      %s304 = scalar_select %p303, %s18, 1
      %s305 = smul.addr %s304, 10
      %s306 = smul.addr %s305, 8
      %s307 = scalar_lea.vmem %s5, %s306
      %p308 = scmp.lt.s32.totalorder %s18, 1
      %s309 = scalar_select %p308, %s18, 1
      %s310 = smul.addr %s309, 10
      %s311 = smul.addr %s310, 4
      %s312 = scalar_lea.vmem %s7, %s311
      %vm314 = vcmask 257024
      %315 = vst.msk [vmem:[#allocation2] sm:$0xf] %vm314, 0
      %316 = vst.msk [vmem:[#allocation2 + $0x4] sm:$0xf] %vm314, 0
      %317 = vst.msk [vmem:[#allocation2 + $0x8] sm:$0xf] %vm314, 0
      %318 = vst.msk [vmem:[#allocation2 + $0xc] sm:$0xf] %vm314, 0
      %319 = vst.msk [vmem:[#allocation2 + $0x10] sm:$0xf] %vm314, 0
      %320 = vst.msk [vmem:[#allocation2 + $0x14] sm:$0xf] %vm314, 0
      %321 = vst.msk [vmem:[#allocation2 + $0x18] sm:$0xf] %vm314, 0
      %322 = vst.msk [vmem:[#allocation2 + $0x1c] sm:$0xf] %vm314, 0
      %323 = vst.msk [vmem:[#allocation2 + $0x20] sm:$0xf] %vm314, 0
      %324 = vst.msk [vmem:[#allocation2 + $0x24] sm:$0xf] %vm314, 0
      %325 = vst.msk [vmem:[#allocation2 + $0x28] sm:$0xf] %vm314, 0
      %326 = vst.msk [vmem:[#allocation2 + $0x2c] sm:$0xf] %vm314, 0
      %327 = vst.msk [vmem:[#allocation2 + $0x30] sm:$0xf] %vm314, 0
      %vm328 = vcmask 256000
      %329 = vst.msk [vmem:[#allocation2 + $0x34] sm:$0x7] %vm328, 0
      %v330 = vld [vmem:[%s299] sm:$0xf]
      %v331 = vld [vmem:[%s299 + $0x4] sm:$0xf]
      %v332 = vld [vmem:[%s299 + $0x8] sm:$0xf]
      %v333 = vld [vmem:[%s299 + $0xc] sm:$0xf]
      %v334 = vld [vmem:[%s299 + $0x10] sm:$0xf]
      %v335 = vld [vmem:[%s299 + $0x14] sm:$0xf]
      %v336 = vld [vmem:[%s299 + $0x18] sm:$0xf]
      %v337 = vld [vmem:[%s299 + $0x1c] sm:$0xf]
      %v338 = vld [vmem:[%s299 + $0x20] sm:$0xf]
      %v339 = vld [vmem:[%s299 + $0x24] sm:$0xf]
      %vm340 = vsmask.f32 1280
      %vm341 = vsmask.f32 5392
      %vm342 = vmor %vm340, %vm341
      %v344 = vshrl.u32 %v330, 16
      %v346 = vrot.slane %v344, 6
      %v347 = vshll.u32 %v330, 16
      %v349 = vrot.slane %v347, 7
      %v350 = vor.u32 %v346, %v349
      %v351 = vrot.slane %v350, 4
      %v353 = vshrl.u32 %v331, 16
      %v355 = vrot.slane %v353, 6
      %v356 = vshll.u32 %v331, 16
      %v358 = vrot.slane %v356, 7
      %v359 = vor.u32 %v355, %v358
      %v360 = vsel %vm342, %v351, %v359
      %v361 = vrot.slane %v359, 4
      %v363 = vshrl.u32 %v332, 16
      %v365 = vrot.slane %v363, 6
      %v366 = vshll.u32 %v332, 16
      %v368 = vrot.slane %v366, 7
      %v369 = vor.u32 %v365, %v368
      %v370 = vsel %vm342, %v361, %v369
      %v371 = vrot.slane %v369, 4
      %v373 = vshrl.u32 %v333, 16
      %v375 = vrot.slane %v373, 6
      %v376 = vshll.u32 %v333, 16
      %v378 = vrot.slane %v376, 7
      %v379 = vor.u32 %v375, %v378
      %v380 = vsel %vm342, %v371, %v379
      %v381 = vrot.slane %v379, 4
      %v383 = vshrl.u32 %v334, 16
      %v385 = vrot.slane %v383, 6
      %v386 = vshll.u32 %v334, 16
      %v388 = vrot.slane %v386, 7
      %v389 = vor.u32 %v385, %v388
      %v390 = vsel %vm342, %v381, %v389
      %v391 = vrot.slane %v389, 4
      %v393 = vshrl.u32 %v335, 16
      %v395 = vrot.slane %v393, 6
      %v396 = vshll.u32 %v335, 16
      %v398 = vrot.slane %v396, 7
      %v399 = vor.u32 %v395, %v398
      %v400 = vsel %vm342, %v391, %v399
      %v401 = vrot.slane %v399, 4
      %v403 = vshrl.u32 %v336, 16
      %v405 = vrot.slane %v403, 6
      %v406 = vshll.u32 %v336, 16
      %v408 = vrot.slane %v406, 7
      %v409 = vor.u32 %v405, %v408
      %v410 = vsel %vm342, %v401, %v409
      %v411 = vrot.slane %v409, 4
      %v413 = vshrl.u32 %v337, 16
      %v415 = vrot.slane %v413, 6
      %v416 = vshll.u32 %v337, 16
      %v418 = vrot.slane %v416, 7
      %v419 = vor.u32 %v415, %v418
      %v420 = vsel %vm342, %v411, %v419
      %v421 = vrot.slane %v419, 4
      %v423 = vshrl.u32 %v338, 16
      %v425 = vrot.slane %v423, 6
      %v426 = vshll.u32 %v338, 16
      %v428 = vrot.slane %v426, 7
      %v429 = vor.u32 %v425, %v428
      %v430 = vsel %vm342, %v421, %v429
      %v431 = vrot.slane %v429, 4
      %v433 = vshrl.u32 %v339, 16
      %v435 = vrot.slane %v433, 6
      %v436 = vshll.u32 %v339, 16
      %v438 = vrot.slane %v436, 7
      %v439 = vor.u32 %v435, %v438
      %v440 = vsel %vm342, %v431, %v439
      %v441 = vrot.slane %v439, 4
      %vm453 = vcmask 257025
      %vm454 = vsmask.f32 7942
      %vm455 = vmand %vm453, %vm454
      %v456 = vld [vmem:[#allocation2 + $0x4] sm:$0xe]
      %v457 = vsel %vm455, %v350, %v456
      %458 = vst [vmem:[#allocation2 + $0x4] sm:$0xe] %v457
      %459 = vst.msk [vmem:[#allocation2 + $0x8] sm:$0xf] %vm314, %v360
      %460 = vst.msk [vmem:[#allocation2 + $0xc] sm:$0xf] %vm314, %v370
      %461 = vst.msk [vmem:[#allocation2 + $0x10] sm:$0xf] %vm314, %v380
      %462 = vst.msk [vmem:[#allocation2 + $0x14] sm:$0xf] %vm314, %v390
      %463 = vst.msk [vmem:[#allocation2 + $0x18] sm:$0xf] %vm314, %v400
      %464 = vst.msk [vmem:[#allocation2 + $0x1c] sm:$0xf] %vm314, %v410
      %465 = vst.msk [vmem:[#allocation2 + $0x20] sm:$0xf] %vm314, %v420
      %466 = vst.msk [vmem:[#allocation2 + $0x24] sm:$0xf] %vm314, %v430
      %467 = vst.msk [vmem:[#allocation2 + $0x28] sm:$0xf] %vm314, %v440
      %vm468 = vcmask 254976
      %vm469 = vmand %vm468, %vm340
      %v470 = vld [vmem:[#allocation2 + $0x2c] sm:$0x3]
      %v471 = vsel %vm469, %v441, %v470
      %472 = vst [vmem:[#allocation2 + $0x2c] sm:$0x3] %v471
      %v473 = vld [vmem:[#allocation2] sm:$0xf]
      %v474 = vld [vmem:[#allocation2 + $0x4] sm:$0xf]
      %v475 = vld [vmem:[#allocation2 + $0x8] sm:$0xf]
      %v476 = vld [vmem:[#allocation2 + $0xc] sm:$0xf]
      %v477 = vld [vmem:[#allocation2 + $0x10] sm:$0xf]
      %v478 = vld [vmem:[#allocation2 + $0x14] sm:$0xf]
      %v479 = vld [vmem:[#allocation2 + $0x18] sm:$0xf]
      %v480 = vld [vmem:[#allocation2 + $0x1c] sm:$0xf]
      %v481 = vld [vmem:[#allocation2 + $0x20] sm:$0xf]
      %v482 = vld [vmem:[#allocation2 + $0x24] sm:$0xf]
      %v483 = vld [vmem:[%s1] sm:$0xf]
      %v484 = vld [vmem:[%s1 + $0x4] sm:$0xf]
      %v485 = vld [vmem:[%s1 + $0x8] sm:$0xf]
      %v486 = vld [vmem:[%s1 + $0xc] sm:$0xf]
      %v487 = vld [vmem:[#allocation2 + $0x28] sm:$0x1]
      %s488 = scalar_lea.vmem %s1, 16
      %v489 = vld [vmem:[%s488] sm:$0xf]
      %v490 = vld [vmem:[%s488 + $0x4] sm:$0xf]
      %v491 = vld [vmem:[%s488 + $0x8] sm:$0xf]
      %v492 = vld [vmem:[%s488 + $0xc] sm:$0xf]
      %v504 = vunpack.c.l.b16 %v473
      %v505 = vunpack.c.l.b16 %v474
      %v506 = vunpack.c.l.b16 %v475
      %v507 = vunpack.c.l.b16 %v476
      %v508 = vunpack.c.l.b16 %v477
      %v509 = vunpack.c.l.b16 %v478
      %v510 = vunpack.c.l.b16 %v479
      %v511 = vunpack.c.l.b16 %v480
      %v512 = vunpack.c.l.b16 %v481
      %v513 = vunpack.c.l.b16 %v482
      %v514 = vunpack.c.l.b16 %v487
      %v515 = vpack.c.b16 %v505, %v504
      %v516 = vpack.c.b16 %v507, %v506
      %v517 = vpack.c.b16 %v509, %v508
      %v518 = vpack.c.b16 %v511, %v510
      %v519 = vpack.c.b16 %v513, %v512
      %v520 = vpack.c.b16 %v514, %v514
      %vm521 = vsmask.f32 7424
      %v523 = vshrl.u32 %v515, 16
      %v525 = vshll.u32 %v515, 16
      %v527 = vrot.slane %v525, 1
      %v528 = vor.u32 %v523, %v527
      %v530 = vshll.u32 %v516, 16
      %v532 = vrot.slane %v530, 1
      %v533 = vsel %vm521, %v528, %v532
      %v534 = vshrl.u32 %v516, 16
      %v536 = vor.u32 %v534, %v532
      %v538 = vshll.u32 %v517, 16
      %v540 = vrot.slane %v538, 1
      %v541 = vsel %vm521, %v536, %v540
      %v542 = vshrl.u32 %v517, 16
      %v544 = vor.u32 %v542, %v540
      %v546 = vshll.u32 %v518, 16
      %v548 = vrot.slane %v546, 1
      %v549 = vsel %vm521, %v544, %v548
      %v550 = vshrl.u32 %v518, 16
      %v552 = vor.u32 %v550, %v548
      %v554 = vshll.u32 %v519, 16
      %v556 = vrot.slane %v554, 1
      %v557 = vsel %vm521, %v552, %v556
      %v558 = vshrl.u32 %v519, 16
      %v560 = vor.u32 %v558, %v556
      %v562 = vshll.u32 %v520, 16
      %v564 = vrot.slane %v562, 1
      %v565 = vsel %vm521, %v560, %v564
      %v570 = vunpack.c.l.b16 %v489
      %v571 = vunpack.c.l.b16 %v490
      %v572 = vunpack.c.l.b16 %v491
      %v573 = vunpack.c.l.b16 %v492
      %v574 = vpack.c.b16 %v571, %v570
      %v575 = vpack.c.b16 %v573, %v572
      %vm578 = vcmask 261120
      %v580 = vsel %vm578, %v533, 0
      %v583 = vsel %vm578, %v541, 0
      %v586 = vsel %vm578, %v549, 0
      %v589 = vsel %vm578, %v557, 0
      %v592 = vsel %vm578, %v565, 0
      %594 = vmatpush.bf16.msra.mxu0 0
      %595 = vmatpush.bf16.msra.mxu0 0
      %596 = vmatpush.bf16.msra.mxu0 0
      %597 = vmatpush.bf16.msra.mxu0 0
      %598 = vmatpush.bf16.msra.mxu0 0
      %599 = vmatpush.bf16.msra.mxu0 0
      %600 = vmatpush.bf16.msra.mxu0 %v575
      %601 = vmatpush.bf16.msra.mxu0 %v574
      %602 = vmatmul.bf16.gmra.mxu0 %v580
      %v603 = vpop.f32.mrf.mxu0
      %v604 = vadd.f32 0.0, %v603
      %v605 = vpop.f32.mrf.mxu0
      %v606 = vadd.f32 0.0, %v605
      %607 = vmatmul.bf16.gmra.mxu0 %v583
      %v608 = vpop.f32.mrf.mxu0
      %v609 = vadd.f32 0.0, %v608
      %v610 = vpop.f32.mrf.mxu0
      %v611 = vadd.f32 0.0, %v610
      %612 = vmatmul.bf16.gmra.mxu0 %v586
      %v613 = vpop.f32.mrf.mxu0
      %v614 = vadd.f32 0.0, %v613
      %v615 = vpop.f32.mrf.mxu0
      %v616 = vadd.f32 0.0, %v615
      %617 = vmatmul.bf16.gmra.mxu0 %v589
      %v618 = vpop.f32.mrf.mxu0
      %v619 = vadd.f32 0.0, %v618
      %v620 = vpop.f32.mrf.mxu0
      %v621 = vadd.f32 0.0, %v620
      %622 = vmatmul.bf16.gmra.mxu0 %v592
      %v623 = vpop.f32.mrf.mxu0
      %v624 = vadd.f32 0.0, %v623
      %v625 = vpop.f32.mrf.mxu0
      %v626 = vadd.f32 0.0, %v625
      %627 = vdwg.mxu0
      %v632 = vunpack.c.l.b16 %v483
      %v633 = vunpack.c.l.b16 %v484
      %v634 = vunpack.c.l.b16 %v485
      %v635 = vunpack.c.l.b16 %v486
      %v636 = vpack.c.b16 %v633, %v632
      %v637 = vpack.c.b16 %v635, %v634
      %v640 = vsel %vm578, %v515, 0
      %v642 = vsel %vm578, %v516, 0
      %v644 = vsel %vm578, %v517, 0
      %v646 = vsel %vm578, %v518, 0
      %v648 = vsel %vm578, %v519, 0
      %650 = vmatpush.bf16.msra.mxu0 0
      %651 = vmatpush.bf16.msra.mxu0 0
      %652 = vmatpush.bf16.msra.mxu0 0
      %653 = vmatpush.bf16.msra.mxu0 0
      %654 = vmatpush.bf16.msra.mxu0 0
      %655 = vmatpush.bf16.msra.mxu0 0
      %656 = vmatpush.bf16.msra.mxu0 %v637
      %657 = vmatpush.bf16.msra.mxu0 %v636
      %658 = vmatmul.bf16.gmra.mxu0 %v640
      %v659 = vpop.f32.mrf.mxu0
      %v660 = vadd.f32 %v604, %v659
      %v661 = vpop.f32.mrf.mxu0
      %v662 = vadd.f32 %v606, %v661
      %663 = vmatmul.bf16.gmra.mxu0 %v642
      %v664 = vpop.f32.mrf.mxu0
      %v665 = vadd.f32 %v609, %v664
      %v666 = vpop.f32.mrf.mxu0
      %v667 = vadd.f32 %v611, %v666
      %668 = vmatmul.bf16.gmra.mxu0 %v644
      %v669 = vpop.f32.mrf.mxu0
      %v670 = vadd.f32 %v614, %v669
      %v671 = vpop.f32.mrf.mxu0
      %v672 = vadd.f32 %v616, %v671
      %673 = vmatmul.bf16.gmra.mxu0 %v646
      %v674 = vpop.f32.mrf.mxu0
      %v675 = vadd.f32 %v619, %v674
      %v676 = vpop.f32.mrf.mxu0
      %v677 = vadd.f32 %v621, %v676
      %678 = vmatmul.bf16.gmra.mxu0 %v648
      %v679 = vpop.f32.mrf.mxu0
      %v680 = vadd.f32 %v624, %v679
      %v681 = vpop.f32.mrf.mxu0
      %v682 = vadd.f32 %v626, %v681
      %683 = vdwg.mxu0
      %v684 = vld [vmem:[#allocation2] sm:$0xe]
      %s685 = scalar_lea.vmem %s1, 32
      %v686 = vld [vmem:[%s685] sm:$0xf]
      %v687 = vld [vmem:[%s685 + $0x4] sm:$0xf]
      %v688 = vld [vmem:[%s685 + $0x8] sm:$0xf]
      %v689 = vld [vmem:[%s685 + $0xc] sm:$0xf]
      %v691 = vunpack.c.l.b16 %v684
      %v692 = vpack.c.b16 %v505, %v691
      %vm693 = vcmask 1046528
      %v694 = vrot.slane %v692, 1
      %v695 = vrot.slane %v516, 1
      %v696 = vsel %vm693, %v694, %v695
      %v697 = vrot.slane %v517, 1
      %v698 = vsel %vm693, %v695, %v697
      %v699 = vrot.slane %v518, 1
      %v700 = vsel %vm693, %v697, %v699
      %v701 = vrot.slane %v519, 1
      %v702 = vsel %vm693, %v699, %v701
      %v703 = vrot.slane %v520, 1
      %v704 = vsel %vm693, %v701, %v703
      %v709 = vunpack.c.l.b16 %v686
      %v710 = vunpack.c.l.b16 %v687
      %v711 = vunpack.c.l.b16 %v688
      %v712 = vunpack.c.l.b16 %v689
      %v713 = vpack.c.b16 %v710, %v709
      %v714 = vpack.c.b16 %v712, %v711
      %v718 = vsel %vm578, %v696, 0
      %v721 = vsel %vm578, %v698, 0
      %v724 = vsel %vm578, %v700, 0
      %v727 = vsel %vm578, %v702, 0
      %v730 = vsel %vm578, %v704, 0
      %732 = vmatpush.bf16.msra.mxu0 0
      %733 = vmatpush.bf16.msra.mxu0 0
      %734 = vmatpush.bf16.msra.mxu0 0
      %735 = vmatpush.bf16.msra.mxu0 0
      %736 = vmatpush.bf16.msra.mxu0 0
      %737 = vmatpush.bf16.msra.mxu0 0
      %738 = vmatpush.bf16.msra.mxu0 %v714
      %739 = vmatpush.bf16.msra.mxu0 %v713
      %740 = vmatmul.bf16.gmra.mxu0 %v718
      %v741 = vpop.f32.mrf.mxu0
      %v742 = vadd.f32 0.0, %v741
      %v743 = vpop.f32.mrf.mxu0
      %v744 = vadd.f32 0.0, %v743
      %745 = vmatmul.bf16.gmra.mxu0 %v721
      %v746 = vpop.f32.mrf.mxu0
      %v747 = vadd.f32 0.0, %v746
      %v748 = vpop.f32.mrf.mxu0
      %v749 = vadd.f32 0.0, %v748
      %750 = vmatmul.bf16.gmra.mxu0 %v724
      %v751 = vpop.f32.mrf.mxu0
      %v752 = vadd.f32 0.0, %v751
      %v753 = vpop.f32.mrf.mxu0
      %v754 = vadd.f32 0.0, %v753
      %755 = vmatmul.bf16.gmra.mxu0 %v727
      %v756 = vpop.f32.mrf.mxu0
      %v757 = vadd.f32 0.0, %v756
      %v758 = vpop.f32.mrf.mxu0
      %v759 = vadd.f32 0.0, %v758
      %760 = vmatmul.bf16.gmra.mxu0 %v730
      %v761 = vpop.f32.mrf.mxu0
      %v762 = vadd.f32 0.0, %v761
      %v763 = vpop.f32.mrf.mxu0
      %v764 = vadd.f32 0.0, %v763
      %765 = vdwg.mxu0
      %v766 = vadd.f32 %v660, %v742
      %v767 = vadd.f32 %v662, %v744
      %v768 = vadd.f32 %v665, %v747
      %v769 = vadd.f32 %v667, %v749
      %v770 = vadd.f32 %v670, %v752
      %v771 = vadd.f32 %v672, %v754
      %v772 = vadd.f32 %v675, %v757
      %v773 = vadd.f32 %v677, %v759
      %v774 = vadd.f32 %v680, %v762
      %v775 = vadd.f32 %v682, %v764
      %v776 = vld [vmem:[#allocation2 + $0x4] sm:$0xe]
      %v777 = vld [vmem:[#allocation2 + $0x8] sm:$0xf]
      %v778 = vld [vmem:[#allocation2 + $0xc] sm:$0xf]
      %v779 = vld [vmem:[#allocation2 + $0x10] sm:$0xf]
      %v780 = vld [vmem:[#allocation2 + $0x14] sm:$0xf]
      %v781 = vld [vmem:[#allocation2 + $0x18] sm:$0xf]
      %v782 = vld [vmem:[#allocation2 + $0x1c] sm:$0xf]
      %v783 = vld [vmem:[#allocation2 + $0x20] sm:$0xf]
      %v784 = vld [vmem:[#allocation2 + $0x24] sm:$0xf]
      %v785 = vld [vmem:[#allocation2 + $0x28] sm:$0xf]
      %v786 = vld [vmem:[#allocation2 + $0x2c] sm:$0x1]
      %s787 = scalar_lea.vmem %s1, 48
      %v788 = vld [vmem:[%s787] sm:$0xf]
      %v789 = vld [vmem:[%s787 + $0x4] sm:$0xf]
      %v790 = vld [vmem:[%s787 + $0x8] sm:$0xf]
      %v791 = vld [vmem:[%s787 + $0xc] sm:$0xf]
      %v803 = vunpack.c.l.b16 %v776
      %v804 = vunpack.c.l.b16 %v777
      %v805 = vunpack.c.l.b16 %v778
      %v806 = vunpack.c.l.b16 %v779
      %v807 = vunpack.c.l.b16 %v780
      %v808 = vunpack.c.l.b16 %v781
      %v809 = vunpack.c.l.b16 %v782
      %v810 = vunpack.c.l.b16 %v783
      %v811 = vunpack.c.l.b16 %v784
      %v812 = vunpack.c.l.b16 %v785
      %v813 = vunpack.c.l.b16 %v786
      %v814 = vpack.c.b16 %v804, %v803
      %v815 = vpack.c.b16 %v806, %v805
      %v816 = vpack.c.b16 %v808, %v807
      %v817 = vpack.c.b16 %v810, %v809
      %v818 = vpack.c.b16 %v812, %v811
      %v819 = vpack.c.b16 %v813, %v813
      %v820 = vrot.slane %v814, 1
      %v821 = vrot.slane %v815, 1
      %v822 = vsel %vm693, %v820, %v821
      %v823 = vrot.slane %v816, 1
      %v824 = vsel %vm693, %v821, %v823
      %v825 = vrot.slane %v817, 1
      %v826 = vsel %vm693, %v823, %v825
      %v827 = vrot.slane %v818, 1
      %v828 = vsel %vm693, %v825, %v827
      %v829 = vrot.slane %v819, 1
      %v830 = vsel %vm693, %v827, %v829
      %v835 = vunpack.c.l.b16 %v788
      %v836 = vunpack.c.l.b16 %v789
      %v837 = vunpack.c.l.b16 %v790
      %v838 = vunpack.c.l.b16 %v791
      %v839 = vpack.c.b16 %v836, %v835
      %v840 = vpack.c.b16 %v838, %v837
      %v844 = vsel %vm578, %v822, 0
      %v847 = vsel %vm578, %v824, 0
      %v850 = vsel %vm578, %v826, 0
      %v853 = vsel %vm578, %v828, 0
      %v856 = vsel %vm578, %v830, 0
      %858 = vmatpush.bf16.msra.mxu0 0
      %859 = vmatpush.bf16.msra.mxu0 0
      %860 = vmatpush.bf16.msra.mxu0 0
      %861 = vmatpush.bf16.msra.mxu0 0
      %862 = vmatpush.bf16.msra.mxu0 0
      %863 = vmatpush.bf16.msra.mxu0 0
      %864 = vmatpush.bf16.msra.mxu0 %v840
      %865 = vmatpush.bf16.msra.mxu0 %v839
      %866 = vmatmul.bf16.gmra.mxu0 %v844
      %v867 = vpop.f32.mrf.mxu0
      %v868 = vadd.f32 0.0, %v867
      %v869 = vpop.f32.mrf.mxu0
      %v870 = vadd.f32 0.0, %v869
      %871 = vmatmul.bf16.gmra.mxu0 %v847
      %v872 = vpop.f32.mrf.mxu0
      %v873 = vadd.f32 0.0, %v872
      %v874 = vpop.f32.mrf.mxu0
      %v875 = vadd.f32 0.0, %v874
      %876 = vmatmul.bf16.gmra.mxu0 %v850
      %v877 = vpop.f32.mrf.mxu0
      %v878 = vadd.f32 0.0, %v877
      %v879 = vpop.f32.mrf.mxu0
      %v880 = vadd.f32 0.0, %v879
      %881 = vmatmul.bf16.gmra.mxu0 %v853
      %v882 = vpop.f32.mrf.mxu0
      %v883 = vadd.f32 0.0, %v882
      %v884 = vpop.f32.mrf.mxu0
      %v885 = vadd.f32 0.0, %v884
      %886 = vmatmul.bf16.gmra.mxu0 %v856
      %v887 = vpop.f32.mrf.mxu0
      %v888 = vadd.f32 0.0, %v887
      %v889 = vpop.f32.mrf.mxu0
      %v890 = vadd.f32 0.0, %v889
      %891 = vdwg.mxu0
      %v892 = vadd.f32 %v766, %v868
      %v893 = vadd.f32 %v767, %v870
      %v894 = vadd.f32 %v768, %v873
      %v895 = vadd.f32 %v769, %v875
      %v896 = vadd.f32 %v770, %v878
      %v897 = vadd.f32 %v771, %v880
      %v898 = vadd.f32 %v772, %v883
      %v899 = vadd.f32 %v773, %v885
      %v900 = vadd.f32 %v774, %v888
      %v901 = vadd.f32 %v775, %v890
      %v902 = vld [vmem:[#allocation2 + $0x2c] sm:$0x3]
      %s903 = scalar_lea.vmem %s1, 64
      %v904 = vld [vmem:[%s903] sm:$0xf]
      %v905 = vld [vmem:[%s903 + $0x4] sm:$0xf]
      %v906 = vld [vmem:[%s903 + $0x8] sm:$0xf]
      %v907 = vld [vmem:[%s903 + $0xc] sm:$0xf]
      %v909 = vunpack.c.l.b16 %v902
      %v910 = vpack.c.b16 %v909, %v909
      %vm911 = vsmask.f32 6400
      %v913 = vshrl.u32 %v814, 16
      %v915 = vrot.slane %v913, 1
      %v916 = vshll.u32 %v814, 16
      %v918 = vrot.slane %v916, 2
      %v919 = vor.u32 %v915, %v918
      %v921 = vshrl.u32 %v815, 16
      %v923 = vrot.slane %v921, 1
      %v924 = vshll.u32 %v815, 16
      %v926 = vrot.slane %v924, 2
      %v927 = vor.u32 %v923, %v926
      %v928 = vsel %vm911, %v919, %v927
      %v930 = vshrl.u32 %v816, 16
      %v932 = vrot.slane %v930, 1
      %v933 = vshll.u32 %v816, 16
      %v935 = vrot.slane %v933, 2
      %v936 = vor.u32 %v932, %v935
      %v937 = vsel %vm911, %v927, %v936
      %v939 = vshrl.u32 %v817, 16
      %v941 = vrot.slane %v939, 1
      %v942 = vshll.u32 %v817, 16
      %v944 = vrot.slane %v942, 2
      %v945 = vor.u32 %v941, %v944
      %v946 = vsel %vm911, %v936, %v945
      %v948 = vshrl.u32 %v818, 16
      %v950 = vrot.slane %v948, 1
      %v951 = vshll.u32 %v818, 16
      %v953 = vrot.slane %v951, 2
      %v954 = vor.u32 %v950, %v953
      %v955 = vsel %vm911, %v945, %v954
      %v957 = vshrl.u32 %v910, 16
      %v959 = vrot.slane %v957, 1
      %v960 = vshll.u32 %v910, 16
      %v962 = vrot.slane %v960, 2
      %v963 = vor.u32 %v959, %v962
      %v964 = vsel %vm911, %v954, %v963
      %v969 = vunpack.c.l.b16 %v904
      %v970 = vunpack.c.l.b16 %v905
      %v971 = vunpack.c.l.b16 %v906
      %v972 = vunpack.c.l.b16 %v907
      %v973 = vpack.c.b16 %v970, %v969
      %v974 = vpack.c.b16 %v972, %v971
      %v978 = vsel %vm578, %v928, 0
      %v981 = vsel %vm578, %v937, 0
      %v984 = vsel %vm578, %v946, 0
      %v987 = vsel %vm578, %v955, 0
      %v990 = vsel %vm578, %v964, 0
      %992 = vmatpush.bf16.msra.mxu0 0
      %993 = vmatpush.bf16.msra.mxu0 0
      %994 = vmatpush.bf16.msra.mxu0 0
      %995 = vmatpush.bf16.msra.mxu0 0
      %996 = vmatpush.bf16.msra.mxu0 0
      %997 = vmatpush.bf16.msra.mxu0 0
      %998 = vmatpush.bf16.msra.mxu0 %v974
      %999 = vmatpush.bf16.msra.mxu0 %v973
      %1000 = vmatmul.bf16.gmra.mxu0 %v978
      %v1001 = vpop.f32.mrf.mxu0
      %v1002 = vadd.f32 0.0, %v1001
      %v1003 = vpop.f32.mrf.mxu0
      %v1004 = vadd.f32 0.0, %v1003
      %1005 = vmatmul.bf16.gmra.mxu0 %v981
      %v1006 = vpop.f32.mrf.mxu0
      %v1007 = vadd.f32 0.0, %v1006
      %v1008 = vpop.f32.mrf.mxu0
      %v1009 = vadd.f32 0.0, %v1008
      %1010 = vmatmul.bf16.gmra.mxu0 %v984
      %v1011 = vpop.f32.mrf.mxu0
      %v1012 = vadd.f32 0.0, %v1011
      %v1013 = vpop.f32.mrf.mxu0
      %v1014 = vadd.f32 0.0, %v1013
      %1015 = vmatmul.bf16.gmra.mxu0 %v987
      %v1016 = vpop.f32.mrf.mxu0
      %v1017 = vadd.f32 0.0, %v1016
      %v1018 = vpop.f32.mrf.mxu0
      %v1019 = vadd.f32 0.0, %v1018
      %1020 = vmatmul.bf16.gmra.mxu0 %v990
      %v1021 = vpop.f32.mrf.mxu0
      %v1022 = vadd.f32 0.0, %v1021
      %v1023 = vpop.f32.mrf.mxu0
      %v1024 = vadd.f32 0.0, %v1023
      %1025 = vdwg.mxu0
      %v1026 = vadd.f32 %v892, %v1002
      %v1027 = vadd.f32 %v893, %v1004
      %v1028 = vadd.f32 %v894, %v1007
      %v1029 = vadd.f32 %v895, %v1009
      %v1030 = vadd.f32 %v896, %v1012
      %v1031 = vadd.f32 %v897, %v1014
      %v1032 = vadd.f32 %v898, %v1017
      %v1033 = vadd.f32 %v899, %v1019
      %v1034 = vadd.f32 %v900, %v1022
      %v1035 = vadd.f32 %v901, %v1024
      %v1036 = vld [vmem:[#allocation2 + $0x4] sm:$0xc]
      %s1037 = scalar_lea.vmem %s1, 80
      %v1038 = vld [vmem:[%s1037] sm:$0xf]
      %v1039 = vld [vmem:[%s1037 + $0x4] sm:$0xf]
      %v1040 = vld [vmem:[%s1037 + $0x8] sm:$0xf]
      %v1041 = vld [vmem:[%s1037 + $0xc] sm:$0xf]
      %v1043 = vunpack.c.l.b16 %v1036
      %v1044 = vpack.c.b16 %v804, %v1043
      %vm1045 = vcmask 1045504
      %v1046 = vrot.slane %v1044, 2
      %v1047 = vrot.slane %v815, 2
      %v1048 = vsel %vm1045, %v1046, %v1047
      %v1049 = vrot.slane %v816, 2
      %v1050 = vsel %vm1045, %v1047, %v1049
      %v1051 = vrot.slane %v817, 2
      %v1052 = vsel %vm1045, %v1049, %v1051
      %v1053 = vrot.slane %v818, 2
      %v1054 = vsel %vm1045, %v1051, %v1053
      %v1055 = vrot.slane %v910, 2
      %v1056 = vsel %vm1045, %v1053, %v1055
      %v1061 = vunpack.c.l.b16 %v1038
      %v1062 = vunpack.c.l.b16 %v1039
      %v1063 = vunpack.c.l.b16 %v1040
      %v1064 = vunpack.c.l.b16 %v1041
      %v1065 = vpack.c.b16 %v1062, %v1061
      %v1066 = vpack.c.b16 %v1064, %v1063
      %v1070 = vsel %vm578, %v1048, 0
      %v1073 = vsel %vm578, %v1050, 0
      %v1076 = vsel %vm578, %v1052, 0
      %v1079 = vsel %vm578, %v1054, 0
      %v1082 = vsel %vm578, %v1056, 0
      %1084 = vmatpush.bf16.msra.mxu0 0
      %1085 = vmatpush.bf16.msra.mxu0 0
      %1086 = vmatpush.bf16.msra.mxu0 0
      %1087 = vmatpush.bf16.msra.mxu0 0
      %1088 = vmatpush.bf16.msra.mxu0 0
      %1089 = vmatpush.bf16.msra.mxu0 0
      %1090 = vmatpush.bf16.msra.mxu0 %v1066
      %1091 = vmatpush.bf16.msra.mxu0 %v1065
      %1092 = vmatmul.bf16.gmra.mxu0 %v1070
      %v1093 = vpop.f32.mrf.mxu0
      %v1094 = vadd.f32 0.0, %v1093
      %v1095 = vpop.f32.mrf.mxu0
      %v1096 = vadd.f32 0.0, %v1095
      %1097 = vmatmul.bf16.gmra.mxu0 %v1073
      %v1098 = vpop.f32.mrf.mxu0
      %v1099 = vadd.f32 0.0, %v1098
      %v1100 = vpop.f32.mrf.mxu0
      %v1101 = vadd.f32 0.0, %v1100
      %1102 = vmatmul.bf16.gmra.mxu0 %v1076
      %v1103 = vpop.f32.mrf.mxu0
      %v1104 = vadd.f32 0.0, %v1103
      %v1105 = vpop.f32.mrf.mxu0
      %v1106 = vadd.f32 0.0, %v1105
      %1107 = vmatmul.bf16.gmra.mxu0 %v1079
      %v1108 = vpop.f32.mrf.mxu0
      %v1109 = vadd.f32 0.0, %v1108
      %v1110 = vpop.f32.mrf.mxu0
      %v1111 = vadd.f32 0.0, %v1110
      %1112 = vmatmul.bf16.gmra.mxu0 %v1082
      %v1113 = vpop.f32.mrf.mxu0
      %v1114 = vadd.f32 0.0, %v1113
      %v1115 = vpop.f32.mrf.mxu0
      %v1116 = vadd.f32 0.0, %v1115
      %1117 = vdwg.mxu0
      %v1118 = vadd.f32 %v1026, %v1094
      %v1119 = vadd.f32 %v1027, %v1096
      %v1120 = vadd.f32 %v1028, %v1099
      %v1121 = vadd.f32 %v1029, %v1101
      %v1122 = vadd.f32 %v1030, %v1104
      %v1123 = vadd.f32 %v1031, %v1106
      %v1124 = vadd.f32 %v1032, %v1109
      %v1125 = vadd.f32 %v1033, %v1111
      %v1126 = vadd.f32 %v1034, %v1114
      %v1127 = vadd.f32 %v1035, %v1116
      %v1128 = vld [vmem:[#allocation2 + $0x8] sm:$0xc]
      %v1129 = vld [vmem:[#allocation2 + $0xc] sm:$0xf]
      %v1130 = vld [vmem:[#allocation2 + $0x10] sm:$0xf]
      %v1131 = vld [vmem:[#allocation2 + $0x14] sm:$0xf]
      %v1132 = vld [vmem:[#allocation2 + $0x18] sm:$0xf]
      %v1133 = vld [vmem:[#allocation2 + $0x1c] sm:$0xf]
      %v1134 = vld [vmem:[#allocation2 + $0x20] sm:$0xf]
      %v1135 = vld [vmem:[#allocation2 + $0x24] sm:$0xf]
      %v1136 = vld [vmem:[#allocation2 + $0x28] sm:$0xf]
      %v1137 = vld [vmem:[#allocation2 + $0x2c] sm:$0xf]
      %v1138 = vld [vmem:[#allocation2 + $0x30] sm:$0x3]
      %s1139 = scalar_lea.vmem %s1, 96
      %v1140 = vld [vmem:[%s1139] sm:$0xf]
      %v1141 = vld [vmem:[%s1139 + $0x4] sm:$0xf]
      %v1142 = vld [vmem:[%s1139 + $0x8] sm:$0xf]
      %v1143 = vld [vmem:[%s1139 + $0xc] sm:$0xf]
      %v1155 = vunpack.c.l.b16 %v1128
      %v1156 = vunpack.c.l.b16 %v1129
      %v1157 = vunpack.c.l.b16 %v1130
      %v1158 = vunpack.c.l.b16 %v1131
      %v1159 = vunpack.c.l.b16 %v1132
      %v1160 = vunpack.c.l.b16 %v1133
      %v1161 = vunpack.c.l.b16 %v1134
      %v1162 = vunpack.c.l.b16 %v1135
      %v1163 = vunpack.c.l.b16 %v1136
      %v1164 = vunpack.c.l.b16 %v1137
      %v1165 = vunpack.c.l.b16 %v1138
      %v1166 = vpack.c.b16 %v1156, %v1155
      %v1167 = vpack.c.b16 %v1158, %v1157
      %v1168 = vpack.c.b16 %v1160, %v1159
      %v1169 = vpack.c.b16 %v1162, %v1161
      %v1170 = vpack.c.b16 %v1164, %v1163
      %v1171 = vpack.c.b16 %v1165, %v1165
      %v1172 = vrot.slane %v1166, 2
      %v1173 = vrot.slane %v1167, 2
      %v1174 = vsel %vm1045, %v1172, %v1173
      %v1175 = vrot.slane %v1168, 2
      %v1176 = vsel %vm1045, %v1173, %v1175
      %v1177 = vrot.slane %v1169, 2
      %v1178 = vsel %vm1045, %v1175, %v1177
      %v1179 = vrot.slane %v1170, 2
      %v1180 = vsel %vm1045, %v1177, %v1179
      %v1181 = vrot.slane %v1171, 2
      %v1182 = vsel %vm1045, %v1179, %v1181
      %v1187 = vunpack.c.l.b16 %v1140
      %v1188 = vunpack.c.l.b16 %v1141
      %v1189 = vunpack.c.l.b16 %v1142
      %v1190 = vunpack.c.l.b16 %v1143
      %v1191 = vpack.c.b16 %v1188, %v1187
      %v1192 = vpack.c.b16 %v1190, %v1189
      %v1196 = vsel %vm578, %v1174, 0
      %v1199 = vsel %vm578, %v1176, 0
      %v1202 = vsel %vm578, %v1178, 0
      %v1205 = vsel %vm578, %v1180, 0
      %v1208 = vsel %vm578, %v1182, 0
      %1210 = vmatpush.bf16.msra.mxu0 0
      %1211 = vmatpush.bf16.msra.mxu0 0
      %1212 = vmatpush.bf16.msra.mxu0 0
      %1213 = vmatpush.bf16.msra.mxu0 0
      %1214 = vmatpush.bf16.msra.mxu0 0
      %1215 = vmatpush.bf16.msra.mxu0 0
      %1216 = vmatpush.bf16.msra.mxu0 %v1192
      %1217 = vmatpush.bf16.msra.mxu0 %v1191
      %1218 = vmatmul.bf16.gmra.mxu0 %v1196
      %v1219 = vpop.f32.mrf.mxu0
      %v1220 = vadd.f32 0.0, %v1219
      %v1221 = vpop.f32.mrf.mxu0
      %v1222 = vadd.f32 0.0, %v1221
      %1223 = vmatmul.bf16.gmra.mxu0 %v1199
      %v1224 = vpop.f32.mrf.mxu0
      %v1225 = vadd.f32 0.0, %v1224
      %v1226 = vpop.f32.mrf.mxu0
      %v1227 = vadd.f32 0.0, %v1226
      %1228 = vmatmul.bf16.gmra.mxu0 %v1202
      %v1229 = vpop.f32.mrf.mxu0
      %v1230 = vadd.f32 0.0, %v1229
      %v1231 = vpop.f32.mrf.mxu0
      %v1232 = vadd.f32 0.0, %v1231
      %1233 = vmatmul.bf16.gmra.mxu0 %v1205
      %v1234 = vpop.f32.mrf.mxu0
      %v1235 = vadd.f32 0.0, %v1234
      %v1236 = vpop.f32.mrf.mxu0
      %v1237 = vadd.f32 0.0, %v1236
      %1238 = vmatmul.bf16.gmra.mxu0 %v1208
      %v1239 = vpop.f32.mrf.mxu0
      %v1240 = vadd.f32 0.0, %v1239
      %v1241 = vpop.f32.mrf.mxu0
      %v1242 = vadd.f32 0.0, %v1241
      %1243 = vdwg.mxu0
      %v1244 = vadd.f32 %v1118, %v1220
      %v1245 = vadd.f32 %v1119, %v1222
      %v1246 = vadd.f32 %v1120, %v1225
      %v1247 = vadd.f32 %v1121, %v1227
      %v1248 = vadd.f32 %v1122, %v1230
      %v1249 = vadd.f32 %v1123, %v1232
      %v1250 = vadd.f32 %v1124, %v1235
      %v1251 = vadd.f32 %v1125, %v1237
      %v1252 = vadd.f32 %v1126, %v1240
      %v1253 = vadd.f32 %v1127, %v1242
      %v1254 = vld [vmem:[#allocation2 + $0x30] sm:$0x7]
      %s1255 = scalar_lea.vmem %s1, 112
      %v1256 = vld [vmem:[%s1255] sm:$0xf]
      %v1257 = vld [vmem:[%s1255 + $0x4] sm:$0xf]
      %v1258 = vld [vmem:[%s1255 + $0x8] sm:$0xf]
      %v1259 = vld [vmem:[%s1255 + $0xc] sm:$0xf]
      %v1261 = vunpack.c.l.b16 %v1254
      %v1262 = vpack.c.b16 %v1261, %v1261
      %vm1263 = vsmask.f32 5376
      %v1265 = vshrl.u32 %v1166, 16
      %v1267 = vrot.slane %v1265, 2
      %v1268 = vshll.u32 %v1166, 16
      %v1270 = vrot.slane %v1268, 3
      %v1271 = vor.u32 %v1267, %v1270
      %v1273 = vshrl.u32 %v1167, 16
      %v1275 = vrot.slane %v1273, 2
      %v1276 = vshll.u32 %v1167, 16
      %v1278 = vrot.slane %v1276, 3
      %v1279 = vor.u32 %v1275, %v1278
      %v1280 = vsel %vm1263, %v1271, %v1279
      %v1282 = vshrl.u32 %v1168, 16
      %v1284 = vrot.slane %v1282, 2
      %v1285 = vshll.u32 %v1168, 16
      %v1287 = vrot.slane %v1285, 3
      %v1288 = vor.u32 %v1284, %v1287
      %v1289 = vsel %vm1263, %v1279, %v1288
      %v1291 = vshrl.u32 %v1169, 16
      %v1293 = vrot.slane %v1291, 2
      %v1294 = vshll.u32 %v1169, 16
      %v1296 = vrot.slane %v1294, 3
      %v1297 = vor.u32 %v1293, %v1296
      %v1298 = vsel %vm1263, %v1288, %v1297
      %v1300 = vshrl.u32 %v1170, 16
      %v1302 = vrot.slane %v1300, 2
      %v1303 = vshll.u32 %v1170, 16
      %v1305 = vrot.slane %v1303, 3
      %v1306 = vor.u32 %v1302, %v1305
      %v1307 = vsel %vm1263, %v1297, %v1306
      %v1309 = vshrl.u32 %v1262, 16
      %v1311 = vrot.slane %v1309, 2
      %v1312 = vshll.u32 %v1262, 16
      %v1314 = vrot.slane %v1312, 3
      %v1315 = vor.u32 %v1311, %v1314
      %v1316 = vsel %vm1263, %v1306, %v1315
      %v1321 = vunpack.c.l.b16 %v1256
      %v1322 = vunpack.c.l.b16 %v1257
      %v1323 = vunpack.c.l.b16 %v1258
      %v1324 = vunpack.c.l.b16 %v1259
      %v1325 = vpack.c.b16 %v1322, %v1321
      %v1326 = vpack.c.b16 %v1324, %v1323
      %v1330 = vsel %vm578, %v1280, 0
      %v1333 = vsel %vm578, %v1289, 0
      %v1336 = vsel %vm578, %v1298, 0
      %v1339 = vsel %vm578, %v1307, 0
      %v1342 = vsel %vm578, %v1316, 0
      %1344 = vmatpush.bf16.msra.mxu0 0
      %1345 = vmatpush.bf16.msra.mxu0 0
      %1346 = vmatpush.bf16.msra.mxu0 0
      %1347 = vmatpush.bf16.msra.mxu0 0
      %1348 = vmatpush.bf16.msra.mxu0 0
      %1349 = vmatpush.bf16.msra.mxu0 0
      %1350 = vmatpush.bf16.msra.mxu0 %v1326
      %1351 = vmatpush.bf16.msra.mxu0 %v1325
      %1352 = vmatmul.bf16.gmra.mxu0 %v1330
      %v1353 = vpop.f32.mrf.mxu0
      %v1354 = vadd.f32 0.0, %v1353
      %v1355 = vpop.f32.mrf.mxu0
      %v1356 = vadd.f32 0.0, %v1355
      %1357 = vmatmul.bf16.gmra.mxu0 %v1333
      %v1358 = vpop.f32.mrf.mxu0
      %v1359 = vadd.f32 0.0, %v1358
      %v1360 = vpop.f32.mrf.mxu0
      %v1361 = vadd.f32 0.0, %v1360
      %1362 = vmatmul.bf16.gmra.mxu0 %v1336
      %v1363 = vpop.f32.mrf.mxu0
      %v1364 = vadd.f32 0.0, %v1363
      %v1365 = vpop.f32.mrf.mxu0
      %v1366 = vadd.f32 0.0, %v1365
      %1367 = vmatmul.bf16.gmra.mxu0 %v1339
      %v1368 = vpop.f32.mrf.mxu0
      %v1369 = vadd.f32 0.0, %v1368
      %v1370 = vpop.f32.mrf.mxu0
      %v1371 = vadd.f32 0.0, %v1370
      %1372 = vmatmul.bf16.gmra.mxu0 %v1342
      %v1373 = vpop.f32.mrf.mxu0
      %v1374 = vadd.f32 0.0, %v1373
      %v1375 = vpop.f32.mrf.mxu0
      %v1376 = vadd.f32 0.0, %v1375
      %1377 = vdwg.mxu0
      %v1378 = vadd.f32 %v1244, %v1354
      %v1379 = vadd.f32 %v1245, %v1356
      %v1380 = vadd.f32 %v1246, %v1359
      %v1381 = vadd.f32 %v1247, %v1361
      %v1382 = vadd.f32 %v1248, %v1364
      %v1383 = vadd.f32 %v1249, %v1366
      %v1384 = vadd.f32 %v1250, %v1369
      %v1385 = vadd.f32 %v1251, %v1371
      %v1386 = vadd.f32 %v1252, %v1374
      %v1387 = vadd.f32 %v1253, %v1376
      %v1388 = vld [vmem:[#allocation2 + $0x8] sm:$0x8]
      %s1389 = scalar_lea.vmem %s1, 128
      %v1390 = vld [vmem:[%s1389] sm:$0xf]
      %v1391 = vld [vmem:[%s1389 + $0x4] sm:$0xf]
      %v1392 = vld [vmem:[%s1389 + $0x8] sm:$0xf]
      %v1393 = vld [vmem:[%s1389 + $0xc] sm:$0xf]
      %v1395 = vunpack.c.l.b16 %v1388
      %v1396 = vpack.c.b16 %v1156, %v1395
      %vm1397 = vcmask 1044480
      %v1398 = vrot.slane %v1396, 3
      %v1399 = vrot.slane %v1167, 3
      %v1400 = vsel %vm1397, %v1398, %v1399
      %v1401 = vrot.slane %v1168, 3
      %v1402 = vsel %vm1397, %v1399, %v1401
      %v1403 = vrot.slane %v1169, 3
      %v1404 = vsel %vm1397, %v1401, %v1403
      %v1405 = vrot.slane %v1170, 3
      %v1406 = vsel %vm1397, %v1403, %v1405
      %v1407 = vrot.slane %v1262, 3
      %v1408 = vsel %vm1397, %v1405, %v1407
      %v1413 = vunpack.c.l.b16 %v1390
      %v1414 = vunpack.c.l.b16 %v1391
      %v1415 = vunpack.c.l.b16 %v1392
      %v1416 = vunpack.c.l.b16 %v1393
      %v1417 = vpack.c.b16 %v1414, %v1413
      %v1418 = vpack.c.b16 %v1416, %v1415
      %v1422 = vsel %vm578, %v1400, 0
      %v1425 = vsel %vm578, %v1402, 0
      %v1428 = vsel %vm578, %v1404, 0
      %v1431 = vsel %vm578, %v1406, 0
      %v1434 = vsel %vm578, %v1408, 0
      %1436 = vmatpush.bf16.msra.mxu0 0
      %1437 = vmatpush.bf16.msra.mxu0 0
      %1438 = vmatpush.bf16.msra.mxu0 0
      %1439 = vmatpush.bf16.msra.mxu0 0
      %1440 = vmatpush.bf16.msra.mxu0 0
      %1441 = vmatpush.bf16.msra.mxu0 0
      %1442 = vmatpush.bf16.msra.mxu0 %v1418
      %1443 = vmatpush.bf16.msra.mxu0 %v1417
      %1444 = vmatmul.bf16.gmra.mxu0 %v1422
      %v1445 = vpop.f32.mrf.mxu0
      %v1446 = vadd.f32 0.0, %v1445
      %v1447 = vpop.f32.mrf.mxu0
      %v1448 = vadd.f32 0.0, %v1447
      %1449 = vmatmul.bf16.gmra.mxu0 %v1425
      %v1450 = vpop.f32.mrf.mxu0
      %v1451 = vadd.f32 0.0, %v1450
      %v1452 = vpop.f32.mrf.mxu0
      %v1453 = vadd.f32 0.0, %v1452
      %1454 = vmatmul.bf16.gmra.mxu0 %v1428
      %v1455 = vpop.f32.mrf.mxu0
      %v1456 = vadd.f32 0.0, %v1455
      %v1457 = vpop.f32.mrf.mxu0
      %v1458 = vadd.f32 0.0, %v1457
      %1459 = vmatmul.bf16.gmra.mxu0 %v1431
      %v1460 = vpop.f32.mrf.mxu0
      %v1461 = vadd.f32 0.0, %v1460
      %v1462 = vpop.f32.mrf.mxu0
      %v1463 = vadd.f32 0.0, %v1462
      %1464 = vmatmul.bf16.gmra.mxu0 %v1434
      %v1465 = vpop.f32.mrf.mxu0
      %v1466 = vadd.f32 0.0, %v1465
      %v1467 = vpop.f32.mrf.mxu0
      %v1468 = vadd.f32 0.0, %v1467
      %1469 = vdwg.mxu0
      %v1470 = vadd.f32 %v1378, %v1446
      %v1471 = vadd.f32 %v1379, %v1448
      %v1472 = vadd.f32 %v1380, %v1451
      %v1473 = vadd.f32 %v1381, %v1453
      %v1474 = vadd.f32 %v1382, %v1456
      %v1475 = vadd.f32 %v1383, %v1458
      %v1476 = vadd.f32 %v1384, %v1461
      %v1477 = vadd.f32 %v1385, %v1463
      %v1478 = vadd.f32 %v1386, %v1466
      %v1479 = vadd.f32 %v1387, %v1468
      %v1480 = vld [vmem:[%s2] sm:$0x1]
      %v1482 = vperm.slane %v1480, 0
      %v1484 = vadd.f32 %v1470, %v1482
      %v1485 = vadd.f32 %v1471, %v1482
      %v1486 = vadd.f32 %v1472, %v1482
      %v1487 = vadd.f32 %v1473, %v1482
      %v1488 = vadd.f32 %v1474, %v1482
      %v1489 = vadd.f32 %v1475, %v1482
      %v1490 = vadd.f32 %v1476, %v1482
      %v1491 = vadd.f32 %v1477, %v1482
      %v1492 = vadd.f32 %v1478, %v1482
      %v1493 = vadd.f32 %v1479, %v1482
      %v1494 = vld [vmem:[%s3] sm:$0x1]
      %v1495 = vld [vmem:[%s307] sm:$0xff]
      %v1496 = vld [vmem:[%s307 + $0x8] sm:$0xff]
      %v1497 = vld [vmem:[%s307 + $0x10] sm:$0xff]
      %v1498 = vld [vmem:[%s307 + $0x18] sm:$0xff]
      %v1499 = vld [vmem:[%s307 + $0x20] sm:$0xff]
      %v1500 = vld [vmem:[%s307 + $0x28] sm:$0xff]
      %v1501 = vld [vmem:[%s307 + $0x30] sm:$0xff]
      %v1502 = vld [vmem:[%s307 + $0x38] sm:$0xff]
      %v1503 = vld [vmem:[%s307 + $0x40] sm:$0xff]
      %v1504 = vld [vmem:[%s307 + $0x48] sm:$0xff]
      %v1505 = vld [vmem:[%s302] sm:$0x1]
      %v1506 = vld [vmem:[%s6] sm:$0xff]
      %v1507 = vld [vmem:[%s6 + $0x8] sm:$0xff]
      %v1508 = vld [vmem:[%s6 + $0x10] sm:$0xff]
      %v1509 = vld [vmem:[%s6 + $0x18] sm:$0xff]
      %v1510 = vld [vmem:[%s6 + $0x20] sm:$0xff]
      %v1511 = vld [vmem:[%s6 + $0x28] sm:$0xff]
      %v1512 = vld [vmem:[%s6 + $0x30] sm:$0xff]
      %v1513 = vld [vmem:[%s6 + $0x38] sm:$0xff]
      %v1514 = vld [vmem:[%s6 + $0x40] sm:$0xff]
      %v1515 = vld [vmem:[%s6 + $0x48] sm:$0xff]
      %v1517 = vperm.slane %v1494, 0
      %1520 = vset.pattern.permute.xlu0 0
      %1521 = vperm.xlu0 %1520, %v1495
      %v1522 = vpop.permute.xlu0 %1521
      %1525 = vset.pattern.permute.xlu0 0
      %1526 = vperm.xlu0 %1525, %v1496
      %v1527 = vpop.permute.xlu0 %1526
      %1530 = vset.pattern.permute.xlu0 0
      %1531 = vperm.xlu0 %1530, %v1497
      %v1532 = vpop.permute.xlu0 %1531
      %1535 = vset.pattern.permute.xlu0 0
      %1536 = vperm.xlu0 %1535, %v1498
      %v1537 = vpop.permute.xlu0 %1536
      %1540 = vset.pattern.permute.xlu0 0
      %1541 = vperm.xlu0 %1540, %v1499
      %v1542 = vpop.permute.xlu0 %1541
      %1545 = vset.pattern.permute.xlu0 0
      %1546 = vperm.xlu0 %1545, %v1500
      %v1547 = vpop.permute.xlu0 %1546
      %1550 = vset.pattern.permute.xlu0 0
      %1551 = vperm.xlu0 %1550, %v1501
      %v1552 = vpop.permute.xlu0 %1551
      %1555 = vset.pattern.permute.xlu0 0
      %1556 = vperm.xlu0 %1555, %v1502
      %v1557 = vpop.permute.xlu0 %1556
      %1560 = vset.pattern.permute.xlu0 0
      %1561 = vperm.xlu0 %1560, %v1503
      %v1562 = vpop.permute.xlu0 %1561
      %1565 = vset.pattern.permute.xlu0 0
      %1566 = vperm.xlu0 %1565, %v1504
      %v1567 = vpop.permute.xlu0 %1566
      %v1569 = vmul.f32 %v1517, %v1522
      %v1570 = vmul.f32 %v1517, %v1527
      %v1571 = vmul.f32 %v1517, %v1532
      %v1572 = vmul.f32 %v1517, %v1537
      %v1573 = vmul.f32 %v1517, %v1542
      %v1574 = vmul.f32 %v1517, %v1547
      %v1575 = vmul.f32 %v1517, %v1552
      %v1576 = vmul.f32 %v1517, %v1557
      %v1577 = vmul.f32 %v1517, %v1562
      %v1578 = vmul.f32 %v1517, %v1567
      %v1579 = vadd.f32 %v1484, %v1569
      %v1580 = vadd.f32 %v1485, %v1570
      %v1581 = vadd.f32 %v1486, %v1571
      %v1582 = vadd.f32 %v1487, %v1572
      %v1583 = vadd.f32 %v1488, %v1573
      %v1584 = vadd.f32 %v1489, %v1574
      %v1585 = vadd.f32 %v1490, %v1575
      %v1586 = vadd.f32 %v1491, %v1576
      %v1587 = vadd.f32 %v1492, %v1577
      %v1588 = vadd.f32 %v1493, %v1578
      %vm1589 = vcmp.ge.f32.partialorder %v1579, 0.0
      %vm1590 = vcmp.ge.f32.partialorder %v1580, 0.0
      %vm1591 = vcmp.ge.f32.partialorder %v1581, 0.0
      %vm1592 = vcmp.ge.f32.partialorder %v1582, 0.0
      %vm1593 = vcmp.ge.f32.partialorder %v1583, 0.0
      %vm1594 = vcmp.ge.f32.partialorder %v1584, 0.0
      %vm1595 = vcmp.ge.f32.partialorder %v1585, 0.0
      %vm1596 = vcmp.ge.f32.partialorder %v1586, 0.0
      %vm1597 = vcmp.ge.f32.partialorder %v1587, 0.0
      %vm1598 = vcmp.ge.f32.partialorder %v1588, 0.0
      %v1599 = vmul.f32 %v1579, 0.2
      %v1600 = vmul.f32 %v1580, 0.2
      %v1601 = vmul.f32 %v1581, 0.2
      %v1602 = vmul.f32 %v1582, 0.2
      %v1603 = vmul.f32 %v1583, 0.2
      %v1604 = vmul.f32 %v1584, 0.2
      %v1605 = vmul.f32 %v1585, 0.2
      %v1606 = vmul.f32 %v1586, 0.2
      %v1607 = vmul.f32 %v1587, 0.2
      %v1608 = vmul.f32 %v1588, 0.2
      %v1609 = vsel %vm1589, %v1579, %v1599
      %v1610 = vsel %vm1590, %v1580, %v1600
      %v1611 = vsel %vm1591, %v1581, %v1601
      %v1612 = vsel %vm1592, %v1582, %v1602
      %v1613 = vsel %vm1593, %v1583, %v1603
      %v1614 = vsel %vm1594, %v1584, %v1604
      %v1615 = vsel %vm1595, %v1585, %v1605
      %v1616 = vsel %vm1596, %v1586, %v1606
      %v1617 = vsel %vm1597, %v1587, %v1607
      %v1618 = vsel %vm1598, %v1588, %v1608
      %1620 = vset.pattern.permute.xlu0 0
      %1621 = vperm.xlu0 %1620, %v1506
      %v1622 = vpop.permute.xlu0 %1621
      %1625 = vset.pattern.permute.xlu0 0
      %1626 = vperm.xlu0 %1625, %v1507
      %v1627 = vpop.permute.xlu0 %1626
      %1630 = vset.pattern.permute.xlu0 0
      %1631 = vperm.xlu0 %1630, %v1508
      %v1632 = vpop.permute.xlu0 %1631
      %1635 = vset.pattern.permute.xlu0 0
      %1636 = vperm.xlu0 %1635, %v1509
      %v1637 = vpop.permute.xlu0 %1636
      %1640 = vset.pattern.permute.xlu0 0
      %1641 = vperm.xlu0 %1640, %v1510
      %v1642 = vpop.permute.xlu0 %1641
      %1645 = vset.pattern.permute.xlu0 0
      %1646 = vperm.xlu0 %1645, %v1511
      %v1647 = vpop.permute.xlu0 %1646
      %1650 = vset.pattern.permute.xlu0 0
      %1651 = vperm.xlu0 %1650, %v1512
      %v1652 = vpop.permute.xlu0 %1651
      %1655 = vset.pattern.permute.xlu0 0
      %1656 = vperm.xlu0 %1655, %v1513
      %v1657 = vpop.permute.xlu0 %1656
      %1660 = vset.pattern.permute.xlu0 0
      %1661 = vperm.xlu0 %1660, %v1514
      %v1662 = vpop.permute.xlu0 %1661
      %1665 = vset.pattern.permute.xlu0 0
      %1666 = vperm.xlu0 %1665, %v1515
      %v1667 = vpop.permute.xlu0 %1666
      %v1669 = vmul.f32 %v1609, %v1622
      %v1670 = vmul.f32 %v1610, %v1627
      %v1671 = vmul.f32 %v1611, %v1632
      %v1672 = vmul.f32 %v1612, %v1637
      %v1673 = vmul.f32 %v1613, %v1642
      %v1674 = vmul.f32 %v1614, %v1647
      %v1675 = vmul.f32 %v1615, %v1652
      %v1676 = vmul.f32 %v1616, %v1657
      %v1677 = vmul.f32 %v1617, %v1662
      %v1678 = vmul.f32 %v1618, %v1667
      %v1679 = vsel %vm578, %v1669, 0.0
      %v1680 = vsel %vm578, %v1670, 0.0
      %v1681 = vadd.f32 %v1679, %v1680
      %v1682 = vsel %vm578, %v1671, 0.0
      %v1683 = vadd.f32 %v1681, %v1682
      %v1684 = vsel %vm578, %v1672, 0.0
      %v1685 = vadd.f32 %v1683, %v1684
      %v1686 = vsel %vm578, %v1673, 0.0
      %v1687 = vadd.f32 %v1685, %v1686
      %v1688 = vsel %vm578, %v1674, 0.0
      %v1689 = vadd.f32 %v1687, %v1688
      %v1690 = vsel %vm578, %v1675, 0.0
      %v1691 = vadd.f32 %v1689, %v1690
      %v1692 = vsel %vm578, %v1676, 0.0
      %v1693 = vadd.f32 %v1691, %v1692
      %v1694 = vsel %vm578, %v1677, 0.0
      %v1695 = vadd.f32 %v1693, %v1694
      %v1696 = vsel %vm578, %v1678, 0.0
      %v1697 = vadd.f32 %v1695, %v1696
      %v1698 = vrot.slane %v1697, 4
      %v1699 = vadd.f32 %v1697, %v1698
      %v1700 = vrot.slane %v1699, 2
      %v1701 = vadd.f32 %v1699, %v1700
      %v1702 = vrot.slane %v1701, 1
      %v1703 = vadd.f32 %v1701, %v1702
      %v1704 = vmul.f32 %v1703, 0.015625
      %v1705 = vsub.f32 %v1609, %v1704
      %v1706 = vsub.f32 %v1610, %v1704
      %v1707 = vsub.f32 %v1611, %v1704
      %v1708 = vsub.f32 %v1612, %v1704
      %v1709 = vsub.f32 %v1613, %v1704
      %v1710 = vsub.f32 %v1614, %v1704
      %v1711 = vsub.f32 %v1615, %v1704
      %v1712 = vsub.f32 %v1616, %v1704
      %v1713 = vsub.f32 %v1617, %v1704
      %v1714 = vsub.f32 %v1618, %v1704
      %v1715 = vmul.f32 %v1705, %v1705
      %v1716 = vmul.f32 %v1706, %v1706
      %v1717 = vmul.f32 %v1707, %v1707
      %v1718 = vmul.f32 %v1708, %v1708
      %v1719 = vmul.f32 %v1709, %v1709
      %v1720 = vmul.f32 %v1710, %v1710
      %v1721 = vmul.f32 %v1711, %v1711
      %v1722 = vmul.f32 %v1712, %v1712
      %v1723 = vmul.f32 %v1713, %v1713
      %v1724 = vmul.f32 %v1714, %v1714
      %v1725 = vmul.f32 %v1715, %v1622
      %v1726 = vmul.f32 %v1716, %v1627
      %v1727 = vmul.f32 %v1717, %v1632
      %v1728 = vmul.f32 %v1718, %v1637
      %v1729 = vmul.f32 %v1719, %v1642
      %v1730 = vmul.f32 %v1720, %v1647
      %v1731 = vmul.f32 %v1721, %v1652
      %v1732 = vmul.f32 %v1722, %v1657
      %v1733 = vmul.f32 %v1723, %v1662
      %v1734 = vmul.f32 %v1724, %v1667
      %v1735 = vsel %vm578, %v1725, 0.0
      %v1736 = vsel %vm578, %v1726, 0.0
      %v1737 = vadd.f32 %v1735, %v1736
      %v1738 = vsel %vm578, %v1727, 0.0
      %v1739 = vadd.f32 %v1737, %v1738
      %v1740 = vsel %vm578, %v1728, 0.0
      %v1741 = vadd.f32 %v1739, %v1740
      %v1742 = vsel %vm578, %v1729, 0.0
      %v1743 = vadd.f32 %v1741, %v1742
      %v1744 = vsel %vm578, %v1730, 0.0
      %v1745 = vadd.f32 %v1743, %v1744
      %v1746 = vsel %vm578, %v1731, 0.0
      %v1747 = vadd.f32 %v1745, %v1746
      %v1748 = vsel %vm578, %v1732, 0.0
      %v1749 = vadd.f32 %v1747, %v1748
      %v1750 = vsel %vm578, %v1733, 0.0
      %v1751 = vadd.f32 %v1749, %v1750
      %v1752 = vsel %vm578, %v1734, 0.0
      %v1753 = vadd.f32 %v1751, %v1752
      %v1754 = vrot.slane %v1753, 4
      %v1755 = vadd.f32 %v1753, %v1754
      %v1756 = vrot.slane %v1755, 2
      %v1757 = vadd.f32 %v1755, %v1756
      %v1758 = vrot.slane %v1757, 1
      %v1759 = vadd.f32 %v1757, %v1758
      %v1760 = vmul.f32 %v1759, 0.015625
      %v1761 = vadd.f32 %v1760, 1e-05
      %v1762 = vrsqrt.pop %v1761
      %v1763 = vmul.f32 %v1762, %v1761
      %v1764 = vmul.f32 %v1763, %v1762
      %v1765 = vmul.f32 0.5, %v1764
      %v1766 = vsub.f32 1.5, %v1765
      %v1767 = vmul.f32 %v1762, %v1766
      %vm1768 = vweird.f32 %v1761
      %vm1769 = vweird.f32 %v1762
      %vm1770 = vmor %vm1768, %vm1769
      %v1771 = vsel %vm1770, %v1762, %v1767
      %v1772 = vmul.f32 %v1705, %v1771
      %v1773 = vmul.f32 %v1706, %v1771
      %v1774 = vmul.f32 %v1707, %v1771
      %v1775 = vmul.f32 %v1708, %v1771
      %v1776 = vmul.f32 %v1709, %v1771
      %v1777 = vmul.f32 %v1710, %v1771
      %v1778 = vmul.f32 %v1711, %v1771
      %v1779 = vmul.f32 %v1712, %v1771
      %v1780 = vmul.f32 %v1713, %v1771
      %v1781 = vmul.f32 %v1714, %v1771
      %v1782 = vadd.f32 %v1505, 1.0
      %v1784 = vperm.slane %v1782, 0
      %v1786 = vmul.f32 %v1772, %v1784
      %v1787 = vmul.f32 %v1773, %v1784
      %v1788 = vmul.f32 %v1774, %v1784
      %v1789 = vmul.f32 %v1775, %v1784
      %v1790 = vmul.f32 %v1776, %v1784
      %v1791 = vmul.f32 %v1777, %v1784
      %v1792 = vmul.f32 %v1778, %v1784
      %v1793 = vmul.f32 %v1779, %v1784
      %v1794 = vmul.f32 %v1780, %v1784
      %v1795 = vmul.f32 %v1781, %v1784
      %v1797 = vperm.slane %v1505, 0
      %1798 = vrot.lane.b32.xlu0 %v1797, 96
      %v1799 = vpop.permute.xlu0 %1798
      %v1801 = vadd.f32 %v1786, %v1799
      %v1802 = vadd.f32 %v1787, %v1799
      %v1803 = vadd.f32 %v1788, %v1799
      %v1804 = vadd.f32 %v1789, %v1799
      %v1805 = vadd.f32 %v1790, %v1799
      %v1806 = vadd.f32 %v1791, %v1799
      %v1807 = vadd.f32 %v1792, %v1799
      %v1808 = vadd.f32 %v1793, %v1799
      %v1809 = vadd.f32 %v1794, %v1799
      %v1810 = vadd.f32 %v1795, %v1799
      %v1811 = vmul.f32 %v1801, %v1622
      %v1812 = vmul.f32 %v1802, %v1627
      %v1813 = vmul.f32 %v1803, %v1632
      %v1814 = vmul.f32 %v1804, %v1637
      %v1815 = vmul.f32 %v1805, %v1642
      %v1816 = vmul.f32 %v1806, %v1647
      %v1817 = vmul.f32 %v1807, %v1652
      %v1818 = vmul.f32 %v1808, %v1657
      %v1819 = vmul.f32 %v1809, %v1662
      %v1820 = vmul.f32 %v1810, %v1667
      %v1821 = vpack.c.bf16 %v1811, %v1811
      %v1822 = vpack.c.bf16 %v1812, %v1812
      %v1823 = vpack.c.bf16 %v1813, %v1813
      %v1824 = vpack.c.bf16 %v1814, %v1814
      %v1825 = vpack.c.bf16 %v1815, %v1815
      %v1826 = vpack.c.bf16 %v1816, %v1816
      %v1827 = vpack.c.bf16 %v1817, %v1817
      %v1828 = vpack.c.bf16 %v1818, %v1818
      %v1829 = vpack.c.bf16 %v1819, %v1819
      %v1830 = vpack.c.bf16 %v1820, %v1820
      %1831 = vst.msk [vmem:[%s312] sm:$0xf] %vm314, %v1821
      %1832 = vst.msk [vmem:[%s312 + $0x4] sm:$0xf] %vm314, %v1822
      %1833 = vst.msk [vmem:[%s312 + $0x8] sm:$0xf] %vm314, %v1823
      %1834 = vst.msk [vmem:[%s312 + $0xc] sm:$0xf] %vm314, %v1824
      %1835 = vst.msk [vmem:[%s312 + $0x10] sm:$0xf] %vm314, %v1825
      %1836 = vst.msk [vmem:[%s312 + $0x14] sm:$0xf] %vm314, %v1826
      %1837 = vst.msk [vmem:[%s312 + $0x18] sm:$0xf] %vm314, %v1827
      %1838 = vst.msk [vmem:[%s312 + $0x1c] sm:$0xf] %vm314, %v1828
      %1839 = vst.msk [vmem:[%s312 + $0x20] sm:$0xf] %vm314, %v1829
      %1840 = vst.msk [vmem:[%s312 + $0x24] sm:$0xf] %vm314, %v1830
      %p1841 = scmp.lt.s32.totalorder %s18, 1
      %s1842 = scalar_select %p1841, %s18, 1
      %s1843 = smul.addr %s1842, 10
      %s1844 = smul.addr %s1843, 4
      %s1845 = scalar_lea.vmem %s7, %s1844
      // Predicated region
      $region49: #{gsynthesis_forward.9} parent=47 // pred_check
        %p1846 = pneg %p198
      $region50: #{gsynthesis_forward.9} parent=47 // pred_check_branch
        %1848 = sbr.rel (%p1846) target = $region52
      $region51: #{gsynthesis_forward.9} parent=47 // pred_region
        _
      $region52: #{gsynthesis_forward.9} parent=47 // pred_fallthru
        _
    $region48: #{gsynthesis_forward.9} parent=5 // pred_fallthru
      _
    %p1849 = scmp.le.s32.totalorder 2, %s13
    // Predicated region
    $region53: #{gsynthesis_forward.9} parent=5 // pred_check
      %p1850 = pneg %p1849
    $region54: #{gsynthesis_forward.9} parent=5 // pred_check_branch
      %1852 = sbr.rel (%p1850) target = $region56
    $region55: #{gsynthesis_forward.9} parent=5 // pred_region
      %s1853 = ssub.s32 %s13, 2
      // Predicated region
      $region57: #{gsynthesis_forward.9} parent=55 // pred_check
        %p1854 = pneg %p204
      $region58: #{gsynthesis_forward.9} parent=55 // pred_check_branch
        %1856 = sbr.rel (%p1854) target = $region60
      $region59: #{gsynthesis_forward.9} parent=55 // pred_region
        %p1857 = scmp.lt.s32.totalorder %s19, 1
        %s1858 = scalar_select %p1857, %s19, 1
        %s1859 = smul.addr %s1858, 10
        %s1860 = smul.addr %s1859, 4
        %s1861 = scalar_lea.vmem %s7, %s1860
      $region60: #{gsynthesis_forward.9} parent=55 // pred_fallthru
        _
    $region56: #{gsynthesis_forward.9} parent=5 // pred_fallthru
      _
  $region6: #{gsynthesis_forward.9} parent=0 // loop_footer
    %s17 = sadd.s32 1, %s13
  $region7: #{gsynthesis_forward.9} parent=0 // loop_footer_branch
    %12 = sbr.rel target = $region3
  $region8: #{gsynthesis_forward.9} parent=0 // loop_exit
    _

// kernel: gsynthesis_forward.13
$region0: #{gsynthesis_forward.13}
  #allocation0 [shape = 'u32[]', space=smem, size = 0x4, offset = 0x4, fixed_abs, tag = 'smem constant byte address 0x4 - core index']
  #allocation1 [shape = 'u32[72,128]{1,0:T(1,128)}', space=vmem, size = 0x9000, scoped, tag = 'internal scratch']
  #allocation2 [shape = 'f32[1]{0:T(128)S(6)}', space=smem, size = 0x200, scoped, tag = 'scoped memory for gsynthesis_forward.13']
  %s0 = inlined_call_operand.<no memory space> [shape: f32[1], index: 0, kind: input, shape index: {}]
  %s1 = inlined_call_operand.vmem [shape: bf16[576,32], index: 1, kind: input, shape index: {}]
  %s2 = inlined_call_operand.vmem [shape: bf16[32,128], index: 2, kind: input, shape index: {}]
  %s3 = inlined_call_operand.vmem [shape: f32[1,128], index: 3, kind: input, shape index: {}]
  %s4 = inlined_call_operand.vmem [shape: bf16[576,32], index: 4, kind: input, shape index: {}]
  %s5 = inlined_call_operand.vmem [shape: bf16[32,128], index: 5, kind: input, shape index: {}]
  %s6 = inlined_call_operand.vmem [shape: f32[1,128], index: 6, kind: input, shape index: {}]
  %s7 = inlined_call_operand.vmem [shape: f32[576,128], index: 7, kind: output, shape index: {}]
  %s8 = sld [smem:[#allocation0]]
  $region38: #{gsynthesis_forward.13} parent=0
    _
  %s10 = ssub.s32 1, %s8
  %s11 = scalar_select 0, %s10, %s8
  %12 = sst [smem:[#allocation2]] %s0
  // Predicated region
  $region2: #{gsynthesis_forward.13} parent=0 // pred_check
    _
  $region3: #{gsynthesis_forward.13} parent=0 // pred_check_branch
    %14 = sbr.rel (0) target = $region5
  $region4: #{gsynthesis_forward.13} parent=0 // pred_region
    _
  $region5: #{gsynthesis_forward.13} parent=0 // pred_fallthru
    _
  // Predicated region
  $region6: #{gsynthesis_forward.13} parent=0 // pred_check
    _
  $region7: #{gsynthesis_forward.13} parent=0 // pred_check_branch
    %16 = sbr.rel (0) target = $region9
  $region8: #{gsynthesis_forward.13} parent=0 // pred_region
    _
  $region9: #{gsynthesis_forward.13} parent=0 // pred_fallthru
    _
  // Predicated region
  $region10: #{gsynthesis_forward.13} parent=0 // pred_check
    _
  $region11: #{gsynthesis_forward.13} parent=0 // pred_check_branch
    %18 = sbr.rel (0) target = $region13
  $region12: #{gsynthesis_forward.13} parent=0 // pred_region
    _
  $region13: #{gsynthesis_forward.13} parent=0 // pred_fallthru
    _
  // Predicated region
  $region14: #{gsynthesis_forward.13} parent=0 // pred_check
    _
  $region15: #{gsynthesis_forward.13} parent=0 // pred_check_branch
    %20 = sbr.rel (0) target = $region17
  $region16: #{gsynthesis_forward.13} parent=0 // pred_region
    _
  $region17: #{gsynthesis_forward.13} parent=0 // pred_fallthru
    _
  // Predicated region
  $region18: #{gsynthesis_forward.13} parent=0 // pred_check
    _
  $region19: #{gsynthesis_forward.13} parent=0 // pred_check_branch
    %22 = sbr.rel (0) target = $region21
  $region20: #{gsynthesis_forward.13} parent=0 // pred_region
    _
  $region21: #{gsynthesis_forward.13} parent=0 // pred_fallthru
    _
  // Predicated region
  $region22: #{gsynthesis_forward.13} parent=0 // pred_check
    _
  $region23: #{gsynthesis_forward.13} parent=0 // pred_check_branch
    %24 = sbr.rel (0) target = $region25
  $region24: #{gsynthesis_forward.13} parent=0 // pred_region
    _
  $region25: #{gsynthesis_forward.13} parent=0 // pred_fallthru
    _
  // Predicated region
  $region26: #{gsynthesis_forward.13} parent=0 // pred_check
    _
  $region27: #{gsynthesis_forward.13} parent=0 // pred_check_branch
    %26 = sbr.rel (0) target = $region29
  $region28: #{gsynthesis_forward.13} parent=0 // pred_region
    _
  $region29: #{gsynthesis_forward.13} parent=0 // pred_fallthru
    _
  %s28 = sld [smem:[#allocation2]]
  %v29 = vld [vmem:[%s1] sm:$0xf]
  %v30 = vld [vmem:[%s1 + $0x4] sm:$0xf]
  %v31 = vld [vmem:[%s1 + $0x8] sm:$0xf]
  %v32 = vld [vmem:[%s1 + $0xc] sm:$0xf]
  %v33 = vld [vmem:[%s1 + $0x10] sm:$0xf]
  %v34 = vld [vmem:[%s1 + $0x14] sm:$0xf]
  %v35 = vld [vmem:[%s1 + $0x18] sm:$0xf]
  %v36 = vld [vmem:[%s1 + $0x1c] sm:$0xf]
  %v37 = vld [vmem:[%s1 + $0x20] sm:$0xf]
  %v38 = vld [vmem:[%s1 + $0x24] sm:$0xf]
  %v39 = vld [vmem:[%s1 + $0x28] sm:$0xf]
  %v40 = vld [vmem:[%s1 + $0x2c] sm:$0xf]
  %v41 = vld [vmem:[%s1 + $0x30] sm:$0xf]
  %v42 = vld [vmem:[%s1 + $0x34] sm:$0xf]
  %v43 = vld [vmem:[%s1 + $0x38] sm:$0xf]
  %v44 = vld [vmem:[%s1 + $0x3c] sm:$0xf]
  %v45 = vld [vmem:[%s1 + $0x40] sm:$0xf]
  %v46 = vld [vmem:[%s1 + $0x44] sm:$0xf]
  %v47 = vld [vmem:[%s1 + $0x48] sm:$0xf]
  %v48 = vld [vmem:[%s1 + $0x4c] sm:$0xf]
  %v49 = vld [vmem:[%s1 + $0x50] sm:$0xf]
  %v50 = vld [vmem:[%s1 + $0x54] sm:$0xf]
  %v51 = vld [vmem:[%s1 + $0x58] sm:$0xf]
  %v52 = vld [vmem:[%s1 + $0x5c] sm:$0xf]
  %v53 = vld [vmem:[%s1 + $0x60] sm:$0xf]
  %v54 = vld [vmem:[%s1 + $0x64] sm:$0xf]
  %v55 = vld [vmem:[%s1 + $0x68] sm:$0xf]
  %v56 = vld [vmem:[%s1 + $0x6c] sm:$0xf]
  %v57 = vld [vmem:[%s1 + $0x70] sm:$0xf]
  %v58 = vld [vmem:[%s1 + $0x74] sm:$0xf]
  %v59 = vld [vmem:[%s1 + $0x78] sm:$0xf]
  %v60 = vld [vmem:[%s1 + $0x7c] sm:$0xf]
  %v61 = vld [vmem:[%s1 + $0x80] sm:$0xf]
  %v62 = vld [vmem:[%s1 + $0x84] sm:$0xf]
  %v63 = vld [vmem:[%s1 + $0x88] sm:$0xf]
  %v64 = vld [vmem:[%s1 + $0x8c] sm:$0xf]
  %v65 = vld [vmem:[%s1 + $0x90] sm:$0xf]
  %v66 = vld [vmem:[%s1 + $0x94] sm:$0xf]
  %v67 = vld [vmem:[%s1 + $0x98] sm:$0xf]
  %v68 = vld [vmem:[%s1 + $0x9c] sm:$0xf]
  %v69 = vld [vmem:[%s1 + $0xa0] sm:$0xf]
  %v70 = vld [vmem:[%s1 + $0xa4] sm:$0xf]
  %v71 = vld [vmem:[%s1 + $0xa8] sm:$0xf]
  %v72 = vld [vmem:[%s1 + $0xac] sm:$0xf]
  %v73 = vld [vmem:[%s1 + $0xb0] sm:$0xf]
  %v74 = vld [vmem:[%s1 + $0xb4] sm:$0xf]
  %v75 = vld [vmem:[%s1 + $0xb8] sm:$0xf]
  %v76 = vld [vmem:[%s1 + $0xbc] sm:$0xf]
  %v77 = vld [vmem:[%s1 + $0xc0] sm:$0xf]
  %v78 = vld [vmem:[%s1 + $0xc4] sm:$0xf]
  %v79 = vld [vmem:[%s1 + $0xc8] sm:$0xf]
  %v80 = vld [vmem:[%s1 + $0xcc] sm:$0xf]
  %v81 = vld [vmem:[%s1 + $0xd0] sm:$0xf]
  %v82 = vld [vmem:[%s1 + $0xd4] sm:$0xf]
  %v83 = vld [vmem:[%s1 + $0xd8] sm:$0xf]
  %v84 = vld [vmem:[%s1 + $0xdc] sm:$0xf]
  %v85 = vld [vmem:[%s1 + $0xe0] sm:$0xf]
  %v86 = vld [vmem:[%s1 + $0xe4] sm:$0xf]
  %v87 = vld [vmem:[%s1 + $0xe8] sm:$0xf]
  %v88 = vld [vmem:[%s1 + $0xec] sm:$0xf]
  %v89 = vld [vmem:[%s1 + $0xf0] sm:$0xf]
  %v90 = vld [vmem:[%s1 + $0xf4] sm:$0xf]
  %v91 = vld [vmem:[%s1 + $0xf8] sm:$0xf]
  %v92 = vld [vmem:[%s1 + $0xfc] sm:$0xf]
  %v93 = vld [vmem:[%s1 + $0x100] sm:$0xf]
  %v94 = vld [vmem:[%s1 + $0x104] sm:$0xf]
  %v95 = vld [vmem:[%s1 + $0x108] sm:$0xf]
  %v96 = vld [vmem:[%s1 + $0x10c] sm:$0xf]
  %v97 = vld [vmem:[%s1 + $0x110] sm:$0xf]
  %v98 = vld [vmem:[%s1 + $0x114] sm:$0xf]
  %v99 = vld [vmem:[%s1 + $0x118] sm:$0xf]
  %v100 = vld [vmem:[%s1 + $0x11c] sm:$0xf]
  %v101 = vld [vmem:[%s2] sm:$0xf]
  %v102 = vld [vmem:[%s2 + $0x4] sm:$0xf]
  %v103 = vld [vmem:[%s2 + $0x8] sm:$0xf]
  %v104 = vld [vmem:[%s2 + $0xc] sm:$0xf]
  %v105 = vld [vmem:[%s3] sm:$0x1]
  %v107 = vperm.slane %v105, 0
  %v181 = vunpack.c.l.b16 %v29
  %v182 = vunpack.c.l.b16 %v30
  %v183 = vunpack.c.l.b16 %v31
  %v184 = vunpack.c.l.b16 %v32
  %v185 = vunpack.c.l.b16 %v33
  %v186 = vunpack.c.l.b16 %v34
  %v187 = vunpack.c.l.b16 %v35
  %v188 = vunpack.c.l.b16 %v36
  %v189 = vunpack.c.l.b16 %v37
  %v190 = vunpack.c.l.b16 %v38
  %v191 = vunpack.c.l.b16 %v39
  %v192 = vunpack.c.l.b16 %v40
  %v193 = vunpack.c.l.b16 %v41
  %v194 = vunpack.c.l.b16 %v42
  %v195 = vunpack.c.l.b16 %v43
  %v196 = vunpack.c.l.b16 %v44
  %v197 = vunpack.c.l.b16 %v45
  %v198 = vunpack.c.l.b16 %v46
  %v199 = vunpack.c.l.b16 %v47
  %v200 = vunpack.c.l.b16 %v48
  %v201 = vunpack.c.l.b16 %v49
  %v202 = vunpack.c.l.b16 %v50
  %v203 = vunpack.c.l.b16 %v51
  %v204 = vunpack.c.l.b16 %v52
  %v205 = vunpack.c.l.b16 %v53
  %v206 = vunpack.c.l.b16 %v54
  %v207 = vunpack.c.l.b16 %v55
  %v208 = vunpack.c.l.b16 %v56
  %v209 = vunpack.c.l.b16 %v57
  %v210 = vunpack.c.l.b16 %v58
  %v211 = vunpack.c.l.b16 %v59
  %v212 = vunpack.c.l.b16 %v60
  %v213 = vunpack.c.l.b16 %v61
  %v214 = vunpack.c.l.b16 %v62
  %v215 = vunpack.c.l.b16 %v63
  %v216 = vunpack.c.l.b16 %v64
  %v217 = vunpack.c.l.b16 %v65
  %v218 = vunpack.c.l.b16 %v66
  %v219 = vunpack.c.l.b16 %v67
  %v220 = vunpack.c.l.b16 %v68
  %v221 = vunpack.c.l.b16 %v69
  %v222 = vunpack.c.l.b16 %v70
  %v223 = vunpack.c.l.b16 %v71
  %v224 = vunpack.c.l.b16 %v72
  %v225 = vunpack.c.l.b16 %v73
  %v226 = vunpack.c.l.b16 %v74
  %v227 = vunpack.c.l.b16 %v75
  %v228 = vunpack.c.l.b16 %v76
  %v229 = vunpack.c.l.b16 %v77
  %v230 = vunpack.c.l.b16 %v78
  %v231 = vunpack.c.l.b16 %v79
  %v232 = vunpack.c.l.b16 %v80
  %v233 = vunpack.c.l.b16 %v81
  %v234 = vunpack.c.l.b16 %v82
  %v235 = vunpack.c.l.b16 %v83
  %v236 = vunpack.c.l.b16 %v84
  %v237 = vunpack.c.l.b16 %v85
  %v238 = vunpack.c.l.b16 %v86
  %v239 = vunpack.c.l.b16 %v87
  %v240 = vunpack.c.l.b16 %v88
  %v241 = vunpack.c.l.b16 %v89
  %v242 = vunpack.c.l.b16 %v90
  %v243 = vunpack.c.l.b16 %v91
  %v244 = vunpack.c.l.b16 %v92
  %v245 = vunpack.c.l.b16 %v93
  %v246 = vunpack.c.l.b16 %v94
  %v247 = vunpack.c.l.b16 %v95
  %v248 = vunpack.c.l.b16 %v96
  %v249 = vunpack.c.l.b16 %v97
  %v250 = vunpack.c.l.b16 %v98
  %v251 = vunpack.c.l.b16 %v99
  %v252 = vunpack.c.l.b16 %v100
  %v253 = vpack.c.b16 %v182, %v181
  %v254 = vpack.c.b16 %v184, %v183
  %v255 = vpack.c.b16 %v186, %v185
  %v256 = vpack.c.b16 %v188, %v187
  %v257 = vpack.c.b16 %v190, %v189
  %v258 = vpack.c.b16 %v192, %v191
  %v259 = vpack.c.b16 %v194, %v193
  %v260 = vpack.c.b16 %v196, %v195
  %v261 = vpack.c.b16 %v198, %v197
  %v262 = vpack.c.b16 %v200, %v199
  %v263 = vpack.c.b16 %v202, %v201
  %v264 = vpack.c.b16 %v204, %v203
  %v265 = vpack.c.b16 %v206, %v205
  %v266 = vpack.c.b16 %v208, %v207
  %v267 = vpack.c.b16 %v210, %v209
  %v268 = vpack.c.b16 %v212, %v211
  %v269 = vpack.c.b16 %v214, %v213
  %v270 = vpack.c.b16 %v216, %v215
  %v271 = vpack.c.b16 %v218, %v217
  %v272 = vpack.c.b16 %v220, %v219
  %v273 = vpack.c.b16 %v222, %v221
  %v274 = vpack.c.b16 %v224, %v223
  %v275 = vpack.c.b16 %v226, %v225
  %v276 = vpack.c.b16 %v228, %v227
  %v277 = vpack.c.b16 %v230, %v229
  %v278 = vpack.c.b16 %v232, %v231
  %v279 = vpack.c.b16 %v234, %v233
  %v280 = vpack.c.b16 %v236, %v235
  %v281 = vpack.c.b16 %v238, %v237
  %v282 = vpack.c.b16 %v240, %v239
  %v283 = vpack.c.b16 %v242, %v241
  %v284 = vpack.c.b16 %v244, %v243
  %v285 = vpack.c.b16 %v246, %v245
  %v286 = vpack.c.b16 %v248, %v247
  %v287 = vpack.c.b16 %v250, %v249
  %v288 = vpack.c.b16 %v252, %v251
  %v293 = vunpack.c.l.b16 %v101
  %v294 = vunpack.c.l.b16 %v102
  %v295 = vunpack.c.l.b16 %v103
  %v296 = vunpack.c.l.b16 %v104
  %v297 = vpack.c.b16 %v294, %v293
  %v298 = vpack.c.b16 %v296, %v295
  %vm301 = vcmask 261120
  %v303 = vsel %vm301, %v253, 0
  %v306 = vsel %vm301, %v254, 0
  %v309 = vsel %vm301, %v255, 0
  %v312 = vsel %vm301, %v256, 0
  %v315 = vsel %vm301, %v257, 0
  %v318 = vsel %vm301, %v258, 0
  %v321 = vsel %vm301, %v259, 0
  %v324 = vsel %vm301, %v260, 0
  %v327 = vsel %vm301, %v261, 0
  %v330 = vsel %vm301, %v262, 0
  %v333 = vsel %vm301, %v263, 0
  %v336 = vsel %vm301, %v264, 0
  %v339 = vsel %vm301, %v265, 0
  %v342 = vsel %vm301, %v266, 0
  %v345 = vsel %vm301, %v267, 0
  %v348 = vsel %vm301, %v268, 0
  %v351 = vsel %vm301, %v269, 0
  %v354 = vsel %vm301, %v270, 0
  %v357 = vsel %vm301, %v271, 0
  %v360 = vsel %vm301, %v272, 0
  %v363 = vsel %vm301, %v273, 0
  %v366 = vsel %vm301, %v274, 0
  %v369 = vsel %vm301, %v275, 0
  %v372 = vsel %vm301, %v276, 0
  %v375 = vsel %vm301, %v277, 0
  %v378 = vsel %vm301, %v278, 0
  %v381 = vsel %vm301, %v279, 0
  %v384 = vsel %vm301, %v280, 0
  %v387 = vsel %vm301, %v281, 0
  %v390 = vsel %vm301, %v282, 0
  %v393 = vsel %vm301, %v283, 0
  %v396 = vsel %vm301, %v284, 0
  %v399 = vsel %vm301, %v285, 0
  %v402 = vsel %vm301, %v286, 0
  %v405 = vsel %vm301, %v287, 0
  %v408 = vsel %vm301, %v288, 0
  %410 = vmatpush.bf16.msra.mxu0 0
  %411 = vmatpush.bf16.msra.mxu0 0
  %412 = vmatpush.bf16.msra.mxu0 0
  %413 = vmatpush.bf16.msra.mxu0 0
  %414 = vmatpush.bf16.msra.mxu0 0
  %415 = vmatpush.bf16.msra.mxu0 0
  %416 = vmatpush.bf16.msra.mxu0 %v298
  %417 = vmatpush.bf16.msra.mxu0 %v297
  %418 = vmatmul.bf16.gmra.mxu0 %v303
  %v419 = vpop.f32.mrf.mxu0
  %v420 = vadd.f32 %v107, %v419
  %v421 = vpop.f32.mrf.mxu0
  %v422 = vadd.f32 %v107, %v421
  %423 = vmatmul.bf16.gmra.mxu0 %v306
  %v424 = vpop.f32.mrf.mxu0
  %v425 = vadd.f32 %v107, %v424
  %v426 = vpop.f32.mrf.mxu0
  %v427 = vadd.f32 %v107, %v426
  %428 = vmatmul.bf16.gmra.mxu0 %v309
  %v429 = vpop.f32.mrf.mxu0
  %v430 = vadd.f32 %v107, %v429
  %v431 = vpop.f32.mrf.mxu0
  %v432 = vadd.f32 %v107, %v431
  %433 = vmatmul.bf16.gmra.mxu0 %v312
  %v434 = vpop.f32.mrf.mxu0
  %v435 = vadd.f32 %v107, %v434
  %v436 = vpop.f32.mrf.mxu0
  %v437 = vadd.f32 %v107, %v436
  %438 = vmatmul.bf16.gmra.mxu0 %v315
  %v439 = vpop.f32.mrf.mxu0
  %v440 = vadd.f32 %v107, %v439
  %v441 = vpop.f32.mrf.mxu0
  %v442 = vadd.f32 %v107, %v441
  %443 = vmatmul.bf16.gmra.mxu0 %v318
  %v444 = vpop.f32.mrf.mxu0
  %v445 = vadd.f32 %v107, %v444
  %v446 = vpop.f32.mrf.mxu0
  %v447 = vadd.f32 %v107, %v446
  %448 = vmatmul.bf16.gmra.mxu0 %v321
  %v449 = vpop.f32.mrf.mxu0
  %v450 = vadd.f32 %v107, %v449
  %v451 = vpop.f32.mrf.mxu0
  %v452 = vadd.f32 %v107, %v451
  %453 = vmatmul.bf16.gmra.mxu0 %v324
  %v454 = vpop.f32.mrf.mxu0
  %v455 = vadd.f32 %v107, %v454
  %v456 = vpop.f32.mrf.mxu0
  %v457 = vadd.f32 %v107, %v456
  %458 = vmatmul.bf16.gmra.mxu0 %v327
  %v459 = vpop.f32.mrf.mxu0
  %v460 = vadd.f32 %v107, %v459
  %v461 = vpop.f32.mrf.mxu0
  %v462 = vadd.f32 %v107, %v461
  %463 = vmatmul.bf16.gmra.mxu0 %v330
  %v464 = vpop.f32.mrf.mxu0
  %v465 = vadd.f32 %v107, %v464
  %v466 = vpop.f32.mrf.mxu0
  %v467 = vadd.f32 %v107, %v466
  %468 = vmatmul.bf16.gmra.mxu0 %v333
  %v469 = vpop.f32.mrf.mxu0
  %v470 = vadd.f32 %v107, %v469
  %v471 = vpop.f32.mrf.mxu0
  %v472 = vadd.f32 %v107, %v471
  %473 = vmatmul.bf16.gmra.mxu0 %v336
  %v474 = vpop.f32.mrf.mxu0
  %v475 = vadd.f32 %v107, %v474
  %v476 = vpop.f32.mrf.mxu0
  %v477 = vadd.f32 %v107, %v476
  %478 = vmatmul.bf16.gmra.mxu0 %v339
  %v479 = vpop.f32.mrf.mxu0
  %v480 = vadd.f32 %v107, %v479
  %v481 = vpop.f32.mrf.mxu0
  %v482 = vadd.f32 %v107, %v481
  %483 = vmatmul.bf16.gmra.mxu0 %v342
  %v484 = vpop.f32.mrf.mxu0
  %v485 = vadd.f32 %v107, %v484
  %v486 = vpop.f32.mrf.mxu0
  %v487 = vadd.f32 %v107, %v486
  %488 = vmatmul.bf16.gmra.mxu0 %v345
  %v489 = vpop.f32.mrf.mxu0
  %v490 = vadd.f32 %v107, %v489
  %v491 = vpop.f32.mrf.mxu0
  %v492 = vadd.f32 %v107, %v491
  %493 = vmatmul.bf16.gmra.mxu0 %v348
  %v494 = vpop.f32.mrf.mxu0
  %v495 = vadd.f32 %v107, %v494
  %v496 = vpop.f32.mrf.mxu0
  %v497 = vadd.f32 %v107, %v496
  %498 = vmatmul.bf16.gmra.mxu0 %v351
  %v499 = vpop.f32.mrf.mxu0
  %v500 = vadd.f32 %v107, %v499
  %v501 = vpop.f32.mrf.mxu0
  %v502 = vadd.f32 %v107, %v501
  %503 = vmatmul.bf16.gmra.mxu0 %v354
  %v504 = vpop.f32.mrf.mxu0
  %v505 = vadd.f32 %v107, %v504
  %v506 = vpop.f32.mrf.mxu0
  %v507 = vadd.f32 %v107, %v506
  %508 = vmatmul.bf16.gmra.mxu0 %v357
  %v509 = vpop.f32.mrf.mxu0
  %v510 = vadd.f32 %v107, %v509
  %v511 = vpop.f32.mrf.mxu0
  %v512 = vadd.f32 %v107, %v511
  %513 = vmatmul.bf16.gmra.mxu0 %v360
  %v514 = vpop.f32.mrf.mxu0
  %v515 = vadd.f32 %v107, %v514
  %v516 = vpop.f32.mrf.mxu0
  %v517 = vadd.f32 %v107, %v516
  %518 = vmatmul.bf16.gmra.mxu0 %v363
  %v519 = vpop.f32.mrf.mxu0
  %v520 = vadd.f32 %v107, %v519
  %v521 = vpop.f32.mrf.mxu0
  %v522 = vadd.f32 %v107, %v521
  %523 = vmatmul.bf16.gmra.mxu0 %v366
  %v524 = vpop.f32.mrf.mxu0
  %v525 = vadd.f32 %v107, %v524
  %v526 = vpop.f32.mrf.mxu0
  %v527 = vadd.f32 %v107, %v526
  %528 = vmatmul.bf16.gmra.mxu0 %v369
  %v529 = vpop.f32.mrf.mxu0
  %v530 = vadd.f32 %v107, %v529
  %v531 = vpop.f32.mrf.mxu0
  %v532 = vadd.f32 %v107, %v531
  %533 = vmatmul.bf16.gmra.mxu0 %v372
  %v534 = vpop.f32.mrf.mxu0
  %v535 = vadd.f32 %v107, %v534
  %v536 = vpop.f32.mrf.mxu0
  %v537 = vadd.f32 %v107, %v536
  %538 = vmatmul.bf16.gmra.mxu0 %v375
  %v539 = vpop.f32.mrf.mxu0
  %v540 = vadd.f32 %v107, %v539
  %v541 = vpop.f32.mrf.mxu0
  %v542 = vadd.f32 %v107, %v541
  %543 = vmatmul.bf16.gmra.mxu0 %v378
  %v544 = vpop.f32.mrf.mxu0
  %v545 = vadd.f32 %v107, %v544
  %v546 = vpop.f32.mrf.mxu0
  %v547 = vadd.f32 %v107, %v546
  %548 = vmatmul.bf16.gmra.mxu0 %v381
  %v549 = vpop.f32.mrf.mxu0
  %v550 = vadd.f32 %v107, %v549
  %v551 = vpop.f32.mrf.mxu0
  %v552 = vadd.f32 %v107, %v551
  %553 = vmatmul.bf16.gmra.mxu0 %v384
  %v554 = vpop.f32.mrf.mxu0
  %v555 = vadd.f32 %v107, %v554
  %v556 = vpop.f32.mrf.mxu0
  %v557 = vadd.f32 %v107, %v556
  %558 = vmatmul.bf16.gmra.mxu0 %v387
  %v559 = vpop.f32.mrf.mxu0
  %v560 = vadd.f32 %v107, %v559
  %v561 = vpop.f32.mrf.mxu0
  %v562 = vadd.f32 %v107, %v561
  %563 = vmatmul.bf16.gmra.mxu0 %v390
  %v564 = vpop.f32.mrf.mxu0
  %v565 = vadd.f32 %v107, %v564
  %v566 = vpop.f32.mrf.mxu0
  %v567 = vadd.f32 %v107, %v566
  %568 = vmatmul.bf16.gmra.mxu0 %v393
  %v569 = vpop.f32.mrf.mxu0
  %v570 = vadd.f32 %v107, %v569
  %v571 = vpop.f32.mrf.mxu0
  %v572 = vadd.f32 %v107, %v571
  %573 = vmatmul.bf16.gmra.mxu0 %v396
  %v574 = vpop.f32.mrf.mxu0
  %v575 = vadd.f32 %v107, %v574
  %v576 = vpop.f32.mrf.mxu0
  %v577 = vadd.f32 %v107, %v576
  %578 = vmatmul.bf16.gmra.mxu0 %v399
  %v579 = vpop.f32.mrf.mxu0
  %v580 = vadd.f32 %v107, %v579
  %v581 = vpop.f32.mrf.mxu0
  %v582 = vadd.f32 %v107, %v581
  %583 = vmatmul.bf16.gmra.mxu0 %v402
  %v584 = vpop.f32.mrf.mxu0
  %v585 = vadd.f32 %v107, %v584
  %v586 = vpop.f32.mrf.mxu0
  %v587 = vadd.f32 %v107, %v586
  %588 = vmatmul.bf16.gmra.mxu0 %v405
  %v589 = vpop.f32.mrf.mxu0
  %v590 = vadd.f32 %v107, %v589
  %v591 = vpop.f32.mrf.mxu0
  %v592 = vadd.f32 %v107, %v591
  %593 = vmatmul.bf16.gmra.mxu0 %v408
  %v594 = vpop.f32.mrf.mxu0
  %v595 = vadd.f32 %v107, %v594
  %v596 = vpop.f32.mrf.mxu0
  %v597 = vadd.f32 %v107, %v596
  %598 = vdwg.mxu0
  %v599 = vld [vmem:[%s4] sm:$0xf]
  %v600 = vld [vmem:[%s4 + $0x4] sm:$0xf]
  %v601 = vld [vmem:[%s4 + $0x8] sm:$0xf]
  %v602 = vld [vmem:[%s4 + $0xc] sm:$0xf]
  %v603 = vld [vmem:[%s4 + $0x10] sm:$0xf]
  %v604 = vld [vmem:[%s4 + $0x14] sm:$0xf]
  %v605 = vld [vmem:[%s4 + $0x18] sm:$0xf]
  %v606 = vld [vmem:[%s4 + $0x1c] sm:$0xf]
  %v607 = vld [vmem:[%s4 + $0x20] sm:$0xf]
  %v608 = vld [vmem:[%s4 + $0x24] sm:$0xf]
  %v609 = vld [vmem:[%s4 + $0x28] sm:$0xf]
  %v610 = vld [vmem:[%s4 + $0x2c] sm:$0xf]
  %v611 = vld [vmem:[%s4 + $0x30] sm:$0xf]
  %v612 = vld [vmem:[%s4 + $0x34] sm:$0xf]
  %v613 = vld [vmem:[%s4 + $0x38] sm:$0xf]
  %v614 = vld [vmem:[%s4 + $0x3c] sm:$0xf]
  %v615 = vld [vmem:[%s4 + $0x40] sm:$0xf]
  %v616 = vld [vmem:[%s4 + $0x44] sm:$0xf]
  %v617 = vld [vmem:[%s4 + $0x48] sm:$0xf]
  %v618 = vld [vmem:[%s4 + $0x4c] sm:$0xf]
  %v619 = vld [vmem:[%s4 + $0x50] sm:$0xf]
  %v620 = vld [vmem:[%s4 + $0x54] sm:$0xf]
  %v621 = vld [vmem:[%s4 + $0x58] sm:$0xf]
  %v622 = vld [vmem:[%s4 + $0x5c] sm:$0xf]
  %v623 = vld [vmem:[%s4 + $0x60] sm:$0xf]
  %v624 = vld [vmem:[%s4 + $0x64] sm:$0xf]
  %v625 = vld [vmem:[%s4 + $0x68] sm:$0xf]
  %v626 = vld [vmem:[%s4 + $0x6c] sm:$0xf]
  %v627 = vld [vmem:[%s4 + $0x70] sm:$0xf]
  %v628 = vld [vmem:[%s4 + $0x74] sm:$0xf]
  %v629 = vld [vmem:[%s4 + $0x78] sm:$0xf]
  %v630 = vld [vmem:[%s4 + $0x7c] sm:$0xf]
  %v631 = vld [vmem:[%s4 + $0x80] sm:$0xf]
  %v632 = vld [vmem:[%s4 + $0x84] sm:$0xf]
  %v633 = vld [vmem:[%s4 + $0x88] sm:$0xf]
  %v634 = vld [vmem:[%s4 + $0x8c] sm:$0xf]
  %v635 = vld [vmem:[%s4 + $0x90] sm:$0xf]
  %v636 = vld [vmem:[%s4 + $0x94] sm:$0xf]
  %v637 = vld [vmem:[%s4 + $0x98] sm:$0xf]
  %v638 = vld [vmem:[%s4 + $0x9c] sm:$0xf]
  %v639 = vld [vmem:[%s4 + $0xa0] sm:$0xf]
  %v640 = vld [vmem:[%s4 + $0xa4] sm:$0xf]
  %v641 = vld [vmem:[%s4 + $0xa8] sm:$0xf]
  %v642 = vld [vmem:[%s4 + $0xac] sm:$0xf]
  %v643 = vld [vmem:[%s4 + $0xb0] sm:$0xf]
  %v644 = vld [vmem:[%s4 + $0xb4] sm:$0xf]
  %v645 = vld [vmem:[%s4 + $0xb8] sm:$0xf]
  %v646 = vld [vmem:[%s4 + $0xbc] sm:$0xf]
  %v647 = vld [vmem:[%s4 + $0xc0] sm:$0xf]
  %v648 = vld [vmem:[%s4 + $0xc4] sm:$0xf]
  %v649 = vld [vmem:[%s4 + $0xc8] sm:$0xf]
  %v650 = vld [vmem:[%s4 + $0xcc] sm:$0xf]
  %v651 = vld [vmem:[%s4 + $0xd0] sm:$0xf]
  %v652 = vld [vmem:[%s4 + $0xd4] sm:$0xf]
  %v653 = vld [vmem:[%s4 + $0xd8] sm:$0xf]
  %v654 = vld [vmem:[%s4 + $0xdc] sm:$0xf]
  %v655 = vld [vmem:[%s4 + $0xe0] sm:$0xf]
  %v656 = vld [vmem:[%s4 + $0xe4] sm:$0xf]
  %v657 = vld [vmem:[%s4 + $0xe8] sm:$0xf]
  %v658 = vld [vmem:[%s4 + $0xec] sm:$0xf]
  %v659 = vld [vmem:[%s4 + $0xf0] sm:$0xf]
  %v660 = vld [vmem:[%s4 + $0xf4] sm:$0xf]
  %v661 = vld [vmem:[%s4 + $0xf8] sm:$0xf]
  %v662 = vld [vmem:[%s4 + $0xfc] sm:$0xf]
  %v663 = vld [vmem:[%s4 + $0x100] sm:$0xf]
  %v664 = vld [vmem:[%s4 + $0x104] sm:$0xf]
  %v665 = vld [vmem:[%s4 + $0x108] sm:$0xf]
  %v666 = vld [vmem:[%s4 + $0x10c] sm:$0xf]
  %v667 = vld [vmem:[%s4 + $0x110] sm:$0xf]
  %v668 = vld [vmem:[%s4 + $0x114] sm:$0xf]
  %v669 = vld [vmem:[%s4 + $0x118] sm:$0xf]
  %v670 = vld [vmem:[%s4 + $0x11c] sm:$0xf]
  %v671 = vld [vmem:[%s5] sm:$0xf]
  %v672 = vld [vmem:[%s5 + $0x4] sm:$0xf]
  %v673 = vld [vmem:[%s5 + $0x8] sm:$0xf]
  %v674 = vld [vmem:[%s5 + $0xc] sm:$0xf]
  %v675 = vld [vmem:[%s6] sm:$0x1]
  %v677 = vperm.slane %v675, 0
  %v751 = vunpack.c.l.b16 %v599
  %v752 = vunpack.c.l.b16 %v600
  %v753 = vunpack.c.l.b16 %v601
  %v754 = vunpack.c.l.b16 %v602
  %v755 = vunpack.c.l.b16 %v603
  %v756 = vunpack.c.l.b16 %v604
  %v757 = vunpack.c.l.b16 %v605
  %v758 = vunpack.c.l.b16 %v606
  %v759 = vunpack.c.l.b16 %v607
  %v760 = vunpack.c.l.b16 %v608
  %v761 = vunpack.c.l.b16 %v609
  %v762 = vunpack.c.l.b16 %v610
  %v763 = vunpack.c.l.b16 %v611
  %v764 = vunpack.c.l.b16 %v612
  %v765 = vunpack.c.l.b16 %v613
  %v766 = vunpack.c.l.b16 %v614
  %v767 = vunpack.c.l.b16 %v615
  %v768 = vunpack.c.l.b16 %v616
  %v769 = vunpack.c.l.b16 %v617
  %v770 = vunpack.c.l.b16 %v618
  %v771 = vunpack.c.l.b16 %v619
  %v772 = vunpack.c.l.b16 %v620
  %v773 = vunpack.c.l.b16 %v621
  %v774 = vunpack.c.l.b16 %v622
  %v775 = vunpack.c.l.b16 %v623
  %v776 = vunpack.c.l.b16 %v624
  %v777 = vunpack.c.l.b16 %v625
  %v778 = vunpack.c.l.b16 %v626
  %v779 = vunpack.c.l.b16 %v627
  %v780 = vunpack.c.l.b16 %v628
  %v781 = vunpack.c.l.b16 %v629
  %v782 = vunpack.c.l.b16 %v630
  %v783 = vunpack.c.l.b16 %v631
  %v784 = vunpack.c.l.b16 %v632
  %v785 = vunpack.c.l.b16 %v633
  %v786 = vunpack.c.l.b16 %v634
  %v787 = vunpack.c.l.b16 %v635
  %v788 = vunpack.c.l.b16 %v636
  %v789 = vunpack.c.l.b16 %v637
  %v790 = vunpack.c.l.b16 %v638
  %v791 = vunpack.c.l.b16 %v639
  %v792 = vunpack.c.l.b16 %v640
  %v793 = vunpack.c.l.b16 %v641
  %v794 = vunpack.c.l.b16 %v642
  %v795 = vunpack.c.l.b16 %v643
  %v796 = vunpack.c.l.b16 %v644
  %v797 = vunpack.c.l.b16 %v645
  %v798 = vunpack.c.l.b16 %v646
  %v799 = vunpack.c.l.b16 %v647
  %v800 = vunpack.c.l.b16 %v648
  %v801 = vunpack.c.l.b16 %v649
  %v802 = vunpack.c.l.b16 %v650
  %v803 = vunpack.c.l.b16 %v651
  %v804 = vunpack.c.l.b16 %v652
  %v805 = vunpack.c.l.b16 %v653
  %v806 = vunpack.c.l.b16 %v654
  %v807 = vunpack.c.l.b16 %v655
  %v808 = vunpack.c.l.b16 %v656
  %v809 = vunpack.c.l.b16 %v657
  %v810 = vunpack.c.l.b16 %v658
  %v811 = vunpack.c.l.b16 %v659
  %v812 = vunpack.c.l.b16 %v660
  %v813 = vunpack.c.l.b16 %v661
  %v814 = vunpack.c.l.b16 %v662
  %v815 = vunpack.c.l.b16 %v663
  %v816 = vunpack.c.l.b16 %v664
  %v817 = vunpack.c.l.b16 %v665
  %v818 = vunpack.c.l.b16 %v666
  %v819 = vunpack.c.l.b16 %v667
  %v820 = vunpack.c.l.b16 %v668
  %v821 = vunpack.c.l.b16 %v669
  %v822 = vunpack.c.l.b16 %v670
  %v823 = vpack.c.b16 %v752, %v751
  %v824 = vpack.c.b16 %v754, %v753
  %v825 = vpack.c.b16 %v756, %v755
  %v826 = vpack.c.b16 %v758, %v757
  %v827 = vpack.c.b16 %v760, %v759
  %v828 = vpack.c.b16 %v762, %v761
  %v829 = vpack.c.b16 %v764, %v763
  %v830 = vpack.c.b16 %v766, %v765
  %v831 = vpack.c.b16 %v768, %v767
  %v832 = vpack.c.b16 %v770, %v769
  %v833 = vpack.c.b16 %v772, %v771
  %v834 = vpack.c.b16 %v774, %v773
  %v835 = vpack.c.b16 %v776, %v775
  %v836 = vpack.c.b16 %v778, %v777
  %v837 = vpack.c.b16 %v780, %v779
  %v838 = vpack.c.b16 %v782, %v781
  %v839 = vpack.c.b16 %v784, %v783
  %v840 = vpack.c.b16 %v786, %v785
  %v841 = vpack.c.b16 %v788, %v787
  %v842 = vpack.c.b16 %v790, %v789
  %v843 = vpack.c.b16 %v792, %v791
  %v844 = vpack.c.b16 %v794, %v793
  %v845 = vpack.c.b16 %v796, %v795
  %v846 = vpack.c.b16 %v798, %v797
  %v847 = vpack.c.b16 %v800, %v799
  %v848 = vpack.c.b16 %v802, %v801
  %v849 = vpack.c.b16 %v804, %v803
  %v850 = vpack.c.b16 %v806, %v805
  %v851 = vpack.c.b16 %v808, %v807
  %v852 = vpack.c.b16 %v810, %v809
  %v853 = vpack.c.b16 %v812, %v811
  %v854 = vpack.c.b16 %v814, %v813
  %v855 = vpack.c.b16 %v816, %v815
  %v856 = vpack.c.b16 %v818, %v817
  %v857 = vpack.c.b16 %v820, %v819
  %v858 = vpack.c.b16 %v822, %v821
  %v863 = vunpack.c.l.b16 %v671
  %v864 = vunpack.c.l.b16 %v672
  %v865 = vunpack.c.l.b16 %v673
  %v866 = vunpack.c.l.b16 %v674
  %v867 = vpack.c.b16 %v864, %v863
  %v868 = vpack.c.b16 %v866, %v865
  %v872 = vsel %vm301, %v823, 0
  %v875 = vsel %vm301, %v824, 0
  %v878 = vsel %vm301, %v825, 0
  %v881 = vsel %vm301, %v826, 0
  %v884 = vsel %vm301, %v827, 0
  %v887 = vsel %vm301, %v828, 0
  %v890 = vsel %vm301, %v829, 0
  %v893 = vsel %vm301, %v830, 0
  %v896 = vsel %vm301, %v831, 0
  %v899 = vsel %vm301, %v832, 0
  %v902 = vsel %vm301, %v833, 0
  %v905 = vsel %vm301, %v834, 0
  %v908 = vsel %vm301, %v835, 0
  %v911 = vsel %vm301, %v836, 0
  %v914 = vsel %vm301, %v837, 0
  %v917 = vsel %vm301, %v838, 0
  %v920 = vsel %vm301, %v839, 0
  %v923 = vsel %vm301, %v840, 0
  %v926 = vsel %vm301, %v841, 0
  %v929 = vsel %vm301, %v842, 0
  %v932 = vsel %vm301, %v843, 0
  %v935 = vsel %vm301, %v844, 0
  %v938 = vsel %vm301, %v845, 0
  %v941 = vsel %vm301, %v846, 0
  %v944 = vsel %vm301, %v847, 0
  %v947 = vsel %vm301, %v848, 0
  %v950 = vsel %vm301, %v849, 0
  %v953 = vsel %vm301, %v850, 0
  %v956 = vsel %vm301, %v851, 0
  %v959 = vsel %vm301, %v852, 0
  %v962 = vsel %vm301, %v853, 0
  %v965 = vsel %vm301, %v854, 0
  %v968 = vsel %vm301, %v855, 0
  %v971 = vsel %vm301, %v856, 0
  %v974 = vsel %vm301, %v857, 0
  %v977 = vsel %vm301, %v858, 0
  %979 = vmatpush.bf16.msra.mxu0 0
  %980 = vmatpush.bf16.msra.mxu0 0
  %981 = vmatpush.bf16.msra.mxu0 0
  %982 = vmatpush.bf16.msra.mxu0 0
  %983 = vmatpush.bf16.msra.mxu0 0
  %984 = vmatpush.bf16.msra.mxu0 0
  %985 = vmatpush.bf16.msra.mxu0 %v868
  %986 = vmatpush.bf16.msra.mxu0 %v867
  %987 = vmatmul.bf16.gmra.mxu0 %v872
  %v988 = vpop.f32.mrf.mxu0
  %v989 = vadd.f32 %v677, %v988
  %v990 = vpop.f32.mrf.mxu0
  %v991 = vadd.f32 %v677, %v990
  %992 = vmatmul.bf16.gmra.mxu0 %v875
  %v993 = vpop.f32.mrf.mxu0
  %v994 = vadd.f32 %v677, %v993
  %v995 = vpop.f32.mrf.mxu0
  %v996 = vadd.f32 %v677, %v995
  %997 = vmatmul.bf16.gmra.mxu0 %v878
  %v998 = vpop.f32.mrf.mxu0
  %v999 = vadd.f32 %v677, %v998
  %v1000 = vpop.f32.mrf.mxu0
  %v1001 = vadd.f32 %v677, %v1000
  %1002 = vmatmul.bf16.gmra.mxu0 %v881
  %v1003 = vpop.f32.mrf.mxu0
  %v1004 = vadd.f32 %v677, %v1003
  %v1005 = vpop.f32.mrf.mxu0
  %v1006 = vadd.f32 %v677, %v1005
  %1007 = vmatmul.bf16.gmra.mxu0 %v884
  %v1008 = vpop.f32.mrf.mxu0
  %v1009 = vadd.f32 %v677, %v1008
  %v1010 = vpop.f32.mrf.mxu0
  %v1011 = vadd.f32 %v677, %v1010
  %1012 = vmatmul.bf16.gmra.mxu0 %v887
  %v1013 = vpop.f32.mrf.mxu0
  %v1014 = vadd.f32 %v677, %v1013
  %v1015 = vpop.f32.mrf.mxu0
  %v1016 = vadd.f32 %v677, %v1015
  %1017 = vmatmul.bf16.gmra.mxu0 %v890
  %v1018 = vpop.f32.mrf.mxu0
  %v1019 = vadd.f32 %v677, %v1018
  %v1020 = vpop.f32.mrf.mxu0
  %v1021 = vadd.f32 %v677, %v1020
  %1022 = vmatmul.bf16.gmra.mxu0 %v893
  %v1023 = vpop.f32.mrf.mxu0
  %v1024 = vadd.f32 %v677, %v1023
  %v1025 = vpop.f32.mrf.mxu0
  %v1026 = vadd.f32 %v677, %v1025
  %1027 = vmatmul.bf16.gmra.mxu0 %v896
  %v1028 = vpop.f32.mrf.mxu0
  %v1029 = vadd.f32 %v677, %v1028
  %v1030 = vpop.f32.mrf.mxu0
  %v1031 = vadd.f32 %v677, %v1030
  %1032 = vmatmul.bf16.gmra.mxu0 %v899
  %v1033 = vpop.f32.mrf.mxu0
  %v1034 = vadd.f32 %v677, %v1033
  %v1035 = vpop.f32.mrf.mxu0
  %v1036 = vadd.f32 %v677, %v1035
  %1037 = vmatmul.bf16.gmra.mxu0 %v902
  %v1038 = vpop.f32.mrf.mxu0
  %v1039 = vadd.f32 %v677, %v1038
  %v1040 = vpop.f32.mrf.mxu0
  %v1041 = vadd.f32 %v677, %v1040
  %1042 = vmatmul.bf16.gmra.mxu0 %v905
  %v1043 = vpop.f32.mrf.mxu0
  %v1044 = vadd.f32 %v677, %v1043
  %v1045 = vpop.f32.mrf.mxu0
  %v1046 = vadd.f32 %v677, %v1045
  %1047 = vmatmul.bf16.gmra.mxu0 %v908
  %v1048 = vpop.f32.mrf.mxu0
  %v1049 = vadd.f32 %v677, %v1048
  %v1050 = vpop.f32.mrf.mxu0
  %v1051 = vadd.f32 %v677, %v1050
  %1052 = vmatmul.bf16.gmra.mxu0 %v911
  %v1053 = vpop.f32.mrf.mxu0
  %v1054 = vadd.f32 %v677, %v1053
  %v1055 = vpop.f32.mrf.mxu0
  %v1056 = vadd.f32 %v677, %v1055
  %1057 = vmatmul.bf16.gmra.mxu0 %v914
  %v1058 = vpop.f32.mrf.mxu0
  %v1059 = vadd.f32 %v677, %v1058
  %v1060 = vpop.f32.mrf.mxu0
  %v1061 = vadd.f32 %v677, %v1060
  %1062 = vmatmul.bf16.gmra.mxu0 %v917
  %v1063 = vpop.f32.mrf.mxu0
  %v1064 = vadd.f32 %v677, %v1063
  %v1065 = vpop.f32.mrf.mxu0
  %v1066 = vadd.f32 %v677, %v1065
  %1067 = vmatmul.bf16.gmra.mxu0 %v920
  %v1068 = vpop.f32.mrf.mxu0
  %v1069 = vadd.f32 %v677, %v1068
  %v1070 = vpop.f32.mrf.mxu0
  %v1071 = vadd.f32 %v677, %v1070
  %1072 = vmatmul.bf16.gmra.mxu0 %v923
  %v1073 = vpop.f32.mrf.mxu0
  %v1074 = vadd.f32 %v677, %v1073
  %v1075 = vpop.f32.mrf.mxu0
  %v1076 = vadd.f32 %v677, %v1075
  %1077 = vmatmul.bf16.gmra.mxu0 %v926
  %v1078 = vpop.f32.mrf.mxu0
  %v1079 = vadd.f32 %v677, %v1078
  %v1080 = vpop.f32.mrf.mxu0
  %v1081 = vadd.f32 %v677, %v1080
  %1082 = vmatmul.bf16.gmra.mxu0 %v929
  %v1083 = vpop.f32.mrf.mxu0
  %v1084 = vadd.f32 %v677, %v1083
  %v1085 = vpop.f32.mrf.mxu0
  %v1086 = vadd.f32 %v677, %v1085
  %1087 = vmatmul.bf16.gmra.mxu0 %v932
  %v1088 = vpop.f32.mrf.mxu0
  %v1089 = vadd.f32 %v677, %v1088
  %v1090 = vpop.f32.mrf.mxu0
  %v1091 = vadd.f32 %v677, %v1090
  %1092 = vmatmul.bf16.gmra.mxu0 %v935
  %v1093 = vpop.f32.mrf.mxu0
  %v1094 = vadd.f32 %v677, %v1093
  %v1095 = vpop.f32.mrf.mxu0
  %v1096 = vadd.f32 %v677, %v1095
  %1097 = vmatmul.bf16.gmra.mxu0 %v938
  %v1098 = vpop.f32.mrf.mxu0
  %v1099 = vadd.f32 %v677, %v1098
  %v1100 = vpop.f32.mrf.mxu0
  %v1101 = vadd.f32 %v677, %v1100
  %1102 = vmatmul.bf16.gmra.mxu0 %v941
  %v1103 = vpop.f32.mrf.mxu0
  %v1104 = vadd.f32 %v677, %v1103
  %v1105 = vpop.f32.mrf.mxu0
  %v1106 = vadd.f32 %v677, %v1105
  %1107 = vmatmul.bf16.gmra.mxu0 %v944
  %v1108 = vpop.f32.mrf.mxu0
  %v1109 = vadd.f32 %v677, %v1108
  %v1110 = vpop.f32.mrf.mxu0
  %v1111 = vadd.f32 %v677, %v1110
  %1112 = vmatmul.bf16.gmra.mxu0 %v947
  %v1113 = vpop.f32.mrf.mxu0
  %v1114 = vadd.f32 %v677, %v1113
  %v1115 = vpop.f32.mrf.mxu0
  %v1116 = vadd.f32 %v677, %v1115
  %1117 = vmatmul.bf16.gmra.mxu0 %v950
  %v1118 = vpop.f32.mrf.mxu0
  %v1119 = vadd.f32 %v677, %v1118
  %v1120 = vpop.f32.mrf.mxu0
  %v1121 = vadd.f32 %v677, %v1120
  %1122 = vmatmul.bf16.gmra.mxu0 %v953
  %v1123 = vpop.f32.mrf.mxu0
  %v1124 = vadd.f32 %v677, %v1123
  %v1125 = vpop.f32.mrf.mxu0
  %v1126 = vadd.f32 %v677, %v1125
  %1127 = vmatmul.bf16.gmra.mxu0 %v956
  %v1128 = vpop.f32.mrf.mxu0
  %v1129 = vadd.f32 %v677, %v1128
  %v1130 = vpop.f32.mrf.mxu0
  %v1131 = vadd.f32 %v677, %v1130
  %1132 = vmatmul.bf16.gmra.mxu0 %v959
  %v1133 = vpop.f32.mrf.mxu0
  %v1134 = vadd.f32 %v677, %v1133
  %v1135 = vpop.f32.mrf.mxu0
  %v1136 = vadd.f32 %v677, %v1135
  %1137 = vmatmul.bf16.gmra.mxu0 %v962
  %v1138 = vpop.f32.mrf.mxu0
  %v1139 = vadd.f32 %v677, %v1138
  %v1140 = vpop.f32.mrf.mxu0
  %v1141 = vadd.f32 %v677, %v1140
  %1142 = vmatmul.bf16.gmra.mxu0 %v965
  %v1143 = vpop.f32.mrf.mxu0
  %v1144 = vadd.f32 %v677, %v1143
  %v1145 = vpop.f32.mrf.mxu0
  %v1146 = vadd.f32 %v677, %v1145
  %1147 = vmatmul.bf16.gmra.mxu0 %v968
  %v1148 = vpop.f32.mrf.mxu0
  %v1149 = vadd.f32 %v677, %v1148
  %v1150 = vpop.f32.mrf.mxu0
  %v1151 = vadd.f32 %v677, %v1150
  %1152 = vmatmul.bf16.gmra.mxu0 %v971
  %v1153 = vpop.f32.mrf.mxu0
  %v1154 = vadd.f32 %v677, %v1153
  %v1155 = vpop.f32.mrf.mxu0
  %v1156 = vadd.f32 %v677, %v1155
  %1157 = vmatmul.bf16.gmra.mxu0 %v974
  %v1158 = vpop.f32.mrf.mxu0
  %v1159 = vadd.f32 %v677, %v1158
  %v1160 = vpop.f32.mrf.mxu0
  %v1161 = vadd.f32 %v677, %v1160
  %1162 = vmatmul.bf16.gmra.mxu0 %v977
  %v1163 = vpop.f32.mrf.mxu0
  %v1164 = vadd.f32 %v677, %v1163
  %v1165 = vpop.f32.mrf.mxu0
  %v1166 = vadd.f32 %v677, %v1165
  %1167 = vdwg.mxu0
  %v1168 = vstv %s28
  %v1169 = vmul.f32 %v1168, %v420
  %v1170 = vmul.f32 %v1168, %v422
  %v1171 = vmul.f32 %v1168, %v425
  %v1172 = vmul.f32 %v1168, %v427
  %v1173 = vmul.f32 %v1168, %v430
  %v1174 = vmul.f32 %v1168, %v432
  %v1175 = vmul.f32 %v1168, %v435
  %v1176 = vmul.f32 %v1168, %v437
  %v1177 = vmul.f32 %v1168, %v440
  %v1178 = vmul.f32 %v1168, %v442
  %v1179 = vmul.f32 %v1168, %v445
  %v1180 = vmul.f32 %v1168, %v447
  %v1181 = vmul.f32 %v1168, %v450
  %v1182 = vmul.f32 %v1168, %v452
  %v1183 = vmul.f32 %v1168, %v455
  %v1184 = vmul.f32 %v1168, %v457
  %v1185 = vmul.f32 %v1168, %v460
  %v1186 = vmul.f32 %v1168, %v462
  %v1187 = vmul.f32 %v1168, %v465
  %v1188 = vmul.f32 %v1168, %v467
  %v1189 = vmul.f32 %v1168, %v470
  %v1190 = vmul.f32 %v1168, %v472
  %v1191 = vmul.f32 %v1168, %v475
  %v1192 = vmul.f32 %v1168, %v477
  %v1193 = vmul.f32 %v1168, %v480
  %v1194 = vmul.f32 %v1168, %v482
  %v1195 = vmul.f32 %v1168, %v485
  %v1196 = vmul.f32 %v1168, %v487
  %v1197 = vmul.f32 %v1168, %v490
  %v1198 = vmul.f32 %v1168, %v492
  %v1199 = vmul.f32 %v1168, %v495
  %v1200 = vmul.f32 %v1168, %v497
  %v1201 = vmul.f32 %v1168, %v500
  %v1202 = vmul.f32 %v1168, %v502
  %v1203 = vmul.f32 %v1168, %v505
  %v1204 = vmul.f32 %v1168, %v507
  %v1205 = vmul.f32 %v1168, %v510
  %v1206 = vmul.f32 %v1168, %v512
  %v1207 = vmul.f32 %v1168, %v515
  %v1208 = vmul.f32 %v1168, %v517
  %v1209 = vmul.f32 %v1168, %v520
  %v1210 = vmul.f32 %v1168, %v522
  %v1211 = vmul.f32 %v1168, %v525
  %v1212 = vmul.f32 %v1168, %v527
  %v1213 = vmul.f32 %v1168, %v530
  %v1214 = vmul.f32 %v1168, %v532
  %v1215 = vmul.f32 %v1168, %v535
  %v1216 = vmul.f32 %v1168, %v537
  %v1217 = vmul.f32 %v1168, %v540
  %v1218 = vmul.f32 %v1168, %v542
  %v1219 = vmul.f32 %v1168, %v545
  %v1220 = vmul.f32 %v1168, %v547
  %v1221 = vmul.f32 %v1168, %v550
  %v1222 = vmul.f32 %v1168, %v552
  %v1223 = vmul.f32 %v1168, %v555
  %v1224 = vmul.f32 %v1168, %v557
  %v1225 = vmul.f32 %v1168, %v560
  %v1226 = vmul.f32 %v1168, %v562
  %v1227 = vmul.f32 %v1168, %v565
  %v1228 = vmul.f32 %v1168, %v567
  %v1229 = vmul.f32 %v1168, %v570
  %v1230 = vmul.f32 %v1168, %v572
  %v1231 = vmul.f32 %v1168, %v575
  %v1232 = vmul.f32 %v1168, %v577
  %v1233 = vmul.f32 %v1168, %v580
  %v1234 = vmul.f32 %v1168, %v582
  %v1235 = vmul.f32 %v1168, %v585
  %v1236 = vmul.f32 %v1168, %v587
  %v1237 = vmul.f32 %v1168, %v590
  %v1238 = vmul.f32 %v1168, %v592
  %v1239 = vmul.f32 %v1168, %v595
  %v1240 = vmul.f32 %v1168, %v597
  %s1241 = ssub.f32 1.0, %s28
  %v1242 = vstv %s1241
  %v1243 = vmul.f32 %v1242, %v989
  %v1244 = vmul.f32 %v1242, %v991
  %v1245 = vmul.f32 %v1242, %v994
  %v1246 = vmul.f32 %v1242, %v996
  %v1247 = vmul.f32 %v1242, %v999
  %v1248 = vmul.f32 %v1242, %v1001
  %v1249 = vmul.f32 %v1242, %v1004
  %v1250 = vmul.f32 %v1242, %v1006
  %v1251 = vmul.f32 %v1242, %v1009
  %v1252 = vmul.f32 %v1242, %v1011
  %v1253 = vmul.f32 %v1242, %v1014
  %v1254 = vmul.f32 %v1242, %v1016
  %v1255 = vmul.f32 %v1242, %v1019
  %v1256 = vmul.f32 %v1242, %v1021
  %v1257 = vmul.f32 %v1242, %v1024
  %v1258 = vmul.f32 %v1242, %v1026
  %v1259 = vmul.f32 %v1242, %v1029
  %v1260 = vmul.f32 %v1242, %v1031
  %v1261 = vmul.f32 %v1242, %v1034
  %v1262 = vmul.f32 %v1242, %v1036
  %v1263 = vmul.f32 %v1242, %v1039
  %v1264 = vmul.f32 %v1242, %v1041
  %v1265 = vmul.f32 %v1242, %v1044
  %v1266 = vmul.f32 %v1242, %v1046
  %v1267 = vmul.f32 %v1242, %v1049
  %v1268 = vmul.f32 %v1242, %v1051
  %v1269 = vmul.f32 %v1242, %v1054
  %v1270 = vmul.f32 %v1242, %v1056
  %v1271 = vmul.f32 %v1242, %v1059
  %v1272 = vmul.f32 %v1242, %v1061
  %v1273 = vmul.f32 %v1242, %v1064
  %v1274 = vmul.f32 %v1242, %v1066
  %v1275 = vmul.f32 %v1242, %v1069
  %v1276 = vmul.f32 %v1242, %v1071
  %v1277 = vmul.f32 %v1242, %v1074
  %v1278 = vmul.f32 %v1242, %v1076
  %v1279 = vmul.f32 %v1242, %v1079
  %v1280 = vmul.f32 %v1242, %v1081
  %v1281 = vmul.f32 %v1242, %v1084
  %v1282 = vmul.f32 %v1242, %v1086
  %v1283 = vmul.f32 %v1242, %v1089
  %v1284 = vmul.f32 %v1242, %v1091
  %v1285 = vmul.f32 %v1242, %v1094
  %v1286 = vmul.f32 %v1242, %v1096
  %v1287 = vmul.f32 %v1242, %v1099
  %v1288 = vmul.f32 %v1242, %v1101
  %v1289 = vmul.f32 %v1242, %v1104
  %v1290 = vmul.f32 %v1242, %v1106
  %v1291 = vmul.f32 %v1242, %v1109
  %v1292 = vmul.f32 %v1242, %v1111
  %v1293 = vmul.f32 %v1242, %v1114
  %v1294 = vmul.f32 %v1242, %v1116
  %v1295 = vmul.f32 %v1242, %v1119
  %v1296 = vmul.f32 %v1242, %v1121
  %v1297 = vmul.f32 %v1242, %v1124
  %v1298 = vmul.f32 %v1242, %v1126
  %v1299 = vmul.f32 %v1242, %v1129
  %v1300 = vmul.f32 %v1242, %v1131
  %v1301 = vmul.f32 %v1242, %v1134
  %v1302 = vmul.f32 %v1242, %v1136
  %v1303 = vmul.f32 %v1242, %v1139
  %v1304 = vmul.f32 %v1242, %v1141
  %v1305 = vmul.f32 %v1242, %v1144
  %v1306 = vmul.f32 %v1242, %v1146
  %v1307 = vmul.f32 %v1242, %v1149
  %v1308 = vmul.f32 %v1242, %v1151
  %v1309 = vmul.f32 %v1242, %v1154
  %v1310 = vmul.f32 %v1242, %v1156
  %v1311 = vmul.f32 %v1242, %v1159
  %v1312 = vmul.f32 %v1242, %v1161
  %v1313 = vmul.f32 %v1242, %v1164
  %v1314 = vmul.f32 %v1242, %v1166
  %v1315 = vadd.f32 %v1169, %v1243
  %v1316 = vadd.f32 %v1170, %v1244
  %v1317 = vadd.f32 %v1171, %v1245
  %v1318 = vadd.f32 %v1172, %v1246
  %v1319 = vadd.f32 %v1173, %v1247
  %v1320 = vadd.f32 %v1174, %v1248
  %v1321 = vadd.f32 %v1175, %v1249
  %v1322 = vadd.f32 %v1176, %v1250
  %v1323 = vadd.f32 %v1177, %v1251
  %v1324 = vadd.f32 %v1178, %v1252
  %v1325 = vadd.f32 %v1179, %v1253
  %v1326 = vadd.f32 %v1180, %v1254
  %v1327 = vadd.f32 %v1181, %v1255
  %v1328 = vadd.f32 %v1182, %v1256
  %v1329 = vadd.f32 %v1183, %v1257
  %v1330 = vadd.f32 %v1184, %v1258
  %v1331 = vadd.f32 %v1185, %v1259
  %v1332 = vadd.f32 %v1186, %v1260
  %v1333 = vadd.f32 %v1187, %v1261
  %v1334 = vadd.f32 %v1188, %v1262
  %v1335 = vadd.f32 %v1189, %v1263
  %v1336 = vadd.f32 %v1190, %v1264
  %v1337 = vadd.f32 %v1191, %v1265
  %v1338 = vadd.f32 %v1192, %v1266
  %v1339 = vadd.f32 %v1193, %v1267
  %v1340 = vadd.f32 %v1194, %v1268
  %v1341 = vadd.f32 %v1195, %v1269
  %v1342 = vadd.f32 %v1196, %v1270
  %v1343 = vadd.f32 %v1197, %v1271
  %v1344 = vadd.f32 %v1198, %v1272
  %v1345 = vadd.f32 %v1199, %v1273
  %v1346 = vadd.f32 %v1200, %v1274
  %v1347 = vadd.f32 %v1201, %v1275
  %v1348 = vadd.f32 %v1202, %v1276
  %v1349 = vadd.f32 %v1203, %v1277
  %v1350 = vadd.f32 %v1204, %v1278
  %v1351 = vadd.f32 %v1205, %v1279
  %v1352 = vadd.f32 %v1206, %v1280
  %v1353 = vadd.f32 %v1207, %v1281
  %v1354 = vadd.f32 %v1208, %v1282
  %v1355 = vadd.f32 %v1209, %v1283
  %v1356 = vadd.f32 %v1210, %v1284
  %v1357 = vadd.f32 %v1211, %v1285
  %v1358 = vadd.f32 %v1212, %v1286
  %v1359 = vadd.f32 %v1213, %v1287
  %v1360 = vadd.f32 %v1214, %v1288
  %v1361 = vadd.f32 %v1215, %v1289
  %v1362 = vadd.f32 %v1216, %v1290
  %v1363 = vadd.f32 %v1217, %v1291
  %v1364 = vadd.f32 %v1218, %v1292
  %v1365 = vadd.f32 %v1219, %v1293
  %v1366 = vadd.f32 %v1220, %v1294
  %v1367 = vadd.f32 %v1221, %v1295
  %v1368 = vadd.f32 %v1222, %v1296
  %v1369 = vadd.f32 %v1223, %v1297
  %v1370 = vadd.f32 %v1224, %v1298
  %v1371 = vadd.f32 %v1225, %v1299
  %v1372 = vadd.f32 %v1226, %v1300
  %v1373 = vadd.f32 %v1227, %v1301
  %v1374 = vadd.f32 %v1228, %v1302
  %v1375 = vadd.f32 %v1229, %v1303
  %v1376 = vadd.f32 %v1230, %v1304
  %v1377 = vadd.f32 %v1231, %v1305
  %v1378 = vadd.f32 %v1232, %v1306
  %v1379 = vadd.f32 %v1233, %v1307
  %v1380 = vadd.f32 %v1234, %v1308
  %v1381 = vadd.f32 %v1235, %v1309
  %v1382 = vadd.f32 %v1236, %v1310
  %v1383 = vadd.f32 %v1237, %v1311
  %v1384 = vadd.f32 %v1238, %v1312
  %v1385 = vadd.f32 %v1239, %v1313
  %v1386 = vadd.f32 %v1240, %v1314
  %1387 = vst [vmem:[%s7] sm:$0xff] %v1315
  %1388 = vst [vmem:[%s7 + $0x8] sm:$0xff] %v1316
  %1389 = vst [vmem:[%s7 + $0x10] sm:$0xff] %v1317
  %1390 = vst [vmem:[%s7 + $0x18] sm:$0xff] %v1318
  %1391 = vst [vmem:[%s7 + $0x20] sm:$0xff] %v1319
  %1392 = vst [vmem:[%s7 + $0x28] sm:$0xff] %v1320
  %1393 = vst [vmem:[%s7 + $0x30] sm:$0xff] %v1321
  %1394 = vst [vmem:[%s7 + $0x38] sm:$0xff] %v1322
  %1395 = vst [vmem:[%s7 + $0x40] sm:$0xff] %v1323
  %1396 = vst [vmem:[%s7 + $0x48] sm:$0xff] %v1324
  %1397 = vst [vmem:[%s7 + $0x50] sm:$0xff] %v1325
  %1398 = vst [vmem:[%s7 + $0x58] sm:$0xff] %v1326
  %1399 = vst [vmem:[%s7 + $0x60] sm:$0xff] %v1327
  %1400 = vst [vmem:[%s7 + $0x68] sm:$0xff] %v1328
  %1401 = vst [vmem:[%s7 + $0x70] sm:$0xff] %v1329
  %1402 = vst [vmem:[%s7 + $0x78] sm:$0xff] %v1330
  %1403 = vst [vmem:[%s7 + $0x80] sm:$0xff] %v1331
  %1404 = vst [vmem:[%s7 + $0x88] sm:$0xff] %v1332
  %1405 = vst [vmem:[%s7 + $0x90] sm:$0xff] %v1333
  %1406 = vst [vmem:[%s7 + $0x98] sm:$0xff] %v1334
  %1407 = vst [vmem:[%s7 + $0xa0] sm:$0xff] %v1335
  %1408 = vst [vmem:[%s7 + $0xa8] sm:$0xff] %v1336
  %1409 = vst [vmem:[%s7 + $0xb0] sm:$0xff] %v1337
  %1410 = vst [vmem:[%s7 + $0xb8] sm:$0xff] %v1338
  %1411 = vst [vmem:[%s7 + $0xc0] sm:$0xff] %v1339
  %1412 = vst [vmem:[%s7 + $0xc8] sm:$0xff] %v1340
  %1413 = vst [vmem:[%s7 + $0xd0] sm:$0xff] %v1341
  %1414 = vst [vmem:[%s7 + $0xd8] sm:$0xff] %v1342
  %1415 = vst [vmem:[%s7 + $0xe0] sm:$0xff] %v1343
  %1416 = vst [vmem:[%s7 + $0xe8] sm:$0xff] %v1344
  %1417 = vst [vmem:[%s7 + $0xf0] sm:$0xff] %v1345
  %1418 = vst [vmem:[%s7 + $0xf8] sm:$0xff] %v1346
  %1419 = vst [vmem:[%s7 + $0x100] sm:$0xff] %v1347
  %1420 = vst [vmem:[%s7 + $0x108] sm:$0xff] %v1348
  %1421 = vst [vmem:[%s7 + $0x110] sm:$0xff] %v1349
  %1422 = vst [vmem:[%s7 + $0x118] sm:$0xff] %v1350
  %1423 = vst [vmem:[%s7 + $0x120] sm:$0xff] %v1351
  %1424 = vst [vmem:[%s7 + $0x128] sm:$0xff] %v1352
  %1425 = vst [vmem:[%s7 + $0x130] sm:$0xff] %v1353
  %1426 = vst [vmem:[%s7 + $0x138] sm:$0xff] %v1354
  %1427 = vst [vmem:[%s7 + $0x140] sm:$0xff] %v1355
  %1428 = vst [vmem:[%s7 + $0x148] sm:$0xff] %v1356
  %1429 = vst [vmem:[%s7 + $0x150] sm:$0xff] %v1357
  %1430 = vst [vmem:[%s7 + $0x158] sm:$0xff] %v1358
  %1431 = vst [vmem:[%s7 + $0x160] sm:$0xff] %v1359
  %1432 = vst [vmem:[%s7 + $0x168] sm:$0xff] %v1360
  %1433 = vst [vmem:[%s7 + $0x170] sm:$0xff] %v1361
  %1434 = vst [vmem:[%s7 + $0x178] sm:$0xff] %v1362
  %1435 = vst [vmem:[%s7 + $0x180] sm:$0xff] %v1363
  %1436 = vst [vmem:[%s7 + $0x188] sm:$0xff] %v1364
  %1437 = vst [vmem:[%s7 + $0x190] sm:$0xff] %v1365
  %1438 = vst [vmem:[%s7 + $0x198] sm:$0xff] %v1366
  %1439 = vst [vmem:[%s7 + $0x1a0] sm:$0xff] %v1367
  %1440 = vst [vmem:[%s7 + $0x1a8] sm:$0xff] %v1368
  %1441 = vst [vmem:[%s7 + $0x1b0] sm:$0xff] %v1369
  %1442 = vst [vmem:[%s7 + $0x1b8] sm:$0xff] %v1370
  %1443 = vst [vmem:[%s7 + $0x1c0] sm:$0xff] %v1371
  %1444 = vst [vmem:[%s7 + $0x1c8] sm:$0xff] %v1372
  %1445 = vst [vmem:[%s7 + $0x1d0] sm:$0xff] %v1373
  %1446 = vst [vmem:[%s7 + $0x1d8] sm:$0xff] %v1374
  %1447 = vst [vmem:[%s7 + $0x1e0] sm:$0xff] %v1375
  %1448 = vst [vmem:[%s7 + $0x1e8] sm:$0xff] %v1376
  %1449 = vst [vmem:[%s7 + $0x1f0] sm:$0xff] %v1377
  %1450 = vst [vmem:[%s7 + $0x1f8] sm:$0xff] %v1378
  %1451 = vst [vmem:[%s7 + $0x200] sm:$0xff] %v1379
  %1452 = vst [vmem:[%s7 + $0x208] sm:$0xff] %v1380
  %1453 = vst [vmem:[%s7 + $0x210] sm:$0xff] %v1381
  %1454 = vst [vmem:[%s7 + $0x218] sm:$0xff] %v1382
  %1455 = vst [vmem:[%s7 + $0x220] sm:$0xff] %v1383
  %1456 = vst [vmem:[%s7 + $0x228] sm:$0xff] %v1384
  %1457 = vst [vmem:[%s7 + $0x230] sm:$0xff] %v1385
  %1458 = vst [vmem:[%s7 + $0x238] sm:$0xff] %v1386
  // Predicated region
  $region30: #{gsynthesis_forward.13} parent=0 // pred_check
    _
  $region31: #{gsynthesis_forward.13} parent=0 // pred_check_branch
    %1460 = sbr.rel (0) target = $region33
  $region32: #{gsynthesis_forward.13} parent=0 // pred_region
    _
  $region33: #{gsynthesis_forward.13} parent=0 // pred_fallthru
    _
  // Predicated region
  $region34: #{gsynthesis_forward.13} parent=0 // pred_check
    _
  $region35: #{gsynthesis_forward.13} parent=0 // pred_check_branch
    %1462 = sbr.rel (0) target = $region37
  $region36: #{gsynthesis_forward.13} parent=0 // pred_region
    _
  $region37: #{gsynthesis_forward.13} parent=0 // pred_fallthru
    _

// kernel: gsynthesis_forward.11
$region0: #{gsynthesis_forward.11}
  #allocation0 [shape = 'u32[]', space=smem, size = 0x4, offset = 0x4, fixed_abs, tag = 'smem constant byte address 0x4 - core index']
  #allocation1 [shape = 'u32[72,128]{1,0:T(1,128)}', space=vmem, size = 0x9000, scoped, tag = 'internal scratch']
  #allocation2 [shape = 'bf16[342,32]{1,0:T(8,128)(2,1)}', space=vmem, size = 0x15800, scoped, tag = 'scratch operand']
  %s0 = inlined_call_operand.vmem [shape: bf16[2,288,32], index: 0, kind: input, shape index: {}]
  %s1 = inlined_call_operand.vmem [shape: bf16[9,32,32], index: 1, kind: input, shape index: {}]
  %s2 = inlined_call_operand.vmem [shape: f32[1,32], index: 2, kind: input, shape index: {}]
  %s3 = inlined_call_operand.vmem [shape: f32[1,32], index: 3, kind: input, shape index: {}]
  %s4 = inlined_call_operand.vmem [shape: f32[2,1,64], index: 4, kind: input, shape index: {}]
  %s5 = inlined_call_operand.vmem [shape: f32[2,288,1], index: 5, kind: input, shape index: {}]
  %s6 = inlined_call_operand.vmem [shape: f32[288,1], index: 6, kind: input, shape index: {}]
  %s7 = inlined_call_operand.vmem [shape: bf16[2,288,32], index: 7, kind: output, shape index: {}]
  %s8 = sld [smem:[#allocation0]]
  $region61: #{gsynthesis_forward.11} parent=0
    _
  %s10 = ssub.s32 1, %s8
  %s11 = scalar_select 0, %s10, %s8
  loop: start=0, step=1, limit=4
  $region2: #{gsynthesis_forward.11} parent=0 // loop_pre_header
    _
  $region3: #{gsynthesis_forward.11} parent=0 // loop_header
    %s13 = sphi 0, %s17
    %p14 = scmp.ge.s32.totalorder %s13, 4
    %s23 = sphi 0, %s25
    %s26 = sphi 0, %s23
    %s27 = sphi 0, %s26
    %s43 = sphi 0, %s27
    %s47 = sphi 0, %s47
    %s49 = sphi 0, %s47
    %s50 = sphi 0, %s49
    %s64 = sphi 0, %s50
    %s68 = sphi 0, %s68
    %s70 = sphi 0, %s68
    %s71 = sphi 0, %s70
    %s85 = sphi 0, %s71
    %s89 = sphi 0, %s89
    %s91 = sphi 0, %s89
    %s92 = sphi 0, %s91
    %s106 = sphi 0, %s92
    %s112 = sphi 0, %s114
    %s115 = sphi 0, %s112
    %s116 = sphi 0, %s115
    %s132 = sphi 0, %s116
    %s138 = sphi 0, %s140
    %s141 = sphi 0, %s138
    %s142 = sphi 0, %s141
    %s158 = sphi 0, %s142
    %s162 = sphi 0, %s162
    %s164 = sphi 0, %s162
    %s165 = sphi 0, %s164
    %s179 = sphi 0, %s165
    %s185 = sphi 0, %s187
    %s188 = sphi 0, %s185
    %s189 = sphi 0, %s188
    %s205 = sphi 0, %s189
  $region4: #{gsynthesis_forward.11} parent=0 // loop_header_branch
    %16 = sbr.rel (%p14) target = $region8
  $region5: #{gsynthesis_forward.11} parent=0 // loop_body
    %s18 = ssub.s32 %s13, 1
    %s19 = ssub.s32 %s13, 2
    %s20 = sadd.s32 %s13, 1
    %s21 = ssub.s32 %s13, %s20
    %p22 = scmp.eq.s32.totalorder %s21, 0
    %s24 = sadd.s32 %s23, 1
    %s25 = scalar_select %p22, %s23, %s24
    %p28 = pneg %p22
    %p29 = scmp.eq.s32.totalorder %s13, 1
    %p30 = por %p28, %p29
    %p31 = scmp.ne.s32.totalorder %s23, %s26
    %p32 = scmp.eq.s32.totalorder %s13, 0
    %p33 = por %p31, %p32
    %p34 = scmp.ne.s32.totalorder %s23, %s26
    %p35 = scmp.eq.s32.totalorder %s18, 1
    %p36 = por %p34, %p35
    %p37 = scmp.ne.s32.totalorder %s26, %s27
    %p38 = scmp.eq.s32.totalorder %s18, 0
    %p39 = por %p37, %p38
    %p40 = scmp.ne.s32.totalorder %s26, %s27
    %p41 = scmp.eq.s32.totalorder %s19, 1
    %p42 = por %p40, %p41
    %p44 = scmp.ne.s32.totalorder %s27, %s43
    %p45 = scmp.eq.s32.totalorder %s19, 0
    %p46 = por %p44, %p45
    %s48 = sadd.s32 %s47, 1
    %p51 = scmp.eq.s32.totalorder %s13, 1
    %p52 = scmp.ne.s32.totalorder %s47, %s49
    %p53 = scmp.eq.s32.totalorder %s13, 0
    %p54 = por %p52, %p53
    %p55 = scmp.ne.s32.totalorder %s47, %s49
    %p56 = scmp.eq.s32.totalorder %s18, 1
    %p57 = por %p55, %p56
    %p58 = scmp.ne.s32.totalorder %s49, %s50
    %p59 = scmp.eq.s32.totalorder %s18, 0
    %p60 = por %p58, %p59
    %p61 = scmp.ne.s32.totalorder %s49, %s50
    %p62 = scmp.eq.s32.totalorder %s19, 1
    %p63 = por %p61, %p62
    %p65 = scmp.ne.s32.totalorder %s50, %s64
    %p66 = scmp.eq.s32.totalorder %s19, 0
    %p67 = por %p65, %p66
    %s69 = sadd.s32 %s68, 1
    %p72 = scmp.eq.s32.totalorder %s13, 1
    %p73 = scmp.ne.s32.totalorder %s68, %s70
    %p74 = scmp.eq.s32.totalorder %s13, 0
    %p75 = por %p73, %p74
    %p76 = scmp.ne.s32.totalorder %s68, %s70
    %p77 = scmp.eq.s32.totalorder %s18, 1
    %p78 = por %p76, %p77
    %p79 = scmp.ne.s32.totalorder %s70, %s71
    %p80 = scmp.eq.s32.totalorder %s18, 0
    %p81 = por %p79, %p80
    %p82 = scmp.ne.s32.totalorder %s70, %s71
    %p83 = scmp.eq.s32.totalorder %s19, 1
    %p84 = por %p82, %p83
    %p86 = scmp.ne.s32.totalorder %s71, %s85
    %p87 = scmp.eq.s32.totalorder %s19, 0
    %p88 = por %p86, %p87
    %s90 = sadd.s32 %s89, 1
    %p93 = scmp.eq.s32.totalorder %s13, 1
    %p94 = scmp.ne.s32.totalorder %s89, %s91
    %p95 = scmp.eq.s32.totalorder %s13, 0
    %p96 = por %p94, %p95
    %p97 = scmp.ne.s32.totalorder %s89, %s91
    %p98 = scmp.eq.s32.totalorder %s18, 1
    %p99 = por %p97, %p98
    %p100 = scmp.ne.s32.totalorder %s91, %s92
    %p101 = scmp.eq.s32.totalorder %s18, 0
    %p102 = por %p100, %p101
    %p103 = scmp.ne.s32.totalorder %s91, %s92
    %p104 = scmp.eq.s32.totalorder %s19, 1
    %p105 = por %p103, %p104
    %p107 = scmp.ne.s32.totalorder %s92, %s106
    %p108 = scmp.eq.s32.totalorder %s19, 0
    %p109 = por %p107, %p108
    %s110 = ssub.s32 %s13, %s20
    %p111 = scmp.eq.s32.totalorder %s110, 0
    %s113 = sadd.s32 %s112, 1
    %s114 = scalar_select %p111, %s112, %s113
    %p117 = pneg %p111
    %p118 = scmp.eq.s32.totalorder %s13, 1
    %p119 = por %p117, %p118
    %p120 = scmp.ne.s32.totalorder %s112, %s115
    %p121 = scmp.eq.s32.totalorder %s13, 0
    %p122 = por %p120, %p121
    %p123 = scmp.ne.s32.totalorder %s112, %s115
    %p124 = scmp.eq.s32.totalorder %s18, 1
    %p125 = por %p123, %p124
    %p126 = scmp.ne.s32.totalorder %s115, %s116
    %p127 = scmp.eq.s32.totalorder %s18, 0
    %p128 = por %p126, %p127
    %p129 = scmp.ne.s32.totalorder %s115, %s116
    %p130 = scmp.eq.s32.totalorder %s19, 1
    %p131 = por %p129, %p130
    %p133 = scmp.ne.s32.totalorder %s116, %s132
    %p134 = scmp.eq.s32.totalorder %s19, 0
    %p135 = por %p133, %p134
    %s136 = ssub.s32 %s13, %s20
    %p137 = scmp.eq.s32.totalorder %s136, 0
    %s139 = sadd.s32 %s138, 1
    %s140 = scalar_select %p137, %s138, %s139
    %p143 = pneg %p137
    %p144 = scmp.eq.s32.totalorder %s13, 1
    %p145 = por %p143, %p144
    %p146 = scmp.ne.s32.totalorder %s138, %s141
    %p147 = scmp.eq.s32.totalorder %s13, 0
    %p148 = por %p146, %p147
    %p149 = scmp.ne.s32.totalorder %s138, %s141
    %p150 = scmp.eq.s32.totalorder %s18, 1
    %p151 = por %p149, %p150
    %p152 = scmp.ne.s32.totalorder %s141, %s142
    %p153 = scmp.eq.s32.totalorder %s18, 0
    %p154 = por %p152, %p153
    %p155 = scmp.ne.s32.totalorder %s141, %s142
    %p156 = scmp.eq.s32.totalorder %s19, 1
    %p157 = por %p155, %p156
    %p159 = scmp.ne.s32.totalorder %s142, %s158
    %p160 = scmp.eq.s32.totalorder %s19, 0
    %p161 = por %p159, %p160
    %s163 = sadd.s32 %s162, 1
    %p166 = scmp.eq.s32.totalorder %s13, 1
    %p167 = scmp.ne.s32.totalorder %s162, %s164
    %p168 = scmp.eq.s32.totalorder %s13, 0
    %p169 = por %p167, %p168
    %p170 = scmp.ne.s32.totalorder %s162, %s164
    %p171 = scmp.eq.s32.totalorder %s18, 1
    %p172 = por %p170, %p171
    %p173 = scmp.ne.s32.totalorder %s164, %s165
    %p174 = scmp.eq.s32.totalorder %s18, 0
    %p175 = por %p173, %p174
    %p176 = scmp.ne.s32.totalorder %s164, %s165
    %p177 = scmp.eq.s32.totalorder %s19, 1
    %p178 = por %p176, %p177
    %p180 = scmp.ne.s32.totalorder %s165, %s179
    %p181 = scmp.eq.s32.totalorder %s19, 0
    %p182 = por %p180, %p181
    %s183 = ssub.s32 %s13, %s20
    %p184 = scmp.eq.s32.totalorder %s183, 0
    %s186 = sadd.s32 %s185, 1
    %s187 = scalar_select %p184, %s185, %s186
    %p190 = pneg %p184
    %p191 = scmp.eq.s32.totalorder %s13, 1
    %p192 = por %p190, %p191
    %p193 = scmp.ne.s32.totalorder %s185, %s188
    %p194 = scmp.eq.s32.totalorder %s13, 0
    %p195 = por %p193, %p194
    %p196 = scmp.ne.s32.totalorder %s185, %s188
    %p197 = scmp.eq.s32.totalorder %s18, 1
    %p198 = por %p196, %p197
    %p199 = scmp.ne.s32.totalorder %s188, %s189
    %p200 = scmp.eq.s32.totalorder %s18, 0
    %p201 = por %p199, %p200
    %p202 = scmp.ne.s32.totalorder %s188, %s189
    %p203 = scmp.eq.s32.totalorder %s19, 1
    %p204 = por %p202, %p203
    %p206 = scmp.ne.s32.totalorder %s189, %s205
    %p207 = scmp.eq.s32.totalorder %s19, 0
    %p208 = por %p206, %p207
    %p209 = scmp.le.s32.totalorder 1, %s13
    %p210 = scmp.lt.s32.totalorder %s13, 3
    %p211 = pnand %p209, %p210
    %p212 = pneg %p211
    // Predicated region
    $region9: #{gsynthesis_forward.11} parent=5 // pred_check
      _
    $region10: #{gsynthesis_forward.11} parent=5 // pred_check_branch
      %214 = sbr.rel (%p211) target = $region12
    $region11: #{gsynthesis_forward.11} parent=5 // pred_region
      %s215 = ssub.s32 %s13, 1
      // Predicated region
      $region13: #{gsynthesis_forward.11} parent=11 // pred_check
        %p216 = pneg %p60
      $region14: #{gsynthesis_forward.11} parent=11 // pred_check_branch
        %218 = sbr.rel (%p216) target = $region16
      $region15: #{gsynthesis_forward.11} parent=11 // pred_region
        _
      $region16: #{gsynthesis_forward.11} parent=11 // pred_fallthru
        _
      // Predicated region
      $region17: #{gsynthesis_forward.11} parent=11 // pred_check
        %p219 = pneg %p81
      $region18: #{gsynthesis_forward.11} parent=11 // pred_check_branch
        %221 = sbr.rel (%p219) target = $region20
      $region19: #{gsynthesis_forward.11} parent=11 // pred_region
        _
      $region20: #{gsynthesis_forward.11} parent=11 // pred_fallthru
        _
      // Predicated region
      $region21: #{gsynthesis_forward.11} parent=11 // pred_check
        %p222 = pneg %p102
      $region22: #{gsynthesis_forward.11} parent=11 // pred_check_branch
        %224 = sbr.rel (%p222) target = $region24
      $region23: #{gsynthesis_forward.11} parent=11 // pred_region
        _
      $region24: #{gsynthesis_forward.11} parent=11 // pred_fallthru
        _
      // Predicated region
      $region25: #{gsynthesis_forward.11} parent=11 // pred_check
        %p225 = pneg %p175
      $region26: #{gsynthesis_forward.11} parent=11 // pred_check_branch
        %227 = sbr.rel (%p225) target = $region28
      $region27: #{gsynthesis_forward.11} parent=11 // pred_region
        _
      $region28: #{gsynthesis_forward.11} parent=11 // pred_fallthru
        _
    $region12: #{gsynthesis_forward.11} parent=5 // pred_fallthru
      _
    %p228 = scmp.lt.s32.totalorder %s13, 2
    // Predicated region
    $region29: #{gsynthesis_forward.11} parent=5 // pred_check
      %p229 = pneg %p228
    $region30: #{gsynthesis_forward.11} parent=5 // pred_check_branch
      %231 = sbr.rel (%p229) target = $region32
    $region31: #{gsynthesis_forward.11} parent=5 // pred_region
      // Predicated region
      $region33: #{gsynthesis_forward.11} parent=31 // pred_check
        %p232 = pneg %p33
      $region34: #{gsynthesis_forward.11} parent=31 // pred_check_branch
        %234 = sbr.rel (%p232) target = $region36
      $region35: #{gsynthesis_forward.11} parent=31 // pred_region
        %p235 = scmp.lt.s32.totalorder %s13, 1
        %s236 = scalar_select %p235, %s13, 1
        %s237 = smul.addr %s236, 36
        %s238 = smul.addr %s237, 4
        %s239 = scalar_lea.vmem %s0, %s238
      $region36: #{gsynthesis_forward.11} parent=31 // pred_fallthru
        _
      // Predicated region
      $region37: #{gsynthesis_forward.11} parent=31 // pred_check
        %p240 = pneg %p122
      $region38: #{gsynthesis_forward.11} parent=31 // pred_check_branch
        %242 = sbr.rel (%p240) target = $region40
      $region39: #{gsynthesis_forward.11} parent=31 // pred_region
        %p243 = scmp.lt.s32.totalorder %s13, 1
        %s244 = scalar_select %p243, %s13, 1
        %s245 = scalar_lea.vmem %s4, %s244
      $region40: #{gsynthesis_forward.11} parent=31 // pred_fallthru
        _
      // Predicated region
      $region41: #{gsynthesis_forward.11} parent=31 // pred_check
        %p246 = pneg %p148
      $region42: #{gsynthesis_forward.11} parent=31 // pred_check_branch
        %248 = sbr.rel (%p246) target = $region44
      $region43: #{gsynthesis_forward.11} parent=31 // pred_region
        %p249 = scmp.lt.s32.totalorder %s13, 1
        %s250 = scalar_select %p249, %s13, 1
        %s251 = smul.addr %s250, 36
        %s252 = smul.addr %s251, 8
        %s253 = scalar_lea.vmem %s5, %s252
      $region44: #{gsynthesis_forward.11} parent=31 // pred_fallthru
        _
    $region32: #{gsynthesis_forward.11} parent=5 // pred_fallthru
      _
    %p254 = scmp.le.s32.totalorder 1, %s13
    %p255 = scmp.lt.s32.totalorder %s13, 3
    %p256 = pnand %p254, %p255
    %p257 = pneg %p256
    // Predicated region
    $region45: #{gsynthesis_forward.11} parent=5 // pred_check
      _
    $region46: #{gsynthesis_forward.11} parent=5 // pred_check_branch
      %259 = sbr.rel (%p256) target = $region48
    $region47: #{gsynthesis_forward.11} parent=5 // pred_region
      %s260 = ssub.s32 %s13, 1
      %p261 = scmp.lt.s32.totalorder %s18, 1
      %s262 = scalar_select %p261, %s18, 1
      %s263 = smul.addr %s262, 36
      %s264 = smul.addr %s263, 4
      %s265 = scalar_lea.vmem %s0, %s264
      %p266 = pneg %p39
      %p267 = pneg %p36
      %p268 = pneg %p60
      %p269 = pneg %p57
      %p270 = pneg %p81
      %p271 = pneg %p78
      %p272 = pneg %p102
      %p273 = pneg %p99
      %p274 = scmp.lt.s32.totalorder %s18, 1
      %s275 = scalar_select %p274, %s18, 1
      %s276 = scalar_lea.vmem %s4, %s275
      %p277 = pneg %p128
      %p278 = pneg %p125
      %p279 = scmp.lt.s32.totalorder %s18, 1
      %s280 = scalar_select %p279, %s18, 1
      %s281 = smul.addr %s280, 36
      %s282 = smul.addr %s281, 8
      %s283 = scalar_lea.vmem %s5, %s282
      %p284 = pneg %p154
      %p285 = pneg %p151
      %p286 = pneg %p175
      %p287 = pneg %p172
      %p288 = pneg %p201
      %p289 = pneg %p198
      %p290 = scmp.lt.s32.totalorder %s18, 1
      %s291 = scalar_select %p290, %s18, 1
      %s292 = smul.addr %s291, 36
      %s293 = smul.addr %s292, 4
      %s294 = scalar_lea.vmem %s7, %s293
      %p295 = scmp.lt.s32.totalorder %s18, 1
      %s296 = scalar_select %p295, %s18, 1
      %s297 = smul.addr %s296, 36
      %s298 = smul.addr %s297, 4
      %s299 = scalar_lea.vmem %s0, %s298
      %p300 = scmp.lt.s32.totalorder %s18, 1
      %s301 = scalar_select %p300, %s18, 1
      %s302 = scalar_lea.vmem %s4, %s301
      %p303 = scmp.lt.s32.totalorder %s18, 1
      %s304 = scalar_select %p303, %s18, 1
      %s305 = smul.addr %s304, 36
      %s306 = smul.addr %s305, 8
      %s307 = scalar_lea.vmem %s5, %s306
      %p308 = scmp.lt.s32.totalorder %s18, 1
      %s309 = scalar_select %p308, %s18, 1
      %s310 = smul.addr %s309, 36
      %s311 = smul.addr %s310, 4
      %s312 = scalar_lea.vmem %s7, %s311
      %vm314 = vcmask 257024
      %315 = vst.msk [vmem:[#allocation2] sm:$0xf] %vm314, 0
      %316 = vst.msk [vmem:[#allocation2 + $0x4] sm:$0xf] %vm314, 0
      %317 = vst.msk [vmem:[#allocation2 + $0x8] sm:$0xf] %vm314, 0
      %318 = vst.msk [vmem:[#allocation2 + $0xc] sm:$0xf] %vm314, 0
      %319 = vst.msk [vmem:[#allocation2 + $0x10] sm:$0xf] %vm314, 0
      %320 = vst.msk [vmem:[#allocation2 + $0x14] sm:$0xf] %vm314, 0
      %321 = vst.msk [vmem:[#allocation2 + $0x18] sm:$0xf] %vm314, 0
      %322 = vst.msk [vmem:[#allocation2 + $0x1c] sm:$0xf] %vm314, 0
      %323 = vst.msk [vmem:[#allocation2 + $0x20] sm:$0xf] %vm314, 0
      %324 = vst.msk [vmem:[#allocation2 + $0x24] sm:$0xf] %vm314, 0
      %325 = vst.msk [vmem:[#allocation2 + $0x28] sm:$0xf] %vm314, 0
      %326 = vst.msk [vmem:[#allocation2 + $0x2c] sm:$0xf] %vm314, 0
      %327 = vst.msk [vmem:[#allocation2 + $0x30] sm:$0xf] %vm314, 0
      %328 = vst.msk [vmem:[#allocation2 + $0x34] sm:$0xf] %vm314, 0
      %329 = vst.msk [vmem:[#allocation2 + $0x38] sm:$0xf] %vm314, 0
      %330 = vst.msk [vmem:[#allocation2 + $0x3c] sm:$0xf] %vm314, 0
      %331 = vst.msk [vmem:[#allocation2 + $0x40] sm:$0xf] %vm314, 0
      %332 = vst.msk [vmem:[#allocation2 + $0x44] sm:$0xf] %vm314, 0
      %333 = vst.msk [vmem:[#allocation2 + $0x48] sm:$0xf] %vm314, 0
      %334 = vst.msk [vmem:[#allocation2 + $0x4c] sm:$0xf] %vm314, 0
      %335 = vst.msk [vmem:[#allocation2 + $0x50] sm:$0xf] %vm314, 0
      %336 = vst.msk [vmem:[#allocation2 + $0x54] sm:$0xf] %vm314, 0
      %337 = vst.msk [vmem:[#allocation2 + $0x58] sm:$0xf] %vm314, 0
      %338 = vst.msk [vmem:[#allocation2 + $0x5c] sm:$0xf] %vm314, 0
      %339 = vst.msk [vmem:[#allocation2 + $0x60] sm:$0xf] %vm314, 0
      %340 = vst.msk [vmem:[#allocation2 + $0x64] sm:$0xf] %vm314, 0
      %341 = vst.msk [vmem:[#allocation2 + $0x68] sm:$0xf] %vm314, 0
      %342 = vst.msk [vmem:[#allocation2 + $0x6c] sm:$0xf] %vm314, 0
      %343 = vst.msk [vmem:[#allocation2 + $0x70] sm:$0xf] %vm314, 0
      %344 = vst.msk [vmem:[#allocation2 + $0x74] sm:$0xf] %vm314, 0
      %345 = vst.msk [vmem:[#allocation2 + $0x78] sm:$0xf] %vm314, 0
      %346 = vst.msk [vmem:[#allocation2 + $0x7c] sm:$0xf] %vm314, 0
      %347 = vst.msk [vmem:[#allocation2 + $0x80] sm:$0xf] %vm314, 0
      %348 = vst.msk [vmem:[#allocation2 + $0x84] sm:$0xf] %vm314, 0
      %349 = vst.msk [vmem:[#allocation2 + $0x88] sm:$0xf] %vm314, 0
      %350 = vst.msk [vmem:[#allocation2 + $0x8c] sm:$0xf] %vm314, 0
      %351 = vst.msk [vmem:[#allocation2 + $0x90] sm:$0xf] %vm314, 0
      %352 = vst.msk [vmem:[#allocation2 + $0x94] sm:$0xf] %vm314, 0
      %353 = vst.msk [vmem:[#allocation2 + $0x98] sm:$0xf] %vm314, 0
      %354 = vst.msk [vmem:[#allocation2 + $0x9c] sm:$0xf] %vm314, 0
      %355 = vst.msk [vmem:[#allocation2 + $0xa0] sm:$0xf] %vm314, 0
      %356 = vst.msk [vmem:[#allocation2 + $0xa4] sm:$0xf] %vm314, 0
      %vm357 = vcmask 256000
      %358 = vst.msk [vmem:[#allocation2 + $0xa8] sm:$0x7] %vm357, 0
      %v359 = vld [vmem:[%s299] sm:$0xf]
      %v360 = vld [vmem:[%s299 + $0x4] sm:$0xf]
      %v361 = vld [vmem:[%s299 + $0x8] sm:$0xf]
      %v362 = vld [vmem:[%s299 + $0xc] sm:$0xf]
      %v363 = vld [vmem:[%s299 + $0x10] sm:$0xf]
      %v364 = vld [vmem:[%s299 + $0x14] sm:$0xf]
      %v365 = vld [vmem:[%s299 + $0x18] sm:$0xf]
      %v366 = vld [vmem:[%s299 + $0x1c] sm:$0xf]
      %v367 = vld [vmem:[%s299 + $0x20] sm:$0xf]
      %v368 = vld [vmem:[%s299 + $0x24] sm:$0xf]
      %v369 = vld [vmem:[%s299 + $0x28] sm:$0xf]
      %v370 = vld [vmem:[%s299 + $0x2c] sm:$0xf]
      %v371 = vld [vmem:[%s299 + $0x30] sm:$0xf]
      %v372 = vld [vmem:[%s299 + $0x34] sm:$0xf]
      %v373 = vld [vmem:[%s299 + $0x38] sm:$0xf]
      %v374 = vld [vmem:[%s299 + $0x3c] sm:$0xf]
      %v375 = vld [vmem:[%s299 + $0x40] sm:$0xf]
      %v376 = vld [vmem:[%s299 + $0x44] sm:$0xf]
      %v377 = vld [vmem:[%s299 + $0x48] sm:$0xf]
      %v378 = vld [vmem:[%s299 + $0x4c] sm:$0xf]
      %v379 = vld [vmem:[%s299 + $0x50] sm:$0xf]
      %v380 = vld [vmem:[%s299 + $0x54] sm:$0xf]
      %v381 = vld [vmem:[%s299 + $0x58] sm:$0xf]
      %v382 = vld [vmem:[%s299 + $0x5c] sm:$0xf]
      %v383 = vld [vmem:[%s299 + $0x60] sm:$0xf]
      %v384 = vld [vmem:[%s299 + $0x64] sm:$0xf]
      %v385 = vld [vmem:[%s299 + $0x68] sm:$0xf]
      %v386 = vld [vmem:[%s299 + $0x6c] sm:$0xf]
      %v387 = vld [vmem:[%s299 + $0x70] sm:$0xf]
      %v388 = vld [vmem:[%s299 + $0x74] sm:$0xf]
      %v389 = vld [vmem:[%s299 + $0x78] sm:$0xf]
      %v390 = vld [vmem:[%s299 + $0x7c] sm:$0xf]
      %v391 = vld [vmem:[%s299 + $0x80] sm:$0xf]
      %v392 = vld [vmem:[%s299 + $0x84] sm:$0xf]
      %v393 = vld [vmem:[%s299 + $0x88] sm:$0xf]
      %v394 = vld [vmem:[%s299 + $0x8c] sm:$0xf]
      %vm395 = vsmask.f32 1280
      %vm396 = vsmask.f32 5392
      %vm397 = vmor %vm395, %vm396
      %v399 = vshrl.u32 %v359, 16
      %v401 = vrot.slane %v399, 6
      %v402 = vshll.u32 %v359, 16
      %v404 = vrot.slane %v402, 7
      %v405 = vor.u32 %v401, %v404
      %v406 = vrot.slane %v405, 4
      %v408 = vshrl.u32 %v360, 16
      %v410 = vrot.slane %v408, 6
      %v411 = vshll.u32 %v360, 16
      %v413 = vrot.slane %v411, 7
      %v414 = vor.u32 %v410, %v413
      %v415 = vsel %vm397, %v406, %v414
      %v416 = vrot.slane %v414, 4
      %v418 = vshrl.u32 %v361, 16
      %v420 = vrot.slane %v418, 6
      %v421 = vshll.u32 %v361, 16
      %v423 = vrot.slane %v421, 7
      %v424 = vor.u32 %v420, %v423
      %v425 = vsel %vm397, %v416, %v424
      %v426 = vrot.slane %v424, 4
      %v428 = vshrl.u32 %v362, 16
      %v430 = vrot.slane %v428, 6
      %v431 = vshll.u32 %v362, 16
      %v433 = vrot.slane %v431, 7
      %v434 = vor.u32 %v430, %v433
      %v435 = vsel %vm397, %v426, %v434
      %v436 = vrot.slane %v434, 4
      %v438 = vshrl.u32 %v363, 16
      %v440 = vrot.slane %v438, 6
      %v441 = vshll.u32 %v363, 16
      %v443 = vrot.slane %v441, 7
      %v444 = vor.u32 %v440, %v443
      %v445 = vsel %vm397, %v436, %v444
      %v446 = vrot.slane %v444, 4
      %v448 = vshrl.u32 %v364, 16
      %v450 = vrot.slane %v448, 6
      %v451 = vshll.u32 %v364, 16
      %v453 = vrot.slane %v451, 7
      %v454 = vor.u32 %v450, %v453
      %v455 = vsel %vm397, %v446, %v454
      %v456 = vrot.slane %v454, 4
      %v458 = vshrl.u32 %v365, 16
      %v460 = vrot.slane %v458, 6
      %v461 = vshll.u32 %v365, 16
      %v463 = vrot.slane %v461, 7
      %v464 = vor.u32 %v460, %v463
      %v465 = vsel %vm397, %v456, %v464
      %v466 = vrot.slane %v464, 4
      %v468 = vshrl.u32 %v366, 16
      %v470 = vrot.slane %v468, 6
      %v471 = vshll.u32 %v366, 16
      %v473 = vrot.slane %v471, 7
      %v474 = vor.u32 %v470, %v473
      %v475 = vsel %vm397, %v466, %v474
      %v476 = vrot.slane %v474, 4
      %v478 = vshrl.u32 %v367, 16
      %v480 = vrot.slane %v478, 6
      %v481 = vshll.u32 %v367, 16
      %v483 = vrot.slane %v481, 7
      %v484 = vor.u32 %v480, %v483
      %v485 = vsel %vm397, %v476, %v484
      %v486 = vrot.slane %v484, 4
      %v488 = vshrl.u32 %v368, 16
      %v490 = vrot.slane %v488, 6
      %v491 = vshll.u32 %v368, 16
      %v493 = vrot.slane %v491, 7
      %v494 = vor.u32 %v490, %v493
      %v495 = vsel %vm397, %v486, %v494
      %v496 = vrot.slane %v494, 4
      %v498 = vshrl.u32 %v369, 16
      %v500 = vrot.slane %v498, 6
      %v501 = vshll.u32 %v369, 16
      %v503 = vrot.slane %v501, 7
      %v504 = vor.u32 %v500, %v503
      %v505 = vsel %vm397, %v496, %v504
      %v506 = vrot.slane %v504, 4
      %v508 = vshrl.u32 %v370, 16
      %v510 = vrot.slane %v508, 6
      %v511 = vshll.u32 %v370, 16
      %v513 = vrot.slane %v511, 7
      %v514 = vor.u32 %v510, %v513
      %v515 = vsel %vm397, %v506, %v514
      %v516 = vrot.slane %v514, 4
      %v518 = vshrl.u32 %v371, 16
      %v520 = vrot.slane %v518, 6
      %v521 = vshll.u32 %v371, 16
      %v523 = vrot.slane %v521, 7
      %v524 = vor.u32 %v520, %v523
      %v525 = vsel %vm397, %v516, %v524
      %v526 = vrot.slane %v524, 4
      %v528 = vshrl.u32 %v372, 16
      %v530 = vrot.slane %v528, 6
      %v531 = vshll.u32 %v372, 16
      %v533 = vrot.slane %v531, 7
      %v534 = vor.u32 %v530, %v533
      %v535 = vsel %vm397, %v526, %v534
      %v536 = vrot.slane %v534, 4
      %v538 = vshrl.u32 %v373, 16
      %v540 = vrot.slane %v538, 6
      %v541 = vshll.u32 %v373, 16
      %v543 = vrot.slane %v541, 7
      %v544 = vor.u32 %v540, %v543
      %v545 = vsel %vm397, %v536, %v544
      %v546 = vrot.slane %v544, 4
      %v548 = vshrl.u32 %v374, 16
      %v550 = vrot.slane %v548, 6
      %v551 = vshll.u32 %v374, 16
      %v553 = vrot.slane %v551, 7
      %v554 = vor.u32 %v550, %v553
      %v555 = vsel %vm397, %v546, %v554
      %v556 = vrot.slane %v554, 4
      %v558 = vshrl.u32 %v375, 16
      %v560 = vrot.slane %v558, 6
      %v561 = vshll.u32 %v375, 16
      %v563 = vrot.slane %v561, 7
      %v564 = vor.u32 %v560, %v563
      %v565 = vsel %vm397, %v556, %v564
      %v566 = vrot.slane %v564, 4
      %v568 = vshrl.u32 %v376, 16
      %v570 = vrot.slane %v568, 6
      %v571 = vshll.u32 %v376, 16
      %v573 = vrot.slane %v571, 7
      %v574 = vor.u32 %v570, %v573
      %v575 = vsel %vm397, %v566, %v574
      %v576 = vrot.slane %v574, 4
      %v578 = vshrl.u32 %v377, 16
      %v580 = vrot.slane %v578, 6
      %v581 = vshll.u32 %v377, 16
      %v583 = vrot.slane %v581, 7
      %v584 = vor.u32 %v580, %v583
      %v585 = vsel %vm397, %v576, %v584
      %v586 = vrot.slane %v584, 4
      %v588 = vshrl.u32 %v378, 16
      %v590 = vrot.slane %v588, 6
      %v591 = vshll.u32 %v378, 16
      %v593 = vrot.slane %v591, 7
      %v594 = vor.u32 %v590, %v593
      %v595 = vsel %vm397, %v586, %v594
      %v596 = vrot.slane %v594, 4
      %v598 = vshrl.u32 %v379, 16
      %v600 = vrot.slane %v598, 6
      %v601 = vshll.u32 %v379, 16
      %v603 = vrot.slane %v601, 7
      %v604 = vor.u32 %v600, %v603
      %v605 = vsel %vm397, %v596, %v604
      %v606 = vrot.slane %v604, 4
      %v608 = vshrl.u32 %v380, 16
      %v610 = vrot.slane %v608, 6
      %v611 = vshll.u32 %v380, 16
      %v613 = vrot.slane %v611, 7
      %v614 = vor.u32 %v610, %v613
      %v615 = vsel %vm397, %v606, %v614
      %v616 = vrot.slane %v614, 4
      %v618 = vshrl.u32 %v381, 16
      %v620 = vrot.slane %v618, 6
      %v621 = vshll.u32 %v381, 16
      %v623 = vrot.slane %v621, 7
      %v624 = vor.u32 %v620, %v623
      %v625 = vsel %vm397, %v616, %v624
      %v626 = vrot.slane %v624, 4
      %v628 = vshrl.u32 %v382, 16
      %v630 = vrot.slane %v628, 6
      %v631 = vshll.u32 %v382, 16
      %v633 = vrot.slane %v631, 7
      %v634 = vor.u32 %v630, %v633
      %v635 = vsel %vm397, %v626, %v634
      %v636 = vrot.slane %v634, 4
      %v638 = vshrl.u32 %v383, 16
      %v640 = vrot.slane %v638, 6
      %v641 = vshll.u32 %v383, 16
      %v643 = vrot.slane %v641, 7
      %v644 = vor.u32 %v640, %v643
      %v645 = vsel %vm397, %v636, %v644
      %v646 = vrot.slane %v644, 4
      %v648 = vshrl.u32 %v384, 16
      %v650 = vrot.slane %v648, 6
      %v651 = vshll.u32 %v384, 16
      %v653 = vrot.slane %v651, 7
      %v654 = vor.u32 %v650, %v653
      %v655 = vsel %vm397, %v646, %v654
      %v656 = vrot.slane %v654, 4
      %v658 = vshrl.u32 %v385, 16
      %v660 = vrot.slane %v658, 6
      %v661 = vshll.u32 %v385, 16
      %v663 = vrot.slane %v661, 7
      %v664 = vor.u32 %v660, %v663
      %v665 = vsel %vm397, %v656, %v664
      %v666 = vrot.slane %v664, 4
      %v668 = vshrl.u32 %v386, 16
      %v670 = vrot.slane %v668, 6
      %v671 = vshll.u32 %v386, 16
      %v673 = vrot.slane %v671, 7
      %v674 = vor.u32 %v670, %v673
      %v675 = vsel %vm397, %v666, %v674
      %v676 = vrot.slane %v674, 4
      %v678 = vshrl.u32 %v387, 16
      %v680 = vrot.slane %v678, 6
      %v681 = vshll.u32 %v387, 16
      %v683 = vrot.slane %v681, 7
      %v684 = vor.u32 %v680, %v683
      %v685 = vsel %vm397, %v676, %v684
      %v686 = vrot.slane %v684, 4
      %v688 = vshrl.u32 %v388, 16
      %v690 = vrot.slane %v688, 6
      %v691 = vshll.u32 %v388, 16
      %v693 = vrot.slane %v691, 7
      %v694 = vor.u32 %v690, %v693
      %v695 = vsel %vm397, %v686, %v694
      %v696 = vrot.slane %v694, 4
      %v698 = vshrl.u32 %v389, 16
      %v700 = vrot.slane %v698, 6
      %v701 = vshll.u32 %v389, 16
      %v703 = vrot.slane %v701, 7
      %v704 = vor.u32 %v700, %v703
      %v705 = vsel %vm397, %v696, %v704
      %v706 = vrot.slane %v704, 4
      %v708 = vshrl.u32 %v390, 16
      %v710 = vrot.slane %v708, 6
      %v711 = vshll.u32 %v390, 16
      %v713 = vrot.slane %v711, 7
      %v714 = vor.u32 %v710, %v713
      %v715 = vsel %vm397, %v706, %v714
      %v716 = vrot.slane %v714, 4
      %v718 = vshrl.u32 %v391, 16
      %v720 = vrot.slane %v718, 6
      %v721 = vshll.u32 %v391, 16
      %v723 = vrot.slane %v721, 7
      %v724 = vor.u32 %v720, %v723
      %v725 = vsel %vm397, %v716, %v724
      %v726 = vrot.slane %v724, 4
      %v728 = vshrl.u32 %v392, 16
      %v730 = vrot.slane %v728, 6
      %v731 = vshll.u32 %v392, 16
      %v733 = vrot.slane %v731, 7
      %v734 = vor.u32 %v730, %v733
      %v735 = vsel %vm397, %v726, %v734
      %v736 = vrot.slane %v734, 4
      %v738 = vshrl.u32 %v393, 16
      %v740 = vrot.slane %v738, 6
      %v741 = vshll.u32 %v393, 16
      %v743 = vrot.slane %v741, 7
      %v744 = vor.u32 %v740, %v743
      %v745 = vsel %vm397, %v736, %v744
      %v746 = vrot.slane %v744, 4
      %v748 = vshrl.u32 %v394, 16
      %v750 = vrot.slane %v748, 6
      %v751 = vshll.u32 %v394, 16
      %v753 = vrot.slane %v751, 7
      %v754 = vor.u32 %v750, %v753
      %v755 = vsel %vm397, %v746, %v754
      %v756 = vrot.slane %v754, 4
      %vm794 = vcmask 257025
      %vm795 = vsmask.f32 7942
      %vm796 = vmand %vm794, %vm795
      %v797 = vld [vmem:[#allocation2 + $0x8] sm:$0xe]
      %v798 = vsel %vm796, %v405, %v797
      %799 = vst [vmem:[#allocation2 + $0x8] sm:$0xe] %v798
      %800 = vst.msk [vmem:[#allocation2 + $0xc] sm:$0xf] %vm314, %v415
      %801 = vst.msk [vmem:[#allocation2 + $0x10] sm:$0xf] %vm314, %v425
      %802 = vst.msk [vmem:[#allocation2 + $0x14] sm:$0xf] %vm314, %v435
      %803 = vst.msk [vmem:[#allocation2 + $0x18] sm:$0xf] %vm314, %v445
      %804 = vst.msk [vmem:[#allocation2 + $0x1c] sm:$0xf] %vm314, %v455
      %805 = vst.msk [vmem:[#allocation2 + $0x20] sm:$0xf] %vm314, %v465
      %806 = vst.msk [vmem:[#allocation2 + $0x24] sm:$0xf] %vm314, %v475
      %807 = vst.msk [vmem:[#allocation2 + $0x28] sm:$0xf] %vm314, %v485
      %808 = vst.msk [vmem:[#allocation2 + $0x2c] sm:$0xf] %vm314, %v495
      %809 = vst.msk [vmem:[#allocation2 + $0x30] sm:$0xf] %vm314, %v505
      %810 = vst.msk [vmem:[#allocation2 + $0x34] sm:$0xf] %vm314, %v515
      %811 = vst.msk [vmem:[#allocation2 + $0x38] sm:$0xf] %vm314, %v525
      %812 = vst.msk [vmem:[#allocation2 + $0x3c] sm:$0xf] %vm314, %v535
      %813 = vst.msk [vmem:[#allocation2 + $0x40] sm:$0xf] %vm314, %v545
      %814 = vst.msk [vmem:[#allocation2 + $0x44] sm:$0xf] %vm314, %v555
      %815 = vst.msk [vmem:[#allocation2 + $0x48] sm:$0xf] %vm314, %v565
      %816 = vst.msk [vmem:[#allocation2 + $0x4c] sm:$0xf] %vm314, %v575
      %817 = vst.msk [vmem:[#allocation2 + $0x50] sm:$0xf] %vm314, %v585
      %818 = vst.msk [vmem:[#allocation2 + $0x54] sm:$0xf] %vm314, %v595
      %819 = vst.msk [vmem:[#allocation2 + $0x58] sm:$0xf] %vm314, %v605
      %820 = vst.msk [vmem:[#allocation2 + $0x5c] sm:$0xf] %vm314, %v615
      %821 = vst.msk [vmem:[#allocation2 + $0x60] sm:$0xf] %vm314, %v625
      %822 = vst.msk [vmem:[#allocation2 + $0x64] sm:$0xf] %vm314, %v635
      %823 = vst.msk [vmem:[#allocation2 + $0x68] sm:$0xf] %vm314, %v645
      %824 = vst.msk [vmem:[#allocation2 + $0x6c] sm:$0xf] %vm314, %v655
      %825 = vst.msk [vmem:[#allocation2 + $0x70] sm:$0xf] %vm314, %v665
      %826 = vst.msk [vmem:[#allocation2 + $0x74] sm:$0xf] %vm314, %v675
      %827 = vst.msk [vmem:[#allocation2 + $0x78] sm:$0xf] %vm314, %v685
      %828 = vst.msk [vmem:[#allocation2 + $0x7c] sm:$0xf] %vm314, %v695
      %829 = vst.msk [vmem:[#allocation2 + $0x80] sm:$0xf] %vm314, %v705
      %830 = vst.msk [vmem:[#allocation2 + $0x84] sm:$0xf] %vm314, %v715
      %831 = vst.msk [vmem:[#allocation2 + $0x88] sm:$0xf] %vm314, %v725
      %832 = vst.msk [vmem:[#allocation2 + $0x8c] sm:$0xf] %vm314, %v735
      %833 = vst.msk [vmem:[#allocation2 + $0x90] sm:$0xf] %vm314, %v745
      %834 = vst.msk [vmem:[#allocation2 + $0x94] sm:$0xf] %vm314, %v755
      %vm835 = vcmask 254976
      %vm836 = vmand %vm835, %vm395
      %v837 = vld [vmem:[#allocation2 + $0x98] sm:$0x3]
      %v838 = vsel %vm836, %v756, %v837
      %839 = vst [vmem:[#allocation2 + $0x98] sm:$0x3] %v838
      %v840 = vld [vmem:[#allocation2] sm:$0xf]
      %v841 = vld [vmem:[#allocation2 + $0x4] sm:$0xf]
      %v842 = vld [vmem:[#allocation2 + $0x8] sm:$0xf]
      %v843 = vld [vmem:[#allocation2 + $0xc] sm:$0xf]
      %v844 = vld [vmem:[#allocation2 + $0x10] sm:$0xf]
      %v845 = vld [vmem:[#allocation2 + $0x14] sm:$0xf]
      %v846 = vld [vmem:[#allocation2 + $0x18] sm:$0xf]
      %v847 = vld [vmem:[#allocation2 + $0x1c] sm:$0xf]
      %v848 = vld [vmem:[#allocation2 + $0x20] sm:$0xf]
      %v849 = vld [vmem:[#allocation2 + $0x24] sm:$0xf]
      %v850 = vld [vmem:[#allocation2 + $0x28] sm:$0xf]
      %v851 = vld [vmem:[#allocation2 + $0x2c] sm:$0xf]
      %v852 = vld [vmem:[#allocation2 + $0x30] sm:$0xf]
      %v853 = vld [vmem:[#allocation2 + $0x34] sm:$0xf]
      %v854 = vld [vmem:[#allocation2 + $0x38] sm:$0xf]
      %v855 = vld [vmem:[#allocation2 + $0x3c] sm:$0xf]
      %v856 = vld [vmem:[#allocation2 + $0x40] sm:$0xf]
      %v857 = vld [vmem:[#allocation2 + $0x44] sm:$0xf]
      %v858 = vld [vmem:[#allocation2 + $0x48] sm:$0xf]
      %v859 = vld [vmem:[#allocation2 + $0x4c] sm:$0xf]
      %v860 = vld [vmem:[#allocation2 + $0x50] sm:$0xf]
      %v861 = vld [vmem:[#allocation2 + $0x54] sm:$0xf]
      %v862 = vld [vmem:[#allocation2 + $0x58] sm:$0xf]
      %v863 = vld [vmem:[#allocation2 + $0x5c] sm:$0xf]
      %v864 = vld [vmem:[#allocation2 + $0x60] sm:$0xf]
      %v865 = vld [vmem:[#allocation2 + $0x64] sm:$0xf]
      %v866 = vld [vmem:[#allocation2 + $0x68] sm:$0xf]
      %v867 = vld [vmem:[#allocation2 + $0x6c] sm:$0xf]
      %v868 = vld [vmem:[#allocation2 + $0x70] sm:$0xf]
      %v869 = vld [vmem:[#allocation2 + $0x74] sm:$0xf]
      %v870 = vld [vmem:[#allocation2 + $0x78] sm:$0xf]
      %v871 = vld [vmem:[#allocation2 + $0x7c] sm:$0xf]
      %v872 = vld [vmem:[#allocation2 + $0x80] sm:$0xf]
      %v873 = vld [vmem:[#allocation2 + $0x84] sm:$0xf]
      %v874 = vld [vmem:[#allocation2 + $0x88] sm:$0xf]
      %v875 = vld [vmem:[#allocation2 + $0x8c] sm:$0xf]
      %v876 = vld [vmem:[%s1] sm:$0xf]
      %v877 = vld [vmem:[%s1 + $0x4] sm:$0xf]
      %v878 = vld [vmem:[%s1 + $0x8] sm:$0xf]
      %v879 = vld [vmem:[%s1 + $0xc] sm:$0xf]
      %v880 = vld [vmem:[#allocation2 + $0x90] sm:$0x1]
      %s881 = scalar_lea.vmem %s1, 16
      %v882 = vld [vmem:[%s881] sm:$0xf]
      %v883 = vld [vmem:[%s881 + $0x4] sm:$0xf]
      %v884 = vld [vmem:[%s881 + $0x8] sm:$0xf]
      %v885 = vld [vmem:[%s881 + $0xc] sm:$0xf]
      %v923 = vunpack.c.l.b16 %v840
      %v924 = vunpack.c.l.b16 %v841
      %v925 = vunpack.c.l.b16 %v842
      %v926 = vunpack.c.l.b16 %v843
      %v927 = vunpack.c.l.b16 %v844
      %v928 = vunpack.c.l.b16 %v845
      %v929 = vunpack.c.l.b16 %v846
      %v930 = vunpack.c.l.b16 %v847
      %v931 = vunpack.c.l.b16 %v848
      %v932 = vunpack.c.l.b16 %v849
      %v933 = vunpack.c.l.b16 %v850
      %v934 = vunpack.c.l.b16 %v851
      %v935 = vunpack.c.l.b16 %v852
      %v936 = vunpack.c.l.b16 %v853
      %v937 = vunpack.c.l.b16 %v854
      %v938 = vunpack.c.l.b16 %v855
      %v939 = vunpack.c.l.b16 %v856
      %v940 = vunpack.c.l.b16 %v857
      %v941 = vunpack.c.l.b16 %v858
      %v942 = vunpack.c.l.b16 %v859
      %v943 = vunpack.c.l.b16 %v860
      %v944 = vunpack.c.l.b16 %v861
      %v945 = vunpack.c.l.b16 %v862
      %v946 = vunpack.c.l.b16 %v863
      %v947 = vunpack.c.l.b16 %v864
      %v948 = vunpack.c.l.b16 %v865
      %v949 = vunpack.c.l.b16 %v866
      %v950 = vunpack.c.l.b16 %v867
      %v951 = vunpack.c.l.b16 %v868
      %v952 = vunpack.c.l.b16 %v869
      %v953 = vunpack.c.l.b16 %v870
      %v954 = vunpack.c.l.b16 %v871
      %v955 = vunpack.c.l.b16 %v872
      %v956 = vunpack.c.l.b16 %v873
      %v957 = vunpack.c.l.b16 %v874
      %v958 = vunpack.c.l.b16 %v875
      %v959 = vunpack.c.l.b16 %v880
      %v960 = vpack.c.b16 %v924, %v923
      %v961 = vpack.c.b16 %v926, %v925
      %v962 = vpack.c.b16 %v928, %v927
      %v963 = vpack.c.b16 %v930, %v929
      %v964 = vpack.c.b16 %v932, %v931
      %v965 = vpack.c.b16 %v934, %v933
      %v966 = vpack.c.b16 %v936, %v935
      %v967 = vpack.c.b16 %v938, %v937
      %v968 = vpack.c.b16 %v940, %v939
      %v969 = vpack.c.b16 %v942, %v941
      %v970 = vpack.c.b16 %v944, %v943
      %v971 = vpack.c.b16 %v946, %v945
      %v972 = vpack.c.b16 %v948, %v947
      %v973 = vpack.c.b16 %v950, %v949
      %v974 = vpack.c.b16 %v952, %v951
      %v975 = vpack.c.b16 %v954, %v953
      %v976 = vpack.c.b16 %v956, %v955
      %v977 = vpack.c.b16 %v958, %v957
      %v978 = vpack.c.b16 %v959, %v959
      %vm979 = vsmask.f32 7424
      %v981 = vshrl.u32 %v960, 16
      %v983 = vshll.u32 %v960, 16
      %v985 = vrot.slane %v983, 1
      %v986 = vor.u32 %v981, %v985
      %v988 = vshll.u32 %v961, 16
      %v990 = vrot.slane %v988, 1
      %v991 = vsel %vm979, %v986, %v990
      %v992 = vshrl.u32 %v961, 16
      %v994 = vor.u32 %v992, %v990
      %v996 = vshll.u32 %v962, 16
      %v998 = vrot.slane %v996, 1
      %v999 = vsel %vm979, %v994, %v998
      %v1000 = vshrl.u32 %v962, 16
      %v1002 = vor.u32 %v1000, %v998
      %v1004 = vshll.u32 %v963, 16
      %v1006 = vrot.slane %v1004, 1
      %v1007 = vsel %vm979, %v1002, %v1006
      %v1008 = vshrl.u32 %v963, 16
      %v1010 = vor.u32 %v1008, %v1006
      %v1012 = vshll.u32 %v964, 16
      %v1014 = vrot.slane %v1012, 1
      %v1015 = vsel %vm979, %v1010, %v1014
      %v1016 = vshrl.u32 %v964, 16
      %v1018 = vor.u32 %v1016, %v1014
      %v1020 = vshll.u32 %v965, 16
      %v1022 = vrot.slane %v1020, 1
      %v1023 = vsel %vm979, %v1018, %v1022
      %v1024 = vshrl.u32 %v965, 16
      %v1026 = vor.u32 %v1024, %v1022
      %v1028 = vshll.u32 %v966, 16
      %v1030 = vrot.slane %v1028, 1
      %v1031 = vsel %vm979, %v1026, %v1030
      %v1032 = vshrl.u32 %v966, 16
      %v1034 = vor.u32 %v1032, %v1030
      %v1036 = vshll.u32 %v967, 16
      %v1038 = vrot.slane %v1036, 1
      %v1039 = vsel %vm979, %v1034, %v1038
      %v1040 = vshrl.u32 %v967, 16
      %v1042 = vor.u32 %v1040, %v1038
      %v1044 = vshll.u32 %v968, 16
      %v1046 = vrot.slane %v1044, 1
      %v1047 = vsel %vm979, %v1042, %v1046
      %v1048 = vshrl.u32 %v968, 16
      %v1050 = vor.u32 %v1048, %v1046
      %v1052 = vshll.u32 %v969, 16
      %v1054 = vrot.slane %v1052, 1
      %v1055 = vsel %vm979, %v1050, %v1054
      %v1056 = vshrl.u32 %v969, 16
      %v1058 = vor.u32 %v1056, %v1054
      %v1060 = vshll.u32 %v970, 16
      %v1062 = vrot.slane %v1060, 1
      %v1063 = vsel %vm979, %v1058, %v1062
      %v1064 = vshrl.u32 %v970, 16
      %v1066 = vor.u32 %v1064, %v1062
      %v1068 = vshll.u32 %v971, 16
      %v1070 = vrot.slane %v1068, 1
      %v1071 = vsel %vm979, %v1066, %v1070
      %v1072 = vshrl.u32 %v971, 16
      %v1074 = vor.u32 %v1072, %v1070
      %v1076 = vshll.u32 %v972, 16
      %v1078 = vrot.slane %v1076, 1
      %v1079 = vsel %vm979, %v1074, %v1078
      %v1080 = vshrl.u32 %v972, 16
      %v1082 = vor.u32 %v1080, %v1078
      %v1084 = vshll.u32 %v973, 16
      %v1086 = vrot.slane %v1084, 1
      %v1087 = vsel %vm979, %v1082, %v1086
      %v1088 = vshrl.u32 %v973, 16
      %v1090 = vor.u32 %v1088, %v1086
      %v1092 = vshll.u32 %v974, 16
      %v1094 = vrot.slane %v1092, 1
      %v1095 = vsel %vm979, %v1090, %v1094
      %v1096 = vshrl.u32 %v974, 16
      %v1098 = vor.u32 %v1096, %v1094
      %v1100 = vshll.u32 %v975, 16
      %v1102 = vrot.slane %v1100, 1
      %v1103 = vsel %vm979, %v1098, %v1102
      %v1104 = vshrl.u32 %v975, 16
      %v1106 = vor.u32 %v1104, %v1102
      %v1108 = vshll.u32 %v976, 16
      %v1110 = vrot.slane %v1108, 1
      %v1111 = vsel %vm979, %v1106, %v1110
      %v1112 = vshrl.u32 %v976, 16
      %v1114 = vor.u32 %v1112, %v1110
      %v1116 = vshll.u32 %v977, 16
      %v1118 = vrot.slane %v1116, 1
      %v1119 = vsel %vm979, %v1114, %v1118
      %v1120 = vshrl.u32 %v977, 16
      %v1122 = vor.u32 %v1120, %v1118
      %v1124 = vshll.u32 %v978, 16
      %v1126 = vrot.slane %v1124, 1
      %v1127 = vsel %vm979, %v1122, %v1126
      %v1132 = vunpack.c.l.b16 %v882
      %v1133 = vunpack.c.l.b16 %v883
      %v1134 = vunpack.c.l.b16 %v884
      %v1135 = vunpack.c.l.b16 %v885
      %v1136 = vpack.c.b16 %v1133, %v1132
      %v1137 = vpack.c.b16 %v1135, %v1134
      %vm1140 = vcmask 261120
      %v1142 = vsel %vm1140, %v991, 0
      %v1145 = vsel %vm1140, %v999, 0
      %v1148 = vsel %vm1140, %v1007, 0
      %v1151 = vsel %vm1140, %v1015, 0
      %v1154 = vsel %vm1140, %v1023, 0
      %v1157 = vsel %vm1140, %v1031, 0
      %v1160 = vsel %vm1140, %v1039, 0
      %v1163 = vsel %vm1140, %v1047, 0
      %v1166 = vsel %vm1140, %v1055, 0
      %v1169 = vsel %vm1140, %v1063, 0
      %v1172 = vsel %vm1140, %v1071, 0
      %v1175 = vsel %vm1140, %v1079, 0
      %v1178 = vsel %vm1140, %v1087, 0
      %v1181 = vsel %vm1140, %v1095, 0
      %v1184 = vsel %vm1140, %v1103, 0
      %v1187 = vsel %vm1140, %v1111, 0
      %v1190 = vsel %vm1140, %v1119, 0
      %v1193 = vsel %vm1140, %v1127, 0
      %1195 = vmatpush.bf16.msra.mxu0 0
      %1196 = vmatpush.bf16.msra.mxu0 0
      %1197 = vmatpush.bf16.msra.mxu0 0
      %1198 = vmatpush.bf16.msra.mxu0 0
      %1199 = vmatpush.bf16.msra.mxu0 0
      %1200 = vmatpush.bf16.msra.mxu0 0
      %1201 = vmatpush.bf16.msra.mxu0 %v1137
      %1202 = vmatpush.bf16.msra.mxu0 %v1136
      %1203 = vmatmul.bf16.gmra.mxu0 %v1142
      %v1204 = vpop.f32.mrf.mxu0
      %v1205 = vadd.f32 0.0, %v1204
      %v1206 = vpop.f32.mrf.mxu0
      %v1207 = vadd.f32 0.0, %v1206
      %1208 = vmatmul.bf16.gmra.mxu0 %v1145
      %v1209 = vpop.f32.mrf.mxu0
      %v1210 = vadd.f32 0.0, %v1209
      %v1211 = vpop.f32.mrf.mxu0
      %v1212 = vadd.f32 0.0, %v1211
      %1213 = vmatmul.bf16.gmra.mxu0 %v1148
      %v1214 = vpop.f32.mrf.mxu0
      %v1215 = vadd.f32 0.0, %v1214
      %v1216 = vpop.f32.mrf.mxu0
      %v1217 = vadd.f32 0.0, %v1216
      %1218 = vmatmul.bf16.gmra.mxu0 %v1151
      %v1219 = vpop.f32.mrf.mxu0
      %v1220 = vadd.f32 0.0, %v1219
      %v1221 = vpop.f32.mrf.mxu0
      %v1222 = vadd.f32 0.0, %v1221
      %1223 = vmatmul.bf16.gmra.mxu0 %v1154
      %v1224 = vpop.f32.mrf.mxu0
      %v1225 = vadd.f32 0.0, %v1224
      %v1226 = vpop.f32.mrf.mxu0
      %v1227 = vadd.f32 0.0, %v1226
      %1228 = vmatmul.bf16.gmra.mxu0 %v1157
      %v1229 = vpop.f32.mrf.mxu0
      %v1230 = vadd.f32 0.0, %v1229
      %v1231 = vpop.f32.mrf.mxu0
      %v1232 = vadd.f32 0.0, %v1231
      %1233 = vmatmul.bf16.gmra.mxu0 %v1160
      %v1234 = vpop.f32.mrf.mxu0
      %v1235 = vadd.f32 0.0, %v1234
      %v1236 = vpop.f32.mrf.mxu0
      %v1237 = vadd.f32 0.0, %v1236
      %1238 = vmatmul.bf16.gmra.mxu0 %v1163
      %v1239 = vpop.f32.mrf.mxu0
      %v1240 = vadd.f32 0.0, %v1239
      %v1241 = vpop.f32.mrf.mxu0
      %v1242 = vadd.f32 0.0, %v1241
      %1243 = vmatmul.bf16.gmra.mxu0 %v1166
      %v1244 = vpop.f32.mrf.mxu0
      %v1245 = vadd.f32 0.0, %v1244
      %v1246 = vpop.f32.mrf.mxu0
      %v1247 = vadd.f32 0.0, %v1246
      %1248 = vmatmul.bf16.gmra.mxu0 %v1169
      %v1249 = vpop.f32.mrf.mxu0
      %v1250 = vadd.f32 0.0, %v1249
      %v1251 = vpop.f32.mrf.mxu0
      %v1252 = vadd.f32 0.0, %v1251
      %1253 = vmatmul.bf16.gmra.mxu0 %v1172
      %v1254 = vpop.f32.mrf.mxu0
      %v1255 = vadd.f32 0.0, %v1254
      %v1256 = vpop.f32.mrf.mxu0
      %v1257 = vadd.f32 0.0, %v1256
      %1258 = vmatmul.bf16.gmra.mxu0 %v1175
      %v1259 = vpop.f32.mrf.mxu0
      %v1260 = vadd.f32 0.0, %v1259
      %v1261 = vpop.f32.mrf.mxu0
      %v1262 = vadd.f32 0.0, %v1261
      %1263 = vmatmul.bf16.gmra.mxu0 %v1178
      %v1264 = vpop.f32.mrf.mxu0
      %v1265 = vadd.f32 0.0, %v1264
      %v1266 = vpop.f32.mrf.mxu0
      %v1267 = vadd.f32 0.0, %v1266
      %1268 = vmatmul.bf16.gmra.mxu0 %v1181
      %v1269 = vpop.f32.mrf.mxu0
      %v1270 = vadd.f32 0.0, %v1269
      %v1271 = vpop.f32.mrf.mxu0
      %v1272 = vadd.f32 0.0, %v1271
      %1273 = vmatmul.bf16.gmra.mxu0 %v1184
      %v1274 = vpop.f32.mrf.mxu0
      %v1275 = vadd.f32 0.0, %v1274
      %v1276 = vpop.f32.mrf.mxu0
      %v1277 = vadd.f32 0.0, %v1276
      %1278 = vmatmul.bf16.gmra.mxu0 %v1187
      %v1279 = vpop.f32.mrf.mxu0
      %v1280 = vadd.f32 0.0, %v1279
      %v1281 = vpop.f32.mrf.mxu0
      %v1282 = vadd.f32 0.0, %v1281
      %1283 = vmatmul.bf16.gmra.mxu0 %v1190
      %v1284 = vpop.f32.mrf.mxu0
      %v1285 = vadd.f32 0.0, %v1284
      %v1286 = vpop.f32.mrf.mxu0
      %v1287 = vadd.f32 0.0, %v1286
      %1288 = vmatmul.bf16.gmra.mxu0 %v1193
      %v1289 = vpop.f32.mrf.mxu0
      %v1290 = vadd.f32 0.0, %v1289
      %v1291 = vpop.f32.mrf.mxu0
      %v1292 = vadd.f32 0.0, %v1291
      %1293 = vdwg.mxu0
      %v1298 = vunpack.c.l.b16 %v876
      %v1299 = vunpack.c.l.b16 %v877
      %v1300 = vunpack.c.l.b16 %v878
      %v1301 = vunpack.c.l.b16 %v879
      %v1302 = vpack.c.b16 %v1299, %v1298
      %v1303 = vpack.c.b16 %v1301, %v1300
      %v1306 = vsel %vm1140, %v960, 0
      %v1308 = vsel %vm1140, %v961, 0
      %v1310 = vsel %vm1140, %v962, 0
      %v1312 = vsel %vm1140, %v963, 0
      %v1314 = vsel %vm1140, %v964, 0
      %v1316 = vsel %vm1140, %v965, 0
      %v1318 = vsel %vm1140, %v966, 0
      %v1320 = vsel %vm1140, %v967, 0
      %v1322 = vsel %vm1140, %v968, 0
      %v1324 = vsel %vm1140, %v969, 0
      %v1326 = vsel %vm1140, %v970, 0
      %v1328 = vsel %vm1140, %v971, 0
      %v1330 = vsel %vm1140, %v972, 0
      %v1332 = vsel %vm1140, %v973, 0
      %v1334 = vsel %vm1140, %v974, 0
      %v1336 = vsel %vm1140, %v975, 0
      %v1338 = vsel %vm1140, %v976, 0
      %v1340 = vsel %vm1140, %v977, 0
      %1342 = vmatpush.bf16.msra.mxu0 0
      %1343 = vmatpush.bf16.msra.mxu0 0
      %1344 = vmatpush.bf16.msra.mxu0 0
      %1345 = vmatpush.bf16.msra.mxu0 0
      %1346 = vmatpush.bf16.msra.mxu0 0
      %1347 = vmatpush.bf16.msra.mxu0 0
      %1348 = vmatpush.bf16.msra.mxu0 %v1303
      %1349 = vmatpush.bf16.msra.mxu0 %v1302
      %1350 = vmatmul.bf16.gmra.mxu0 %v1306
      %v1351 = vpop.f32.mrf.mxu0
      %v1352 = vadd.f32 %v1205, %v1351
      %v1353 = vpop.f32.mrf.mxu0
      %v1354 = vadd.f32 %v1207, %v1353
      %1355 = vmatmul.bf16.gmra.mxu0 %v1308
      %v1356 = vpop.f32.mrf.mxu0
      %v1357 = vadd.f32 %v1210, %v1356
      %v1358 = vpop.f32.mrf.mxu0
      %v1359 = vadd.f32 %v1212, %v1358
      %1360 = vmatmul.bf16.gmra.mxu0 %v1310
      %v1361 = vpop.f32.mrf.mxu0
      %v1362 = vadd.f32 %v1215, %v1361
      %v1363 = vpop.f32.mrf.mxu0
      %v1364 = vadd.f32 %v1217, %v1363
      %1365 = vmatmul.bf16.gmra.mxu0 %v1312
      %v1366 = vpop.f32.mrf.mxu0
      %v1367 = vadd.f32 %v1220, %v1366
      %v1368 = vpop.f32.mrf.mxu0
      %v1369 = vadd.f32 %v1222, %v1368
      %1370 = vmatmul.bf16.gmra.mxu0 %v1314
      %v1371 = vpop.f32.mrf.mxu0
      %v1372 = vadd.f32 %v1225, %v1371
      %v1373 = vpop.f32.mrf.mxu0
      %v1374 = vadd.f32 %v1227, %v1373
      %1375 = vmatmul.bf16.gmra.mxu0 %v1316
      %v1376 = vpop.f32.mrf.mxu0
      %v1377 = vadd.f32 %v1230, %v1376
      %v1378 = vpop.f32.mrf.mxu0
      %v1379 = vadd.f32 %v1232, %v1378
      %1380 = vmatmul.bf16.gmra.mxu0 %v1318
      %v1381 = vpop.f32.mrf.mxu0
      %v1382 = vadd.f32 %v1235, %v1381
      %v1383 = vpop.f32.mrf.mxu0
      %v1384 = vadd.f32 %v1237, %v1383
      %1385 = vmatmul.bf16.gmra.mxu0 %v1320
      %v1386 = vpop.f32.mrf.mxu0
      %v1387 = vadd.f32 %v1240, %v1386
      %v1388 = vpop.f32.mrf.mxu0
      %v1389 = vadd.f32 %v1242, %v1388
      %1390 = vmatmul.bf16.gmra.mxu0 %v1322
      %v1391 = vpop.f32.mrf.mxu0
      %v1392 = vadd.f32 %v1245, %v1391
      %v1393 = vpop.f32.mrf.mxu0
      %v1394 = vadd.f32 %v1247, %v1393
      %1395 = vmatmul.bf16.gmra.mxu0 %v1324
      %v1396 = vpop.f32.mrf.mxu0
      %v1397 = vadd.f32 %v1250, %v1396
      %v1398 = vpop.f32.mrf.mxu0
      %v1399 = vadd.f32 %v1252, %v1398
      %1400 = vmatmul.bf16.gmra.mxu0 %v1326
      %v1401 = vpop.f32.mrf.mxu0
      %v1402 = vadd.f32 %v1255, %v1401
      %v1403 = vpop.f32.mrf.mxu0
      %v1404 = vadd.f32 %v1257, %v1403
      %1405 = vmatmul.bf16.gmra.mxu0 %v1328
      %v1406 = vpop.f32.mrf.mxu0
      %v1407 = vadd.f32 %v1260, %v1406
      %v1408 = vpop.f32.mrf.mxu0
      %v1409 = vadd.f32 %v1262, %v1408
      %1410 = vmatmul.bf16.gmra.mxu0 %v1330
      %v1411 = vpop.f32.mrf.mxu0
      %v1412 = vadd.f32 %v1265, %v1411
      %v1413 = vpop.f32.mrf.mxu0
      %v1414 = vadd.f32 %v1267, %v1413
      %1415 = vmatmul.bf16.gmra.mxu0 %v1332
      %v1416 = vpop.f32.mrf.mxu0
      %v1417 = vadd.f32 %v1270, %v1416
      %v1418 = vpop.f32.mrf.mxu0
      %v1419 = vadd.f32 %v1272, %v1418
      %1420 = vmatmul.bf16.gmra.mxu0 %v1334
      %v1421 = vpop.f32.mrf.mxu0
      %v1422 = vadd.f32 %v1275, %v1421
      %v1423 = vpop.f32.mrf.mxu0
      %v1424 = vadd.f32 %v1277, %v1423
      %1425 = vmatmul.bf16.gmra.mxu0 %v1336
      %v1426 = vpop.f32.mrf.mxu0
      %v1427 = vadd.f32 %v1280, %v1426
      %v1428 = vpop.f32.mrf.mxu0
      %v1429 = vadd.f32 %v1282, %v1428
      %1430 = vmatmul.bf16.gmra.mxu0 %v1338
      %v1431 = vpop.f32.mrf.mxu0
      %v1432 = vadd.f32 %v1285, %v1431
      %v1433 = vpop.f32.mrf.mxu0
      %v1434 = vadd.f32 %v1287, %v1433
      %1435 = vmatmul.bf16.gmra.mxu0 %v1340
      %v1436 = vpop.f32.mrf.mxu0
      %v1437 = vadd.f32 %v1290, %v1436
      %v1438 = vpop.f32.mrf.mxu0
      %v1439 = vadd.f32 %v1292, %v1438
      %1440 = vdwg.mxu0
      %v1441 = vld [vmem:[#allocation2] sm:$0xe]
      %s1442 = scalar_lea.vmem %s1, 32
      %v1443 = vld [vmem:[%s1442] sm:$0xf]
      %v1444 = vld [vmem:[%s1442 + $0x4] sm:$0xf]
      %v1445 = vld [vmem:[%s1442 + $0x8] sm:$0xf]
      %v1446 = vld [vmem:[%s1442 + $0xc] sm:$0xf]
      %v1448 = vunpack.c.l.b16 %v1441
      %v1449 = vpack.c.b16 %v924, %v1448
      %vm1450 = vcmask 1046528
      %v1451 = vrot.slane %v1449, 1
      %v1452 = vrot.slane %v961, 1
      %v1453 = vsel %vm1450, %v1451, %v1452
      %v1454 = vrot.slane %v962, 1
      %v1455 = vsel %vm1450, %v1452, %v1454
      %v1456 = vrot.slane %v963, 1
      %v1457 = vsel %vm1450, %v1454, %v1456
      %v1458 = vrot.slane %v964, 1
      %v1459 = vsel %vm1450, %v1456, %v1458
      %v1460 = vrot.slane %v965, 1
      %v1461 = vsel %vm1450, %v1458, %v1460
      %v1462 = vrot.slane %v966, 1
      %v1463 = vsel %vm1450, %v1460, %v1462
      %v1464 = vrot.slane %v967, 1
      %v1465 = vsel %vm1450, %v1462, %v1464
      %v1466 = vrot.slane %v968, 1
      %v1467 = vsel %vm1450, %v1464, %v1466
      %v1468 = vrot.slane %v969, 1
      %v1469 = vsel %vm1450, %v1466, %v1468
      %v1470 = vrot.slane %v970, 1
      %v1471 = vsel %vm1450, %v1468, %v1470
      %v1472 = vrot.slane %v971, 1
      %v1473 = vsel %vm1450, %v1470, %v1472
      %v1474 = vrot.slane %v972, 1
      %v1475 = vsel %vm1450, %v1472, %v1474
      %v1476 = vrot.slane %v973, 1
      %v1477 = vsel %vm1450, %v1474, %v1476
      %v1478 = vrot.slane %v974, 1
      %v1479 = vsel %vm1450, %v1476, %v1478
      %v1480 = vrot.slane %v975, 1
      %v1481 = vsel %vm1450, %v1478, %v1480
      %v1482 = vrot.slane %v976, 1
      %v1483 = vsel %vm1450, %v1480, %v1482
      %v1484 = vrot.slane %v977, 1
      %v1485 = vsel %vm1450, %v1482, %v1484
      %v1486 = vrot.slane %v978, 1
      %v1487 = vsel %vm1450, %v1484, %v1486
      %v1492 = vunpack.c.l.b16 %v1443
      %v1493 = vunpack.c.l.b16 %v1444
      %v1494 = vunpack.c.l.b16 %v1445
      %v1495 = vunpack.c.l.b16 %v1446
      %v1496 = vpack.c.b16 %v1493, %v1492
      %v1497 = vpack.c.b16 %v1495, %v1494
      %v1501 = vsel %vm1140, %v1453, 0
      %v1504 = vsel %vm1140, %v1455, 0
      %v1507 = vsel %vm1140, %v1457, 0
      %v1510 = vsel %vm1140, %v1459, 0
      %v1513 = vsel %vm1140, %v1461, 0
      %v1516 = vsel %vm1140, %v1463, 0
      %v1519 = vsel %vm1140, %v1465, 0
      %v1522 = vsel %vm1140, %v1467, 0
      %v1525 = vsel %vm1140, %v1469, 0
      %v1528 = vsel %vm1140, %v1471, 0
      %v1531 = vsel %vm1140, %v1473, 0
      %v1534 = vsel %vm1140, %v1475, 0
      %v1537 = vsel %vm1140, %v1477, 0
      %v1540 = vsel %vm1140, %v1479, 0
      %v1543 = vsel %vm1140, %v1481, 0
      %v1546 = vsel %vm1140, %v1483, 0
      %v1549 = vsel %vm1140, %v1485, 0
      %v1552 = vsel %vm1140, %v1487, 0
      %1554 = vmatpush.bf16.msra.mxu0 0
      %1555 = vmatpush.bf16.msra.mxu0 0
      %1556 = vmatpush.bf16.msra.mxu0 0
      %1557 = vmatpush.bf16.msra.mxu0 0
      %1558 = vmatpush.bf16.msra.mxu0 0
      %1559 = vmatpush.bf16.msra.mxu0 0
      %1560 = vmatpush.bf16.msra.mxu0 %v1497
      %1561 = vmatpush.bf16.msra.mxu0 %v1496
      %1562 = vmatmul.bf16.gmra.mxu0 %v1501
      %v1563 = vpop.f32.mrf.mxu0
      %v1564 = vadd.f32 0.0, %v1563
      %v1565 = vpop.f32.mrf.mxu0
      %v1566 = vadd.f32 0.0, %v1565
      %1567 = vmatmul.bf16.gmra.mxu0 %v1504
      %v1568 = vpop.f32.mrf.mxu0
      %v1569 = vadd.f32 0.0, %v1568
      %v1570 = vpop.f32.mrf.mxu0
      %v1571 = vadd.f32 0.0, %v1570
      %1572 = vmatmul.bf16.gmra.mxu0 %v1507
      %v1573 = vpop.f32.mrf.mxu0
      %v1574 = vadd.f32 0.0, %v1573
      %v1575 = vpop.f32.mrf.mxu0
      %v1576 = vadd.f32 0.0, %v1575
      %1577 = vmatmul.bf16.gmra.mxu0 %v1510
      %v1578 = vpop.f32.mrf.mxu0
      %v1579 = vadd.f32 0.0, %v1578
      %v1580 = vpop.f32.mrf.mxu0
      %v1581 = vadd.f32 0.0, %v1580
      %1582 = vmatmul.bf16.gmra.mxu0 %v1513
      %v1583 = vpop.f32.mrf.mxu0
      %v1584 = vadd.f32 0.0, %v1583
      %v1585 = vpop.f32.mrf.mxu0
      %v1586 = vadd.f32 0.0, %v1585
      %1587 = vmatmul.bf16.gmra.mxu0 %v1516
      %v1588 = vpop.f32.mrf.mxu0
      %v1589 = vadd.f32 0.0, %v1588
      %v1590 = vpop.f32.mrf.mxu0
      %v1591 = vadd.f32 0.0, %v1590
      %1592 = vmatmul.bf16.gmra.mxu0 %v1519
      %v1593 = vpop.f32.mrf.mxu0
      %v1594 = vadd.f32 0.0, %v1593
      %v1595 = vpop.f32.mrf.mxu0
      %v1596 = vadd.f32 0.0, %v1595
      %1597 = vmatmul.bf16.gmra.mxu0 %v1522
      %v1598 = vpop.f32.mrf.mxu0
      %v1599 = vadd.f32 0.0, %v1598
      %v1600 = vpop.f32.mrf.mxu0
      %v1601 = vadd.f32 0.0, %v1600
      %1602 = vmatmul.bf16.gmra.mxu0 %v1525
      %v1603 = vpop.f32.mrf.mxu0
      %v1604 = vadd.f32 0.0, %v1603
      %v1605 = vpop.f32.mrf.mxu0
      %v1606 = vadd.f32 0.0, %v1605
      %1607 = vmatmul.bf16.gmra.mxu0 %v1528
      %v1608 = vpop.f32.mrf.mxu0
      %v1609 = vadd.f32 0.0, %v1608
      %v1610 = vpop.f32.mrf.mxu0
      %v1611 = vadd.f32 0.0, %v1610
      %1612 = vmatmul.bf16.gmra.mxu0 %v1531
      %v1613 = vpop.f32.mrf.mxu0
      %v1614 = vadd.f32 0.0, %v1613
      %v1615 = vpop.f32.mrf.mxu0
      %v1616 = vadd.f32 0.0, %v1615
      %1617 = vmatmul.bf16.gmra.mxu0 %v1534
      %v1618 = vpop.f32.mrf.mxu0
      %v1619 = vadd.f32 0.0, %v1618
      %v1620 = vpop.f32.mrf.mxu0
      %v1621 = vadd.f32 0.0, %v1620
      %1622 = vmatmul.bf16.gmra.mxu0 %v1537
      %v1623 = vpop.f32.mrf.mxu0
      %v1624 = vadd.f32 0.0, %v1623
      %v1625 = vpop.f32.mrf.mxu0
      %v1626 = vadd.f32 0.0, %v1625
      %1627 = vmatmul.bf16.gmra.mxu0 %v1540
      %v1628 = vpop.f32.mrf.mxu0
      %v1629 = vadd.f32 0.0, %v1628
      %v1630 = vpop.f32.mrf.mxu0
      %v1631 = vadd.f32 0.0, %v1630
      %1632 = vmatmul.bf16.gmra.mxu0 %v1543
      %v1633 = vpop.f32.mrf.mxu0
      %v1634 = vadd.f32 0.0, %v1633
      %v1635 = vpop.f32.mrf.mxu0
      %v1636 = vadd.f32 0.0, %v1635
      %1637 = vmatmul.bf16.gmra.mxu0 %v1546
      %v1638 = vpop.f32.mrf.mxu0
      %v1639 = vadd.f32 0.0, %v1638
      %v1640 = vpop.f32.mrf.mxu0
      %v1641 = vadd.f32 0.0, %v1640
      %1642 = vmatmul.bf16.gmra.mxu0 %v1549
      %v1643 = vpop.f32.mrf.mxu0
      %v1644 = vadd.f32 0.0, %v1643
      %v1645 = vpop.f32.mrf.mxu0
      %v1646 = vadd.f32 0.0, %v1645
      %1647 = vmatmul.bf16.gmra.mxu0 %v1552
      %v1648 = vpop.f32.mrf.mxu0
      %v1649 = vadd.f32 0.0, %v1648
      %v1650 = vpop.f32.mrf.mxu0
      %v1651 = vadd.f32 0.0, %v1650
      %1652 = vdwg.mxu0
      %v1653 = vadd.f32 %v1352, %v1564
      %v1654 = vadd.f32 %v1354, %v1566
      %v1655 = vadd.f32 %v1357, %v1569
      %v1656 = vadd.f32 %v1359, %v1571
      %v1657 = vadd.f32 %v1362, %v1574
      %v1658 = vadd.f32 %v1364, %v1576
      %v1659 = vadd.f32 %v1367, %v1579
      %v1660 = vadd.f32 %v1369, %v1581
      %v1661 = vadd.f32 %v1372, %v1584
      %v1662 = vadd.f32 %v1374, %v1586
      %v1663 = vadd.f32 %v1377, %v1589
      %v1664 = vadd.f32 %v1379, %v1591
      %v1665 = vadd.f32 %v1382, %v1594
      %v1666 = vadd.f32 %v1384, %v1596
      %v1667 = vadd.f32 %v1387, %v1599
      %v1668 = vadd.f32 %v1389, %v1601
      %v1669 = vadd.f32 %v1392, %v1604
      %v1670 = vadd.f32 %v1394, %v1606
      %v1671 = vadd.f32 %v1397, %v1609
      %v1672 = vadd.f32 %v1399, %v1611
      %v1673 = vadd.f32 %v1402, %v1614
      %v1674 = vadd.f32 %v1404, %v1616
      %v1675 = vadd.f32 %v1407, %v1619
      %v1676 = vadd.f32 %v1409, %v1621
      %v1677 = vadd.f32 %v1412, %v1624
      %v1678 = vadd.f32 %v1414, %v1626
      %v1679 = vadd.f32 %v1417, %v1629
      %v1680 = vadd.f32 %v1419, %v1631
      %v1681 = vadd.f32 %v1422, %v1634
      %v1682 = vadd.f32 %v1424, %v1636
      %v1683 = vadd.f32 %v1427, %v1639
      %v1684 = vadd.f32 %v1429, %v1641
      %v1685 = vadd.f32 %v1432, %v1644
      %v1686 = vadd.f32 %v1434, %v1646
      %v1687 = vadd.f32 %v1437, %v1649
      %v1688 = vadd.f32 %v1439, %v1651
      %v1689 = vld [vmem:[#allocation2 + $0x8] sm:$0xe]
      %v1690 = vld [vmem:[#allocation2 + $0xc] sm:$0xf]
      %v1691 = vld [vmem:[#allocation2 + $0x10] sm:$0xf]
      %v1692 = vld [vmem:[#allocation2 + $0x14] sm:$0xf]
      %v1693 = vld [vmem:[#allocation2 + $0x18] sm:$0xf]
      %v1694 = vld [vmem:[#allocation2 + $0x1c] sm:$0xf]
      %v1695 = vld [vmem:[#allocation2 + $0x20] sm:$0xf]
      %v1696 = vld [vmem:[#allocation2 + $0x24] sm:$0xf]
      %v1697 = vld [vmem:[#allocation2 + $0x28] sm:$0xf]
      %v1698 = vld [vmem:[#allocation2 + $0x2c] sm:$0xf]
      %v1699 = vld [vmem:[#allocation2 + $0x30] sm:$0xf]
      %v1700 = vld [vmem:[#allocation2 + $0x34] sm:$0xf]
      %v1701 = vld [vmem:[#allocation2 + $0x38] sm:$0xf]
      %v1702 = vld [vmem:[#allocation2 + $0x3c] sm:$0xf]
      %v1703 = vld [vmem:[#allocation2 + $0x40] sm:$0xf]
      %v1704 = vld [vmem:[#allocation2 + $0x44] sm:$0xf]
      %v1705 = vld [vmem:[#allocation2 + $0x48] sm:$0xf]
      %v1706 = vld [vmem:[#allocation2 + $0x4c] sm:$0xf]
      %v1707 = vld [vmem:[#allocation2 + $0x50] sm:$0xf]
      %v1708 = vld [vmem:[#allocation2 + $0x54] sm:$0xf]
      %v1709 = vld [vmem:[#allocation2 + $0x58] sm:$0xf]
      %v1710 = vld [vmem:[#allocation2 + $0x5c] sm:$0xf]
      %v1711 = vld [vmem:[#allocation2 + $0x60] sm:$0xf]
      %v1712 = vld [vmem:[#allocation2 + $0x64] sm:$0xf]
      %v1713 = vld [vmem:[#allocation2 + $0x68] sm:$0xf]
      %v1714 = vld [vmem:[#allocation2 + $0x6c] sm:$0xf]
      %v1715 = vld [vmem:[#allocation2 + $0x70] sm:$0xf]
      %v1716 = vld [vmem:[#allocation2 + $0x74] sm:$0xf]
      %v1717 = vld [vmem:[#allocation2 + $0x78] sm:$0xf]
      %v1718 = vld [vmem:[#allocation2 + $0x7c] sm:$0xf]
      %v1719 = vld [vmem:[#allocation2 + $0x80] sm:$0xf]
      %v1720 = vld [vmem:[#allocation2 + $0x84] sm:$0xf]
      %v1721 = vld [vmem:[#allocation2 + $0x88] sm:$0xf]
      %v1722 = vld [vmem:[#allocation2 + $0x8c] sm:$0xf]
      %v1723 = vld [vmem:[#allocation2 + $0x90] sm:$0xf]
      %v1724 = vld [vmem:[#allocation2 + $0x94] sm:$0xf]
      %v1725 = vld [vmem:[#allocation2 + $0x98] sm:$0x1]
      %s1726 = scalar_lea.vmem %s1, 48
      %v1727 = vld [vmem:[%s1726] sm:$0xf]
      %v1728 = vld [vmem:[%s1726 + $0x4] sm:$0xf]
      %v1729 = vld [vmem:[%s1726 + $0x8] sm:$0xf]
      %v1730 = vld [vmem:[%s1726 + $0xc] sm:$0xf]
      %v1768 = vunpack.c.l.b16 %v1689
      %v1769 = vunpack.c.l.b16 %v1690
      %v1770 = vunpack.c.l.b16 %v1691
      %v1771 = vunpack.c.l.b16 %v1692
      %v1772 = vunpack.c.l.b16 %v1693
      %v1773 = vunpack.c.l.b16 %v1694
      %v1774 = vunpack.c.l.b16 %v1695
      %v1775 = vunpack.c.l.b16 %v1696
      %v1776 = vunpack.c.l.b16 %v1697
      %v1777 = vunpack.c.l.b16 %v1698
      %v1778 = vunpack.c.l.b16 %v1699
      %v1779 = vunpack.c.l.b16 %v1700
      %v1780 = vunpack.c.l.b16 %v1701
      %v1781 = vunpack.c.l.b16 %v1702
      %v1782 = vunpack.c.l.b16 %v1703
      %v1783 = vunpack.c.l.b16 %v1704
      %v1784 = vunpack.c.l.b16 %v1705
      %v1785 = vunpack.c.l.b16 %v1706
      %v1786 = vunpack.c.l.b16 %v1707
      %v1787 = vunpack.c.l.b16 %v1708
      %v1788 = vunpack.c.l.b16 %v1709
      %v1789 = vunpack.c.l.b16 %v1710
      %v1790 = vunpack.c.l.b16 %v1711
      %v1791 = vunpack.c.l.b16 %v1712
      %v1792 = vunpack.c.l.b16 %v1713
      %v1793 = vunpack.c.l.b16 %v1714
      %v1794 = vunpack.c.l.b16 %v1715
      %v1795 = vunpack.c.l.b16 %v1716
      %v1796 = vunpack.c.l.b16 %v1717
      %v1797 = vunpack.c.l.b16 %v1718
      %v1798 = vunpack.c.l.b16 %v1719
      %v1799 = vunpack.c.l.b16 %v1720
      %v1800 = vunpack.c.l.b16 %v1721
      %v1801 = vunpack.c.l.b16 %v1722
      %v1802 = vunpack.c.l.b16 %v1723
      %v1803 = vunpack.c.l.b16 %v1724
      %v1804 = vunpack.c.l.b16 %v1725
      %v1805 = vpack.c.b16 %v1769, %v1768
      %v1806 = vpack.c.b16 %v1771, %v1770
      %v1807 = vpack.c.b16 %v1773, %v1772
      %v1808 = vpack.c.b16 %v1775, %v1774
      %v1809 = vpack.c.b16 %v1777, %v1776
      %v1810 = vpack.c.b16 %v1779, %v1778
      %v1811 = vpack.c.b16 %v1781, %v1780
      %v1812 = vpack.c.b16 %v1783, %v1782
      %v1813 = vpack.c.b16 %v1785, %v1784
      %v1814 = vpack.c.b16 %v1787, %v1786
      %v1815 = vpack.c.b16 %v1789, %v1788
      %v1816 = vpack.c.b16 %v1791, %v1790
      %v1817 = vpack.c.b16 %v1793, %v1792
      %v1818 = vpack.c.b16 %v1795, %v1794
      %v1819 = vpack.c.b16 %v1797, %v1796
      %v1820 = vpack.c.b16 %v1799, %v1798
      %v1821 = vpack.c.b16 %v1801, %v1800
      %v1822 = vpack.c.b16 %v1803, %v1802
      %v1823 = vpack.c.b16 %v1804, %v1804
      %v1824 = vrot.slane %v1805, 1
      %v1825 = vrot.slane %v1806, 1
      %v1826 = vsel %vm1450, %v1824, %v1825
      %v1827 = vrot.slane %v1807, 1
      %v1828 = vsel %vm1450, %v1825, %v1827
      %v1829 = vrot.slane %v1808, 1
      %v1830 = vsel %vm1450, %v1827, %v1829
      %v1831 = vrot.slane %v1809, 1
      %v1832 = vsel %vm1450, %v1829, %v1831
      %v1833 = vrot.slane %v1810, 1
      %v1834 = vsel %vm1450, %v1831, %v1833
      %v1835 = vrot.slane %v1811, 1
      %v1836 = vsel %vm1450, %v1833, %v1835
      %v1837 = vrot.slane %v1812, 1
      %v1838 = vsel %vm1450, %v1835, %v1837
      %v1839 = vrot.slane %v1813, 1
      %v1840 = vsel %vm1450, %v1837, %v1839
      %v1841 = vrot.slane %v1814, 1
      %v1842 = vsel %vm1450, %v1839, %v1841
      %v1843 = vrot.slane %v1815, 1
      %v1844 = vsel %vm1450, %v1841, %v1843
      %v1845 = vrot.slane %v1816, 1
      %v1846 = vsel %vm1450, %v1843, %v1845
      %v1847 = vrot.slane %v1817, 1
      %v1848 = vsel %vm1450, %v1845, %v1847
      %v1849 = vrot.slane %v1818, 1
      %v1850 = vsel %vm1450, %v1847, %v1849
      %v1851 = vrot.slane %v1819, 1
      %v1852 = vsel %vm1450, %v1849, %v1851
      %v1853 = vrot.slane %v1820, 1
      %v1854 = vsel %vm1450, %v1851, %v1853
      %v1855 = vrot.slane %v1821, 1
      %v1856 = vsel %vm1450, %v1853, %v1855
      %v1857 = vrot.slane %v1822, 1
      %v1858 = vsel %vm1450, %v1855, %v1857
      %v1859 = vrot.slane %v1823, 1
      %v1860 = vsel %vm1450, %v1857, %v1859
      %v1865 = vunpack.c.l.b16 %v1727
      %v1866 = vunpack.c.l.b16 %v1728
      %v1867 = vunpack.c.l.b16 %v1729
      %v1868 = vunpack.c.l.b16 %v1730
      %v1869 = vpack.c.b16 %v1866, %v1865
      %v1870 = vpack.c.b16 %v1868, %v1867
      %v1874 = vsel %vm1140, %v1826, 0
      %v1877 = vsel %vm1140, %v1828, 0
      %v1880 = vsel %vm1140, %v1830, 0
      %v1883 = vsel %vm1140, %v1832, 0
      %v1886 = vsel %vm1140, %v1834, 0
      %v1889 = vsel %vm1140, %v1836, 0
      %v1892 = vsel %vm1140, %v1838, 0
      %v1895 = vsel %vm1140, %v1840, 0
      %v1898 = vsel %vm1140, %v1842, 0
      %v1901 = vsel %vm1140, %v1844, 0
      %v1904 = vsel %vm1140, %v1846, 0
      %v1907 = vsel %vm1140, %v1848, 0
      %v1910 = vsel %vm1140, %v1850, 0
      %v1913 = vsel %vm1140, %v1852, 0
      %v1916 = vsel %vm1140, %v1854, 0
      %v1919 = vsel %vm1140, %v1856, 0
      %v1922 = vsel %vm1140, %v1858, 0
      %v1925 = vsel %vm1140, %v1860, 0
      %1927 = vmatpush.bf16.msra.mxu0 0
      %1928 = vmatpush.bf16.msra.mxu0 0
      %1929 = vmatpush.bf16.msra.mxu0 0
      %1930 = vmatpush.bf16.msra.mxu0 0
      %1931 = vmatpush.bf16.msra.mxu0 0
      %1932 = vmatpush.bf16.msra.mxu0 0
      %1933 = vmatpush.bf16.msra.mxu0 %v1870
      %1934 = vmatpush.bf16.msra.mxu0 %v1869
      %1935 = vmatmul.bf16.gmra.mxu0 %v1874
      %v1936 = vpop.f32.mrf.mxu0
      %v1937 = vadd.f32 0.0, %v1936
      %v1938 = vpop.f32.mrf.mxu0
      %v1939 = vadd.f32 0.0, %v1938
      %1940 = vmatmul.bf16.gmra.mxu0 %v1877
      %v1941 = vpop.f32.mrf.mxu0
      %v1942 = vadd.f32 0.0, %v1941
      %v1943 = vpop.f32.mrf.mxu0
      %v1944 = vadd.f32 0.0, %v1943
      %1945 = vmatmul.bf16.gmra.mxu0 %v1880
      %v1946 = vpop.f32.mrf.mxu0
      %v1947 = vadd.f32 0.0, %v1946
      %v1948 = vpop.f32.mrf.mxu0
      %v1949 = vadd.f32 0.0, %v1948
      %1950 = vmatmul.bf16.gmra.mxu0 %v1883
      %v1951 = vpop.f32.mrf.mxu0
      %v1952 = vadd.f32 0.0, %v1951
      %v1953 = vpop.f32.mrf.mxu0
      %v1954 = vadd.f32 0.0, %v1953
      %1955 = vmatmul.bf16.gmra.mxu0 %v1886
      %v1956 = vpop.f32.mrf.mxu0
      %v1957 = vadd.f32 0.0, %v1956
      %v1958 = vpop.f32.mrf.mxu0
      %v1959 = vadd.f32 0.0, %v1958
      %1960 = vmatmul.bf16.gmra.mxu0 %v1889
      %v1961 = vpop.f32.mrf.mxu0
      %v1962 = vadd.f32 0.0, %v1961
      %v1963 = vpop.f32.mrf.mxu0
      %v1964 = vadd.f32 0.0, %v1963
      %1965 = vmatmul.bf16.gmra.mxu0 %v1892
      %v1966 = vpop.f32.mrf.mxu0
      %v1967 = vadd.f32 0.0, %v1966
      %v1968 = vpop.f32.mrf.mxu0
      %v1969 = vadd.f32 0.0, %v1968
      %1970 = vmatmul.bf16.gmra.mxu0 %v1895
      %v1971 = vpop.f32.mrf.mxu0
      %v1972 = vadd.f32 0.0, %v1971
      %v1973 = vpop.f32.mrf.mxu0
      %v1974 = vadd.f32 0.0, %v1973
      %1975 = vmatmul.bf16.gmra.mxu0 %v1898
      %v1976 = vpop.f32.mrf.mxu0
      %v1977 = vadd.f32 0.0, %v1976
      %v1978 = vpop.f32.mrf.mxu0
      %v1979 = vadd.f32 0.0, %v1978
      %1980 = vmatmul.bf16.gmra.mxu0 %v1901
      %v1981 = vpop.f32.mrf.mxu0
      %v1982 = vadd.f32 0.0, %v1981
      %v1983 = vpop.f32.mrf.mxu0
      %v1984 = vadd.f32 0.0, %v1983
      %1985 = vmatmul.bf16.gmra.mxu0 %v1904
      %v1986 = vpop.f32.mrf.mxu0
      %v1987 = vadd.f32 0.0, %v1986
      %v1988 = vpop.f32.mrf.mxu0
      %v1989 = vadd.f32 0.0, %v1988
      %1990 = vmatmul.bf16.gmra.mxu0 %v1907
      %v1991 = vpop.f32.mrf.mxu0
      %v1992 = vadd.f32 0.0, %v1991
      %v1993 = vpop.f32.mrf.mxu0
      %v1994 = vadd.f32 0.0, %v1993
      %1995 = vmatmul.bf16.gmra.mxu0 %v1910
      %v1996 = vpop.f32.mrf.mxu0
      %v1997 = vadd.f32 0.0, %v1996
      %v1998 = vpop.f32.mrf.mxu0
      %v1999 = vadd.f32 0.0, %v1998
      %2000 = vmatmul.bf16.gmra.mxu0 %v1913
      %v2001 = vpop.f32.mrf.mxu0
      %v2002 = vadd.f32 0.0, %v2001
      %v2003 = vpop.f32.mrf.mxu0
      %v2004 = vadd.f32 0.0, %v2003
      %2005 = vmatmul.bf16.gmra.mxu0 %v1916
      %v2006 = vpop.f32.mrf.mxu0
      %v2007 = vadd.f32 0.0, %v2006
      %v2008 = vpop.f32.mrf.mxu0
      %v2009 = vadd.f32 0.0, %v2008
      %2010 = vmatmul.bf16.gmra.mxu0 %v1919
      %v2011 = vpop.f32.mrf.mxu0
      %v2012 = vadd.f32 0.0, %v2011
      %v2013 = vpop.f32.mrf.mxu0
      %v2014 = vadd.f32 0.0, %v2013
      %2015 = vmatmul.bf16.gmra.mxu0 %v1922
      %v2016 = vpop.f32.mrf.mxu0
      %v2017 = vadd.f32 0.0, %v2016
      %v2018 = vpop.f32.mrf.mxu0
      %v2019 = vadd.f32 0.0, %v2018
      %2020 = vmatmul.bf16.gmra.mxu0 %v1925
      %v2021 = vpop.f32.mrf.mxu0
      %v2022 = vadd.f32 0.0, %v2021
      %v2023 = vpop.f32.mrf.mxu0
      %v2024 = vadd.f32 0.0, %v2023
      %2025 = vdwg.mxu0
      %v2026 = vadd.f32 %v1653, %v1937
      %v2027 = vadd.f32 %v1654, %v1939
      %v2028 = vadd.f32 %v1655, %v1942
      %v2029 = vadd.f32 %v1656, %v1944
      %v2030 = vadd.f32 %v1657, %v1947
      %v2031 = vadd.f32 %v1658, %v1949
      %v2032 = vadd.f32 %v1659, %v1952
      %v2033 = vadd.f32 %v1660, %v1954
      %v2034 = vadd.f32 %v1661, %v1957
      %v2035 = vadd.f32 %v1662, %v1959
      %v2036 = vadd.f32 %v1663, %v1962
      %v2037 = vadd.f32 %v1664, %v1964
      %v2038 = vadd.f32 %v1665, %v1967
      %v2039 = vadd.f32 %v1666, %v1969
      %v2040 = vadd.f32 %v1667, %v1972
      %v2041 = vadd.f32 %v1668, %v1974
      %v2042 = vadd.f32 %v1669, %v1977
      %v2043 = vadd.f32 %v1670, %v1979
      %v2044 = vadd.f32 %v1671, %v1982
      %v2045 = vadd.f32 %v1672, %v1984
      %v2046 = vadd.f32 %v1673, %v1987
      %v2047 = vadd.f32 %v1674, %v1989
      %v2048 = vadd.f32 %v1675, %v1992
      %v2049 = vadd.f32 %v1676, %v1994
      %v2050 = vadd.f32 %v1677, %v1997
      %v2051 = vadd.f32 %v1678, %v1999
      %v2052 = vadd.f32 %v1679, %v2002
      %v2053 = vadd.f32 %v1680, %v2004
      %v2054 = vadd.f32 %v1681, %v2007
      %v2055 = vadd.f32 %v1682, %v2009
      %v2056 = vadd.f32 %v1683, %v2012
      %v2057 = vadd.f32 %v1684, %v2014
      %v2058 = vadd.f32 %v1685, %v2017
      %v2059 = vadd.f32 %v1686, %v2019
      %v2060 = vadd.f32 %v1687, %v2022
      %v2061 = vadd.f32 %v1688, %v2024
      %v2062 = vld [vmem:[#allocation2 + $0x98] sm:$0x3]
      %s2063 = scalar_lea.vmem %s1, 64
      %v2064 = vld [vmem:[%s2063] sm:$0xf]
      %v2065 = vld [vmem:[%s2063 + $0x4] sm:$0xf]
      %v2066 = vld [vmem:[%s2063 + $0x8] sm:$0xf]
      %v2067 = vld [vmem:[%s2063 + $0xc] sm:$0xf]
      %v2069 = vunpack.c.l.b16 %v2062
      %v2070 = vpack.c.b16 %v2069, %v2069
      %vm2071 = vsmask.f32 6400
      %v2073 = vshrl.u32 %v1805, 16
      %v2075 = vrot.slane %v2073, 1
      %v2076 = vshll.u32 %v1805, 16
      %v2078 = vrot.slane %v2076, 2
      %v2079 = vor.u32 %v2075, %v2078
      %v2081 = vshrl.u32 %v1806, 16
      %v2083 = vrot.slane %v2081, 1
      %v2084 = vshll.u32 %v1806, 16
      %v2086 = vrot.slane %v2084, 2
      %v2087 = vor.u32 %v2083, %v2086
      %v2088 = vsel %vm2071, %v2079, %v2087
      %v2090 = vshrl.u32 %v1807, 16
      %v2092 = vrot.slane %v2090, 1
      %v2093 = vshll.u32 %v1807, 16
      %v2095 = vrot.slane %v2093, 2
      %v2096 = vor.u32 %v2092, %v2095
      %v2097 = vsel %vm2071, %v2087, %v2096
      %v2099 = vshrl.u32 %v1808, 16
      %v2101 = vrot.slane %v2099, 1
      %v2102 = vshll.u32 %v1808, 16
      %v2104 = vrot.slane %v2102, 2
      %v2105 = vor.u32 %v2101, %v2104
      %v2106 = vsel %vm2071, %v2096, %v2105
      %v2108 = vshrl.u32 %v1809, 16
      %v2110 = vrot.slane %v2108, 1
      %v2111 = vshll.u32 %v1809, 16
      %v2113 = vrot.slane %v2111, 2
      %v2114 = vor.u32 %v2110, %v2113
      %v2115 = vsel %vm2071, %v2105, %v2114
      %v2117 = vshrl.u32 %v1810, 16
      %v2119 = vrot.slane %v2117, 1
      %v2120 = vshll.u32 %v1810, 16
      %v2122 = vrot.slane %v2120, 2
      %v2123 = vor.u32 %v2119, %v2122
      %v2124 = vsel %vm2071, %v2114, %v2123
      %v2126 = vshrl.u32 %v1811, 16
      %v2128 = vrot.slane %v2126, 1
      %v2129 = vshll.u32 %v1811, 16
      %v2131 = vrot.slane %v2129, 2
      %v2132 = vor.u32 %v2128, %v2131
      %v2133 = vsel %vm2071, %v2123, %v2132
      %v2135 = vshrl.u32 %v1812, 16
      %v2137 = vrot.slane %v2135, 1
      %v2138 = vshll.u32 %v1812, 16
      %v2140 = vrot.slane %v2138, 2
      %v2141 = vor.u32 %v2137, %v2140
      %v2142 = vsel %vm2071, %v2132, %v2141
      %v2144 = vshrl.u32 %v1813, 16
      %v2146 = vrot.slane %v2144, 1
      %v2147 = vshll.u32 %v1813, 16
      %v2149 = vrot.slane %v2147, 2
      %v2150 = vor.u32 %v2146, %v2149
      %v2151 = vsel %vm2071, %v2141, %v2150
      %v2153 = vshrl.u32 %v1814, 16
      %v2155 = vrot.slane %v2153, 1
      %v2156 = vshll.u32 %v1814, 16
      %v2158 = vrot.slane %v2156, 2
      %v2159 = vor.u32 %v2155, %v2158
      %v2160 = vsel %vm2071, %v2150, %v2159
      %v2162 = vshrl.u32 %v1815, 16
      %v2164 = vrot.slane %v2162, 1
      %v2165 = vshll.u32 %v1815, 16
      %v2167 = vrot.slane %v2165, 2
      %v2168 = vor.u32 %v2164, %v2167
      %v2169 = vsel %vm2071, %v2159, %v2168
      %v2171 = vshrl.u32 %v1816, 16
      %v2173 = vrot.slane %v2171, 1
      %v2174 = vshll.u32 %v1816, 16
      %v2176 = vrot.slane %v2174, 2
      %v2177 = vor.u32 %v2173, %v2176
      %v2178 = vsel %vm2071, %v2168, %v2177
      %v2180 = vshrl.u32 %v1817, 16
      %v2182 = vrot.slane %v2180, 1
      %v2183 = vshll.u32 %v1817, 16
      %v2185 = vrot.slane %v2183, 2
      %v2186 = vor.u32 %v2182, %v2185
      %v2187 = vsel %vm2071, %v2177, %v2186
      %v2189 = vshrl.u32 %v1818, 16
      %v2191 = vrot.slane %v2189, 1
      %v2192 = vshll.u32 %v1818, 16
      %v2194 = vrot.slane %v2192, 2
      %v2195 = vor.u32 %v2191, %v2194
      %v2196 = vsel %vm2071, %v2186, %v2195
      %v2198 = vshrl.u32 %v1819, 16
      %v2200 = vrot.slane %v2198, 1
      %v2201 = vshll.u32 %v1819, 16
      %v2203 = vrot.slane %v2201, 2
      %v2204 = vor.u32 %v2200, %v2203
      %v2205 = vsel %vm2071, %v2195, %v2204
      %v2207 = vshrl.u32 %v1820, 16
      %v2209 = vrot.slane %v2207, 1
      %v2210 = vshll.u32 %v1820, 16
      %v2212 = vrot.slane %v2210, 2
      %v2213 = vor.u32 %v2209, %v2212
      %v2214 = vsel %vm2071, %v2204, %v2213
      %v2216 = vshrl.u32 %v1821, 16
      %v2218 = vrot.slane %v2216, 1
      %v2219 = vshll.u32 %v1821, 16
      %v2221 = vrot.slane %v2219, 2
      %v2222 = vor.u32 %v2218, %v2221
      %v2223 = vsel %vm2071, %v2213, %v2222
      %v2225 = vshrl.u32 %v1822, 16
      %v2227 = vrot.slane %v2225, 1
      %v2228 = vshll.u32 %v1822, 16
      %v2230 = vrot.slane %v2228, 2
      %v2231 = vor.u32 %v2227, %v2230
      %v2232 = vsel %vm2071, %v2222, %v2231
      %v2234 = vshrl.u32 %v2070, 16
      %v2236 = vrot.slane %v2234, 1
      %v2237 = vshll.u32 %v2070, 16
      %v2239 = vrot.slane %v2237, 2
      %v2240 = vor.u32 %v2236, %v2239
      %v2241 = vsel %vm2071, %v2231, %v2240
      %v2246 = vunpack.c.l.b16 %v2064
      %v2247 = vunpack.c.l.b16 %v2065
      %v2248 = vunpack.c.l.b16 %v2066
      %v2249 = vunpack.c.l.b16 %v2067
      %v2250 = vpack.c.b16 %v2247, %v2246
      %v2251 = vpack.c.b16 %v2249, %v2248
      %v2255 = vsel %vm1140, %v2088, 0
      %v2258 = vsel %vm1140, %v2097, 0
      %v2261 = vsel %vm1140, %v2106, 0
      %v2264 = vsel %vm1140, %v2115, 0
      %v2267 = vsel %vm1140, %v2124, 0
      %v2270 = vsel %vm1140, %v2133, 0
      %v2273 = vsel %vm1140, %v2142, 0
      %v2276 = vsel %vm1140, %v2151, 0
      %v2279 = vsel %vm1140, %v2160, 0
      %v2282 = vsel %vm1140, %v2169, 0
      %v2285 = vsel %vm1140, %v2178, 0
      %v2288 = vsel %vm1140, %v2187, 0
      %v2291 = vsel %vm1140, %v2196, 0
      %v2294 = vsel %vm1140, %v2205, 0
      %v2297 = vsel %vm1140, %v2214, 0
      %v2300 = vsel %vm1140, %v2223, 0
      %v2303 = vsel %vm1140, %v2232, 0
      %v2306 = vsel %vm1140, %v2241, 0
      %2308 = vmatpush.bf16.msra.mxu0 0
      %2309 = vmatpush.bf16.msra.mxu0 0
      %2310 = vmatpush.bf16.msra.mxu0 0
      %2311 = vmatpush.bf16.msra.mxu0 0
      %2312 = vmatpush.bf16.msra.mxu0 0
      %2313 = vmatpush.bf16.msra.mxu0 0
      %2314 = vmatpush.bf16.msra.mxu0 %v2251
      %2315 = vmatpush.bf16.msra.mxu0 %v2250
      %2316 = vmatmul.bf16.gmra.mxu0 %v2255
      %v2317 = vpop.f32.mrf.mxu0
      %v2318 = vadd.f32 0.0, %v2317
      %v2319 = vpop.f32.mrf.mxu0
      %v2320 = vadd.f32 0.0, %v2319
      %2321 = vmatmul.bf16.gmra.mxu0 %v2258
      %v2322 = vpop.f32.mrf.mxu0
      %v2323 = vadd.f32 0.0, %v2322
      %v2324 = vpop.f32.mrf.mxu0
      %v2325 = vadd.f32 0.0, %v2324
      %2326 = vmatmul.bf16.gmra.mxu0 %v2261
      %v2327 = vpop.f32.mrf.mxu0
      %v2328 = vadd.f32 0.0, %v2327
      %v2329 = vpop.f32.mrf.mxu0
      %v2330 = vadd.f32 0.0, %v2329
      %2331 = vmatmul.bf16.gmra.mxu0 %v2264
      %v2332 = vpop.f32.mrf.mxu0
      %v2333 = vadd.f32 0.0, %v2332
      %v2334 = vpop.f32.mrf.mxu0
      %v2335 = vadd.f32 0.0, %v2334
      %2336 = vmatmul.bf16.gmra.mxu0 %v2267
      %v2337 = vpop.f32.mrf.mxu0
      %v2338 = vadd.f32 0.0, %v2337
      %v2339 = vpop.f32.mrf.mxu0
      %v2340 = vadd.f32 0.0, %v2339
      %2341 = vmatmul.bf16.gmra.mxu0 %v2270
      %v2342 = vpop.f32.mrf.mxu0
      %v2343 = vadd.f32 0.0, %v2342
      %v2344 = vpop.f32.mrf.mxu0
      %v2345 = vadd.f32 0.0, %v2344
      %2346 = vmatmul.bf16.gmra.mxu0 %v2273
      %v2347 = vpop.f32.mrf.mxu0
      %v2348 = vadd.f32 0.0, %v2347
      %v2349 = vpop.f32.mrf.mxu0
      %v2350 = vadd.f32 0.0, %v2349
      %2351 = vmatmul.bf16.gmra.mxu0 %v2276
      %v2352 = vpop.f32.mrf.mxu0
      %v2353 = vadd.f32 0.0, %v2352
      %v2354 = vpop.f32.mrf.mxu0
      %v2355 = vadd.f32 0.0, %v2354
      %2356 = vmatmul.bf16.gmra.mxu0 %v2279
      %v2357 = vpop.f32.mrf.mxu0
      %v2358 = vadd.f32 0.0, %v2357
      %v2359 = vpop.f32.mrf.mxu0
      %v2360 = vadd.f32 0.0, %v2359
      %2361 = vmatmul.bf16.gmra.mxu0 %v2282
      %v2362 = vpop.f32.mrf.mxu0
      %v2363 = vadd.f32 0.0, %v2362
      %v2364 = vpop.f32.mrf.mxu0
      %v2365 = vadd.f32 0.0, %v2364
      %2366 = vmatmul.bf16.gmra.mxu0 %v2285
      %v2367 = vpop.f32.mrf.mxu0
      %v2368 = vadd.f32 0.0, %v2367
      %v2369 = vpop.f32.mrf.mxu0
      %v2370 = vadd.f32 0.0, %v2369
      %2371 = vmatmul.bf16.gmra.mxu0 %v2288
      %v2372 = vpop.f32.mrf.mxu0
      %v2373 = vadd.f32 0.0, %v2372
      %v2374 = vpop.f32.mrf.mxu0
      %v2375 = vadd.f32 0.0, %v2374
      %2376 = vmatmul.bf16.gmra.mxu0 %v2291
      %v2377 = vpop.f32.mrf.mxu0
      %v2378 = vadd.f32 0.0, %v2377
      %v2379 = vpop.f32.mrf.mxu0
      %v2380 = vadd.f32 0.0, %v2379
      %2381 = vmatmul.bf16.gmra.mxu0 %v2294
      %v2382 = vpop.f32.mrf.mxu0
      %v2383 = vadd.f32 0.0, %v2382
      %v2384 = vpop.f32.mrf.mxu0
      %v2385 = vadd.f32 0.0, %v2384
      %2386 = vmatmul.bf16.gmra.mxu0 %v2297
      %v2387 = vpop.f32.mrf.mxu0
      %v2388 = vadd.f32 0.0, %v2387
      %v2389 = vpop.f32.mrf.mxu0
      %v2390 = vadd.f32 0.0, %v2389
      %2391 = vmatmul.bf16.gmra.mxu0 %v2300
      %v2392 = vpop.f32.mrf.mxu0
      %v2393 = vadd.f32 0.0, %v2392
      %v2394 = vpop.f32.mrf.mxu0
      %v2395 = vadd.f32 0.0, %v2394
      %2396 = vmatmul.bf16.gmra.mxu0 %v2303
      %v2397 = vpop.f32.mrf.mxu0
      %v2398 = vadd.f32 0.0, %v2397
      %v2399 = vpop.f32.mrf.mxu0
      %v2400 = vadd.f32 0.0, %v2399
      %2401 = vmatmul.bf16.gmra.mxu0 %v2306
      %v2402 = vpop.f32.mrf.mxu0
      %v2403 = vadd.f32 0.0, %v2402
      %v2404 = vpop.f32.mrf.mxu0
      %v2405 = vadd.f32 0.0, %v2404
      %2406 = vdwg.mxu0
      %v2407 = vadd.f32 %v2026, %v2318
      %v2408 = vadd.f32 %v2027, %v2320
      %v2409 = vadd.f32 %v2028, %v2323
      %v2410 = vadd.f32 %v2029, %v2325
      %v2411 = vadd.f32 %v2030, %v2328
      %v2412 = vadd.f32 %v2031, %v2330
      %v2413 = vadd.f32 %v2032, %v2333
      %v2414 = vadd.f32 %v2033, %v2335
      %v2415 = vadd.f32 %v2034, %v2338
      %v2416 = vadd.f32 %v2035, %v2340
      %v2417 = vadd.f32 %v2036, %v2343
      %v2418 = vadd.f32 %v2037, %v2345
      %v2419 = vadd.f32 %v2038, %v2348
      %v2420 = vadd.f32 %v2039, %v2350
      %v2421 = vadd.f32 %v2040, %v2353
      %v2422 = vadd.f32 %v2041, %v2355
      %v2423 = vadd.f32 %v2042, %v2358
      %v2424 = vadd.f32 %v2043, %v2360
      %v2425 = vadd.f32 %v2044, %v2363
      %v2426 = vadd.f32 %v2045, %v2365
      %v2427 = vadd.f32 %v2046, %v2368
      %v2428 = vadd.f32 %v2047, %v2370
      %v2429 = vadd.f32 %v2048, %v2373
      %v2430 = vadd.f32 %v2049, %v2375
      %v2431 = vadd.f32 %v2050, %v2378
      %v2432 = vadd.f32 %v2051, %v2380
      %v2433 = vadd.f32 %v2052, %v2383
      %v2434 = vadd.f32 %v2053, %v2385
      %v2435 = vadd.f32 %v2054, %v2388
      %v2436 = vadd.f32 %v2055, %v2390
      %v2437 = vadd.f32 %v2056, %v2393
      %v2438 = vadd.f32 %v2057, %v2395
      %v2439 = vadd.f32 %v2058, %v2398
      %v2440 = vadd.f32 %v2059, %v2400
      %v2441 = vadd.f32 %v2060, %v2403
      %v2442 = vadd.f32 %v2061, %v2405
      %v2443 = vld [vmem:[#allocation2 + $0x8] sm:$0xc]
      %s2444 = scalar_lea.vmem %s1, 80
      %v2445 = vld [vmem:[%s2444] sm:$0xf]
      %v2446 = vld [vmem:[%s2444 + $0x4] sm:$0xf]
      %v2447 = vld [vmem:[%s2444 + $0x8] sm:$0xf]
      %v2448 = vld [vmem:[%s2444 + $0xc] sm:$0xf]
      %v2450 = vunpack.c.l.b16 %v2443
      %v2451 = vpack.c.b16 %v1769, %v2450
      %vm2452 = vcmask 1045504
      %v2453 = vrot.slane %v2451, 2
      %v2454 = vrot.slane %v1806, 2
      %v2455 = vsel %vm2452, %v2453, %v2454
      %v2456 = vrot.slane %v1807, 2
      %v2457 = vsel %vm2452, %v2454, %v2456
      %v2458 = vrot.slane %v1808, 2
      %v2459 = vsel %vm2452, %v2456, %v2458
      %v2460 = vrot.slane %v1809, 2
      %v2461 = vsel %vm2452, %v2458, %v2460
      %v2462 = vrot.slane %v1810, 2
      %v2463 = vsel %vm2452, %v2460, %v2462
      %v2464 = vrot.slane %v1811, 2
      %v2465 = vsel %vm2452, %v2462, %v2464
      %v2466 = vrot.slane %v1812, 2
      %v2467 = vsel %vm2452, %v2464, %v2466
      %v2468 = vrot.slane %v1813, 2
      %v2469 = vsel %vm2452, %v2466, %v2468
      %v2470 = vrot.slane %v1814, 2
      %v2471 = vsel %vm2452, %v2468, %v2470
      %v2472 = vrot.slane %v1815, 2
      %v2473 = vsel %vm2452, %v2470, %v2472
      %v2474 = vrot.slane %v1816, 2
      %v2475 = vsel %vm2452, %v2472, %v2474
      %v2476 = vrot.slane %v1817, 2
      %v2477 = vsel %vm2452, %v2474, %v2476
      %v2478 = vrot.slane %v1818, 2
      %v2479 = vsel %vm2452, %v2476, %v2478
      %v2480 = vrot.slane %v1819, 2
      %v2481 = vsel %vm2452, %v2478, %v2480
      %v2482 = vrot.slane %v1820, 2
      %v2483 = vsel %vm2452, %v2480, %v2482
      %v2484 = vrot.slane %v1821, 2
      %v2485 = vsel %vm2452, %v2482, %v2484
      %v2486 = vrot.slane %v1822, 2
      %v2487 = vsel %vm2452, %v2484, %v2486
      %v2488 = vrot.slane %v2070, 2
      %v2489 = vsel %vm2452, %v2486, %v2488
      %v2494 = vunpack.c.l.b16 %v2445
      %v2495 = vunpack.c.l.b16 %v2446
      %v2496 = vunpack.c.l.b16 %v2447
      %v2497 = vunpack.c.l.b16 %v2448
      %v2498 = vpack.c.b16 %v2495, %v2494
      %v2499 = vpack.c.b16 %v2497, %v2496
      %v2503 = vsel %vm1140, %v2455, 0
      %v2506 = vsel %vm1140, %v2457, 0
      %v2509 = vsel %vm1140, %v2459, 0
      %v2512 = vsel %vm1140, %v2461, 0
      %v2515 = vsel %vm1140, %v2463, 0
      %v2518 = vsel %vm1140, %v2465, 0
      %v2521 = vsel %vm1140, %v2467, 0
      %v2524 = vsel %vm1140, %v2469, 0
      %v2527 = vsel %vm1140, %v2471, 0
      %v2530 = vsel %vm1140, %v2473, 0
      %v2533 = vsel %vm1140, %v2475, 0
      %v2536 = vsel %vm1140, %v2477, 0
      %v2539 = vsel %vm1140, %v2479, 0
      %v2542 = vsel %vm1140, %v2481, 0
      %v2545 = vsel %vm1140, %v2483, 0
      %v2548 = vsel %vm1140, %v2485, 0
      %v2551 = vsel %vm1140, %v2487, 0
      %v2554 = vsel %vm1140, %v2489, 0
      %2556 = vmatpush.bf16.msra.mxu0 0
      %2557 = vmatpush.bf16.msra.mxu0 0
      %2558 = vmatpush.bf16.msra.mxu0 0
      %2559 = vmatpush.bf16.msra.mxu0 0
      %2560 = vmatpush.bf16.msra.mxu0 0
      %2561 = vmatpush.bf16.msra.mxu0 0
      %2562 = vmatpush.bf16.msra.mxu0 %v2499
      %2563 = vmatpush.bf16.msra.mxu0 %v2498
      %2564 = vmatmul.bf16.gmra.mxu0 %v2503
      %v2565 = vpop.f32.mrf.mxu0
      %v2566 = vadd.f32 0.0, %v2565
      %v2567 = vpop.f32.mrf.mxu0
      %v2568 = vadd.f32 0.0, %v2567
      %2569 = vmatmul.bf16.gmra.mxu0 %v2506
      %v2570 = vpop.f32.mrf.mxu0
      %v2571 = vadd.f32 0.0, %v2570
      %v2572 = vpop.f32.mrf.mxu0
      %v2573 = vadd.f32 0.0, %v2572
      %2574 = vmatmul.bf16.gmra.mxu0 %v2509
      %v2575 = vpop.f32.mrf.mxu0
      %v2576 = vadd.f32 0.0, %v2575
      %v2577 = vpop.f32.mrf.mxu0
      %v2578 = vadd.f32 0.0, %v2577
      %2579 = vmatmul.bf16.gmra.mxu0 %v2512
      %v2580 = vpop.f32.mrf.mxu0
      %v2581 = vadd.f32 0.0, %v2580
      %v2582 = vpop.f32.mrf.mxu0
      %v2583 = vadd.f32 0.0, %v2582
      %2584 = vmatmul.bf16.gmra.mxu0 %v2515
      %v2585 = vpop.f32.mrf.mxu0
      %v2586 = vadd.f32 0.0, %v2585
      %v2587 = vpop.f32.mrf.mxu0
      %v2588 = vadd.f32 0.0, %v2587
      %2589 = vmatmul.bf16.gmra.mxu0 %v2518
      %v2590 = vpop.f32.mrf.mxu0
      %v2591 = vadd.f32 0.0, %v2590
      %v2592 = vpop.f32.mrf.mxu0
      %v2593 = vadd.f32 0.0, %v2592
      %2594 = vmatmul.bf16.gmra.mxu0 %v2521
      %v2595 = vpop.f32.mrf.mxu0
      %v2596 = vadd.f32 0.0, %v2595
      %v2597 = vpop.f32.mrf.mxu0
      %v2598 = vadd.f32 0.0, %v2597
      %2599 = vmatmul.bf16.gmra.mxu0 %v2524
      %v2600 = vpop.f32.mrf.mxu0
      %v2601 = vadd.f32 0.0, %v2600
      %v2602 = vpop.f32.mrf.mxu0
      %v2603 = vadd.f32 0.0, %v2602
      %2604 = vmatmul.bf16.gmra.mxu0 %v2527
      %v2605 = vpop.f32.mrf.mxu0
      %v2606 = vadd.f32 0.0, %v2605
      %v2607 = vpop.f32.mrf.mxu0
      %v2608 = vadd.f32 0.0, %v2607
      %2609 = vmatmul.bf16.gmra.mxu0 %v2530
      %v2610 = vpop.f32.mrf.mxu0
      %v2611 = vadd.f32 0.0, %v2610
      %v2612 = vpop.f32.mrf.mxu0
      %v2613 = vadd.f32 0.0, %v2612
      %2614 = vmatmul.bf16.gmra.mxu0 %v2533
      %v2615 = vpop.f32.mrf.mxu0
      %v2616 = vadd.f32 0.0, %v2615
      %v2617 = vpop.f32.mrf.mxu0
      %v2618 = vadd.f32 0.0, %v2617
      %2619 = vmatmul.bf16.gmra.mxu0 %v2536
      %v2620 = vpop.f32.mrf.mxu0
      %v2621 = vadd.f32 0.0, %v2620
      %v2622 = vpop.f32.mrf.mxu0
      %v2623 = vadd.f32 0.0, %v2622
      %2624 = vmatmul.bf16.gmra.mxu0 %v2539
      %v2625 = vpop.f32.mrf.mxu0
      %v2626 = vadd.f32 0.0, %v2625
      %v2627 = vpop.f32.mrf.mxu0
      %v2628 = vadd.f32 0.0, %v2627
      %2629 = vmatmul.bf16.gmra.mxu0 %v2542
      %v2630 = vpop.f32.mrf.mxu0
      %v2631 = vadd.f32 0.0, %v2630
      %v2632 = vpop.f32.mrf.mxu0
      %v2633 = vadd.f32 0.0, %v2632
      %2634 = vmatmul.bf16.gmra.mxu0 %v2545
      %v2635 = vpop.f32.mrf.mxu0
      %v2636 = vadd.f32 0.0, %v2635
      %v2637 = vpop.f32.mrf.mxu0
      %v2638 = vadd.f32 0.0, %v2637
      %2639 = vmatmul.bf16.gmra.mxu0 %v2548
      %v2640 = vpop.f32.mrf.mxu0
      %v2641 = vadd.f32 0.0, %v2640
      %v2642 = vpop.f32.mrf.mxu0
      %v2643 = vadd.f32 0.0, %v2642
      %2644 = vmatmul.bf16.gmra.mxu0 %v2551
      %v2645 = vpop.f32.mrf.mxu0
      %v2646 = vadd.f32 0.0, %v2645
      %v2647 = vpop.f32.mrf.mxu0
      %v2648 = vadd.f32 0.0, %v2647
      %2649 = vmatmul.bf16.gmra.mxu0 %v2554
      %v2650 = vpop.f32.mrf.mxu0
      %v2651 = vadd.f32 0.0, %v2650
      %v2652 = vpop.f32.mrf.mxu0
      %v2653 = vadd.f32 0.0, %v2652
      %2654 = vdwg.mxu0
      %v2655 = vadd.f32 %v2407, %v2566
      %v2656 = vadd.f32 %v2408, %v2568
      %v2657 = vadd.f32 %v2409, %v2571
      %v2658 = vadd.f32 %v2410, %v2573
      %v2659 = vadd.f32 %v2411, %v2576
      %v2660 = vadd.f32 %v2412, %v2578
      %v2661 = vadd.f32 %v2413, %v2581
      %v2662 = vadd.f32 %v2414, %v2583
      %v2663 = vadd.f32 %v2415, %v2586
      %v2664 = vadd.f32 %v2416, %v2588
      %v2665 = vadd.f32 %v2417, %v2591
      %v2666 = vadd.f32 %v2418, %v2593
      %v2667 = vadd.f32 %v2419, %v2596
      %v2668 = vadd.f32 %v2420, %v2598
      %v2669 = vadd.f32 %v2421, %v2601
      %v2670 = vadd.f32 %v2422, %v2603
      %v2671 = vadd.f32 %v2423, %v2606
      %v2672 = vadd.f32 %v2424, %v2608
      %v2673 = vadd.f32 %v2425, %v2611
      %v2674 = vadd.f32 %v2426, %v2613
      %v2675 = vadd.f32 %v2427, %v2616
      %v2676 = vadd.f32 %v2428, %v2618
      %v2677 = vadd.f32 %v2429, %v2621
      %v2678 = vadd.f32 %v2430, %v2623
      %v2679 = vadd.f32 %v2431, %v2626
      %v2680 = vadd.f32 %v2432, %v2628
      %v2681 = vadd.f32 %v2433, %v2631
      %v2682 = vadd.f32 %v2434, %v2633
      %v2683 = vadd.f32 %v2435, %v2636
      %v2684 = vadd.f32 %v2436, %v2638
      %v2685 = vadd.f32 %v2437, %v2641
      %v2686 = vadd.f32 %v2438, %v2643
      %v2687 = vadd.f32 %v2439, %v2646
      %v2688 = vadd.f32 %v2440, %v2648
      %v2689 = vadd.f32 %v2441, %v2651
      %v2690 = vadd.f32 %v2442, %v2653
      %v2691 = vld [vmem:[#allocation2 + $0x10] sm:$0xc]
      %v2692 = vld [vmem:[#allocation2 + $0x14] sm:$0xf]
      %v2693 = vld [vmem:[#allocation2 + $0x18] sm:$0xf]
      %v2694 = vld [vmem:[#allocation2 + $0x1c] sm:$0xf]
      %v2695 = vld [vmem:[#allocation2 + $0x20] sm:$0xf]
      %v2696 = vld [vmem:[#allocation2 + $0x24] sm:$0xf]
      %v2697 = vld [vmem:[#allocation2 + $0x28] sm:$0xf]
      %v2698 = vld [vmem:[#allocation2 + $0x2c] sm:$0xf]
      %v2699 = vld [vmem:[#allocation2 + $0x30] sm:$0xf]
      %v2700 = vld [vmem:[#allocation2 + $0x34] sm:$0xf]
      %v2701 = vld [vmem:[#allocation2 + $0x38] sm:$0xf]
      %v2702 = vld [vmem:[#allocation2 + $0x3c] sm:$0xf]
      %v2703 = vld [vmem:[#allocation2 + $0x40] sm:$0xf]
      %v2704 = vld [vmem:[#allocation2 + $0x44] sm:$0xf]
      %v2705 = vld [vmem:[#allocation2 + $0x48] sm:$0xf]
      %v2706 = vld [vmem:[#allocation2 + $0x4c] sm:$0xf]
      %v2707 = vld [vmem:[#allocation2 + $0x50] sm:$0xf]
      %v2708 = vld [vmem:[#allocation2 + $0x54] sm:$0xf]
      %v2709 = vld [vmem:[#allocation2 + $0x58] sm:$0xf]
      %v2710 = vld [vmem:[#allocation2 + $0x5c] sm:$0xf]
      %v2711 = vld [vmem:[#allocation2 + $0x60] sm:$0xf]
      %v2712 = vld [vmem:[#allocation2 + $0x64] sm:$0xf]
      %v2713 = vld [vmem:[#allocation2 + $0x68] sm:$0xf]
      %v2714 = vld [vmem:[#allocation2 + $0x6c] sm:$0xf]
      %v2715 = vld [vmem:[#allocation2 + $0x70] sm:$0xf]
      %v2716 = vld [vmem:[#allocation2 + $0x74] sm:$0xf]
      %v2717 = vld [vmem:[#allocation2 + $0x78] sm:$0xf]
      %v2718 = vld [vmem:[#allocation2 + $0x7c] sm:$0xf]
      %v2719 = vld [vmem:[#allocation2 + $0x80] sm:$0xf]
      %v2720 = vld [vmem:[#allocation2 + $0x84] sm:$0xf]
      %v2721 = vld [vmem:[#allocation2 + $0x88] sm:$0xf]
      %v2722 = vld [vmem:[#allocation2 + $0x8c] sm:$0xf]
      %v2723 = vld [vmem:[#allocation2 + $0x90] sm:$0xf]
      %v2724 = vld [vmem:[#allocation2 + $0x94] sm:$0xf]
      %v2725 = vld [vmem:[#allocation2 + $0x98] sm:$0xf]
      %v2726 = vld [vmem:[#allocation2 + $0x9c] sm:$0xf]
      %v2727 = vld [vmem:[#allocation2 + $0xa0] sm:$0x3]
      %s2728 = scalar_lea.vmem %s1, 96
      %v2729 = vld [vmem:[%s2728] sm:$0xf]
      %v2730 = vld [vmem:[%s2728 + $0x4] sm:$0xf]
      %v2731 = vld [vmem:[%s2728 + $0x8] sm:$0xf]
      %v2732 = vld [vmem:[%s2728 + $0xc] sm:$0xf]
      %v2770 = vunpack.c.l.b16 %v2691
      %v2771 = vunpack.c.l.b16 %v2692
      %v2772 = vunpack.c.l.b16 %v2693
      %v2773 = vunpack.c.l.b16 %v2694
      %v2774 = vunpack.c.l.b16 %v2695
      %v2775 = vunpack.c.l.b16 %v2696
      %v2776 = vunpack.c.l.b16 %v2697
      %v2777 = vunpack.c.l.b16 %v2698
      %v2778 = vunpack.c.l.b16 %v2699
      %v2779 = vunpack.c.l.b16 %v2700
      %v2780 = vunpack.c.l.b16 %v2701
      %v2781 = vunpack.c.l.b16 %v2702
      %v2782 = vunpack.c.l.b16 %v2703
      %v2783 = vunpack.c.l.b16 %v2704
      %v2784 = vunpack.c.l.b16 %v2705
      %v2785 = vunpack.c.l.b16 %v2706
      %v2786 = vunpack.c.l.b16 %v2707
      %v2787 = vunpack.c.l.b16 %v2708
      %v2788 = vunpack.c.l.b16 %v2709
      %v2789 = vunpack.c.l.b16 %v2710
      %v2790 = vunpack.c.l.b16 %v2711
      %v2791 = vunpack.c.l.b16 %v2712
      %v2792 = vunpack.c.l.b16 %v2713
      %v2793 = vunpack.c.l.b16 %v2714
      %v2794 = vunpack.c.l.b16 %v2715
      %v2795 = vunpack.c.l.b16 %v2716
      %v2796 = vunpack.c.l.b16 %v2717
      %v2797 = vunpack.c.l.b16 %v2718
      %v2798 = vunpack.c.l.b16 %v2719
      %v2799 = vunpack.c.l.b16 %v2720
      %v2800 = vunpack.c.l.b16 %v2721
      %v2801 = vunpack.c.l.b16 %v2722
      %v2802 = vunpack.c.l.b16 %v2723
      %v2803 = vunpack.c.l.b16 %v2724
      %v2804 = vunpack.c.l.b16 %v2725
      %v2805 = vunpack.c.l.b16 %v2726
      %v2806 = vunpack.c.l.b16 %v2727
      %v2807 = vpack.c.b16 %v2771, %v2770
      %v2808 = vpack.c.b16 %v2773, %v2772
      %v2809 = vpack.c.b16 %v2775, %v2774
      %v2810 = vpack.c.b16 %v2777, %v2776
      %v2811 = vpack.c.b16 %v2779, %v2778
      %v2812 = vpack.c.b16 %v2781, %v2780
      %v2813 = vpack.c.b16 %v2783, %v2782
      %v2814 = vpack.c.b16 %v2785, %v2784
      %v2815 = vpack.c.b16 %v2787, %v2786
      %v2816 = vpack.c.b16 %v2789, %v2788
      %v2817 = vpack.c.b16 %v2791, %v2790
      %v2818 = vpack.c.b16 %v2793, %v2792
      %v2819 = vpack.c.b16 %v2795, %v2794
      %v2820 = vpack.c.b16 %v2797, %v2796
      %v2821 = vpack.c.b16 %v2799, %v2798
      %v2822 = vpack.c.b16 %v2801, %v2800
      %v2823 = vpack.c.b16 %v2803, %v2802
      %v2824 = vpack.c.b16 %v2805, %v2804
      %v2825 = vpack.c.b16 %v2806, %v2806
      %v2826 = vrot.slane %v2807, 2
      %v2827 = vrot.slane %v2808, 2
      %v2828 = vsel %vm2452, %v2826, %v2827
      %v2829 = vrot.slane %v2809, 2
      %v2830 = vsel %vm2452, %v2827, %v2829
      %v2831 = vrot.slane %v2810, 2
      %v2832 = vsel %vm2452, %v2829, %v2831
      %v2833 = vrot.slane %v2811, 2
      %v2834 = vsel %vm2452, %v2831, %v2833
      %v2835 = vrot.slane %v2812, 2
      %v2836 = vsel %vm2452, %v2833, %v2835
      %v2837 = vrot.slane %v2813, 2
      %v2838 = vsel %vm2452, %v2835, %v2837
      %v2839 = vrot.slane %v2814, 2
      %v2840 = vsel %vm2452, %v2837, %v2839
      %v2841 = vrot.slane %v2815, 2
      %v2842 = vsel %vm2452, %v2839, %v2841
      %v2843 = vrot.slane %v2816, 2
      %v2844 = vsel %vm2452, %v2841, %v2843
      %v2845 = vrot.slane %v2817, 2
      %v2846 = vsel %vm2452, %v2843, %v2845
      %v2847 = vrot.slane %v2818, 2
      %v2848 = vsel %vm2452, %v2845, %v2847
      %v2849 = vrot.slane %v2819, 2
      %v2850 = vsel %vm2452, %v2847, %v2849
      %v2851 = vrot.slane %v2820, 2
      %v2852 = vsel %vm2452, %v2849, %v2851
      %v2853 = vrot.slane %v2821, 2
      %v2854 = vsel %vm2452, %v2851, %v2853
      %v2855 = vrot.slane %v2822, 2
      %v2856 = vsel %vm2452, %v2853, %v2855
      %v2857 = vrot.slane %v2823, 2
      %v2858 = vsel %vm2452, %v2855, %v2857
      %v2859 = vrot.slane %v2824, 2
      %v2860 = vsel %vm2452, %v2857, %v2859
      %v2861 = vrot.slane %v2825, 2
      %v2862 = vsel %vm2452, %v2859, %v2861
      %v2867 = vunpack.c.l.b16 %v2729
      %v2868 = vunpack.c.l.b16 %v2730
      %v2869 = vunpack.c.l.b16 %v2731
      %v2870 = vunpack.c.l.b16 %v2732
      %v2871 = vpack.c.b16 %v2868, %v2867
      %v2872 = vpack.c.b16 %v2870, %v2869
      %v2876 = vsel %vm1140, %v2828, 0
      %v2879 = vsel %vm1140, %v2830, 0
      %v2882 = vsel %vm1140, %v2832, 0
      %v2885 = vsel %vm1140, %v2834, 0
      %v2888 = vsel %vm1140, %v2836, 0
      %v2891 = vsel %vm1140, %v2838, 0
      %v2894 = vsel %vm1140, %v2840, 0
      %v2897 = vsel %vm1140, %v2842, 0
      %v2900 = vsel %vm1140, %v2844, 0
      %v2903 = vsel %vm1140, %v2846, 0
      %v2906 = vsel %vm1140, %v2848, 0
      %v2909 = vsel %vm1140, %v2850, 0
      %v2912 = vsel %vm1140, %v2852, 0
      %v2915 = vsel %vm1140, %v2854, 0
      %v2918 = vsel %vm1140, %v2856, 0
      %v2921 = vsel %vm1140, %v2858, 0
      %v2924 = vsel %vm1140, %v2860, 0
      %v2927 = vsel %vm1140, %v2862, 0
      %2929 = vmatpush.bf16.msra.mxu0 0
      %2930 = vmatpush.bf16.msra.mxu0 0
      %2931 = vmatpush.bf16.msra.mxu0 0
      %2932 = vmatpush.bf16.msra.mxu0 0
      %2933 = vmatpush.bf16.msra.mxu0 0
      %2934 = vmatpush.bf16.msra.mxu0 0
      %2935 = vmatpush.bf16.msra.mxu0 %v2872
      %2936 = vmatpush.bf16.msra.mxu0 %v2871
      %2937 = vmatmul.bf16.gmra.mxu0 %v2876
      %v2938 = vpop.f32.mrf.mxu0
      %v2939 = vadd.f32 0.0, %v2938
      %v2940 = vpop.f32.mrf.mxu0
      %v2941 = vadd.f32 0.0, %v2940
      %2942 = vmatmul.bf16.gmra.mxu0 %v2879
      %v2943 = vpop.f32.mrf.mxu0
      %v2944 = vadd.f32 0.0, %v2943
      %v2945 = vpop.f32.mrf.mxu0
      %v2946 = vadd.f32 0.0, %v2945
      %2947 = vmatmul.bf16.gmra.mxu0 %v2882
      %v2948 = vpop.f32.mrf.mxu0
      %v2949 = vadd.f32 0.0, %v2948
      %v2950 = vpop.f32.mrf.mxu0
      %v2951 = vadd.f32 0.0, %v2950
      %2952 = vmatmul.bf16.gmra.mxu0 %v2885
      %v2953 = vpop.f32.mrf.mxu0
      %v2954 = vadd.f32 0.0, %v2953
      %v2955 = vpop.f32.mrf.mxu0
      %v2956 = vadd.f32 0.0, %v2955
      %2957 = vmatmul.bf16.gmra.mxu0 %v2888
      %v2958 = vpop.f32.mrf.mxu0
      %v2959 = vadd.f32 0.0, %v2958
      %v2960 = vpop.f32.mrf.mxu0
      %v2961 = vadd.f32 0.0, %v2960
      %2962 = vmatmul.bf16.gmra.mxu0 %v2891
      %v2963 = vpop.f32.mrf.mxu0
      %v2964 = vadd.f32 0.0, %v2963
      %v2965 = vpop.f32.mrf.mxu0
      %v2966 = vadd.f32 0.0, %v2965
      %2967 = vmatmul.bf16.gmra.mxu0 %v2894
      %v2968 = vpop.f32.mrf.mxu0
      %v2969 = vadd.f32 0.0, %v2968
      %v2970 = vpop.f32.mrf.mxu0
      %v2971 = vadd.f32 0.0, %v2970
      %2972 = vmatmul.bf16.gmra.mxu0 %v2897
      %v2973 = vpop.f32.mrf.mxu0
      %v2974 = vadd.f32 0.0, %v2973
      %v2975 = vpop.f32.mrf.mxu0
      %v2976 = vadd.f32 0.0, %v2975
      %2977 = vmatmul.bf16.gmra.mxu0 %v2900
      %v2978 = vpop.f32.mrf.mxu0
      %v2979 = vadd.f32 0.0, %v2978
      %v2980 = vpop.f32.mrf.mxu0
      %v2981 = vadd.f32 0.0, %v2980
      %2982 = vmatmul.bf16.gmra.mxu0 %v2903
      %v2983 = vpop.f32.mrf.mxu0
      %v2984 = vadd.f32 0.0, %v2983
      %v2985 = vpop.f32.mrf.mxu0
      %v2986 = vadd.f32 0.0, %v2985
      %2987 = vmatmul.bf16.gmra.mxu0 %v2906
      %v2988 = vpop.f32.mrf.mxu0
      %v2989 = vadd.f32 0.0, %v2988
      %v2990 = vpop.f32.mrf.mxu0
      %v2991 = vadd.f32 0.0, %v2990
      %2992 = vmatmul.bf16.gmra.mxu0 %v2909
      %v2993 = vpop.f32.mrf.mxu0
      %v2994 = vadd.f32 0.0, %v2993
      %v2995 = vpop.f32.mrf.mxu0
      %v2996 = vadd.f32 0.0, %v2995
      %2997 = vmatmul.bf16.gmra.mxu0 %v2912
      %v2998 = vpop.f32.mrf.mxu0
      %v2999 = vadd.f32 0.0, %v2998
      %v3000 = vpop.f32.mrf.mxu0
      %v3001 = vadd.f32 0.0, %v3000
      %3002 = vmatmul.bf16.gmra.mxu0 %v2915
      %v3003 = vpop.f32.mrf.mxu0
      %v3004 = vadd.f32 0.0, %v3003
      %v3005 = vpop.f32.mrf.mxu0
      %v3006 = vadd.f32 0.0, %v3005
      %3007 = vmatmul.bf16.gmra.mxu0 %v2918
      %v3008 = vpop.f32.mrf.mxu0
      %v3009 = vadd.f32 0.0, %v3008
      %v3010 = vpop.f32.mrf.mxu0
      %v3011 = vadd.f32 0.0, %v3010
      %3012 = vmatmul.bf16.gmra.mxu0 %v2921
      %v3013 = vpop.f32.mrf.mxu0
      %v3014 = vadd.f32 0.0, %v3013
      %v3015 = vpop.f32.mrf.mxu0
      %v3016 = vadd.f32 0.0, %v3015
      %3017 = vmatmul.bf16.gmra.mxu0 %v2924
      %v3018 = vpop.f32.mrf.mxu0
      %v3019 = vadd.f32 0.0, %v3018
      %v3020 = vpop.f32.mrf.mxu0
      %v3021 = vadd.f32 0.0, %v3020
      %3022 = vmatmul.bf16.gmra.mxu0 %v2927
      %v3023 = vpop.f32.mrf.mxu0
      %v3024 = vadd.f32 0.0, %v3023
      %v3025 = vpop.f32.mrf.mxu0
      %v3026 = vadd.f32 0.0, %v3025
      %3027 = vdwg.mxu0
      %v3028 = vadd.f32 %v2655, %v2939
      %v3029 = vadd.f32 %v2656, %v2941
      %v3030 = vadd.f32 %v2657, %v2944
      %v3031 = vadd.f32 %v2658, %v2946
      %v3032 = vadd.f32 %v2659, %v2949
      %v3033 = vadd.f32 %v2660, %v2951
      %v3034 = vadd.f32 %v2661, %v2954
      %v3035 = vadd.f32 %v2662, %v2956
      %v3036 = vadd.f32 %v2663, %v2959
      %v3037 = vadd.f32 %v2664, %v2961
      %v3038 = vadd.f32 %v2665, %v2964
      %v3039 = vadd.f32 %v2666, %v2966
      %v3040 = vadd.f32 %v2667, %v2969
      %v3041 = vadd.f32 %v2668, %v2971
      %v3042 = vadd.f32 %v2669, %v2974
      %v3043 = vadd.f32 %v2670, %v2976
      %v3044 = vadd.f32 %v2671, %v2979
      %v3045 = vadd.f32 %v2672, %v2981
      %v3046 = vadd.f32 %v2673, %v2984
      %v3047 = vadd.f32 %v2674, %v2986
      %v3048 = vadd.f32 %v2675, %v2989
      %v3049 = vadd.f32 %v2676, %v2991
      %v3050 = vadd.f32 %v2677, %v2994
      %v3051 = vadd.f32 %v2678, %v2996
      %v3052 = vadd.f32 %v2679, %v2999
      %v3053 = vadd.f32 %v2680, %v3001
      %v3054 = vadd.f32 %v2681, %v3004
      %v3055 = vadd.f32 %v2682, %v3006
      %v3056 = vadd.f32 %v2683, %v3009
      %v3057 = vadd.f32 %v2684, %v3011
      %v3058 = vadd.f32 %v2685, %v3014
      %v3059 = vadd.f32 %v2686, %v3016
      %v3060 = vadd.f32 %v2687, %v3019
      %v3061 = vadd.f32 %v2688, %v3021
      %v3062 = vadd.f32 %v2689, %v3024
      %v3063 = vadd.f32 %v2690, %v3026
      %v3064 = vld [vmem:[#allocation2 + $0xa0] sm:$0x7]
      %s3065 = scalar_lea.vmem %s1, 112
      %v3066 = vld [vmem:[%s3065] sm:$0xf]
      %v3067 = vld [vmem:[%s3065 + $0x4] sm:$0xf]
      %v3068 = vld [vmem:[%s3065 + $0x8] sm:$0xf]
      %v3069 = vld [vmem:[%s3065 + $0xc] sm:$0xf]
      %v3071 = vunpack.c.l.b16 %v3064
      %v3072 = vpack.c.b16 %v3071, %v3071
      %vm3073 = vsmask.f32 5376
      %v3075 = vshrl.u32 %v2807, 16
      %v3077 = vrot.slane %v3075, 2
      %v3078 = vshll.u32 %v2807, 16
      %v3080 = vrot.slane %v3078, 3
      %v3081 = vor.u32 %v3077, %v3080
      %v3083 = vshrl.u32 %v2808, 16
      %v3085 = vrot.slane %v3083, 2
      %v3086 = vshll.u32 %v2808, 16
      %v3088 = vrot.slane %v3086, 3
      %v3089 = vor.u32 %v3085, %v3088
      %v3090 = vsel %vm3073, %v3081, %v3089
      %v3092 = vshrl.u32 %v2809, 16
      %v3094 = vrot.slane %v3092, 2
      %v3095 = vshll.u32 %v2809, 16
      %v3097 = vrot.slane %v3095, 3
      %v3098 = vor.u32 %v3094, %v3097
      %v3099 = vsel %vm3073, %v3089, %v3098
      %v3101 = vshrl.u32 %v2810, 16
      %v3103 = vrot.slane %v3101, 2
      %v3104 = vshll.u32 %v2810, 16
      %v3106 = vrot.slane %v3104, 3
      %v3107 = vor.u32 %v3103, %v3106
      %v3108 = vsel %vm3073, %v3098, %v3107
      %v3110 = vshrl.u32 %v2811, 16
      %v3112 = vrot.slane %v3110, 2
      %v3113 = vshll.u32 %v2811, 16
      %v3115 = vrot.slane %v3113, 3
      %v3116 = vor.u32 %v3112, %v3115
      %v3117 = vsel %vm3073, %v3107, %v3116
      %v3119 = vshrl.u32 %v2812, 16
      %v3121 = vrot.slane %v3119, 2
      %v3122 = vshll.u32 %v2812, 16
      %v3124 = vrot.slane %v3122, 3
      %v3125 = vor.u32 %v3121, %v3124
      %v3126 = vsel %vm3073, %v3116, %v3125
      %v3128 = vshrl.u32 %v2813, 16
      %v3130 = vrot.slane %v3128, 2
      %v3131 = vshll.u32 %v2813, 16
      %v3133 = vrot.slane %v3131, 3
      %v3134 = vor.u32 %v3130, %v3133
      %v3135 = vsel %vm3073, %v3125, %v3134
      %v3137 = vshrl.u32 %v2814, 16
      %v3139 = vrot.slane %v3137, 2
      %v3140 = vshll.u32 %v2814, 16
      %v3142 = vrot.slane %v3140, 3
      %v3143 = vor.u32 %v3139, %v3142
      %v3144 = vsel %vm3073, %v3134, %v3143
      %v3146 = vshrl.u32 %v2815, 16
      %v3148 = vrot.slane %v3146, 2
      %v3149 = vshll.u32 %v2815, 16
      %v3151 = vrot.slane %v3149, 3
      %v3152 = vor.u32 %v3148, %v3151
      %v3153 = vsel %vm3073, %v3143, %v3152
      %v3155 = vshrl.u32 %v2816, 16
      %v3157 = vrot.slane %v3155, 2
      %v3158 = vshll.u32 %v2816, 16
      %v3160 = vrot.slane %v3158, 3
      %v3161 = vor.u32 %v3157, %v3160
      %v3162 = vsel %vm3073, %v3152, %v3161
      %v3164 = vshrl.u32 %v2817, 16
      %v3166 = vrot.slane %v3164, 2
      %v3167 = vshll.u32 %v2817, 16
      %v3169 = vrot.slane %v3167, 3
      %v3170 = vor.u32 %v3166, %v3169
      %v3171 = vsel %vm3073, %v3161, %v3170
      %v3173 = vshrl.u32 %v2818, 16
      %v3175 = vrot.slane %v3173, 2
      %v3176 = vshll.u32 %v2818, 16
      %v3178 = vrot.slane %v3176, 3
      %v3179 = vor.u32 %v3175, %v3178
      %v3180 = vsel %vm3073, %v3170, %v3179
      %v3182 = vshrl.u32 %v2819, 16
      %v3184 = vrot.slane %v3182, 2
      %v3185 = vshll.u32 %v2819, 16
      %v3187 = vrot.slane %v3185, 3
      %v3188 = vor.u32 %v3184, %v3187
      %v3189 = vsel %vm3073, %v3179, %v3188
      %v3191 = vshrl.u32 %v2820, 16
      %v3193 = vrot.slane %v3191, 2
      %v3194 = vshll.u32 %v2820, 16
      %v3196 = vrot.slane %v3194, 3
      %v3197 = vor.u32 %v3193, %v3196
      %v3198 = vsel %vm3073, %v3188, %v3197
      %v3200 = vshrl.u32 %v2821, 16
      %v3202 = vrot.slane %v3200, 2
      %v3203 = vshll.u32 %v2821, 16
      %v3205 = vrot.slane %v3203, 3
      %v3206 = vor.u32 %v3202, %v3205
      %v3207 = vsel %vm3073, %v3197, %v3206
      %v3209 = vshrl.u32 %v2822, 16
      %v3211 = vrot.slane %v3209, 2
      %v3212 = vshll.u32 %v2822, 16
      %v3214 = vrot.slane %v3212, 3
      %v3215 = vor.u32 %v3211, %v3214
      %v3216 = vsel %vm3073, %v3206, %v3215
      %v3218 = vshrl.u32 %v2823, 16
      %v3220 = vrot.slane %v3218, 2
      %v3221 = vshll.u32 %v2823, 16
      %v3223 = vrot.slane %v3221, 3
      %v3224 = vor.u32 %v3220, %v3223
      %v3225 = vsel %vm3073, %v3215, %v3224
      %v3227 = vshrl.u32 %v2824, 16
      %v3229 = vrot.slane %v3227, 2
      %v3230 = vshll.u32 %v2824, 16
      %v3232 = vrot.slane %v3230, 3
      %v3233 = vor.u32 %v3229, %v3232
      %v3234 = vsel %vm3073, %v3224, %v3233
      %v3236 = vshrl.u32 %v3072, 16
      %v3238 = vrot.slane %v3236, 2
      %v3239 = vshll.u32 %v3072, 16
      %v3241 = vrot.slane %v3239, 3
      %v3242 = vor.u32 %v3238, %v3241
      %v3243 = vsel %vm3073, %v3233, %v3242
      %v3248 = vunpack.c.l.b16 %v3066
      %v3249 = vunpack.c.l.b16 %v3067
      %v3250 = vunpack.c.l.b16 %v3068
      %v3251 = vunpack.c.l.b16 %v3069
      %v3252 = vpack.c.b16 %v3249, %v3248
      %v3253 = vpack.c.b16 %v3251, %v3250
      %v3257 = vsel %vm1140, %v3090, 0
      %v3260 = vsel %vm1140, %v3099, 0
      %v3263 = vsel %vm1140, %v3108, 0
      %v3266 = vsel %vm1140, %v3117, 0
      %v3269 = vsel %vm1140, %v3126, 0
      %v3272 = vsel %vm1140, %v3135, 0
      %v3275 = vsel %vm1140, %v3144, 0
      %v3278 = vsel %vm1140, %v3153, 0
      %v3281 = vsel %vm1140, %v3162, 0
      %v3284 = vsel %vm1140, %v3171, 0
      %v3287 = vsel %vm1140, %v3180, 0
      %v3290 = vsel %vm1140, %v3189, 0
      %v3293 = vsel %vm1140, %v3198, 0
      %v3296 = vsel %vm1140, %v3207, 0
      %v3299 = vsel %vm1140, %v3216, 0
      %v3302 = vsel %vm1140, %v3225, 0
      %v3305 = vsel %vm1140, %v3234, 0
      %v3308 = vsel %vm1140, %v3243, 0
      %3310 = vmatpush.bf16.msra.mxu0 0
      %3311 = vmatpush.bf16.msra.mxu0 0
      %3312 = vmatpush.bf16.msra.mxu0 0
      %3313 = vmatpush.bf16.msra.mxu0 0
      %3314 = vmatpush.bf16.msra.mxu0 0
      %3315 = vmatpush.bf16.msra.mxu0 0
      %3316 = vmatpush.bf16.msra.mxu0 %v3253
      %3317 = vmatpush.bf16.msra.mxu0 %v3252
      %3318 = vmatmul.bf16.gmra.mxu0 %v3257
      %v3319 = vpop.f32.mrf.mxu0
      %v3320 = vadd.f32 0.0, %v3319
      %v3321 = vpop.f32.mrf.mxu0
      %v3322 = vadd.f32 0.0, %v3321
      %3323 = vmatmul.bf16.gmra.mxu0 %v3260
      %v3324 = vpop.f32.mrf.mxu0
      %v3325 = vadd.f32 0.0, %v3324
      %v3326 = vpop.f32.mrf.mxu0
      %v3327 = vadd.f32 0.0, %v3326
      %3328 = vmatmul.bf16.gmra.mxu0 %v3263
      %v3329 = vpop.f32.mrf.mxu0
      %v3330 = vadd.f32 0.0, %v3329
      %v3331 = vpop.f32.mrf.mxu0
      %v3332 = vadd.f32 0.0, %v3331
      %3333 = vmatmul.bf16.gmra.mxu0 %v3266
      %v3334 = vpop.f32.mrf.mxu0
      %v3335 = vadd.f32 0.0, %v3334
      %v3336 = vpop.f32.mrf.mxu0
      %v3337 = vadd.f32 0.0, %v3336
      %3338 = vmatmul.bf16.gmra.mxu0 %v3269
      %v3339 = vpop.f32.mrf.mxu0
      %v3340 = vadd.f32 0.0, %v3339
      %v3341 = vpop.f32.mrf.mxu0
      %v3342 = vadd.f32 0.0, %v3341
      %3343 = vmatmul.bf16.gmra.mxu0 %v3272
      %v3344 = vpop.f32.mrf.mxu0
      %v3345 = vadd.f32 0.0, %v3344
      %v3346 = vpop.f32.mrf.mxu0
      %v3347 = vadd.f32 0.0, %v3346
      %3348 = vmatmul.bf16.gmra.mxu0 %v3275
      %v3349 = vpop.f32.mrf.mxu0
      %v3350 = vadd.f32 0.0, %v3349
      %v3351 = vpop.f32.mrf.mxu0
      %v3352 = vadd.f32 0.0, %v3351
      %3353 = vmatmul.bf16.gmra.mxu0 %v3278
      %v3354 = vpop.f32.mrf.mxu0
      %v3355 = vadd.f32 0.0, %v3354
      %v3356 = vpop.f32.mrf.mxu0
      %v3357 = vadd.f32 0.0, %v3356
      %3358 = vmatmul.bf16.gmra.mxu0 %v3281
      %v3359 = vpop.f32.mrf.mxu0
      %v3360 = vadd.f32 0.0, %v3359
      %v3361 = vpop.f32.mrf.mxu0
      %v3362 = vadd.f32 0.0, %v3361
      %3363 = vmatmul.bf16.gmra.mxu0 %v3284
      %v3364 = vpop.f32.mrf.mxu0
      %v3365 = vadd.f32 0.0, %v3364
      %v3366 = vpop.f32.mrf.mxu0
      %v3367 = vadd.f32 0.0, %v3366
      %3368 = vmatmul.bf16.gmra.mxu0 %v3287
      %v3369 = vpop.f32.mrf.mxu0
      %v3370 = vadd.f32 0.0, %v3369
      %v3371 = vpop.f32.mrf.mxu0
      %v3372 = vadd.f32 0.0, %v3371
      %3373 = vmatmul.bf16.gmra.mxu0 %v3290
      %v3374 = vpop.f32.mrf.mxu0
      %v3375 = vadd.f32 0.0, %v3374
      %v3376 = vpop.f32.mrf.mxu0
      %v3377 = vadd.f32 0.0, %v3376
      %3378 = vmatmul.bf16.gmra.mxu0 %v3293
      %v3379 = vpop.f32.mrf.mxu0
      %v3380 = vadd.f32 0.0, %v3379
      %v3381 = vpop.f32.mrf.mxu0
      %v3382 = vadd.f32 0.0, %v3381
      %3383 = vmatmul.bf16.gmra.mxu0 %v3296
      %v3384 = vpop.f32.mrf.mxu0
      %v3385 = vadd.f32 0.0, %v3384
      %v3386 = vpop.f32.mrf.mxu0
      %v3387 = vadd.f32 0.0, %v3386
      %3388 = vmatmul.bf16.gmra.mxu0 %v3299
      %v3389 = vpop.f32.mrf.mxu0
      %v3390 = vadd.f32 0.0, %v3389
      %v3391 = vpop.f32.mrf.mxu0
      %v3392 = vadd.f32 0.0, %v3391
      %3393 = vmatmul.bf16.gmra.mxu0 %v3302
      %v3394 = vpop.f32.mrf.mxu0
      %v3395 = vadd.f32 0.0, %v3394
      %v3396 = vpop.f32.mrf.mxu0
      %v3397 = vadd.f32 0.0, %v3396
      %3398 = vmatmul.bf16.gmra.mxu0 %v3305
      %v3399 = vpop.f32.mrf.mxu0
      %v3400 = vadd.f32 0.0, %v3399
      %v3401 = vpop.f32.mrf.mxu0
      %v3402 = vadd.f32 0.0, %v3401
      %3403 = vmatmul.bf16.gmra.mxu0 %v3308
      %v3404 = vpop.f32.mrf.mxu0
      %v3405 = vadd.f32 0.0, %v3404
      %v3406 = vpop.f32.mrf.mxu0
      %v3407 = vadd.f32 0.0, %v3406
      %3408 = vdwg.mxu0
      %v3409 = vadd.f32 %v3028, %v3320
      %v3410 = vadd.f32 %v3029, %v3322
      %v3411 = vadd.f32 %v3030, %v3325
      %v3412 = vadd.f32 %v3031, %v3327
      %v3413 = vadd.f32 %v3032, %v3330
      %v3414 = vadd.f32 %v3033, %v3332
      %v3415 = vadd.f32 %v3034, %v3335
      %v3416 = vadd.f32 %v3035, %v3337
      %v3417 = vadd.f32 %v3036, %v3340
      %v3418 = vadd.f32 %v3037, %v3342
      %v3419 = vadd.f32 %v3038, %v3345
      %v3420 = vadd.f32 %v3039, %v3347
      %v3421 = vadd.f32 %v3040, %v3350
      %v3422 = vadd.f32 %v3041, %v3352
      %v3423 = vadd.f32 %v3042, %v3355
      %v3424 = vadd.f32 %v3043, %v3357
      %v3425 = vadd.f32 %v3044, %v3360
      %v3426 = vadd.f32 %v3045, %v3362
      %v3427 = vadd.f32 %v3046, %v3365
      %v3428 = vadd.f32 %v3047, %v3367
      %v3429 = vadd.f32 %v3048, %v3370
      %v3430 = vadd.f32 %v3049, %v3372
      %v3431 = vadd.f32 %v3050, %v3375
      %v3432 = vadd.f32 %v3051, %v3377
      %v3433 = vadd.f32 %v3052, %v3380
      %v3434 = vadd.f32 %v3053, %v3382
      %v3435 = vadd.f32 %v3054, %v3385
      %v3436 = vadd.f32 %v3055, %v3387
      %v3437 = vadd.f32 %v3056, %v3390
      %v3438 = vadd.f32 %v3057, %v3392
      %v3439 = vadd.f32 %v3058, %v3395
      %v3440 = vadd.f32 %v3059, %v3397
      %v3441 = vadd.f32 %v3060, %v3400
      %v3442 = vadd.f32 %v3061, %v3402
      %v3443 = vadd.f32 %v3062, %v3405
      %v3444 = vadd.f32 %v3063, %v3407
      %v3445 = vld [vmem:[#allocation2 + $0x10] sm:$0x8]
      %s3446 = scalar_lea.vmem %s1, 128
      %v3447 = vld [vmem:[%s3446] sm:$0xf]
      %v3448 = vld [vmem:[%s3446 + $0x4] sm:$0xf]
      %v3449 = vld [vmem:[%s3446 + $0x8] sm:$0xf]
      %v3450 = vld [vmem:[%s3446 + $0xc] sm:$0xf]
      %v3452 = vunpack.c.l.b16 %v3445
      %v3453 = vpack.c.b16 %v2771, %v3452
      %vm3454 = vcmask 1044480
      %v3455 = vrot.slane %v3453, 3
      %v3456 = vrot.slane %v2808, 3
      %v3457 = vsel %vm3454, %v3455, %v3456
      %v3458 = vrot.slane %v2809, 3
      %v3459 = vsel %vm3454, %v3456, %v3458
      %v3460 = vrot.slane %v2810, 3
      %v3461 = vsel %vm3454, %v3458, %v3460
      %v3462 = vrot.slane %v2811, 3
      %v3463 = vsel %vm3454, %v3460, %v3462
      %v3464 = vrot.slane %v2812, 3
      %v3465 = vsel %vm3454, %v3462, %v3464
      %v3466 = vrot.slane %v2813, 3
      %v3467 = vsel %vm3454, %v3464, %v3466
      %v3468 = vrot.slane %v2814, 3
      %v3469 = vsel %vm3454, %v3466, %v3468
      %v3470 = vrot.slane %v2815, 3
      %v3471 = vsel %vm3454, %v3468, %v3470
      %v3472 = vrot.slane %v2816, 3
      %v3473 = vsel %vm3454, %v3470, %v3472
      %v3474 = vrot.slane %v2817, 3
      %v3475 = vsel %vm3454, %v3472, %v3474
      %v3476 = vrot.slane %v2818, 3
      %v3477 = vsel %vm3454, %v3474, %v3476
      %v3478 = vrot.slane %v2819, 3
      %v3479 = vsel %vm3454, %v3476, %v3478
      %v3480 = vrot.slane %v2820, 3
      %v3481 = vsel %vm3454, %v3478, %v3480
      %v3482 = vrot.slane %v2821, 3
      %v3483 = vsel %vm3454, %v3480, %v3482
      %v3484 = vrot.slane %v2822, 3
      %v3485 = vsel %vm3454, %v3482, %v3484
      %v3486 = vrot.slane %v2823, 3
      %v3487 = vsel %vm3454, %v3484, %v3486
      %v3488 = vrot.slane %v2824, 3
      %v3489 = vsel %vm3454, %v3486, %v3488
      %v3490 = vrot.slane %v3072, 3
      %v3491 = vsel %vm3454, %v3488, %v3490
      %v3496 = vunpack.c.l.b16 %v3447
      %v3497 = vunpack.c.l.b16 %v3448
      %v3498 = vunpack.c.l.b16 %v3449
      %v3499 = vunpack.c.l.b16 %v3450
      %v3500 = vpack.c.b16 %v3497, %v3496
      %v3501 = vpack.c.b16 %v3499, %v3498
      %v3505 = vsel %vm1140, %v3457, 0
      %v3508 = vsel %vm1140, %v3459, 0
      %v3511 = vsel %vm1140, %v3461, 0
      %v3514 = vsel %vm1140, %v3463, 0
      %v3517 = vsel %vm1140, %v3465, 0
      %v3520 = vsel %vm1140, %v3467, 0
      %v3523 = vsel %vm1140, %v3469, 0
      %v3526 = vsel %vm1140, %v3471, 0
      %v3529 = vsel %vm1140, %v3473, 0
      %v3532 = vsel %vm1140, %v3475, 0
      %v3535 = vsel %vm1140, %v3477, 0
      %v3538 = vsel %vm1140, %v3479, 0
      %v3541 = vsel %vm1140, %v3481, 0
      %v3544 = vsel %vm1140, %v3483, 0
      %v3547 = vsel %vm1140, %v3485, 0
      %v3550 = vsel %vm1140, %v3487, 0
      %v3553 = vsel %vm1140, %v3489, 0
      %v3556 = vsel %vm1140, %v3491, 0
      %3558 = vmatpush.bf16.msra.mxu0 0
      %3559 = vmatpush.bf16.msra.mxu0 0
      %3560 = vmatpush.bf16.msra.mxu0 0
      %3561 = vmatpush.bf16.msra.mxu0 0
      %3562 = vmatpush.bf16.msra.mxu0 0
      %3563 = vmatpush.bf16.msra.mxu0 0
      %3564 = vmatpush.bf16.msra.mxu0 %v3501
      %3565 = vmatpush.bf16.msra.mxu0 %v3500
      %3566 = vmatmul.bf16.gmra.mxu0 %v3505
      %v3567 = vpop.f32.mrf.mxu0
      %v3568 = vadd.f32 0.0, %v3567
      %v3569 = vpop.f32.mrf.mxu0
      %v3570 = vadd.f32 0.0, %v3569
      %3571 = vmatmul.bf16.gmra.mxu0 %v3508
      %v3572 = vpop.f32.mrf.mxu0
      %v3573 = vadd.f32 0.0, %v3572
      %v3574 = vpop.f32.mrf.mxu0
      %v3575 = vadd.f32 0.0, %v3574
      %3576 = vmatmul.bf16.gmra.mxu0 %v3511
      %v3577 = vpop.f32.mrf.mxu0
      %v3578 = vadd.f32 0.0, %v3577
      %v3579 = vpop.f32.mrf.mxu0
      %v3580 = vadd.f32 0.0, %v3579
      %3581 = vmatmul.bf16.gmra.mxu0 %v3514
      %v3582 = vpop.f32.mrf.mxu0
      %v3583 = vadd.f32 0.0, %v3582
      %v3584 = vpop.f32.mrf.mxu0
      %v3585 = vadd.f32 0.0, %v3584
      %3586 = vmatmul.bf16.gmra.mxu0 %v3517
      %v3587 = vpop.f32.mrf.mxu0
      %v3588 = vadd.f32 0.0, %v3587
      %v3589 = vpop.f32.mrf.mxu0
      %v3590 = vadd.f32 0.0, %v3589
      %3591 = vmatmul.bf16.gmra.mxu0 %v3520
      %v3592 = vpop.f32.mrf.mxu0
      %v3593 = vadd.f32 0.0, %v3592
      %v3594 = vpop.f32.mrf.mxu0
      %v3595 = vadd.f32 0.0, %v3594
      %3596 = vmatmul.bf16.gmra.mxu0 %v3523
      %v3597 = vpop.f32.mrf.mxu0
      %v3598 = vadd.f32 0.0, %v3597
      %v3599 = vpop.f32.mrf.mxu0
      %v3600 = vadd.f32 0.0, %v3599
      %3601 = vmatmul.bf16.gmra.mxu0 %v3526
      %v3602 = vpop.f32.mrf.mxu0
      %v3603 = vadd.f32 0.0, %v3602
      %v3604 = vpop.f32.mrf.mxu0
      %v3605 = vadd.f32 0.0, %v3604
      %3606 = vmatmul.bf16.gmra.mxu0 %v3529
      %v3607 = vpop.f32.mrf.mxu0
      %v3608 = vadd.f32 0.0, %v3607
      %v3609 = vpop.f32.mrf.mxu0
      %v3610 = vadd.f32 0.0, %v3609
      %3611 = vmatmul.bf16.gmra.mxu0 %v3532
      %v3612 = vpop.f32.mrf.mxu0
      %v3613 = vadd.f32 0.0, %v3612
      %v3614 = vpop.f32.mrf.mxu0
      %v3615 = vadd.f32 0.0, %v3614
      %3616 = vmatmul.bf16.gmra.mxu0 %v3535
      %v3617 = vpop.f32.mrf.mxu0
      %v3618 = vadd.f32 0.0, %v3617
      %v3619 = vpop.f32.mrf.mxu0
      %v3620 = vadd.f32 0.0, %v3619
      %3621 = vmatmul.bf16.gmra.mxu0 %v3538
      %v3622 = vpop.f32.mrf.mxu0
      %v3623 = vadd.f32 0.0, %v3622
      %v3624 = vpop.f32.mrf.mxu0
      %v3625 = vadd.f32 0.0, %v3624
      %3626 = vmatmul.bf16.gmra.mxu0 %v3541
      %v3627 = vpop.f32.mrf.mxu0
      %v3628 = vadd.f32 0.0, %v3627
      %v3629 = vpop.f32.mrf.mxu0
      %v3630 = vadd.f32 0.0, %v3629
      %3631 = vmatmul.bf16.gmra.mxu0 %v3544
      %v3632 = vpop.f32.mrf.mxu0
      %v3633 = vadd.f32 0.0, %v3632
      %v3634 = vpop.f32.mrf.mxu0
      %v3635 = vadd.f32 0.0, %v3634
      %3636 = vmatmul.bf16.gmra.mxu0 %v3547
      %v3637 = vpop.f32.mrf.mxu0
      %v3638 = vadd.f32 0.0, %v3637
      %v3639 = vpop.f32.mrf.mxu0
      %v3640 = vadd.f32 0.0, %v3639
      %3641 = vmatmul.bf16.gmra.mxu0 %v3550
      %v3642 = vpop.f32.mrf.mxu0
      %v3643 = vadd.f32 0.0, %v3642
      %v3644 = vpop.f32.mrf.mxu0
      %v3645 = vadd.f32 0.0, %v3644
      %3646 = vmatmul.bf16.gmra.mxu0 %v3553
      %v3647 = vpop.f32.mrf.mxu0
      %v3648 = vadd.f32 0.0, %v3647
      %v3649 = vpop.f32.mrf.mxu0
      %v3650 = vadd.f32 0.0, %v3649
      %3651 = vmatmul.bf16.gmra.mxu0 %v3556
      %v3652 = vpop.f32.mrf.mxu0
      %v3653 = vadd.f32 0.0, %v3652
      %v3654 = vpop.f32.mrf.mxu0
      %v3655 = vadd.f32 0.0, %v3654
      %3656 = vdwg.mxu0
      %v3657 = vadd.f32 %v3409, %v3568
      %v3658 = vadd.f32 %v3410, %v3570
      %v3659 = vadd.f32 %v3411, %v3573
      %v3660 = vadd.f32 %v3412, %v3575
      %v3661 = vadd.f32 %v3413, %v3578
      %v3662 = vadd.f32 %v3414, %v3580
      %v3663 = vadd.f32 %v3415, %v3583
      %v3664 = vadd.f32 %v3416, %v3585
      %v3665 = vadd.f32 %v3417, %v3588
      %v3666 = vadd.f32 %v3418, %v3590
      %v3667 = vadd.f32 %v3419, %v3593
      %v3668 = vadd.f32 %v3420, %v3595
      %v3669 = vadd.f32 %v3421, %v3598
      %v3670 = vadd.f32 %v3422, %v3600
      %v3671 = vadd.f32 %v3423, %v3603
      %v3672 = vadd.f32 %v3424, %v3605
      %v3673 = vadd.f32 %v3425, %v3608
      %v3674 = vadd.f32 %v3426, %v3610
      %v3675 = vadd.f32 %v3427, %v3613
      %v3676 = vadd.f32 %v3428, %v3615
      %v3677 = vadd.f32 %v3429, %v3618
      %v3678 = vadd.f32 %v3430, %v3620
      %v3679 = vadd.f32 %v3431, %v3623
      %v3680 = vadd.f32 %v3432, %v3625
      %v3681 = vadd.f32 %v3433, %v3628
      %v3682 = vadd.f32 %v3434, %v3630
      %v3683 = vadd.f32 %v3435, %v3633
      %v3684 = vadd.f32 %v3436, %v3635
      %v3685 = vadd.f32 %v3437, %v3638
      %v3686 = vadd.f32 %v3438, %v3640
      %v3687 = vadd.f32 %v3439, %v3643
      %v3688 = vadd.f32 %v3440, %v3645
      %v3689 = vadd.f32 %v3441, %v3648
      %v3690 = vadd.f32 %v3442, %v3650
      %v3691 = vadd.f32 %v3443, %v3653
      %v3692 = vadd.f32 %v3444, %v3655
      %v3693 = vld [vmem:[%s2] sm:$0x1]
      %v3695 = vperm.slane %v3693, 0
      %v3697 = vadd.f32 %v3657, %v3695
      %v3698 = vadd.f32 %v3658, %v3695
      %v3699 = vadd.f32 %v3659, %v3695
      %v3700 = vadd.f32 %v3660, %v3695
      %v3701 = vadd.f32 %v3661, %v3695
      %v3702 = vadd.f32 %v3662, %v3695
      %v3703 = vadd.f32 %v3663, %v3695
      %v3704 = vadd.f32 %v3664, %v3695
      %v3705 = vadd.f32 %v3665, %v3695
      %v3706 = vadd.f32 %v3666, %v3695
      %v3707 = vadd.f32 %v3667, %v3695
      %v3708 = vadd.f32 %v3668, %v3695
      %v3709 = vadd.f32 %v3669, %v3695
      %v3710 = vadd.f32 %v3670, %v3695
      %v3711 = vadd.f32 %v3671, %v3695
      %v3712 = vadd.f32 %v3672, %v3695
      %v3713 = vadd.f32 %v3673, %v3695
      %v3714 = vadd.f32 %v3674, %v3695
      %v3715 = vadd.f32 %v3675, %v3695
      %v3716 = vadd.f32 %v3676, %v3695
      %v3717 = vadd.f32 %v3677, %v3695
      %v3718 = vadd.f32 %v3678, %v3695
      %v3719 = vadd.f32 %v3679, %v3695
      %v3720 = vadd.f32 %v3680, %v3695
      %v3721 = vadd.f32 %v3681, %v3695
      %v3722 = vadd.f32 %v3682, %v3695
      %v3723 = vadd.f32 %v3683, %v3695
      %v3724 = vadd.f32 %v3684, %v3695
      %v3725 = vadd.f32 %v3685, %v3695
      %v3726 = vadd.f32 %v3686, %v3695
      %v3727 = vadd.f32 %v3687, %v3695
      %v3728 = vadd.f32 %v3688, %v3695
      %v3729 = vadd.f32 %v3689, %v3695
      %v3730 = vadd.f32 %v3690, %v3695
      %v3731 = vadd.f32 %v3691, %v3695
      %v3732 = vadd.f32 %v3692, %v3695
      %v3733 = vld [vmem:[%s3] sm:$0x1]
      %v3734 = vld [vmem:[%s307] sm:$0xff]
      %v3735 = vld [vmem:[%s307 + $0x8] sm:$0xff]
      %v3736 = vld [vmem:[%s307 + $0x10] sm:$0xff]
      %v3737 = vld [vmem:[%s307 + $0x18] sm:$0xff]
      %v3738 = vld [vmem:[%s307 + $0x20] sm:$0xff]
      %v3739 = vld [vmem:[%s307 + $0x28] sm:$0xff]
      %v3740 = vld [vmem:[%s307 + $0x30] sm:$0xff]
      %v3741 = vld [vmem:[%s307 + $0x38] sm:$0xff]
      %v3742 = vld [vmem:[%s307 + $0x40] sm:$0xff]
      %v3743 = vld [vmem:[%s307 + $0x48] sm:$0xff]
      %v3744 = vld [vmem:[%s307 + $0x50] sm:$0xff]
      %v3745 = vld [vmem:[%s307 + $0x58] sm:$0xff]
      %v3746 = vld [vmem:[%s307 + $0x60] sm:$0xff]
      %v3747 = vld [vmem:[%s307 + $0x68] sm:$0xff]
      %v3748 = vld [vmem:[%s307 + $0x70] sm:$0xff]
      %v3749 = vld [vmem:[%s307 + $0x78] sm:$0xff]
      %v3750 = vld [vmem:[%s307 + $0x80] sm:$0xff]
      %v3751 = vld [vmem:[%s307 + $0x88] sm:$0xff]
      %v3752 = vld [vmem:[%s307 + $0x90] sm:$0xff]
      %v3753 = vld [vmem:[%s307 + $0x98] sm:$0xff]
      %v3754 = vld [vmem:[%s307 + $0xa0] sm:$0xff]
      %v3755 = vld [vmem:[%s307 + $0xa8] sm:$0xff]
      %v3756 = vld [vmem:[%s307 + $0xb0] sm:$0xff]
      %v3757 = vld [vmem:[%s307 + $0xb8] sm:$0xff]
      %v3758 = vld [vmem:[%s307 + $0xc0] sm:$0xff]
      %v3759 = vld [vmem:[%s307 + $0xc8] sm:$0xff]
      %v3760 = vld [vmem:[%s307 + $0xd0] sm:$0xff]
      %v3761 = vld [vmem:[%s307 + $0xd8] sm:$0xff]
      %v3762 = vld [vmem:[%s307 + $0xe0] sm:$0xff]
      %v3763 = vld [vmem:[%s307 + $0xe8] sm:$0xff]
      %v3764 = vld [vmem:[%s307 + $0xf0] sm:$0xff]
      %v3765 = vld [vmem:[%s307 + $0xf8] sm:$0xff]
      %v3766 = vld [vmem:[%s307 + $0x100] sm:$0xff]
      %v3767 = vld [vmem:[%s307 + $0x108] sm:$0xff]
      %v3768 = vld [vmem:[%s307 + $0x110] sm:$0xff]
      %v3769 = vld [vmem:[%s307 + $0x118] sm:$0xff]
      %v3770 = vld [vmem:[%s302] sm:$0x1]
      %v3771 = vld [vmem:[%s6] sm:$0xff]
      %v3772 = vld [vmem:[%s6 + $0x8] sm:$0xff]
      %v3773 = vld [vmem:[%s6 + $0x10] sm:$0xff]
      %v3774 = vld [vmem:[%s6 + $0x18] sm:$0xff]
      %v3775 = vld [vmem:[%s6 + $0x20] sm:$0xff]
      %v3776 = vld [vmem:[%s6 + $0x28] sm:$0xff]
      %v3777 = vld [vmem:[%s6 + $0x30] sm:$0xff]
      %v3778 = vld [vmem:[%s6 + $0x38] sm:$0xff]
      %v3779 = vld [vmem:[%s6 + $0x40] sm:$0xff]
      %v3780 = vld [vmem:[%s6 + $0x48] sm:$0xff]
      %v3781 = vld [vmem:[%s6 + $0x50] sm:$0xff]
      %v3782 = vld [vmem:[%s6 + $0x58] sm:$0xff]
      %v3783 = vld [vmem:[%s6 + $0x60] sm:$0xff]
      %v3784 = vld [vmem:[%s6 + $0x68] sm:$0xff]
      %v3785 = vld [vmem:[%s6 + $0x70] sm:$0xff]
      %v3786 = vld [vmem:[%s6 + $0x78] sm:$0xff]
      %v3787 = vld [vmem:[%s6 + $0x80] sm:$0xff]
      %v3788 = vld [vmem:[%s6 + $0x88] sm:$0xff]
      %v3789 = vld [vmem:[%s6 + $0x90] sm:$0xff]
      %v3790 = vld [vmem:[%s6 + $0x98] sm:$0xff]
      %v3791 = vld [vmem:[%s6 + $0xa0] sm:$0xff]
      %v3792 = vld [vmem:[%s6 + $0xa8] sm:$0xff]
      %v3793 = vld [vmem:[%s6 + $0xb0] sm:$0xff]
      %v3794 = vld [vmem:[%s6 + $0xb8] sm:$0xff]
      %v3795 = vld [vmem:[%s6 + $0xc0] sm:$0xff]
      %v3796 = vld [vmem:[%s6 + $0xc8] sm:$0xff]
      %v3797 = vld [vmem:[%s6 + $0xd0] sm:$0xff]
      %v3798 = vld [vmem:[%s6 + $0xd8] sm:$0xff]
      %v3799 = vld [vmem:[%s6 + $0xe0] sm:$0xff]
      %v3800 = vld [vmem:[%s6 + $0xe8] sm:$0xff]
      %v3801 = vld [vmem:[%s6 + $0xf0] sm:$0xff]
      %v3802 = vld [vmem:[%s6 + $0xf8] sm:$0xff]
      %v3803 = vld [vmem:[%s6 + $0x100] sm:$0xff]
      %v3804 = vld [vmem:[%s6 + $0x108] sm:$0xff]
      %v3805 = vld [vmem:[%s6 + $0x110] sm:$0xff]
      %v3806 = vld [vmem:[%s6 + $0x118] sm:$0xff]
      %v3808 = vperm.slane %v3733, 0
      %3811 = vset.pattern.permute.xlu0 0
      %3812 = vperm.xlu0 %3811, %v3734
      %v3813 = vpop.permute.xlu0 %3812
      %3816 = vset.pattern.permute.xlu0 0
      %3817 = vperm.xlu0 %3816, %v3735
      %v3818 = vpop.permute.xlu0 %3817
      %3821 = vset.pattern.permute.xlu0 0
      %3822 = vperm.xlu0 %3821, %v3736
      %v3823 = vpop.permute.xlu0 %3822
      %3826 = vset.pattern.permute.xlu0 0
      %3827 = vperm.xlu0 %3826, %v3737
      %v3828 = vpop.permute.xlu0 %3827
      %3831 = vset.pattern.permute.xlu0 0
      %3832 = vperm.xlu0 %3831, %v3738
      %v3833 = vpop.permute.xlu0 %3832
      %3836 = vset.pattern.permute.xlu0 0
      %3837 = vperm.xlu0 %3836, %v3739
      %v3838 = vpop.permute.xlu0 %3837
      %3841 = vset.pattern.permute.xlu0 0
      %3842 = vperm.xlu0 %3841, %v3740
      %v3843 = vpop.permute.xlu0 %3842
      %3846 = vset.pattern.permute.xlu0 0
      %3847 = vperm.xlu0 %3846, %v3741
      %v3848 = vpop.permute.xlu0 %3847
      %3851 = vset.pattern.permute.xlu0 0
      %3852 = vperm.xlu0 %3851, %v3742
      %v3853 = vpop.permute.xlu0 %3852
      %3856 = vset.pattern.permute.xlu0 0
      %3857 = vperm.xlu0 %3856, %v3743
      %v3858 = vpop.permute.xlu0 %3857
      %3861 = vset.pattern.permute.xlu0 0
      %3862 = vperm.xlu0 %3861, %v3744
      %v3863 = vpop.permute.xlu0 %3862
      %3866 = vset.pattern.permute.xlu0 0
      %3867 = vperm.xlu0 %3866, %v3745
      %v3868 = vpop.permute.xlu0 %3867
      %3871 = vset.pattern.permute.xlu0 0
      %3872 = vperm.xlu0 %3871, %v3746
      %v3873 = vpop.permute.xlu0 %3872
      %3876 = vset.pattern.permute.xlu0 0
      %3877 = vperm.xlu0 %3876, %v3747
      %v3878 = vpop.permute.xlu0 %3877
      %3881 = vset.pattern.permute.xlu0 0
      %3882 = vperm.xlu0 %3881, %v3748
      %v3883 = vpop.permute.xlu0 %3882
      %3886 = vset.pattern.permute.xlu0 0
      %3887 = vperm.xlu0 %3886, %v3749
      %v3888 = vpop.permute.xlu0 %3887
      %3891 = vset.pattern.permute.xlu0 0
      %3892 = vperm.xlu0 %3891, %v3750
      %v3893 = vpop.permute.xlu0 %3892
      %3896 = vset.pattern.permute.xlu0 0
      %3897 = vperm.xlu0 %3896, %v3751
      %v3898 = vpop.permute.xlu0 %3897
      %3901 = vset.pattern.permute.xlu0 0
      %3902 = vperm.xlu0 %3901, %v3752
      %v3903 = vpop.permute.xlu0 %3902
      %3906 = vset.pattern.permute.xlu0 0
      %3907 = vperm.xlu0 %3906, %v3753
      %v3908 = vpop.permute.xlu0 %3907
      %3911 = vset.pattern.permute.xlu0 0
      %3912 = vperm.xlu0 %3911, %v3754
      %v3913 = vpop.permute.xlu0 %3912
      %3916 = vset.pattern.permute.xlu0 0
      %3917 = vperm.xlu0 %3916, %v3755
      %v3918 = vpop.permute.xlu0 %3917
      %3921 = vset.pattern.permute.xlu0 0
      %3922 = vperm.xlu0 %3921, %v3756
      %v3923 = vpop.permute.xlu0 %3922
      %3926 = vset.pattern.permute.xlu0 0
      %3927 = vperm.xlu0 %3926, %v3757
      %v3928 = vpop.permute.xlu0 %3927
      %3931 = vset.pattern.permute.xlu0 0
      %3932 = vperm.xlu0 %3931, %v3758
      %v3933 = vpop.permute.xlu0 %3932
      %3936 = vset.pattern.permute.xlu0 0
      %3937 = vperm.xlu0 %3936, %v3759
      %v3938 = vpop.permute.xlu0 %3937
      %3941 = vset.pattern.permute.xlu0 0
      %3942 = vperm.xlu0 %3941, %v3760
      %v3943 = vpop.permute.xlu0 %3942
      %3946 = vset.pattern.permute.xlu0 0
      %3947 = vperm.xlu0 %3946, %v3761
      %v3948 = vpop.permute.xlu0 %3947
      %3951 = vset.pattern.permute.xlu0 0
      %3952 = vperm.xlu0 %3951, %v3762
      %v3953 = vpop.permute.xlu0 %3952
      %3956 = vset.pattern.permute.xlu0 0
      %3957 = vperm.xlu0 %3956, %v3763
      %v3958 = vpop.permute.xlu0 %3957
      %3961 = vset.pattern.permute.xlu0 0
      %3962 = vperm.xlu0 %3961, %v3764
      %v3963 = vpop.permute.xlu0 %3962
      %3966 = vset.pattern.permute.xlu0 0
      %3967 = vperm.xlu0 %3966, %v3765
      %v3968 = vpop.permute.xlu0 %3967
      %3971 = vset.pattern.permute.xlu0 0
      %3972 = vperm.xlu0 %3971, %v3766
      %v3973 = vpop.permute.xlu0 %3972
      %3976 = vset.pattern.permute.xlu0 0
      %3977 = vperm.xlu0 %3976, %v3767
      %v3978 = vpop.permute.xlu0 %3977
      %3981 = vset.pattern.permute.xlu0 0
      %3982 = vperm.xlu0 %3981, %v3768
      %v3983 = vpop.permute.xlu0 %3982
      %3986 = vset.pattern.permute.xlu0 0
      %3987 = vperm.xlu0 %3986, %v3769
      %v3988 = vpop.permute.xlu0 %3987
      %v3990 = vmul.f32 %v3808, %v3813
      %v3991 = vmul.f32 %v3808, %v3818
      %v3992 = vmul.f32 %v3808, %v3823
      %v3993 = vmul.f32 %v3808, %v3828
      %v3994 = vmul.f32 %v3808, %v3833
      %v3995 = vmul.f32 %v3808, %v3838
      %v3996 = vmul.f32 %v3808, %v3843
      %v3997 = vmul.f32 %v3808, %v3848
      %v3998 = vmul.f32 %v3808, %v3853
      %v3999 = vmul.f32 %v3808, %v3858
      %v4000 = vmul.f32 %v3808, %v3863
      %v4001 = vmul.f32 %v3808, %v3868
      %v4002 = vmul.f32 %v3808, %v3873
      %v4003 = vmul.f32 %v3808, %v3878
      %v4004 = vmul.f32 %v3808, %v3883
      %v4005 = vmul.f32 %v3808, %v3888
      %v4006 = vmul.f32 %v3808, %v3893
      %v4007 = vmul.f32 %v3808, %v3898
      %v4008 = vmul.f32 %v3808, %v3903
      %v4009 = vmul.f32 %v3808, %v3908
      %v4010 = vmul.f32 %v3808, %v3913
      %v4011 = vmul.f32 %v3808, %v3918
      %v4012 = vmul.f32 %v3808, %v3923
      %v4013 = vmul.f32 %v3808, %v3928
      %v4014 = vmul.f32 %v3808, %v3933
      %v4015 = vmul.f32 %v3808, %v3938
      %v4016 = vmul.f32 %v3808, %v3943
      %v4017 = vmul.f32 %v3808, %v3948
      %v4018 = vmul.f32 %v3808, %v3953
      %v4019 = vmul.f32 %v3808, %v3958
      %v4020 = vmul.f32 %v3808, %v3963
      %v4021 = vmul.f32 %v3808, %v3968
      %v4022 = vmul.f32 %v3808, %v3973
      %v4023 = vmul.f32 %v3808, %v3978
      %v4024 = vmul.f32 %v3808, %v3983
      %v4025 = vmul.f32 %v3808, %v3988
      %v4026 = vadd.f32 %v3697, %v3990
      %v4027 = vadd.f32 %v3698, %v3991
      %v4028 = vadd.f32 %v3699, %v3992
      %v4029 = vadd.f32 %v3700, %v3993
      %v4030 = vadd.f32 %v3701, %v3994
      %v4031 = vadd.f32 %v3702, %v3995
      %v4032 = vadd.f32 %v3703, %v3996
      %v4033 = vadd.f32 %v3704, %v3997
      %v4034 = vadd.f32 %v3705, %v3998
      %v4035 = vadd.f32 %v3706, %v3999
      %v4036 = vadd.f32 %v3707, %v4000
      %v4037 = vadd.f32 %v3708, %v4001
      %v4038 = vadd.f32 %v3709, %v4002
      %v4039 = vadd.f32 %v3710, %v4003
      %v4040 = vadd.f32 %v3711, %v4004
      %v4041 = vadd.f32 %v3712, %v4005
      %v4042 = vadd.f32 %v3713, %v4006
      %v4043 = vadd.f32 %v3714, %v4007
      %v4044 = vadd.f32 %v3715, %v4008
      %v4045 = vadd.f32 %v3716, %v4009
      %v4046 = vadd.f32 %v3717, %v4010
      %v4047 = vadd.f32 %v3718, %v4011
      %v4048 = vadd.f32 %v3719, %v4012
      %v4049 = vadd.f32 %v3720, %v4013
      %v4050 = vadd.f32 %v3721, %v4014
      %v4051 = vadd.f32 %v3722, %v4015
      %v4052 = vadd.f32 %v3723, %v4016
      %v4053 = vadd.f32 %v3724, %v4017
      %v4054 = vadd.f32 %v3725, %v4018
      %v4055 = vadd.f32 %v3726, %v4019
      %v4056 = vadd.f32 %v3727, %v4020
      %v4057 = vadd.f32 %v3728, %v4021
      %v4058 = vadd.f32 %v3729, %v4022
      %v4059 = vadd.f32 %v3730, %v4023
      %v4060 = vadd.f32 %v3731, %v4024
      %v4061 = vadd.f32 %v3732, %v4025
      %vm4062 = vcmp.ge.f32.partialorder %v4026, 0.0
      %vm4063 = vcmp.ge.f32.partialorder %v4027, 0.0
      %vm4064 = vcmp.ge.f32.partialorder %v4028, 0.0
      %vm4065 = vcmp.ge.f32.partialorder %v4029, 0.0
      %vm4066 = vcmp.ge.f32.partialorder %v4030, 0.0
      %vm4067 = vcmp.ge.f32.partialorder %v4031, 0.0
      %vm4068 = vcmp.ge.f32.partialorder %v4032, 0.0
      %vm4069 = vcmp.ge.f32.partialorder %v4033, 0.0
      %vm4070 = vcmp.ge.f32.partialorder %v4034, 0.0
      %vm4071 = vcmp.ge.f32.partialorder %v4035, 0.0
      %vm4072 = vcmp.ge.f32.partialorder %v4036, 0.0
      %vm4073 = vcmp.ge.f32.partialorder %v4037, 0.0
      %vm4074 = vcmp.ge.f32.partialorder %v4038, 0.0
      %vm4075 = vcmp.ge.f32.partialorder %v4039, 0.0
      %vm4076 = vcmp.ge.f32.partialorder %v4040, 0.0
      %vm4077 = vcmp.ge.f32.partialorder %v4041, 0.0
      %vm4078 = vcmp.ge.f32.partialorder %v4042, 0.0
      %vm4079 = vcmp.ge.f32.partialorder %v4043, 0.0
      %vm4080 = vcmp.ge.f32.partialorder %v4044, 0.0
      %vm4081 = vcmp.ge.f32.partialorder %v4045, 0.0
      %vm4082 = vcmp.ge.f32.partialorder %v4046, 0.0
      %vm4083 = vcmp.ge.f32.partialorder %v4047, 0.0
      %vm4084 = vcmp.ge.f32.partialorder %v4048, 0.0
      %vm4085 = vcmp.ge.f32.partialorder %v4049, 0.0
      %vm4086 = vcmp.ge.f32.partialorder %v4050, 0.0
      %vm4087 = vcmp.ge.f32.partialorder %v4051, 0.0
      %vm4088 = vcmp.ge.f32.partialorder %v4052, 0.0
      %vm4089 = vcmp.ge.f32.partialorder %v4053, 0.0
      %vm4090 = vcmp.ge.f32.partialorder %v4054, 0.0
      %vm4091 = vcmp.ge.f32.partialorder %v4055, 0.0
      %vm4092 = vcmp.ge.f32.partialorder %v4056, 0.0
      %vm4093 = vcmp.ge.f32.partialorder %v4057, 0.0
      %vm4094 = vcmp.ge.f32.partialorder %v4058, 0.0
      %vm4095 = vcmp.ge.f32.partialorder %v4059, 0.0
      %vm4096 = vcmp.ge.f32.partialorder %v4060, 0.0
      %vm4097 = vcmp.ge.f32.partialorder %v4061, 0.0
      %v4098 = vmul.f32 %v4026, 0.2
      %v4099 = vmul.f32 %v4027, 0.2
      %v4100 = vmul.f32 %v4028, 0.2
      %v4101 = vmul.f32 %v4029, 0.2
      %v4102 = vmul.f32 %v4030, 0.2
      %v4103 = vmul.f32 %v4031, 0.2
      %v4104 = vmul.f32 %v4032, 0.2
      %v4105 = vmul.f32 %v4033, 0.2
      %v4106 = vmul.f32 %v4034, 0.2
      %v4107 = vmul.f32 %v4035, 0.2
      %v4108 = vmul.f32 %v4036, 0.2
      %v4109 = vmul.f32 %v4037, 0.2
      %v4110 = vmul.f32 %v4038, 0.2
      %v4111 = vmul.f32 %v4039, 0.2
      %v4112 = vmul.f32 %v4040, 0.2
      %v4113 = vmul.f32 %v4041, 0.2
      %v4114 = vmul.f32 %v4042, 0.2
      %v4115 = vmul.f32 %v4043, 0.2
      %v4116 = vmul.f32 %v4044, 0.2
      %v4117 = vmul.f32 %v4045, 0.2
      %v4118 = vmul.f32 %v4046, 0.2
      %v4119 = vmul.f32 %v4047, 0.2
      %v4120 = vmul.f32 %v4048, 0.2
      %v4121 = vmul.f32 %v4049, 0.2
      %v4122 = vmul.f32 %v4050, 0.2
      %v4123 = vmul.f32 %v4051, 0.2
      %v4124 = vmul.f32 %v4052, 0.2
      %v4125 = vmul.f32 %v4053, 0.2
      %v4126 = vmul.f32 %v4054, 0.2
      %v4127 = vmul.f32 %v4055, 0.2
      %v4128 = vmul.f32 %v4056, 0.2
      %v4129 = vmul.f32 %v4057, 0.2
      %v4130 = vmul.f32 %v4058, 0.2
      %v4131 = vmul.f32 %v4059, 0.2
      %v4132 = vmul.f32 %v4060, 0.2
      %v4133 = vmul.f32 %v4061, 0.2
      %v4134 = vsel %vm4062, %v4026, %v4098
      %v4135 = vsel %vm4063, %v4027, %v4099
      %v4136 = vsel %vm4064, %v4028, %v4100
      %v4137 = vsel %vm4065, %v4029, %v4101
      %v4138 = vsel %vm4066, %v4030, %v4102
      %v4139 = vsel %vm4067, %v4031, %v4103
      %v4140 = vsel %vm4068, %v4032, %v4104
      %v4141 = vsel %vm4069, %v4033, %v4105
      %v4142 = vsel %vm4070, %v4034, %v4106
      %v4143 = vsel %vm4071, %v4035, %v4107
      %v4144 = vsel %vm4072, %v4036, %v4108
      %v4145 = vsel %vm4073, %v4037, %v4109
      %v4146 = vsel %vm4074, %v4038, %v4110
      %v4147 = vsel %vm4075, %v4039, %v4111
      %v4148 = vsel %vm4076, %v4040, %v4112
      %v4149 = vsel %vm4077, %v4041, %v4113
      %v4150 = vsel %vm4078, %v4042, %v4114
      %v4151 = vsel %vm4079, %v4043, %v4115
      %v4152 = vsel %vm4080, %v4044, %v4116
      %v4153 = vsel %vm4081, %v4045, %v4117
      %v4154 = vsel %vm4082, %v4046, %v4118
      %v4155 = vsel %vm4083, %v4047, %v4119
      %v4156 = vsel %vm4084, %v4048, %v4120
      %v4157 = vsel %vm4085, %v4049, %v4121
      %v4158 = vsel %vm4086, %v4050, %v4122
      %v4159 = vsel %vm4087, %v4051, %v4123
      %v4160 = vsel %vm4088, %v4052, %v4124
      %v4161 = vsel %vm4089, %v4053, %v4125
      %v4162 = vsel %vm4090, %v4054, %v4126
      %v4163 = vsel %vm4091, %v4055, %v4127
      %v4164 = vsel %vm4092, %v4056, %v4128
      %v4165 = vsel %vm4093, %v4057, %v4129
      %v4166 = vsel %vm4094, %v4058, %v4130
      %v4167 = vsel %vm4095, %v4059, %v4131
      %v4168 = vsel %vm4096, %v4060, %v4132
      %v4169 = vsel %vm4097, %v4061, %v4133
      %4171 = vset.pattern.permute.xlu0 0
      %4172 = vperm.xlu0 %4171, %v3771
      %v4173 = vpop.permute.xlu0 %4172
      %4176 = vset.pattern.permute.xlu0 0
      %4177 = vperm.xlu0 %4176, %v3772
      %v4178 = vpop.permute.xlu0 %4177
      %4181 = vset.pattern.permute.xlu0 0
      %4182 = vperm.xlu0 %4181, %v3773
      %v4183 = vpop.permute.xlu0 %4182
      %4186 = vset.pattern.permute.xlu0 0
      %4187 = vperm.xlu0 %4186, %v3774
      %v4188 = vpop.permute.xlu0 %4187
      %4191 = vset.pattern.permute.xlu0 0
      %4192 = vperm.xlu0 %4191, %v3775
      %v4193 = vpop.permute.xlu0 %4192
      %4196 = vset.pattern.permute.xlu0 0
      %4197 = vperm.xlu0 %4196, %v3776
      %v4198 = vpop.permute.xlu0 %4197
      %4201 = vset.pattern.permute.xlu0 0
      %4202 = vperm.xlu0 %4201, %v3777
      %v4203 = vpop.permute.xlu0 %4202
      %4206 = vset.pattern.permute.xlu0 0
      %4207 = vperm.xlu0 %4206, %v3778
      %v4208 = vpop.permute.xlu0 %4207
      %4211 = vset.pattern.permute.xlu0 0
      %4212 = vperm.xlu0 %4211, %v3779
      %v4213 = vpop.permute.xlu0 %4212
      %4216 = vset.pattern.permute.xlu0 0
      %4217 = vperm.xlu0 %4216, %v3780
      %v4218 = vpop.permute.xlu0 %4217
      %4221 = vset.pattern.permute.xlu0 0
      %4222 = vperm.xlu0 %4221, %v3781
      %v4223 = vpop.permute.xlu0 %4222
      %4226 = vset.pattern.permute.xlu0 0
      %4227 = vperm.xlu0 %4226, %v3782
      %v4228 = vpop.permute.xlu0 %4227
      %4231 = vset.pattern.permute.xlu0 0
      %4232 = vperm.xlu0 %4231, %v3783
      %v4233 = vpop.permute.xlu0 %4232
      %4236 = vset.pattern.permute.xlu0 0
      %4237 = vperm.xlu0 %4236, %v3784
      %v4238 = vpop.permute.xlu0 %4237
      %4241 = vset.pattern.permute.xlu0 0
      %4242 = vperm.xlu0 %4241, %v3785
      %v4243 = vpop.permute.xlu0 %4242
      %4246 = vset.pattern.permute.xlu0 0
      %4247 = vperm.xlu0 %4246, %v3786
      %v4248 = vpop.permute.xlu0 %4247
      %4251 = vset.pattern.permute.xlu0 0
      %4252 = vperm.xlu0 %4251, %v3787
      %v4253 = vpop.permute.xlu0 %4252
      %4256 = vset.pattern.permute.xlu0 0
      %4257 = vperm.xlu0 %4256, %v3788
      %v4258 = vpop.permute.xlu0 %4257
      %4261 = vset.pattern.permute.xlu0 0
      %4262 = vperm.xlu0 %4261, %v3789
      %v4263 = vpop.permute.xlu0 %4262
      %4266 = vset.pattern.permute.xlu0 0
      %4267 = vperm.xlu0 %4266, %v3790
      %v4268 = vpop.permute.xlu0 %4267
      %4271 = vset.pattern.permute.xlu0 0
      %4272 = vperm.xlu0 %4271, %v3791
      %v4273 = vpop.permute.xlu0 %4272
      %4276 = vset.pattern.permute.xlu0 0
      %4277 = vperm.xlu0 %4276, %v3792
      %v4278 = vpop.permute.xlu0 %4277
      %4281 = vset.pattern.permute.xlu0 0
      %4282 = vperm.xlu0 %4281, %v3793
      %v4283 = vpop.permute.xlu0 %4282
      %4286 = vset.pattern.permute.xlu0 0
      %4287 = vperm.xlu0 %4286, %v3794
      %v4288 = vpop.permute.xlu0 %4287
      %4291 = vset.pattern.permute.xlu0 0
      %4292 = vperm.xlu0 %4291, %v3795
      %v4293 = vpop.permute.xlu0 %4292
      %4296 = vset.pattern.permute.xlu0 0
      %4297 = vperm.xlu0 %4296, %v3796
      %v4298 = vpop.permute.xlu0 %4297
      %4301 = vset.pattern.permute.xlu0 0
      %4302 = vperm.xlu0 %4301, %v3797
      %v4303 = vpop.permute.xlu0 %4302
      %4306 = vset.pattern.permute.xlu0 0
      %4307 = vperm.xlu0 %4306, %v3798
      %v4308 = vpop.permute.xlu0 %4307
      %4311 = vset.pattern.permute.xlu0 0
      %4312 = vperm.xlu0 %4311, %v3799
      %v4313 = vpop.permute.xlu0 %4312
      %4316 = vset.pattern.permute.xlu0 0
      %4317 = vperm.xlu0 %4316, %v3800
      %v4318 = vpop.permute.xlu0 %4317
      %4321 = vset.pattern.permute.xlu0 0
      %4322 = vperm.xlu0 %4321, %v3801
      %v4323 = vpop.permute.xlu0 %4322
      %4326 = vset.pattern.permute.xlu0 0
      %4327 = vperm.xlu0 %4326, %v3802
      %v4328 = vpop.permute.xlu0 %4327
      %4331 = vset.pattern.permute.xlu0 0
      %4332 = vperm.xlu0 %4331, %v3803
      %v4333 = vpop.permute.xlu0 %4332
      %4336 = vset.pattern.permute.xlu0 0
      %4337 = vperm.xlu0 %4336, %v3804
      %v4338 = vpop.permute.xlu0 %4337
      %4341 = vset.pattern.permute.xlu0 0
      %4342 = vperm.xlu0 %4341, %v3805
      %v4343 = vpop.permute.xlu0 %4342
      %4346 = vset.pattern.permute.xlu0 0
      %4347 = vperm.xlu0 %4346, %v3806
      %v4348 = vpop.permute.xlu0 %4347
      %v4350 = vmul.f32 %v4134, %v4173
      %v4351 = vmul.f32 %v4135, %v4178
      %v4352 = vmul.f32 %v4136, %v4183
      %v4353 = vmul.f32 %v4137, %v4188
      %v4354 = vmul.f32 %v4138, %v4193
      %v4355 = vmul.f32 %v4139, %v4198
      %v4356 = vmul.f32 %v4140, %v4203
      %v4357 = vmul.f32 %v4141, %v4208
      %v4358 = vmul.f32 %v4142, %v4213
      %v4359 = vmul.f32 %v4143, %v4218
      %v4360 = vmul.f32 %v4144, %v4223
      %v4361 = vmul.f32 %v4145, %v4228
      %v4362 = vmul.f32 %v4146, %v4233
      %v4363 = vmul.f32 %v4147, %v4238
      %v4364 = vmul.f32 %v4148, %v4243
      %v4365 = vmul.f32 %v4149, %v4248
      %v4366 = vmul.f32 %v4150, %v4253
      %v4367 = vmul.f32 %v4151, %v4258
      %v4368 = vmul.f32 %v4152, %v4263
      %v4369 = vmul.f32 %v4153, %v4268
      %v4370 = vmul.f32 %v4154, %v4273
      %v4371 = vmul.f32 %v4155, %v4278
      %v4372 = vmul.f32 %v4156, %v4283
      %v4373 = vmul.f32 %v4157, %v4288
      %v4374 = vmul.f32 %v4158, %v4293
      %v4375 = vmul.f32 %v4159, %v4298
      %v4376 = vmul.f32 %v4160, %v4303
      %v4377 = vmul.f32 %v4161, %v4308
      %v4378 = vmul.f32 %v4162, %v4313
      %v4379 = vmul.f32 %v4163, %v4318
      %v4380 = vmul.f32 %v4164, %v4323
      %v4381 = vmul.f32 %v4165, %v4328
      %v4382 = vmul.f32 %v4166, %v4333
      %v4383 = vmul.f32 %v4167, %v4338
      %v4384 = vmul.f32 %v4168, %v4343
      %v4385 = vmul.f32 %v4169, %v4348
      %v4386 = vsel %vm1140, %v4350, 0.0
      %v4387 = vsel %vm1140, %v4351, 0.0
      %v4388 = vadd.f32 %v4386, %v4387
      %v4389 = vsel %vm1140, %v4352, 0.0
      %v4390 = vadd.f32 %v4388, %v4389
      %v4391 = vsel %vm1140, %v4353, 0.0
      %v4392 = vadd.f32 %v4390, %v4391
      %v4393 = vsel %vm1140, %v4354, 0.0
      %v4394 = vadd.f32 %v4392, %v4393
      %v4395 = vsel %vm1140, %v4355, 0.0
      %v4396 = vadd.f32 %v4394, %v4395
      %v4397 = vsel %vm1140, %v4356, 0.0
      %v4398 = vadd.f32 %v4396, %v4397
      %v4399 = vsel %vm1140, %v4357, 0.0
      %v4400 = vadd.f32 %v4398, %v4399
      %v4401 = vsel %vm1140, %v4358, 0.0
      %v4402 = vadd.f32 %v4400, %v4401
      %v4403 = vsel %vm1140, %v4359, 0.0
      %v4404 = vadd.f32 %v4402, %v4403
      %v4405 = vsel %vm1140, %v4360, 0.0
      %v4406 = vadd.f32 %v4404, %v4405
      %v4407 = vsel %vm1140, %v4361, 0.0
      %v4408 = vadd.f32 %v4406, %v4407
      %v4409 = vsel %vm1140, %v4362, 0.0
      %v4410 = vadd.f32 %v4408, %v4409
      %v4411 = vsel %vm1140, %v4363, 0.0
      %v4412 = vadd.f32 %v4410, %v4411
      %v4413 = vsel %vm1140, %v4364, 0.0
      %v4414 = vadd.f32 %v4412, %v4413
      %v4415 = vsel %vm1140, %v4365, 0.0
      %v4416 = vadd.f32 %v4414, %v4415
      %v4417 = vsel %vm1140, %v4366, 0.0
      %v4418 = vadd.f32 %v4416, %v4417
      %v4419 = vsel %vm1140, %v4367, 0.0
      %v4420 = vadd.f32 %v4418, %v4419
      %v4421 = vsel %vm1140, %v4368, 0.0
      %v4422 = vadd.f32 %v4420, %v4421
      %v4423 = vsel %vm1140, %v4369, 0.0
      %v4424 = vadd.f32 %v4422, %v4423
      %v4425 = vsel %vm1140, %v4370, 0.0
      %v4426 = vadd.f32 %v4424, %v4425
      %v4427 = vsel %vm1140, %v4371, 0.0
      %v4428 = vadd.f32 %v4426, %v4427
      %v4429 = vsel %vm1140, %v4372, 0.0
      %v4430 = vadd.f32 %v4428, %v4429
      %v4431 = vsel %vm1140, %v4373, 0.0
      %v4432 = vadd.f32 %v4430, %v4431
      %v4433 = vsel %vm1140, %v4374, 0.0
      %v4434 = vadd.f32 %v4432, %v4433
      %v4435 = vsel %vm1140, %v4375, 0.0
      %v4436 = vadd.f32 %v4434, %v4435
      %v4437 = vsel %vm1140, %v4376, 0.0
      %v4438 = vadd.f32 %v4436, %v4437
      %v4439 = vsel %vm1140, %v4377, 0.0
      %v4440 = vadd.f32 %v4438, %v4439
      %v4441 = vsel %vm1140, %v4378, 0.0
      %v4442 = vadd.f32 %v4440, %v4441
      %v4443 = vsel %vm1140, %v4379, 0.0
      %v4444 = vadd.f32 %v4442, %v4443
      %v4445 = vsel %vm1140, %v4380, 0.0
      %v4446 = vadd.f32 %v4444, %v4445
      %v4447 = vsel %vm1140, %v4381, 0.0
      %v4448 = vadd.f32 %v4446, %v4447
      %v4449 = vsel %vm1140, %v4382, 0.0
      %v4450 = vadd.f32 %v4448, %v4449
      %v4451 = vsel %vm1140, %v4383, 0.0
      %v4452 = vadd.f32 %v4450, %v4451
      %v4453 = vsel %vm1140, %v4384, 0.0
      %v4454 = vadd.f32 %v4452, %v4453
      %v4455 = vsel %vm1140, %v4385, 0.0
      %v4456 = vadd.f32 %v4454, %v4455
      %v4457 = vrot.slane %v4456, 4
      %v4458 = vadd.f32 %v4456, %v4457
      %v4459 = vrot.slane %v4458, 2
      %v4460 = vadd.f32 %v4458, %v4459
      %v4461 = vrot.slane %v4460, 1
      %v4462 = vadd.f32 %v4460, %v4461
      %v4463 = vmul.f32 %v4462, 0.00390625
      %v4464 = vsub.f32 %v4134, %v4463
      %v4465 = vsub.f32 %v4135, %v4463
      %v4466 = vsub.f32 %v4136, %v4463
      %v4467 = vsub.f32 %v4137, %v4463
      %v4468 = vsub.f32 %v4138, %v4463
      %v4469 = vsub.f32 %v4139, %v4463
      %v4470 = vsub.f32 %v4140, %v4463
      %v4471 = vsub.f32 %v4141, %v4463
      %v4472 = vsub.f32 %v4142, %v4463
      %v4473 = vsub.f32 %v4143, %v4463
      %v4474 = vsub.f32 %v4144, %v4463
      %v4475 = vsub.f32 %v4145, %v4463
      %v4476 = vsub.f32 %v4146, %v4463
      %v4477 = vsub.f32 %v4147, %v4463
      %v4478 = vsub.f32 %v4148, %v4463
      %v4479 = vsub.f32 %v4149, %v4463
      %v4480 = vsub.f32 %v4150, %v4463
      %v4481 = vsub.f32 %v4151, %v4463
      %v4482 = vsub.f32 %v4152, %v4463
      %v4483 = vsub.f32 %v4153, %v4463
      %v4484 = vsub.f32 %v4154, %v4463
      %v4485 = vsub.f32 %v4155, %v4463
      %v4486 = vsub.f32 %v4156, %v4463
      %v4487 = vsub.f32 %v4157, %v4463
      %v4488 = vsub.f32 %v4158, %v4463
      %v4489 = vsub.f32 %v4159, %v4463
      %v4490 = vsub.f32 %v4160, %v4463
      %v4491 = vsub.f32 %v4161, %v4463
      %v4492 = vsub.f32 %v4162, %v4463
      %v4493 = vsub.f32 %v4163, %v4463
      %v4494 = vsub.f32 %v4164, %v4463
      %v4495 = vsub.f32 %v4165, %v4463
      %v4496 = vsub.f32 %v4166, %v4463
      %v4497 = vsub.f32 %v4167, %v4463
      %v4498 = vsub.f32 %v4168, %v4463
      %v4499 = vsub.f32 %v4169, %v4463
      %v4500 = vmul.f32 %v4464, %v4464
      %v4501 = vmul.f32 %v4465, %v4465
      %v4502 = vmul.f32 %v4466, %v4466
      %v4503 = vmul.f32 %v4467, %v4467
      %v4504 = vmul.f32 %v4468, %v4468
      %v4505 = vmul.f32 %v4469, %v4469
      %v4506 = vmul.f32 %v4470, %v4470
      %v4507 = vmul.f32 %v4471, %v4471
      %v4508 = vmul.f32 %v4472, %v4472
      %v4509 = vmul.f32 %v4473, %v4473
      %v4510 = vmul.f32 %v4474, %v4474
      %v4511 = vmul.f32 %v4475, %v4475
      %v4512 = vmul.f32 %v4476, %v4476
      %v4513 = vmul.f32 %v4477, %v4477
      %v4514 = vmul.f32 %v4478, %v4478
      %v4515 = vmul.f32 %v4479, %v4479
      %v4516 = vmul.f32 %v4480, %v4480
      %v4517 = vmul.f32 %v4481, %v4481
      %v4518 = vmul.f32 %v4482, %v4482
      %v4519 = vmul.f32 %v4483, %v4483
      %v4520 = vmul.f32 %v4484, %v4484
      %v4521 = vmul.f32 %v4485, %v4485
      %v4522 = vmul.f32 %v4486, %v4486
      %v4523 = vmul.f32 %v4487, %v4487
      %v4524 = vmul.f32 %v4488, %v4488
      %v4525 = vmul.f32 %v4489, %v4489
      %v4526 = vmul.f32 %v4490, %v4490
      %v4527 = vmul.f32 %v4491, %v4491
      %v4528 = vmul.f32 %v4492, %v4492
      %v4529 = vmul.f32 %v4493, %v4493
      %v4530 = vmul.f32 %v4494, %v4494
      %v4531 = vmul.f32 %v4495, %v4495
      %v4532 = vmul.f32 %v4496, %v4496
      %v4533 = vmul.f32 %v4497, %v4497
      %v4534 = vmul.f32 %v4498, %v4498
      %v4535 = vmul.f32 %v4499, %v4499
      %v4536 = vmul.f32 %v4500, %v4173
      %v4537 = vmul.f32 %v4501, %v4178
      %v4538 = vmul.f32 %v4502, %v4183
      %v4539 = vmul.f32 %v4503, %v4188
      %v4540 = vmul.f32 %v4504, %v4193
      %v4541 = vmul.f32 %v4505, %v4198
      %v4542 = vmul.f32 %v4506, %v4203
      %v4543 = vmul.f32 %v4507, %v4208
      %v4544 = vmul.f32 %v4508, %v4213
      %v4545 = vmul.f32 %v4509, %v4218
      %v4546 = vmul.f32 %v4510, %v4223
      %v4547 = vmul.f32 %v4511, %v4228
      %v4548 = vmul.f32 %v4512, %v4233
      %v4549 = vmul.f32 %v4513, %v4238
      %v4550 = vmul.f32 %v4514, %v4243
      %v4551 = vmul.f32 %v4515, %v4248
      %v4552 = vmul.f32 %v4516, %v4253
      %v4553 = vmul.f32 %v4517, %v4258
      %v4554 = vmul.f32 %v4518, %v4263
      %v4555 = vmul.f32 %v4519, %v4268
      %v4556 = vmul.f32 %v4520, %v4273
      %v4557 = vmul.f32 %v4521, %v4278
      %v4558 = vmul.f32 %v4522, %v4283
      %v4559 = vmul.f32 %v4523, %v4288
      %v4560 = vmul.f32 %v4524, %v4293
      %v4561 = vmul.f32 %v4525, %v4298
      %v4562 = vmul.f32 %v4526, %v4303
      %v4563 = vmul.f32 %v4527, %v4308
      %v4564 = vmul.f32 %v4528, %v4313
      %v4565 = vmul.f32 %v4529, %v4318
      %v4566 = vmul.f32 %v4530, %v4323
      %v4567 = vmul.f32 %v4531, %v4328
      %v4568 = vmul.f32 %v4532, %v4333
      %v4569 = vmul.f32 %v4533, %v4338
      %v4570 = vmul.f32 %v4534, %v4343
      %v4571 = vmul.f32 %v4535, %v4348
      %v4572 = vsel %vm1140, %v4536, 0.0
      %v4573 = vsel %vm1140, %v4537, 0.0
      %v4574 = vadd.f32 %v4572, %v4573
      %v4575 = vsel %vm1140, %v4538, 0.0
      %v4576 = vadd.f32 %v4574, %v4575
      %v4577 = vsel %vm1140, %v4539, 0.0
      %v4578 = vadd.f32 %v4576, %v4577
      %v4579 = vsel %vm1140, %v4540, 0.0
      %v4580 = vadd.f32 %v4578, %v4579
      %v4581 = vsel %vm1140, %v4541, 0.0
      %v4582 = vadd.f32 %v4580, %v4581
      %v4583 = vsel %vm1140, %v4542, 0.0
      %v4584 = vadd.f32 %v4582, %v4583
      %v4585 = vsel %vm1140, %v4543, 0.0
      %v4586 = vadd.f32 %v4584, %v4585
      %v4587 = vsel %vm1140, %v4544, 0.0
      %v4588 = vadd.f32 %v4586, %v4587
      %v4589 = vsel %vm1140, %v4545, 0.0
      %v4590 = vadd.f32 %v4588, %v4589
      %v4591 = vsel %vm1140, %v4546, 0.0
      %v4592 = vadd.f32 %v4590, %v4591
      %v4593 = vsel %vm1140, %v4547, 0.0
      %v4594 = vadd.f32 %v4592, %v4593
      %v4595 = vsel %vm1140, %v4548, 0.0
      %v4596 = vadd.f32 %v4594, %v4595
      %v4597 = vsel %vm1140, %v4549, 0.0
      %v4598 = vadd.f32 %v4596, %v4597
      %v4599 = vsel %vm1140, %v4550, 0.0
      %v4600 = vadd.f32 %v4598, %v4599
      %v4601 = vsel %vm1140, %v4551, 0.0
      %v4602 = vadd.f32 %v4600, %v4601
      %v4603 = vsel %vm1140, %v4552, 0.0
      %v4604 = vadd.f32 %v4602, %v4603
      %v4605 = vsel %vm1140, %v4553, 0.0
      %v4606 = vadd.f32 %v4604, %v4605
      %v4607 = vsel %vm1140, %v4554, 0.0
      %v4608 = vadd.f32 %v4606, %v4607
      %v4609 = vsel %vm1140, %v4555, 0.0
      %v4610 = vadd.f32 %v4608, %v4609
      %v4611 = vsel %vm1140, %v4556, 0.0
      %v4612 = vadd.f32 %v4610, %v4611
      %v4613 = vsel %vm1140, %v4557, 0.0
      %v4614 = vadd.f32 %v4612, %v4613
      %v4615 = vsel %vm1140, %v4558, 0.0
      %v4616 = vadd.f32 %v4614, %v4615
      %v4617 = vsel %vm1140, %v4559, 0.0
      %v4618 = vadd.f32 %v4616, %v4617
      %v4619 = vsel %vm1140, %v4560, 0.0
      %v4620 = vadd.f32 %v4618, %v4619
      %v4621 = vsel %vm1140, %v4561, 0.0
      %v4622 = vadd.f32 %v4620, %v4621
      %v4623 = vsel %vm1140, %v4562, 0.0
      %v4624 = vadd.f32 %v4622, %v4623
      %v4625 = vsel %vm1140, %v4563, 0.0
      %v4626 = vadd.f32 %v4624, %v4625
      %v4627 = vsel %vm1140, %v4564, 0.0
      %v4628 = vadd.f32 %v4626, %v4627
      %v4629 = vsel %vm1140, %v4565, 0.0
      %v4630 = vadd.f32 %v4628, %v4629
      %v4631 = vsel %vm1140, %v4566, 0.0
      %v4632 = vadd.f32 %v4630, %v4631
      %v4633 = vsel %vm1140, %v4567, 0.0
      %v4634 = vadd.f32 %v4632, %v4633
      %v4635 = vsel %vm1140, %v4568, 0.0
      %v4636 = vadd.f32 %v4634, %v4635
      %v4637 = vsel %vm1140, %v4569, 0.0
      %v4638 = vadd.f32 %v4636, %v4637
      %v4639 = vsel %vm1140, %v4570, 0.0
      %v4640 = vadd.f32 %v4638, %v4639
      %v4641 = vsel %vm1140, %v4571, 0.0
      %v4642 = vadd.f32 %v4640, %v4641
      %v4643 = vrot.slane %v4642, 4
      %v4644 = vadd.f32 %v4642, %v4643
      %v4645 = vrot.slane %v4644, 2
      %v4646 = vadd.f32 %v4644, %v4645
      %v4647 = vrot.slane %v4646, 1
      %v4648 = vadd.f32 %v4646, %v4647
      %v4649 = vmul.f32 %v4648, 0.00390625
      %v4650 = vadd.f32 %v4649, 1e-05
      %v4651 = vrsqrt.pop %v4650
      %v4652 = vmul.f32 %v4651, %v4650
      %v4653 = vmul.f32 %v4652, %v4651
      %v4654 = vmul.f32 0.5, %v4653
      %v4655 = vsub.f32 1.5, %v4654
      %v4656 = vmul.f32 %v4651, %v4655
      %vm4657 = vweird.f32 %v4650
      %vm4658 = vweird.f32 %v4651
      %vm4659 = vmor %vm4657, %vm4658
      %v4660 = vsel %vm4659, %v4651, %v4656
      %v4661 = vmul.f32 %v4464, %v4660
      %v4662 = vmul.f32 %v4465, %v4660
      %v4663 = vmul.f32 %v4466, %v4660
      %v4664 = vmul.f32 %v4467, %v4660
      %v4665 = vmul.f32 %v4468, %v4660
      %v4666 = vmul.f32 %v4469, %v4660
      %v4667 = vmul.f32 %v4470, %v4660
      %v4668 = vmul.f32 %v4471, %v4660
      %v4669 = vmul.f32 %v4472, %v4660
      %v4670 = vmul.f32 %v4473, %v4660
      %v4671 = vmul.f32 %v4474, %v4660
      %v4672 = vmul.f32 %v4475, %v4660
      %v4673 = vmul.f32 %v4476, %v4660
      %v4674 = vmul.f32 %v4477, %v4660
      %v4675 = vmul.f32 %v4478, %v4660
      %v4676 = vmul.f32 %v4479, %v4660
      %v4677 = vmul.f32 %v4480, %v4660
      %v4678 = vmul.f32 %v4481, %v4660
      %v4679 = vmul.f32 %v4482, %v4660
      %v4680 = vmul.f32 %v4483, %v4660
      %v4681 = vmul.f32 %v4484, %v4660
      %v4682 = vmul.f32 %v4485, %v4660
      %v4683 = vmul.f32 %v4486, %v4660
      %v4684 = vmul.f32 %v4487, %v4660
      %v4685 = vmul.f32 %v4488, %v4660
      %v4686 = vmul.f32 %v4489, %v4660
      %v4687 = vmul.f32 %v4490, %v4660
      %v4688 = vmul.f32 %v4491, %v4660
      %v4689 = vmul.f32 %v4492, %v4660
      %v4690 = vmul.f32 %v4493, %v4660
      %v4691 = vmul.f32 %v4494, %v4660
      %v4692 = vmul.f32 %v4495, %v4660
      %v4693 = vmul.f32 %v4496, %v4660
      %v4694 = vmul.f32 %v4497, %v4660
      %v4695 = vmul.f32 %v4498, %v4660
      %v4696 = vmul.f32 %v4499, %v4660
      %v4697 = vadd.f32 %v3770, 1.0
      %v4699 = vperm.slane %v4697, 0
      %v4701 = vmul.f32 %v4661, %v4699
      %v4702 = vmul.f32 %v4662, %v4699
      %v4703 = vmul.f32 %v4663, %v4699
      %v4704 = vmul.f32 %v4664, %v4699
      %v4705 = vmul.f32 %v4665, %v4699
      %v4706 = vmul.f32 %v4666, %v4699
      %v4707 = vmul.f32 %v4667, %v4699
      %v4708 = vmul.f32 %v4668, %v4699
      %v4709 = vmul.f32 %v4669, %v4699
      %v4710 = vmul.f32 %v4670, %v4699
      %v4711 = vmul.f32 %v4671, %v4699
      %v4712 = vmul.f32 %v4672, %v4699
      %v4713 = vmul.f32 %v4673, %v4699
      %v4714 = vmul.f32 %v4674, %v4699
      %v4715 = vmul.f32 %v4675, %v4699
      %v4716 = vmul.f32 %v4676, %v4699
      %v4717 = vmul.f32 %v4677, %v4699
      %v4718 = vmul.f32 %v4678, %v4699
      %v4719 = vmul.f32 %v4679, %v4699
      %v4720 = vmul.f32 %v4680, %v4699
      %v4721 = vmul.f32 %v4681, %v4699
      %v4722 = vmul.f32 %v4682, %v4699
      %v4723 = vmul.f32 %v4683, %v4699
      %v4724 = vmul.f32 %v4684, %v4699
      %v4725 = vmul.f32 %v4685, %v4699
      %v4726 = vmul.f32 %v4686, %v4699
      %v4727 = vmul.f32 %v4687, %v4699
      %v4728 = vmul.f32 %v4688, %v4699
      %v4729 = vmul.f32 %v4689, %v4699
      %v4730 = vmul.f32 %v4690, %v4699
      %v4731 = vmul.f32 %v4691, %v4699
      %v4732 = vmul.f32 %v4692, %v4699
      %v4733 = vmul.f32 %v4693, %v4699
      %v4734 = vmul.f32 %v4694, %v4699
      %v4735 = vmul.f32 %v4695, %v4699
      %v4736 = vmul.f32 %v4696, %v4699
      %v4738 = vperm.slane %v3770, 0
      %4739 = vrot.lane.b32.xlu0 %v4738, 96
      %v4740 = vpop.permute.xlu0 %4739
      %v4742 = vadd.f32 %v4701, %v4740
      %v4743 = vadd.f32 %v4702, %v4740
      %v4744 = vadd.f32 %v4703, %v4740
      %v4745 = vadd.f32 %v4704, %v4740
      %v4746 = vadd.f32 %v4705, %v4740
      %v4747 = vadd.f32 %v4706, %v4740
      %v4748 = vadd.f32 %v4707, %v4740
      %v4749 = vadd.f32 %v4708, %v4740
      %v4750 = vadd.f32 %v4709, %v4740
      %v4751 = vadd.f32 %v4710, %v4740
      %v4752 = vadd.f32 %v4711, %v4740
      %v4753 = vadd.f32 %v4712, %v4740
      %v4754 = vadd.f32 %v4713, %v4740
      %v4755 = vadd.f32 %v4714, %v4740
      %v4756 = vadd.f32 %v4715, %v4740
      %v4757 = vadd.f32 %v4716, %v4740
      %v4758 = vadd.f32 %v4717, %v4740
      %v4759 = vadd.f32 %v4718, %v4740
      %v4760 = vadd.f32 %v4719, %v4740
      %v4761 = vadd.f32 %v4720, %v4740
      %v4762 = vadd.f32 %v4721, %v4740
      %v4763 = vadd.f32 %v4722, %v4740
      %v4764 = vadd.f32 %v4723, %v4740
      %v4765 = vadd.f32 %v4724, %v4740
      %v4766 = vadd.f32 %v4725, %v4740
      %v4767 = vadd.f32 %v4726, %v4740
      %v4768 = vadd.f32 %v4727, %v4740
      %v4769 = vadd.f32 %v4728, %v4740
      %v4770 = vadd.f32 %v4729, %v4740
      %v4771 = vadd.f32 %v4730, %v4740
      %v4772 = vadd.f32 %v4731, %v4740
      %v4773 = vadd.f32 %v4732, %v4740
      %v4774 = vadd.f32 %v4733, %v4740
      %v4775 = vadd.f32 %v4734, %v4740
      %v4776 = vadd.f32 %v4735, %v4740
      %v4777 = vadd.f32 %v4736, %v4740
      %v4778 = vmul.f32 %v4742, %v4173
      %v4779 = vmul.f32 %v4743, %v4178
      %v4780 = vmul.f32 %v4744, %v4183
      %v4781 = vmul.f32 %v4745, %v4188
      %v4782 = vmul.f32 %v4746, %v4193
      %v4783 = vmul.f32 %v4747, %v4198
      %v4784 = vmul.f32 %v4748, %v4203
      %v4785 = vmul.f32 %v4749, %v4208
      %v4786 = vmul.f32 %v4750, %v4213
      %v4787 = vmul.f32 %v4751, %v4218
      %v4788 = vmul.f32 %v4752, %v4223
      %v4789 = vmul.f32 %v4753, %v4228
      %v4790 = vmul.f32 %v4754, %v4233
      %v4791 = vmul.f32 %v4755, %v4238
      %v4792 = vmul.f32 %v4756, %v4243
      %v4793 = vmul.f32 %v4757, %v4248
      %v4794 = vmul.f32 %v4758, %v4253
      %v4795 = vmul.f32 %v4759, %v4258
      %v4796 = vmul.f32 %v4760, %v4263
      %v4797 = vmul.f32 %v4761, %v4268
      %v4798 = vmul.f32 %v4762, %v4273
      %v4799 = vmul.f32 %v4763, %v4278
      %v4800 = vmul.f32 %v4764, %v4283
      %v4801 = vmul.f32 %v4765, %v4288
      %v4802 = vmul.f32 %v4766, %v4293
      %v4803 = vmul.f32 %v4767, %v4298
      %v4804 = vmul.f32 %v4768, %v4303
      %v4805 = vmul.f32 %v4769, %v4308
      %v4806 = vmul.f32 %v4770, %v4313
      %v4807 = vmul.f32 %v4771, %v4318
      %v4808 = vmul.f32 %v4772, %v4323
      %v4809 = vmul.f32 %v4773, %v4328
      %v4810 = vmul.f32 %v4774, %v4333
      %v4811 = vmul.f32 %v4775, %v4338
      %v4812 = vmul.f32 %v4776, %v4343
      %v4813 = vmul.f32 %v4777, %v4348
      %v4814 = vpack.c.bf16 %v4778, %v4778
      %v4815 = vpack.c.bf16 %v4779, %v4779
      %v4816 = vpack.c.bf16 %v4780, %v4780
      %v4817 = vpack.c.bf16 %v4781, %v4781
      %v4818 = vpack.c.bf16 %v4782, %v4782
      %v4819 = vpack.c.bf16 %v4783, %v4783
      %v4820 = vpack.c.bf16 %v4784, %v4784
      %v4821 = vpack.c.bf16 %v4785, %v4785
      %v4822 = vpack.c.bf16 %v4786, %v4786
      %v4823 = vpack.c.bf16 %v4787, %v4787
      %v4824 = vpack.c.bf16 %v4788, %v4788
      %v4825 = vpack.c.bf16 %v4789, %v4789
      %v4826 = vpack.c.bf16 %v4790, %v4790
      %v4827 = vpack.c.bf16 %v4791, %v4791
      %v4828 = vpack.c.bf16 %v4792, %v4792
      %v4829 = vpack.c.bf16 %v4793, %v4793
      %v4830 = vpack.c.bf16 %v4794, %v4794
      %v4831 = vpack.c.bf16 %v4795, %v4795
      %v4832 = vpack.c.bf16 %v4796, %v4796
      %v4833 = vpack.c.bf16 %v4797, %v4797
      %v4834 = vpack.c.bf16 %v4798, %v4798
      %v4835 = vpack.c.bf16 %v4799, %v4799
      %v4836 = vpack.c.bf16 %v4800, %v4800
      %v4837 = vpack.c.bf16 %v4801, %v4801
      %v4838 = vpack.c.bf16 %v4802, %v4802
      %v4839 = vpack.c.bf16 %v4803, %v4803
      %v4840 = vpack.c.bf16 %v4804, %v4804
      %v4841 = vpack.c.bf16 %v4805, %v4805
      %v4842 = vpack.c.bf16 %v4806, %v4806
      %v4843 = vpack.c.bf16 %v4807, %v4807
      %v4844 = vpack.c.bf16 %v4808, %v4808
      %v4845 = vpack.c.bf16 %v4809, %v4809
      %v4846 = vpack.c.bf16 %v4810, %v4810
      %v4847 = vpack.c.bf16 %v4811, %v4811
      %v4848 = vpack.c.bf16 %v4812, %v4812
      %v4849 = vpack.c.bf16 %v4813, %v4813
      %4850 = vst.msk [vmem:[%s312] sm:$0xf] %vm314, %v4814
      %4851 = vst.msk [vmem:[%s312 + $0x4] sm:$0xf] %vm314, %v4815
      %4852 = vst.msk [vmem:[%s312 + $0x8] sm:$0xf] %vm314, %v4816
      %4853 = vst.msk [vmem:[%s312 + $0xc] sm:$0xf] %vm314, %v4817
      %4854 = vst.msk [vmem:[%s312 + $0x10] sm:$0xf] %vm314, %v4818
      %4855 = vst.msk [vmem:[%s312 + $0x14] sm:$0xf] %vm314, %v4819
      %4856 = vst.msk [vmem:[%s312 + $0x18] sm:$0xf] %vm314, %v4820
      %4857 = vst.msk [vmem:[%s312 + $0x1c] sm:$0xf] %vm314, %v4821
      %4858 = vst.msk [vmem:[%s312 + $0x20] sm:$0xf] %vm314, %v4822
      %4859 = vst.msk [vmem:[%s312 + $0x24] sm:$0xf] %vm314, %v4823
      %4860 = vst.msk [vmem:[%s312 + $0x28] sm:$0xf] %vm314, %v4824
      %4861 = vst.msk [vmem:[%s312 + $0x2c] sm:$0xf] %vm314, %v4825
      %4862 = vst.msk [vmem:[%s312 + $0x30] sm:$0xf] %vm314, %v4826
      %4863 = vst.msk [vmem:[%s312 + $0x34] sm:$0xf] %vm314, %v4827
      %4864 = vst.msk [vmem:[%s312 + $0x38] sm:$0xf] %vm314, %v4828
      %4865 = vst.msk [vmem:[%s312 + $0x3c] sm:$0xf] %vm314, %v4829
      %4866 = vst.msk [vmem:[%s312 + $0x40] sm:$0xf] %vm314, %v4830
      %4867 = vst.msk [vmem:[%s312 + $0x44] sm:$0xf] %vm314, %v4831
      %4868 = vst.msk [vmem:[%s312 + $0x48] sm:$0xf] %vm314, %v4832
      %4869 = vst.msk [vmem:[%s312 + $0x4c] sm:$0xf] %vm314, %v4833
      %4870 = vst.msk [vmem:[%s312 + $0x50] sm:$0xf] %vm314, %v4834
      %4871 = vst.msk [vmem:[%s312 + $0x54] sm:$0xf] %vm314, %v4835
      %4872 = vst.msk [vmem:[%s312 + $0x58] sm:$0xf] %vm314, %v4836
      %4873 = vst.msk [vmem:[%s312 + $0x5c] sm:$0xf] %vm314, %v4837
      %4874 = vst.msk [vmem:[%s312 + $0x60] sm:$0xf] %vm314, %v4838
      %4875 = vst.msk [vmem:[%s312 + $0x64] sm:$0xf] %vm314, %v4839
      %4876 = vst.msk [vmem:[%s312 + $0x68] sm:$0xf] %vm314, %v4840
      %4877 = vst.msk [vmem:[%s312 + $0x6c] sm:$0xf] %vm314, %v4841
      %4878 = vst.msk [vmem:[%s312 + $0x70] sm:$0xf] %vm314, %v4842
      %4879 = vst.msk [vmem:[%s312 + $0x74] sm:$0xf] %vm314, %v4843
      %4880 = vst.msk [vmem:[%s312 + $0x78] sm:$0xf] %vm314, %v4844
      %4881 = vst.msk [vmem:[%s312 + $0x7c] sm:$0xf] %vm314, %v4845
      %4882 = vst.msk [vmem:[%s312 + $0x80] sm:$0xf] %vm314, %v4846
      %4883 = vst.msk [vmem:[%s312 + $0x84] sm:$0xf] %vm314, %v4847
      %4884 = vst.msk [vmem:[%s312 + $0x88] sm:$0xf] %vm314, %v4848
      %4885 = vst.msk [vmem:[%s312 + $0x8c] sm:$0xf] %vm314, %v4849
      %p4886 = scmp.lt.s32.totalorder %s18, 1
      %s4887 = scalar_select %p4886, %s18, 1
      %s4888 = smul.addr %s4887, 36
      %s4889 = smul.addr %s4888, 4
      %s4890 = scalar_lea.vmem %s7, %s4889
      // Predicated region
      $region49: #{gsynthesis_forward.11} parent=47 // pred_check
        %p4891 = pneg %p198
      $region50: #{gsynthesis_forward.11} parent=47 // pred_check_branch
        %4893 = sbr.rel (%p4891) target = $region52
      $region51: #{gsynthesis_forward.11} parent=47 // pred_region
        _
      $region52: #{gsynthesis_forward.11} parent=47 // pred_fallthru
        _
    $region48: #{gsynthesis_forward.11} parent=5 // pred_fallthru
      _
    %p4894 = scmp.le.s32.totalorder 2, %s13
    // Predicated region
    $region53: #{gsynthesis_forward.11} parent=5 // pred_check
      %p4895 = pneg %p4894
    $region54: #{gsynthesis_forward.11} parent=5 // pred_check_branch
      %4897 = sbr.rel (%p4895) target = $region56
    $region55: #{gsynthesis_forward.11} parent=5 // pred_region
      %s4898 = ssub.s32 %s13, 2
      // Predicated region
      $region57: #{gsynthesis_forward.11} parent=55 // pred_check
        %p4899 = pneg %p204
      $region58: #{gsynthesis_forward.11} parent=55 // pred_check_branch
        %4901 = sbr.rel (%p4899) target = $region60
      $region59: #{gsynthesis_forward.11} parent=55 // pred_region
        %p4902 = scmp.lt.s32.totalorder %s19, 1
        %s4903 = scalar_select %p4902, %s19, 1
        %s4904 = smul.addr %s4903, 36
        %s4905 = smul.addr %s4904, 4
        %s4906 = scalar_lea.vmem %s7, %s4905
      $region60: #{gsynthesis_forward.11} parent=55 // pred_fallthru
        _
    $region56: #{gsynthesis_forward.11} parent=5 // pred_fallthru
      _
  $region6: #{gsynthesis_forward.11} parent=0 // loop_footer
    %s17 = sadd.s32 1, %s13
  $region7: #{gsynthesis_forward.11} parent=0 // loop_footer_branch
    %12 = sbr.rel target = $region3
  $region8: #{gsynthesis_forward.11} parent=0 // loop_exit
    _

</llo_original>
